<compile_context>
chip_gen: v6e
topology: v6e:2x2x1
jax: 0.10.0
libtpu: 0.0.40
codegen_flags: <defaults>
</compile_context>

<pallas_src>
import functools

import jax
import jax.numpy as jnp
from jax import lax
from jax.experimental import pallas as pl
from jax.experimental.pallas import tpu as pltpu


# ----------------------------------------------------------------------------- kernel

def _num_hseq_buffers(nb_layer):
    # 0 buffers for a single layer, 1 for two layers, ping/pong for 3+.
    return 0 if nb_layer == 1 else (1 if nb_layer == 2 else 2)


def _make_fused_kernel(nb_layer, T, H, Bt):
    """Fused multi-layer LSTM + FC kernel for a fixed (static) layer count."""
    n_hseq = _num_hseq_buffers(nb_layer)

    def kernel(*refs):
        # inputs : x, (w_ih, w_hh, b) * nb_layer, fc_w, fc_b
        # outputs: out
        # scratch: xw, hseq[0..n_hseq), h, c
        x_ref = refs[0]
        idx = 1
        layer_refs = []
        for _ in range(nb_layer):
            layer_refs.append(refs[idx:idx + 3])
            idx += 3
        fc_w_ref, fc_b_ref = refs[idx], refs[idx + 1]
        out_ref = refs[idx + 2]
        scratch = refs[idx + 3:]
        xw_sc = scratch[0]                      # (T*Bt, 4H) f32
        hseq = scratch[1:1 + n_hseq]            # (T*Bt, H)  bf16 each
        h_sc = scratch[1 + n_hseq]              # (Bt, H)    f32
        c_sc = scratch[2 + n_hseq]              # (Bt, H)    f32

        def hseq_buf(layer):
            return hseq[layer % 2] if n_hseq == 2 else hseq[0]

        for layer in range(nb_layer):
            w_ih_ref, w_hh_ref, b_ref = layer_refs[layer]
            last_layer = layer == nb_layer - 1
            out_buf = None if last_layer else hseq_buf(layer)

            # ---- hoisted input projection: one big MXU matmul (+ bias, once)
            if layer == 0:
                d_in = x_ref.shape[-1]
                x_in = x_ref[...].reshape(T * Bt, d_in)      # merge leading dims (free)
            else:
                x_in = hseq_buf(layer - 1)[...]              # (T*Bt, H) bf16
            xw_sc[...] = (
                jnp.dot(x_in, w_ih_ref[...], preferred_element_type=jnp.float32)
                + b_ref[...]                                 # (T*Bt, 4H) f32
            )

            # ---- recurrence: only h_prev @ W_hh on the serial critical path
            h_sc[...] = jnp.zeros_like(h_sc)                 # h0 = 0
            c_sc[...] = jnp.zeros_like(c_sc)                 # c0 = 0

            # TODO(synk): stage W_hh in the MXU weight registers across the
            # unrolled time loop (pltpu.matmul_push_rhs / matmul_acc_lhs /
            # matmul_pop) once the 4H-wide RHS tiling over the MXU columns is
            # validated against a bundle dump; jnp.dot re-pushes the RHS/step.
            @pl.loop(0, T, unroll=True)
            def _(t):
                row = pl.multiple_of(t * Bt, Bt)             # Bt-aligned row offset
                h_prev = h_sc[...]                           # (Bt, H) f32
                # TODO(synk): recurrent matmul in bf16 (PyTorch keeps the
                # recurrence f32); fine at T=8 / 2e-2 tol, revisit for long T.
                gates = xw_sc[pl.ds(row, Bt), :] + jnp.dot(
                    h_prev.astype(jnp.bfloat16), w_hh_ref[...],
                    preferred_element_type=jnp.float32)      # (Bt, 4H) f32
                # PyTorch gate order: i, f, g, o (lane-aligned: H % 128 == 0)
                i = jax.nn.sigmoid(gates[:, 0 * H:1 * H])
                f = jax.nn.sigmoid(gates[:, 1 * H:2 * H])
                g = jnp.tanh(gates[:, 2 * H:3 * H])
                o = jax.nn.sigmoid(gates[:, 3 * H:4 * H])
                c_new = f * c_sc[...] + i * g
                h_new = o * jnp.tanh(c_new)
                c_sc[...] = c_new
                h_sc[...] = h_new
                if not last_layer:               # last layer: only h_T is needed
                    # Bt % 16 == 0 → full (16,128) bf16 tile store, unmasked.
                    out_buf[pl.ds(row, Bt), :] = h_new.astype(jnp.bfloat16)

        # ---- final FC on the last timestep of the last layer (still in VMEM)
        out_ref[...] = (
            jnp.dot(h_sc[...].astype(jnp.bfloat16), fc_w_ref[...],
                    preferred_element_type=jnp.float32)
            + fc_b_ref[...]
        )

    return kernel


# ----------------------------------------------------------------------------- wrapper

def lstm_word_net_fused(x_tm, lstm_layers, fc_w_t, fc_b, *, batch_tile=16):
    T, B, D = x_tm.shape
    nb_layer = len(lstm_layers)
    H = lstm_layers[0]["w_hh_t"].shape[0]
    C = fc_w_t.shape[1]
    Bt = min(batch_tile, B)
    assert B % Bt == 0, (B, Bt)
    # bf16 activations pack into (16,128) tiles: keep the batch tile 16-row
    # aligned so the x block and per-step hseq stores are full, unmasked tiles.
    assert Bt % 16 == 0, Bt
    n_hseq = _num_hseq_buffers(nb_layer)

    def full_spec(shape):
        return pl.BlockSpec(shape, lambda b, _n=len(shape): (0,) * _n)

    # TODO(synk): single-buffer the constant weight operands
    # (pipeline_mode=pl.Buffered(1)); negligible at these shapes but frees VMEM
    # before scaling H or the FC vocab.
    in_specs = [pl.BlockSpec((T, Bt, D), lambda b: (0, b, 0))]
    inputs = [x_tm]
    for layer in lstm_layers:
        in_specs += [full_spec(layer["w_ih_t"].shape),
                     full_spec(layer["w_hh_t"].shape),
                     full_spec(layer["b"].shape)]
        inputs += [layer["w_ih_t"], layer["w_hh_t"], layer["b"]]
    in_specs += [full_spec(fc_w_t.shape), full_spec(fc_b.shape)]
    inputs += [fc_w_t, fc_b]

    scratch_shapes = [pltpu.VMEM((T * Bt, 4 * H), jnp.float32)]       # x @ W_ih + b
    scratch_shapes += [pltpu.VMEM((T * Bt, H), jnp.bfloat16)] * n_hseq  # inter-layer h
    scratch_shapes += [pltpu.VMEM((Bt, H), jnp.float32),              # recurrent h
                       pltpu.VMEM((Bt, H), jnp.float32)]              # recurrent c

    # TODO(synk): for B >= 32 on v7x, keep >= 2 grid tiles (each 16-row aligned)
    # so the two TensorCores each run half the serial recurrence; at B=16 one
    # 16-row tile on one TC is the better trade (no misaligned 8-row tiles).
    return pl.pallas_call(
        _make_fused_kernel(nb_layer, T, H, Bt),
        out_shape=jax.ShapeDtypeStruct((B, C), jnp.float32),
        grid=(B // Bt,),
        in_specs=in_specs,
        out_specs=pl.BlockSpec((Bt, C), lambda b: (b, 0)),
        scratch_shapes=scratch_shapes,
        compiler_params=pltpu.CompilerParams(
            dimension_semantics=("parallel",),
            vmem_limit_bytes=64 * 1024 * 1024),   # explicit; within v7x's 64 MiB
    )(*inputs)


@functools.partial(jax.jit, static_argnames=("seq_length",))
def lstm_word_net_forward(params, tokens, seq_length):
    emb = params["emb"]                                      # (V, D)
    D = emb.shape[1]
    B = tokens.shape[0]
    # Embedding lookup (glue, plain JAX gather) producing time-major layout
    # directly: transpose the tiny (B, T) token matrix, not the activations.
    x_tm = jnp.take(emb, tokens.T.reshape(-1), axis=0).reshape(seq_length, B, D)
    x_tm = x_tm.astype(jnp.bfloat16)
    lstm_bf16 = [
        {"w_ih_t": l["w_ih_t"].astype(jnp.bfloat16),
         "w_hh_t": l["w_hh_t"].astype(jnp.bfloat16),
         "b": l["b"]}                                        # bias stays f32
        for l in params["lstm"]
    ]
    return lstm_word_net_fused(
        x_tm, lstm_bf16,
        params["fc_w_t"].astype(jnp.bfloat16), params["fc_b"])


# ----------------------------------------------------------------------------- pure-JAX reference

def lstm_word_net_reference(params, tokens, seq_length):
    emb = params["emb"]
    D = emb.shape[1]
    x = jnp.take(emb, tokens.reshape(-1), axis=0).reshape(-1, seq_length, D)
    x = x.astype(jnp.float32)
    B = x.shape[0]
    dot = functools.partial(jnp.dot, precision=lax.Precision.HIGHEST)
    for layer in params["lstm"]:
        H = layer["w_hh_t"].shape[0]
        h = jnp.zeros((B, H), jnp.float32)
        c = jnp.zeros((B, H), jnp.float32)
        outs = []
        for t in range(seq_length):
            gates = dot(x[:, t, :], layer["w_ih_t"]) + dot(h, layer["w_hh_t"]) + layer["b"]
            i = jax.nn.sigmoid(gates[:, 0 * H:1 * H])
            f = jax.nn.sigmoid(gates[:, 1 * H:2 * H])
            g = jnp.tanh(gates[:, 2 * H:3 * H])
            o = jax.nn.sigmoid(gates[:, 3 * H:4 * H])
            c = f * c + i * g
            h = o * jnp.tanh(c)
            outs.append(h)
        x = jnp.stack(outs, axis=1)
    return dot(x[:, -1, :], params["fc_w_t"]) + params["fc_b"]


# ----------------------------------------------------------------------------- param init

def init_params(key, vocab, emb_dim, hidden, nb_layer):
    keys = jax.random.split(key, 2 + 4 * nb_layer + 2)
    k_it = iter(keys)
    # "GloVe" embedding table (frozen, synthetic)
    emb = jax.random.normal(next(k_it), (vocab, emb_dim), jnp.float32) * 0.1
    scale = 1.0 / jnp.sqrt(hidden)
    lstm_layers = []
    for layer in range(nb_layer):
        d_in = emb_dim if layer == 0 else hidden
        w_ih = jax.random.uniform(next(k_it), (4 * hidden, d_in), jnp.float32, -scale, scale)
        w_hh = jax.random.uniform(next(k_it), (4 * hidden, hidden), jnp.float32, -scale, scale)
        b_ih = jax.random.uniform(next(k_it), (4 * hidden,), jnp.float32, -scale, scale)
        b_hh = jax.random.uniform(next(k_it), (4 * hidden,), jnp.float32, -scale, scale)
        lstm_layers.append({
            "w_ih_t": w_ih.T,                      # (D, 4H)
            "w_hh_t": w_hh.T,                      # (H, 4H)
            "b": (b_ih + b_hh)[None, :],           # (1, 4H) combined bias
        })
    fc_w = jax.random.uniform(next(k_it), (vocab, hidden), jnp.float32, -scale, scale)
    fc_b = jax.random.uniform(next(k_it), (vocab,), jnp.float32, -scale, scale)
    return {
        "emb": emb,
        "lstm": lstm_layers,
        "fc_w_t": fc_w.T,                          # (H, C)
        "fc_b": fc_b[None, :],                     # (1, C)
    }


# ----------------------------------------------------------------------------- main

if __name__ == "__main__":
    # Small, module-consistent, lane-dense shapes:
    batch = 16            # one 16-row tile -> grid=(1,), bf16 (16,128)-aligned
    seq_length = 8
    emb_dim = 128         # "lstm_input" (GloVe vector dim, shrunk to a lane multiple)
    hidden_size = 128
    nb_layer = 2
    vocab = 256           # nb_classes == len(glove.itos), shrunk

    key = jax.random.PRNGKey(0)
    k_params, k_tokens = jax.random.split(key)
    params = init_params(k_params, vocab, emb_dim, hidden_size, nb_layer)
    tokens = jax.random.randint(k_tokens, (batch, seq_length), 0, vocab, jnp.int32)

    out = lstm_word_net_forward(params, tokens, seq_length)
    out = jax.block_until_ready(out)
    assert out.shape == (batch, vocab), out.shape

    ref = lstm_word_net_reference(params, tokens, seq_length)
    assert jnp.allclose(out, ref, rtol=2e-2, atol=2e-2), (
        float(jnp.max(jnp.abs(out - ref))))

    print("KERNEL_OK")
</pallas_src>

<mosaic_0001>
module attributes {stable_mosaic.version = 11 : i64} {
  func.func @kernel(%arg0: i32, %arg1: memref<8x16x128xbf16, #tpu.memory_space<vmem>>, %arg2: memref<128x512xbf16, #tpu.memory_space<vmem>>, %arg3: memref<128x512xbf16, #tpu.memory_space<vmem>>, %arg4: memref<1x512xf32, #tpu.memory_space<vmem>>, %arg5: memref<128x512xbf16, #tpu.memory_space<vmem>>, %arg6: memref<128x512xbf16, #tpu.memory_space<vmem>>, %arg7: memref<1x512xf32, #tpu.memory_space<vmem>>, %arg8: memref<128x256xbf16, #tpu.memory_space<vmem>>, %arg9: memref<1x256xf32, #tpu.memory_space<vmem>>, %arg10: memref<16x256xf32, #tpu.memory_space<vmem>>, %arg11: memref<128x512xf32, #tpu.memory_space<vmem>>, %arg12: memref<128x128xbf16, #tpu.memory_space<vmem>>, %arg13: memref<16x128xf32, #tpu.memory_space<vmem>>, %arg14: memref<16x128xf32, #tpu.memory_space<vmem>>) attributes {dimension_semantics = [#tpu.dimension_semantics<parallel>], iteration_bounds = array<i64: 1>, scalar_prefetch = 0 : i64, scratch_operands = 4 : i64, tpu.core_type = #tpu.core_type<tc>, window_params = [{transform_indices = @transform_0, window_bounds = array<i64: 8, 16, 128>}, {pipeline_mode = #tpu.pipeline_mode<synchronous>, transform_indices = @transform_1, window_bounds = array<i64: 128, 512>}, {pipeline_mode = #tpu.pipeline_mode<synchronous>, transform_indices = @transform_2, window_bounds = array<i64: 128, 512>}, {pipeline_mode = #tpu.pipeline_mode<synchronous>, transform_indices = @transform_3, window_bounds = array<i64: 1, 512>}, {pipeline_mode = #tpu.pipeline_mode<synchronous>, transform_indices = @transform_4, window_bounds = array<i64: 128, 512>}, {pipeline_mode = #tpu.pipeline_mode<synchronous>, transform_indices = @transform_5, window_bounds = array<i64: 128, 512>}, {pipeline_mode = #tpu.pipeline_mode<synchronous>, transform_indices = @transform_6, window_bounds = array<i64: 1, 512>}, {pipeline_mode = #tpu.pipeline_mode<synchronous>, transform_indices = @transform_7, window_bounds = array<i64: 128, 256>}, {pipeline_mode = #tpu.pipeline_mode<synchronous>, transform_indices = @transform_8, window_bounds = array<i64: 1, 256>}, {transform_indices = @transform_9, window_bounds = array<i64: 16, 256>}]} {
    %c0 = arith.constant 0 : index
    %c0_0 = arith.constant 0 : index
    %c0_1 = arith.constant 0 : index
    %0 = vector.load %arg1[%c0, %c0_0, %c0_1] : memref<8x16x128xbf16, #tpu.memory_space<vmem>>, vector<8x16x128xbf16>
    %1 = vector.shape_cast %0 : vector<8x16x128xbf16> to vector<128x128xbf16>
    %c0_2 = arith.constant 0 : index
    %c0_3 = arith.constant 0 : index
    %2 = vector.load %arg2[%c0_2, %c0_3] : memref<128x512xbf16, #tpu.memory_space<vmem>>, vector<128x512xbf16>
    %cst = arith.constant dense<0.000000e+00> : vector<128x512xf32>
    %3 = tpu.matmul %1, %2, %cst {dimension_numbers = #tpu.dot_dimension_numbers<[1], [0], [0], [1], [0, 0, 1, 1], [], []>} : vector<128x128xbf16>, vector<128x512xbf16>, vector<128x512xf32> -> vector<128x512xf32>
    %c0_4 = arith.constant 0 : index
    %c0_5 = arith.constant 0 : index
    %4 = vector.load %arg4[%c0_4, %c0_5] : memref<1x512xf32, #tpu.memory_space<vmem>>, vector<1x512xf32>
    %5 = vector.broadcast %4 : vector<1x512xf32> to vector<128x512xf32>
    %6 = arith.addf %3, %5 : vector<128x512xf32>
    %c0_6 = arith.constant 0 : index
    %c0_7 = arith.constant 0 : index
    %7 = vector.load %arg11[%c0_6, %c0_7] : memref<128x512xf32, #tpu.memory_space<vmem>>, vector<128x512xf32>
    tpu.vector_store %arg11[%c0_6, %c0_7], %6 {strides = array<i32>} : memref<128x512xf32, #tpu.memory_space<vmem>>, vector<128x512xf32>,
    %cst_8 = arith.constant 0.000000e+00 : f32
    %8 = vector.broadcast %cst_8 : f32 to vector<16x128xf32>
    %c0_9 = arith.constant 0 : index
    %c0_10 = arith.constant 0 : index
    %9 = vector.load %arg13[%c0_9, %c0_10] : memref<16x128xf32, #tpu.memory_space<vmem>>, vector<16x128xf32>
    tpu.vector_store %arg13[%c0_9, %c0_10], %8 {strides = array<i32>} : memref<16x128xf32, #tpu.memory_space<vmem>>, vector<16x128xf32>,
    %cst_11 = arith.constant 0.000000e+00 : f32
    %10 = vector.broadcast %cst_11 : f32 to vector<16x128xf32>
    %c0_12 = arith.constant 0 : index
    %c0_13 = arith.constant 0 : index
    %11 = vector.load %arg14[%c0_12, %c0_13] : memref<16x128xf32, #tpu.memory_space<vmem>>, vector<16x128xf32>
    tpu.vector_store %arg14[%c0_12, %c0_13], %10 {strides = array<i32>} : memref<16x128xf32, #tpu.memory_space<vmem>>, vector<16x128xf32>,
    %c0_i32 = arith.constant 0 : i32
    %c1_i32 = arith.constant 1 : i32
    %12 = arith.muli %c0_i32, %c1_i32 : i32
    %c0_i32_14 = arith.constant 0 : i32
    %13 = arith.addi %c0_i32_14, %12 : i32
    %c16_i32 = arith.constant 16 : i32
    %14 = arith.muli %13, %c16_i32 : i32
    %15 = tpu.assume_multiple %14, 16 : i32
    %c0_15 = arith.constant 0 : index
    %c0_16 = arith.constant 0 : index
    %16 = vector.load %arg13[%c0_15, %c0_16] : memref<16x128xf32, #tpu.memory_space<vmem>>, vector<16x128xf32>
    %17 = arith.index_cast %15 : i32 to index
    %c0_17 = arith.constant 0 : index
    %18 = vector.load %arg11[%17, %c0_17] : memref<128x512xf32, #tpu.memory_space<vmem>>, vector<16x512xf32>
    %19 = arith.truncf %16 : vector<16x128xf32> to vector<16x128xbf16>
    %c0_18 = arith.constant 0 : index
    %c0_19 = arith.constant 0 : index
    %20 = vector.load %arg3[%c0_18, %c0_19] : memref<128x512xbf16, #tpu.memory_space<vmem>>, vector<128x512xbf16>
    %cst_20 = arith.constant dense<0.000000e+00> : vector<16x512xf32>
    %21 = tpu.matmul %19, %20, %cst_20 {dimension_numbers = #tpu.dot_dimension_numbers<[1], [0], [0], [1], [0, 0, 1, 1], [], []>} : vector<16x128xbf16>, vector<128x512xbf16>, vector<16x512xf32> -> vector<16x512xf32>
    %22 = arith.addf %18, %21 : vector<16x512xf32>
    %23 = vector.extract_strided_slice %22 {offsets = [0, 0], sizes = [16, 128], strides = [1, 1]} : vector<16x512xf32> to vector<16x128xf32>
    %24 = arith.negf %23 : vector<16x128xf32>
    %25 = math.exp %24 : vector<16x128xf32>
    %cst_21 = arith.constant 1.000000e+00 : f32
    %26 = vector.broadcast %cst_21 : f32 to vector<16x128xf32>
    %27 = arith.addf %26, %25 : vector<16x128xf32>
    %28 = arith.divf %26, %27 : vector<16x128xf32>
    %29 = vector.extract_strided_slice %22 {offsets = [0, 128], sizes = [16, 128], strides = [1, 1]} : vector<16x512xf32> to vector<16x128xf32>
    %30 = arith.negf %29 : vector<16x128xf32>
    %31 = math.exp %30 : vector<16x128xf32>
    %cst_22 = arith.constant 1.000000e+00 : f32
    %32 = vector.broadcast %cst_22 : f32 to vector<16x128xf32>
    %33 = arith.addf %32, %31 : vector<16x128xf32>
    %34 = arith.divf %32, %33 : vector<16x128xf32>
    %35 = vector.extract_strided_slice %22 {offsets = [0, 256], sizes = [16, 128], strides = [1, 1]} : vector<16x512xf32> to vector<16x128xf32>
    %36 = math.tanh %35 : vector<16x128xf32>
    %37 = vector.extract_strided_slice %22 {offsets = [0, 384], sizes = [16, 128], strides = [1, 1]} : vector<16x512xf32> to vector<16x128xf32>
    %38 = arith.negf %37 : vector<16x128xf32>
    %39 = math.exp %38 : vector<16x128xf32>
    %cst_23 = arith.constant 1.000000e+00 : f32
    %40 = vector.broadcast %cst_23 : f32 to vector<16x128xf32>
    %41 = arith.addf %40, %39 : vector<16x128xf32>
    %42 = arith.divf %40, %41 : vector<16x128xf32>
    %c0_24 = arith.constant 0 : index
    %c0_25 = arith.constant 0 : index
    %43 = vector.load %arg14[%c0_24, %c0_25] : memref<16x128xf32, #tpu.memory_space<vmem>>, vector<16x128xf32>
    %44 = arith.mulf %34, %43 : vector<16x128xf32>
    %45 = arith.mulf %28, %36 : vector<16x128xf32>
    %46 = arith.addf %44, %45 : vector<16x128xf32>
    %47 = math.tanh %46 : vector<16x128xf32>
    %48 = arith.mulf %42, %47 : vector<16x128xf32>
    %c0_26 = arith.constant 0 : index
    %c0_27 = arith.constant 0 : index
    %49 = vector.load %arg14[%c0_26, %c0_27] : memref<16x128xf32, #tpu.memory_space<vmem>>, vector<16x128xf32>
    tpu.vector_store %arg14[%c0_26, %c0_27], %46 {strides = array<i32>} : memref<16x128xf32, #tpu.memory_space<vmem>>, vector<16x128xf32>,
    %c0_28 = arith.constant 0 : index
    %c0_29 = arith.constant 0 : index
    %50 = vector.load %arg13[%c0_28, %c0_29] : memref<16x128xf32, #tpu.memory_space<vmem>>, vector<16x128xf32>
    tpu.vector_store %arg13[%c0_28, %c0_29], %48 {strides = array<i32>} : memref<16x128xf32, #tpu.memory_space<vmem>>, vector<16x128xf32>,
    %51 = arith.truncf %48 : vector<16x128xf32> to vector<16x128xbf16>
    %52 = arith.index_cast %15 : i32 to index
    %c0_30 = arith.constant 0 : index
    %53 = vector.load %arg12[%52, %c0_30] : memref<128x128xbf16, #tpu.memory_space<vmem>>, vector<16x128xbf16>
    tpu.vector_store %arg12[%52, %c0_30], %51 {strides = array<i32>} : memref<128x128xbf16, #tpu.memory_space<vmem>>, vector<16x128xbf16>,
    %c1_i32_31 = arith.constant 1 : i32
    %c1_i32_32 = arith.constant 1 : i32
    %54 = arith.muli %c1_i32_31, %c1_i32_32 : i32
    %c0_i32_33 = arith.constant 0 : i32
    %55 = arith.addi %c0_i32_33, %54 : i32
    %c16_i32_34 = arith.constant 16 : i32
    %56 = arith.muli %55, %c16_i32_34 : i32
    %57 = tpu.assume_multiple %56, 16 : i32
    %c0_35 = arith.constant 0 : index
    %c0_36 = arith.constant 0 : index
    %58 = vector.load %arg13[%c0_35, %c0_36] : memref<16x128xf32, #tpu.memory_space<vmem>>, vector<16x128xf32>
    %59 = arith.index_cast %57 : i32 to index
    %c0_37 = arith.constant 0 : index
    %60 = vector.load %arg11[%59, %c0_37] : memref<128x512xf32, #tpu.memory_space<vmem>>, vector<16x512xf32>
    %61 = arith.truncf %58 : vector<16x128xf32> to vector<16x128xbf16>
    %c0_38 = arith.constant 0 : index
    %c0_39 = arith.constant 0 : index
    %62 = vector.load %arg3[%c0_38, %c0_39] : memref<128x512xbf16, #tpu.memory_space<vmem>>, vector<128x512xbf16>
    %cst_40 = arith.constant dense<0.000000e+00> : vector<16x512xf32>
    %63 = tpu.matmul %61, %62, %cst_40 {dimension_numbers = #tpu.dot_dimension_numbers<[1], [0], [0], [1], [0, 0, 1, 1], [], []>} : vector<16x128xbf16>, vector<128x512xbf16>, vector<16x512xf32> -> vector<16x512xf32>
    %64 = arith.addf %60, %63 : vector<16x512xf32>
    %65 = vector.extract_strided_slice %64 {offsets = [0, 0], sizes = [16, 128], strides = [1, 1]} : vector<16x512xf32> to vector<16x128xf32>
    %66 = arith.negf %65 : vector<16x128xf32>
    %67 = math.exp %66 : vector<16x128xf32>
    %cst_41 = arith.constant 1.000000e+00 : f32
    %68 = vector.broadcast %cst_41 : f32 to vector<16x128xf32>
    %69 = arith.addf %68, %67 : vector<16x128xf32>
    %70 = arith.divf %68, %69 : vector<16x128xf32>
    %71 = vector.extract_strided_slice %64 {offsets = [0, 128], sizes = [16, 128], strides = [1, 1]} : vector<16x512xf32> to vector<16x128xf32>
    %72 = arith.negf %71 : vector<16x128xf32>
    %73 = math.exp %72 : vector<16x128xf32>
    %cst_42 = arith.constant 1.000000e+00 : f32
    %74 = vector.broadcast %cst_42 : f32 to vector<16x128xf32>
    %75 = arith.addf %74, %73 : vector<16x128xf32>
    %76 = arith.divf %74, %75 : vector<16x128xf32>
    %77 = vector.extract_strided_slice %64 {offsets = [0, 256], sizes = [16, 128], strides = [1, 1]} : vector<16x512xf32> to vector<16x128xf32>
    %78 = math.tanh %77 : vector<16x128xf32>
    %79 = vector.extract_strided_slice %64 {offsets = [0, 384], sizes = [16, 128], strides = [1, 1]} : vector<16x512xf32> to vector<16x128xf32>
    %80 = arith.negf %79 : vector<16x128xf32>
    %81 = math.exp %80 : vector<16x128xf32>
    %cst_43 = arith.constant 1.000000e+00 : f32
    %82 = vector.broadcast %cst_43 : f32 to vector<16x128xf32>
    %83 = arith.addf %82, %81 : vector<16x128xf32>
    %84 = arith.divf %82, %83 : vector<16x128xf32>
    %c0_44 = arith.constant 0 : index
    %c0_45 = arith.constant 0 : index
    %85 = vector.load %arg14[%c0_44, %c0_45] : memref<16x128xf32, #tpu.memory_space<vmem>>, vector<16x128xf32>
    %86 = arith.mulf %76, %85 : vector<16x128xf32>
    %87 = arith.mulf %70, %78 : vector<16x128xf32>
    %88 = arith.addf %86, %87 : vector<16x128xf32>
    %89 = math.tanh %88 : vector<16x128xf32>
    %90 = arith.mulf %84, %89 : vector<16x128xf32>
    %c0_46 = arith.constant 0 : index
    %c0_47 = arith.constant 0 : index
    %91 = vector.load %arg14[%c0_46, %c0_47] : memref<16x128xf32, #tpu.memory_space<vmem>>, vector<16x128xf32>
    tpu.vector_store %arg14[%c0_46, %c0_47], %88 {strides = array<i32>} : memref<16x128xf32, #tpu.memory_space<vmem>>, vector<16x128xf32>,
    %c0_48 = arith.constant 0 : index
    %c0_49 = arith.constant 0 : index
    %92 = vector.load %arg13[%c0_48, %c0_49] : memref<16x128xf32, #tpu.memory_space<vmem>>, vector<16x128xf32>
    tpu.vector_store %arg13[%c0_48, %c0_49], %90 {strides = array<i32>} : memref<16x128xf32, #tpu.memory_space<vmem>>, vector<16x128xf32>,
    %93 = arith.truncf %90 : vector<16x128xf32> to vector<16x128xbf16>
    %94 = arith.index_cast %57 : i32 to index
    %c0_50 = arith.constant 0 : index
    %95 = vector.load %arg12[%94, %c0_50] : memref<128x128xbf16, #tpu.memory_space<vmem>>, vector<16x128xbf16>
    tpu.vector_store %arg12[%94, %c0_50], %93 {strides = array<i32>} : memref<128x128xbf16, #tpu.memory_space<vmem>>, vector<16x128xbf16>,
    %c2_i32 = arith.constant 2 : i32
    %c1_i32_51 = arith.constant 1 : i32
    %96 = arith.muli %c2_i32, %c1_i32_51 : i32
    %c0_i32_52 = arith.constant 0 : i32
    %97 = arith.addi %c0_i32_52, %96 : i32
    %c16_i32_53 = arith.constant 16 : i32
    %98 = arith.muli %97, %c16_i32_53 : i32
    %99 = tpu.assume_multiple %98, 16 : i32
    %c0_54 = arith.constant 0 : index
    %c0_55 = arith.constant 0 : index
    %100 = vector.load %arg13[%c0_54, %c0_55] : memref<16x128xf32, #tpu.memory_space<vmem>>, vector<16x128xf32>
    %101 = arith.index_cast %99 : i32 to index
    %c0_56 = arith.constant 0 : index
    %102 = vector.load %arg11[%101, %c0_56] : memref<128x512xf32, #tpu.memory_space<vmem>>, vector<16x512xf32>
    %103 = arith.truncf %100 : vector<16x128xf32> to vector<16x128xbf16>
    %c0_57 = arith.constant 0 : index
    %c0_58 = arith.constant 0 : index
    %104 = vector.load %arg3[%c0_57, %c0_58] : memref<128x512xbf16, #tpu.memory_space<vmem>>, vector<128x512xbf16>
    %cst_59 = arith.constant dense<0.000000e+00> : vector<16x512xf32>
    %105 = tpu.matmul %103, %104, %cst_59 {dimension_numbers = #tpu.dot_dimension_numbers<[1], [0], [0], [1], [0, 0, 1, 1], [], []>} : vector<16x128xbf16>, vector<128x512xbf16>, vector<16x512xf32> -> vector<16x512xf32>
    %106 = arith.addf %102, %105 : vector<16x512xf32>
    %107 = vector.extract_strided_slice %106 {offsets = [0, 0], sizes = [16, 128], strides = [1, 1]} : vector<16x512xf32> to vector<16x128xf32>
    %108 = arith.negf %107 : vector<16x128xf32>
    %109 = math.exp %108 : vector<16x128xf32>
    %cst_60 = arith.constant 1.000000e+00 : f32
    %110 = vector.broadcast %cst_60 : f32 to vector<16x128xf32>
    %111 = arith.addf %110, %109 : vector<16x128xf32>
    %112 = arith.divf %110, %111 : vector<16x128xf32>
    %113 = vector.extract_strided_slice %106 {offsets = [0, 128], sizes = [16, 128], strides = [1, 1]} : vector<16x512xf32> to vector<16x128xf32>
    %114 = arith.negf %113 : vector<16x128xf32>
    %115 = math.exp %114 : vector<16x128xf32>
    %cst_61 = arith.constant 1.000000e+00 : f32
    %116 = vector.broadcast %cst_61 : f32 to vector<16x128xf32>
    %117 = arith.addf %116, %115 : vector<16x128xf32>
    %118 = arith.divf %116, %117 : vector<16x128xf32>
    %119 = vector.extract_strided_slice %106 {offsets = [0, 256], sizes = [16, 128], strides = [1, 1]} : vector<16x512xf32> to vector<16x128xf32>
    %120 = math.tanh %119 : vector<16x128xf32>
    %121 = vector.extract_strided_slice %106 {offsets = [0, 384], sizes = [16, 128], strides = [1, 1]} : vector<16x512xf32> to vector<16x128xf32>
    %122 = arith.negf %121 : vector<16x128xf32>
    %123 = math.exp %122 : vector<16x128xf32>
    %cst_62 = arith.constant 1.000000e+00 : f32
    %124 = vector.broadcast %cst_62 : f32 to vector<16x128xf32>
    %125 = arith.addf %124, %123 : vector<16x128xf32>
    %126 = arith.divf %124, %125 : vector<16x128xf32>
    %c0_63 = arith.constant 0 : index
    %c0_64 = arith.constant 0 : index
    %127 = vector.load %arg14[%c0_63, %c0_64] : memref<16x128xf32, #tpu.memory_space<vmem>>, vector<16x128xf32>
    %128 = arith.mulf %118, %127 : vector<16x128xf32>
    %129 = arith.mulf %112, %120 : vector<16x128xf32>
    %130 = arith.addf %128, %129 : vector<16x128xf32>
    %131 = math.tanh %130 : vector<16x128xf32>
    %132 = arith.mulf %126, %131 : vector<16x128xf32>
    %c0_65 = arith.constant 0 : index
    %c0_66 = arith.constant 0 : index
    %133 = vector.load %arg14[%c0_65, %c0_66] : memref<16x128xf32, #tpu.memory_space<vmem>>, vector<16x128xf32>
    tpu.vector_store %arg14[%c0_65, %c0_66], %130 {strides = array<i32>} : memref<16x128xf32, #tpu.memory_space<vmem>>, vector<16x128xf32>,
    %c0_67 = arith.constant 0 : index
    %c0_68 = arith.constant 0 : index
    %134 = vector.load %arg13[%c0_67, %c0_68] : memref<16x128xf32, #tpu.memory_space<vmem>>, vector<16x128xf32>
    tpu.vector_store %arg13[%c0_67, %c0_68], %132 {strides = array<i32>} : memref<16x128xf32, #tpu.memory_space<vmem>>, vector<16x128xf32>,
    %135 = arith.truncf %132 : vector<16x128xf32> to vector<16x128xbf16>
    %136 = arith.index_cast %99 : i32 to index
    %c0_69 = arith.constant 0 : index
    %137 = vector.load %arg12[%136, %c0_69] : memref<128x128xbf16, #tpu.memory_space<vmem>>, vector<16x128xbf16>
    tpu.vector_store %arg12[%136, %c0_69], %135 {strides = array<i32>} : memref<128x128xbf16, #tpu.memory_space<vmem>>, vector<16x128xbf16>,
    %c3_i32 = arith.constant 3 : i32
    %c1_i32_70 = arith.constant 1 : i32
    %138 = arith.muli %c3_i32, %c1_i32_70 : i32
    %c0_i32_71 = arith.constant 0 : i32
    %139 = arith.addi %c0_i32_71, %138 : i32
    %c16_i32_72 = arith.constant 16 : i32
    %140 = arith.muli %139, %c16_i32_72 : i32
    %141 = tpu.assume_multiple %140, 16 : i32
    %c0_73 = arith.constant 0 : index
    %c0_74 = arith.constant 0 : index
    %142 = vector.load %arg13[%c0_73, %c0_74] : memref<16x128xf32, #tpu.memory_space<vmem>>, vector<16x128xf32>
    %143 = arith.index_cast %141 : i32 to index
    %c0_75 = arith.constant 0 : index
    %144 = vector.load %arg11[%143, %c0_75] : memref<128x512xf32, #tpu.memory_space<vmem>>, vector<16x512xf32>
    %145 = arith.truncf %142 : vector<16x128xf32> to vector<16x128xbf16>
    %c0_76 = arith.constant 0 : index
    %c0_77 = arith.constant 0 : index
    %146 = vector.load %arg3[%c0_76, %c0_77] : memref<128x512xbf16, #tpu.memory_space<vmem>>, vector<128x512xbf16>
    %cst_78 = arith.constant dense<0.000000e+00> : vector<16x512xf32>
    %147 = tpu.matmul %145, %146, %cst_78 {dimension_numbers = #tpu.dot_dimension_numbers<[1], [0], [0], [1], [0, 0, 1, 1], [], []>} : vector<16x128xbf16>, vector<128x512xbf16>, vector<16x512xf32> -> vector<16x512xf32>
    %148 = arith.addf %144, %147 : vector<16x512xf32>
    %149 = vector.extract_strided_slice %148 {offsets = [0, 0], sizes = [16, 128], strides = [1, 1]} : vector<16x512xf32> to vector<16x128xf32>
    %150 = arith.negf %149 : vector<16x128xf32>
    %151 = math.exp %150 : vector<16x128xf32>
    %cst_79 = arith.constant 1.000000e+00 : f32
    %152 = vector.broadcast %cst_79 : f32 to vector<16x128xf32>
    %153 = arith.addf %152, %151 : vector<16x128xf32>
    %154 = arith.divf %152, %153 : vector<16x128xf32>
    %155 = vector.extract_strided_slice %148 {offsets = [0, 128], sizes = [16, 128], strides = [1, 1]} : vector<16x512xf32> to vector<16x128xf32>
    %156 = arith.negf %155 : vector<16x128xf32>
    %157 = math.exp %156 : vector<16x128xf32>
    %cst_80 = arith.constant 1.000000e+00 : f32
    %158 = vector.broadcast %cst_80 : f32 to vector<16x128xf32>
    %159 = arith.addf %158, %157 : vector<16x128xf32>
    %160 = arith.divf %158, %159 : vector<16x128xf32>
    %161 = vector.extract_strided_slice %148 {offsets = [0, 256], sizes = [16, 128], strides = [1, 1]} : vector<16x512xf32> to vector<16x128xf32>
    %162 = math.tanh %161 : vector<16x128xf32>
    %163 = vector.extract_strided_slice %148 {offsets = [0, 384], sizes = [16, 128], strides = [1, 1]} : vector<16x512xf32> to vector<16x128xf32>
    %164 = arith.negf %163 : vector<16x128xf32>
    %165 = math.exp %164 : vector<16x128xf32>
    %cst_81 = arith.constant 1.000000e+00 : f32
    %166 = vector.broadcast %cst_81 : f32 to vector<16x128xf32>
    %167 = arith.addf %166, %165 : vector<16x128xf32>
    %168 = arith.divf %166, %167 : vector<16x128xf32>
    %c0_82 = arith.constant 0 : index
    %c0_83 = arith.constant 0 : index
    %169 = vector.load %arg14[%c0_82, %c0_83] : memref<16x128xf32, #tpu.memory_space<vmem>>, vector<16x128xf32>
    %170 = arith.mulf %160, %169 : vector<16x128xf32>
    %171 = arith.mulf %154, %162 : vector<16x128xf32>
    %172 = arith.addf %170, %171 : vector<16x128xf32>
    %173 = math.tanh %172 : vector<16x128xf32>
    %174 = arith.mulf %168, %173 : vector<16x128xf32>
    %c0_84 = arith.constant 0 : index
    %c0_85 = arith.constant 0 : index
    %175 = vector.load %arg14[%c0_84, %c0_85] : memref<16x128xf32, #tpu.memory_space<vmem>>, vector<16x128xf32>
    tpu.vector_store %arg14[%c0_84, %c0_85], %172 {strides = array<i32>} : memref<16x128xf32, #tpu.memory_space<vmem>>, vector<16x128xf32>,
    %c0_86 = arith.constant 0 : index
    %c0_87 = arith.constant 0 : index
    %176 = vector.load %arg13[%c0_86, %c0_87] : memref<16x128xf32, #tpu.memory_space<vmem>>, vector<16x128xf32>
    tpu.vector_store %arg13[%c0_86, %c0_87], %174 {strides = array<i32>} : memref<16x128xf32, #tpu.memory_space<vmem>>, vector<16x128xf32>,
    %177 = arith.truncf %174 : vector<16x128xf32> to vector<16x128xbf16>
    %178 = arith.index_cast %141 : i32 to index
    %c0_88 = arith.constant 0 : index
    %179 = vector.load %arg12[%178, %c0_88] : memref<128x128xbf16, #tpu.memory_space<vmem>>, vector<16x128xbf16>
    tpu.vector_store %arg12[%178, %c0_88], %177 {strides = array<i32>} : memref<128x128xbf16, #tpu.memory_space<vmem>>, vector<16x128xbf16>,
    %c4_i32 = arith.constant 4 : i32
    %c1_i32_89 = arith.constant 1 : i32
    %180 = arith.muli %c4_i32, %c1_i32_89 : i32
    %c0_i32_90 = arith.constant 0 : i32
    %181 = arith.addi %c0_i32_90, %180 : i32
    %c16_i32_91 = arith.constant 16 : i32
    %182 = arith.muli %181, %c16_i32_91 : i32
    %183 = tpu.assume_multiple %182, 16 : i32
    %c0_92 = arith.constant 0 : index
    %c0_93 = arith.constant 0 : index
    %184 = vector.load %arg13[%c0_92, %c0_93] : memref<16x128xf32, #tpu.memory_space<vmem>>, vector<16x128xf32>
    %185 = arith.index_cast %183 : i32 to index
    %c0_94 = arith.constant 0 : index
    %186 = vector.load %arg11[%185, %c0_94] : memref<128x512xf32, #tpu.memory_space<vmem>>, vector<16x512xf32>
    %187 = arith.truncf %184 : vector<16x128xf32> to vector<16x128xbf16>
    %c0_95 = arith.constant 0 : index
    %c0_96 = arith.constant 0 : index
    %188 = vector.load %arg3[%c0_95, %c0_96] : memref<128x512xbf16, #tpu.memory_space<vmem>>, vector<128x512xbf16>
    %cst_97 = arith.constant dense<0.000000e+00> : vector<16x512xf32>
    %189 = tpu.matmul %187, %188, %cst_97 {dimension_numbers = #tpu.dot_dimension_numbers<[1], [0], [0], [1], [0, 0, 1, 1], [], []>} : vector<16x128xbf16>, vector<128x512xbf16>, vector<16x512xf32> -> vector<16x512xf32>
    %190 = arith.addf %186, %189 : vector<16x512xf32>
    %191 = vector.extract_strided_slice %190 {offsets = [0, 0], sizes = [16, 128], strides = [1, 1]} : vector<16x512xf32> to vector<16x128xf32>
    %192 = arith.negf %191 : vector<16x128xf32>
    %193 = math.exp %192 : vector<16x128xf32>
    %cst_98 = arith.constant 1.000000e+00 : f32
    %194 = vector.broadcast %cst_98 : f32 to vector<16x128xf32>
    %195 = arith.addf %194, %193 : vector<16x128xf32>
    %196 = arith.divf %194, %195 : vector<16x128xf32>
    %197 = vector.extract_strided_slice %190 {offsets = [0, 128], sizes = [16, 128], strides = [1, 1]} : vector<16x512xf32> to vector<16x128xf32>
    %198 = arith.negf %197 : vector<16x128xf32>
    %199 = math.exp %198 : vector<16x128xf32>
    %cst_99 = arith.constant 1.000000e+00 : f32
    %200 = vector.broadcast %cst_99 : f32 to vector<16x128xf32>
    %201 = arith.addf %200, %199 : vector<16x128xf32>
    %202 = arith.divf %200, %201 : vector<16x128xf32>
    %203 = vector.extract_strided_slice %190 {offsets = [0, 256], sizes = [16, 128], strides = [1, 1]} : vector<16x512xf32> to vector<16x128xf32>
    %204 = math.tanh %203 : vector<16x128xf32>
    %205 = vector.extract_strided_slice %190 {offsets = [0, 384], sizes = [16, 128], strides = [1, 1]} : vector<16x512xf32> to vector<16x128xf32>
    %206 = arith.negf %205 : vector<16x128xf32>
    %207 = math.exp %206 : vector<16x128xf32>
    %cst_100 = arith.constant 1.000000e+00 : f32
    %208 = vector.broadcast %cst_100 : f32 to vector<16x128xf32>
    %209 = arith.addf %208, %207 : vector<16x128xf32>
    %210 = arith.divf %208, %209 : vector<16x128xf32>
    %c0_101 = arith.constant 0 : index
    %c0_102 = arith.constant 0 : index
    %211 = vector.load %arg14[%c0_101, %c0_102] : memref<16x128xf32, #tpu.memory_space<vmem>>, vector<16x128xf32>
    %212 = arith.mulf %202, %211 : vector<16x128xf32>
    %213 = arith.mulf %196, %204 : vector<16x128xf32>
    %214 = arith.addf %212, %213 : vector<16x128xf32>
    %215 = math.tanh %214 : vector<16x128xf32>
    %216 = arith.mulf %210, %215 : vector<16x128xf32>
    %c0_103 = arith.constant 0 : index
    %c0_104 = arith.constant 0 : index
    %217 = vector.load %arg14[%c0_103, %c0_104] : memref<16x128xf32, #tpu.memory_space<vmem>>, vector<16x128xf32>
    tpu.vector_store %arg14[%c0_103, %c0_104], %214 {strides = array<i32>} : memref<16x128xf32, #tpu.memory_space<vmem>>, vector<16x128xf32>,
    %c0_105 = arith.constant 0 : index
    %c0_106 = arith.constant 0 : index
    %218 = vector.load %arg13[%c0_105, %c0_106] : memref<16x128xf32, #tpu.memory_space<vmem>>, vector<16x128xf32>
    tpu.vector_store %arg13[%c0_105, %c0_106], %216 {strides = array<i32>} : memref<16x128xf32, #tpu.memory_space<vmem>>, vector<16x128xf32>,
    %219 = arith.truncf %216 : vector<16x128xf32> to vector<16x128xbf16>
    %220 = arith.index_cast %183 : i32 to index
    %c0_107 = arith.constant 0 : index
    %221 = vector.load %arg12[%220, %c0_107] : memref<128x128xbf16, #tpu.memory_space<vmem>>, vector<16x128xbf16>
    tpu.vector_store %arg12[%220, %c0_107], %219 {strides = array<i32>} : memref<128x128xbf16, #tpu.memory_space<vmem>>, vector<16x128xbf16>,
    %c5_i32 = arith.constant 5 : i32
    %c1_i32_108 = arith.constant 1 : i32
    %222 = arith.muli %c5_i32, %c1_i32_108 : i32
    %c0_i32_109 = arith.constant 0 : i32
    %223 = arith.addi %c0_i32_109, %222 : i32
    %c16_i32_110 = arith.constant 16 : i32
    %224 = arith.muli %223, %c16_i32_110 : i32
    %225 = tpu.assume_multiple %224, 16 : i32
    %c0_111 = arith.constant 0 : index
    %c0_112 = arith.constant 0 : index
    %226 = vector.load %arg13[%c0_111, %c0_112] : memref<16x128xf32, #tpu.memory_space<vmem>>, vector<16x128xf32>
    %227 = arith.index_cast %225 : i32 to index
    %c0_113 = arith.constant 0 : index
    %228 = vector.load %arg11[%227, %c0_113] : memref<128x512xf32, #tpu.memory_space<vmem>>, vector<16x512xf32>
    %229 = arith.truncf %226 : vector<16x128xf32> to vector<16x128xbf16>
    %c0_114 = arith.constant 0 : index
    %c0_115 = arith.constant 0 : index
    %230 = vector.load %arg3[%c0_114, %c0_115] : memref<128x512xbf16, #tpu.memory_space<vmem>>, vector<128x512xbf16>
    %cst_116 = arith.constant dense<0.000000e+00> : vector<16x512xf32>
    %231 = tpu.matmul %229, %230, %cst_116 {dimension_numbers = #tpu.dot_dimension_numbers<[1], [0], [0], [1], [0, 0, 1, 1], [], []>} : vector<16x128xbf16>, vector<128x512xbf16>, vector<16x512xf32> -> vector<16x512xf32>
    %232 = arith.addf %228, %231 : vector<16x512xf32>
    %233 = vector.extract_strided_slice %232 {offsets = [0, 0], sizes = [16, 128], strides = [1, 1]} : vector<16x512xf32> to vector<16x128xf32>
    %234 = arith.negf %233 : vector<16x128xf32>
    %235 = math.exp %234 : vector<16x128xf32>
    %cst_117 = arith.constant 1.000000e+00 : f32
    %236 = vector.broadcast %cst_117 : f32 to vector<16x128xf32>
    %237 = arith.addf %236, %235 : vector<16x128xf32>
    %238 = arith.divf %236, %237 : vector<16x128xf32>
    %239 = vector.extract_strided_slice %232 {offsets = [0, 128], sizes = [16, 128], strides = [1, 1]} : vector<16x512xf32> to vector<16x128xf32>
    %240 = arith.negf %239 : vector<16x128xf32>
    %241 = math.exp %240 : vector<16x128xf32>
    %cst_118 = arith.constant 1.000000e+00 : f32
    %242 = vector.broadcast %cst_118 : f32 to vector<16x128xf32>
    %243 = arith.addf %242, %241 : vector<16x128xf32>
    %244 = arith.divf %242, %243 : vector<16x128xf32>
    %245 = vector.extract_strided_slice %232 {offsets = [0, 256], sizes = [16, 128], strides = [1, 1]} : vector<16x512xf32> to vector<16x128xf32>
    %246 = math.tanh %245 : vector<16x128xf32>
    %247 = vector.extract_strided_slice %232 {offsets = [0, 384], sizes = [16, 128], strides = [1, 1]} : vector<16x512xf32> to vector<16x128xf32>
    %248 = arith.negf %247 : vector<16x128xf32>
    %249 = math.exp %248 : vector<16x128xf32>
    %cst_119 = arith.constant 1.000000e+00 : f32
    %250 = vector.broadcast %cst_119 : f32 to vector<16x128xf32>
    %251 = arith.addf %250, %249 : vector<16x128xf32>
    %252 = arith.divf %250, %251 : vector<16x128xf32>
    %c0_120 = arith.constant 0 : index
    %c0_121 = arith.constant 0 : index
    %253 = vector.load %arg14[%c0_120, %c0_121] : memref<16x128xf32, #tpu.memory_space<vmem>>, vector<16x128xf32>
    %254 = arith.mulf %244, %253 : vector<16x128xf32>
    %255 = arith.mulf %238, %246 : vector<16x128xf32>
    %256 = arith.addf %254, %255 : vector<16x128xf32>
    %257 = math.tanh %256 : vector<16x128xf32>
    %258 = arith.mulf %252, %257 : vector<16x128xf32>
    %c0_122 = arith.constant 0 : index
    %c0_123 = arith.constant 0 : index
    %259 = vector.load %arg14[%c0_122, %c0_123] : memref<16x128xf32, #tpu.memory_space<vmem>>, vector<16x128xf32>
    tpu.vector_store %arg14[%c0_122, %c0_123], %256 {strides = array<i32>} : memref<16x128xf32, #tpu.memory_space<vmem>>, vector<16x128xf32>,
    %c0_124 = arith.constant 0 : index
    %c0_125 = arith.constant 0 : index
    %260 = vector.load %arg13[%c0_124, %c0_125] : memref<16x128xf32, #tpu.memory_space<vmem>>, vector<16x128xf32>
    tpu.vector_store %arg13[%c0_124, %c0_125], %258 {strides = array<i32>} : memref<16x128xf32, #tpu.memory_space<vmem>>, vector<16x128xf32>,
    %261 = arith.truncf %258 : vector<16x128xf32> to vector<16x128xbf16>
    %262 = arith.index_cast %225 : i32 to index
    %c0_126 = arith.constant 0 : index
    %263 = vector.load %arg12[%262, %c0_126] : memref<128x128xbf16, #tpu.memory_space<vmem>>, vector<16x128xbf16>
    tpu.vector_store %arg12[%262, %c0_126], %261 {strides = array<i32>} : memref<128x128xbf16, #tpu.memory_space<vmem>>, vector<16x128xbf16>,
    %c6_i32 = arith.constant 6 : i32
    %c1_i32_127 = arith.constant 1 : i32
    %264 = arith.muli %c6_i32, %c1_i32_127 : i32
    %c0_i32_128 = arith.constant 0 : i32
    %265 = arith.addi %c0_i32_128, %264 : i32
    %c16_i32_129 = arith.constant 16 : i32
    %266 = arith.muli %265, %c16_i32_129 : i32
    %267 = tpu.assume_multiple %266, 16 : i32
    %c0_130 = arith.constant 0 : index
    %c0_131 = arith.constant 0 : index
    %268 = vector.load %arg13[%c0_130, %c0_131] : memref<16x128xf32, #tpu.memory_space<vmem>>, vector<16x128xf32>
    %269 = arith.index_cast %267 : i32 to index
    %c0_132 = arith.constant 0 : index
    %270 = vector.load %arg11[%269, %c0_132] : memref<128x512xf32, #tpu.memory_space<vmem>>, vector<16x512xf32>
    %271 = arith.truncf %268 : vector<16x128xf32> to vector<16x128xbf16>
    %c0_133 = arith.constant 0 : index
    %c0_134 = arith.constant 0 : index
    %272 = vector.load %arg3[%c0_133, %c0_134] : memref<128x512xbf16, #tpu.memory_space<vmem>>, vector<128x512xbf16>
    %cst_135 = arith.constant dense<0.000000e+00> : vector<16x512xf32>
    %273 = tpu.matmul %271, %272, %cst_135 {dimension_numbers = #tpu.dot_dimension_numbers<[1], [0], [0], [1], [0, 0, 1, 1], [], []>} : vector<16x128xbf16>, vector<128x512xbf16>, vector<16x512xf32> -> vector<16x512xf32>
    %274 = arith.addf %270, %273 : vector<16x512xf32>
    %275 = vector.extract_strided_slice %274 {offsets = [0, 0], sizes = [16, 128], strides = [1, 1]} : vector<16x512xf32> to vector<16x128xf32>
    %276 = arith.negf %275 : vector<16x128xf32>
    %277 = math.exp %276 : vector<16x128xf32>
    %cst_136 = arith.constant 1.000000e+00 : f32
    %278 = vector.broadcast %cst_136 : f32 to vector<16x128xf32>
    %279 = arith.addf %278, %277 : vector<16x128xf32>
    %280 = arith.divf %278, %279 : vector<16x128xf32>
    %281 = vector.extract_strided_slice %274 {offsets = [0, 128], sizes = [16, 128], strides = [1, 1]} : vector<16x512xf32> to vector<16x128xf32>
    %282 = arith.negf %281 : vector<16x128xf32>
    %283 = math.exp %282 : vector<16x128xf32>
    %cst_137 = arith.constant 1.000000e+00 : f32
    %284 = vector.broadcast %cst_137 : f32 to vector<16x128xf32>
    %285 = arith.addf %284, %283 : vector<16x128xf32>
    %286 = arith.divf %284, %285 : vector<16x128xf32>
    %287 = vector.extract_strided_slice %274 {offsets = [0, 256], sizes = [16, 128], strides = [1, 1]} : vector<16x512xf32> to vector<16x128xf32>
    %288 = math.tanh %287 : vector<16x128xf32>
    %289 = vector.extract_strided_slice %274 {offsets = [0, 384], sizes = [16, 128], strides = [1, 1]} : vector<16x512xf32> to vector<16x128xf32>
    %290 = arith.negf %289 : vector<16x128xf32>
    %291 = math.exp %290 : vector<16x128xf32>
    %cst_138 = arith.constant 1.000000e+00 : f32
    %292 = vector.broadcast %cst_138 : f32 to vector<16x128xf32>
    %293 = arith.addf %292, %291 : vector<16x128xf32>
    %294 = arith.divf %292, %293 : vector<16x128xf32>
    %c0_139 = arith.constant 0 : index
    %c0_140 = arith.constant 0 : index
    %295 = vector.load %arg14[%c0_139, %c0_140] : memref<16x128xf32, #tpu.memory_space<vmem>>, vector<16x128xf32>
    %296 = arith.mulf %286, %295 : vector<16x128xf32>
    %297 = arith.mulf %280, %288 : vector<16x128xf32>
    %298 = arith.addf %296, %297 : vector<16x128xf32>
    %299 = math.tanh %298 : vector<16x128xf32>
    %300 = arith.mulf %294, %299 : vector<16x128xf32>
    %c0_141 = arith.constant 0 : index
    %c0_142 = arith.constant 0 : index
    %301 = vector.load %arg14[%c0_141, %c0_142] : memref<16x128xf32, #tpu.memory_space<vmem>>, vector<16x128xf32>
    tpu.vector_store %arg14[%c0_141, %c0_142], %298 {strides = array<i32>} : memref<16x128xf32, #tpu.memory_space<vmem>>, vector<16x128xf32>,
    %c0_143 = arith.constant 0 : index
    %c0_144 = arith.constant 0 : index
    %302 = vector.load %arg13[%c0_143, %c0_144] : memref<16x128xf32, #tpu.memory_space<vmem>>, vector<16x128xf32>
    tpu.vector_store %arg13[%c0_143, %c0_144], %300 {strides = array<i32>} : memref<16x128xf32, #tpu.memory_space<vmem>>, vector<16x128xf32>,
    %303 = arith.truncf %300 : vector<16x128xf32> to vector<16x128xbf16>
    %304 = arith.index_cast %267 : i32 to index
    %c0_145 = arith.constant 0 : index
    %305 = vector.load %arg12[%304, %c0_145] : memref<128x128xbf16, #tpu.memory_space<vmem>>, vector<16x128xbf16>
    tpu.vector_store %arg12[%304, %c0_145], %303 {strides = array<i32>} : memref<128x128xbf16, #tpu.memory_space<vmem>>, vector<16x128xbf16>,
    %c7_i32 = arith.constant 7 : i32
    %c1_i32_146 = arith.constant 1 : i32
    %306 = arith.muli %c7_i32, %c1_i32_146 : i32
    %c0_i32_147 = arith.constant 0 : i32
    %307 = arith.addi %c0_i32_147, %306 : i32
    %c16_i32_148 = arith.constant 16 : i32
    %308 = arith.muli %307, %c16_i32_148 : i32
    %309 = tpu.assume_multiple %308, 16 : i32
    %c0_149 = arith.constant 0 : index
    %c0_150 = arith.constant 0 : index
    %310 = vector.load %arg13[%c0_149, %c0_150] : memref<16x128xf32, #tpu.memory_space<vmem>>, vector<16x128xf32>
    %311 = arith.index_cast %309 : i32 to index
    %c0_151 = arith.constant 0 : index
    %312 = vector.load %arg11[%311, %c0_151] : memref<128x512xf32, #tpu.memory_space<vmem>>, vector<16x512xf32>
    %313 = arith.truncf %310 : vector<16x128xf32> to vector<16x128xbf16>
    %c0_152 = arith.constant 0 : index
    %c0_153 = arith.constant 0 : index
    %314 = vector.load %arg3[%c0_152, %c0_153] : memref<128x512xbf16, #tpu.memory_space<vmem>>, vector<128x512xbf16>
    %cst_154 = arith.constant dense<0.000000e+00> : vector<16x512xf32>
    %315 = tpu.matmul %313, %314, %cst_154 {dimension_numbers = #tpu.dot_dimension_numbers<[1], [0], [0], [1], [0, 0, 1, 1], [], []>} : vector<16x128xbf16>, vector<128x512xbf16>, vector<16x512xf32> -> vector<16x512xf32>
    %316 = arith.addf %312, %315 : vector<16x512xf32>
    %317 = vector.extract_strided_slice %316 {offsets = [0, 0], sizes = [16, 128], strides = [1, 1]} : vector<16x512xf32> to vector<16x128xf32>
    %318 = arith.negf %317 : vector<16x128xf32>
    %319 = math.exp %318 : vector<16x128xf32>
    %cst_155 = arith.constant 1.000000e+00 : f32
    %320 = vector.broadcast %cst_155 : f32 to vector<16x128xf32>
    %321 = arith.addf %320, %319 : vector<16x128xf32>
    %322 = arith.divf %320, %321 : vector<16x128xf32>
    %323 = vector.extract_strided_slice %316 {offsets = [0, 128], sizes = [16, 128], strides = [1, 1]} : vector<16x512xf32> to vector<16x128xf32>
    %324 = arith.negf %323 : vector<16x128xf32>
    %325 = math.exp %324 : vector<16x128xf32>
    %cst_156 = arith.constant 1.000000e+00 : f32
    %326 = vector.broadcast %cst_156 : f32 to vector<16x128xf32>
    %327 = arith.addf %326, %325 : vector<16x128xf32>
    %328 = arith.divf %326, %327 : vector<16x128xf32>
    %329 = vector.extract_strided_slice %316 {offsets = [0, 256], sizes = [16, 128], strides = [1, 1]} : vector<16x512xf32> to vector<16x128xf32>
    %330 = math.tanh %329 : vector<16x128xf32>
    %331 = vector.extract_strided_slice %316 {offsets = [0, 384], sizes = [16, 128], strides = [1, 1]} : vector<16x512xf32> to vector<16x128xf32>
    %332 = arith.negf %331 : vector<16x128xf32>
    %333 = math.exp %332 : vector<16x128xf32>
    %cst_157 = arith.constant 1.000000e+00 : f32
    %334 = vector.broadcast %cst_157 : f32 to vector<16x128xf32>
    %335 = arith.addf %334, %333 : vector<16x128xf32>
    %336 = arith.divf %334, %335 : vector<16x128xf32>
    %c0_158 = arith.constant 0 : index
    %c0_159 = arith.constant 0 : index
    %337 = vector.load %arg14[%c0_158, %c0_159] : memref<16x128xf32, #tpu.memory_space<vmem>>, vector<16x128xf32>
    %338 = arith.mulf %328, %337 : vector<16x128xf32>
    %339 = arith.mulf %322, %330 : vector<16x128xf32>
    %340 = arith.addf %338, %339 : vector<16x128xf32>
    %341 = math.tanh %340 : vector<16x128xf32>
    %342 = arith.mulf %336, %341 : vector<16x128xf32>
    %c0_160 = arith.constant 0 : index
    %c0_161 = arith.constant 0 : index
    %343 = vector.load %arg14[%c0_160, %c0_161] : memref<16x128xf32, #tpu.memory_space<vmem>>, vector<16x128xf32>
    tpu.vector_store %arg14[%c0_160, %c0_161], %340 {strides = array<i32>} : memref<16x128xf32, #tpu.memory_space<vmem>>, vector<16x128xf32>,
    %c0_162 = arith.constant 0 : index
    %c0_163 = arith.constant 0 : index
    %344 = vector.load %arg13[%c0_162, %c0_163] : memref<16x128xf32, #tpu.memory_space<vmem>>, vector<16x128xf32>
    tpu.vector_store %arg13[%c0_162, %c0_163], %342 {strides = array<i32>} : memref<16x128xf32, #tpu.memory_space<vmem>>, vector<16x128xf32>,
    %345 = arith.truncf %342 : vector<16x128xf32> to vector<16x128xbf16>
    %346 = arith.index_cast %309 : i32 to index
    %c0_164 = arith.constant 0 : index
    %347 = vector.load %arg12[%346, %c0_164] : memref<128x128xbf16, #tpu.memory_space<vmem>>, vector<16x128xbf16>
    tpu.vector_store %arg12[%346, %c0_164], %345 {strides = array<i32>} : memref<128x128xbf16, #tpu.memory_space<vmem>>, vector<16x128xbf16>,
    %c8_i32 = arith.constant 8 : i32
    %c0_165 = arith.constant 0 : index
    %c0_166 = arith.constant 0 : index
    %348 = vector.load %arg12[%c0_165, %c0_166] : memref<128x128xbf16, #tpu.memory_space<vmem>>, vector<128x128xbf16>
    %c0_167 = arith.constant 0 : index
    %c0_168 = arith.constant 0 : index
    %349 = vector.load %arg5[%c0_167, %c0_168] : memref<128x512xbf16, #tpu.memory_space<vmem>>, vector<128x512xbf16>
    %cst_169 = arith.constant dense<0.000000e+00> : vector<128x512xf32>
    %350 = tpu.matmul %348, %349, %cst_169 {dimension_numbers = #tpu.dot_dimension_numbers<[1], [0], [0], [1], [0, 0, 1, 1], [], []>} : vector<128x128xbf16>, vector<128x512xbf16>, vector<128x512xf32> -> vector<128x512xf32>
    %c0_170 = arith.constant 0 : index
    %c0_171 = arith.constant 0 : index
    %351 = vector.load %arg7[%c0_170, %c0_171] : memref<1x512xf32, #tpu.memory_space<vmem>>, vector<1x512xf32>
    %352 = vector.broadcast %351 : vector<1x512xf32> to vector<128x512xf32>
    %353 = arith.addf %350, %352 : vector<128x512xf32>
    %c0_172 = arith.constant 0 : index
    %c0_173 = arith.constant 0 : index
    %354 = vector.load %arg11[%c0_172, %c0_173] : memref<128x512xf32, #tpu.memory_space<vmem>>, vector<128x512xf32>
    tpu.vector_store %arg11[%c0_172, %c0_173], %353 {strides = array<i32>} : memref<128x512xf32, #tpu.memory_space<vmem>>, vector<128x512xf32>,
    %cst_174 = arith.constant 0.000000e+00 : f32
    %355 = vector.broadcast %cst_174 : f32 to vector<16x128xf32>
    %c0_175 = arith.constant 0 : index
    %c0_176 = arith.constant 0 : index
    %356 = vector.load %arg13[%c0_175, %c0_176] : memref<16x128xf32, #tpu.memory_space<vmem>>, vector<16x128xf32>
    tpu.vector_store %arg13[%c0_175, %c0_176], %355 {strides = array<i32>} : memref<16x128xf32, #tpu.memory_space<vmem>>, vector<16x128xf32>,
    %cst_177 = arith.constant 0.000000e+00 : f32
    %357 = vector.broadcast %cst_177 : f32 to vector<16x128xf32>
    %c0_178 = arith.constant 0 : index
    %c0_179 = arith.constant 0 : index
    %358 = vector.load %arg14[%c0_178, %c0_179] : memref<16x128xf32, #tpu.memory_space<vmem>>, vector<16x128xf32>
    tpu.vector_store %arg14[%c0_178, %c0_179], %357 {strides = array<i32>} : memref<16x128xf32, #tpu.memory_space<vmem>>, vector<16x128xf32>,
    %c0_i32_180 = arith.constant 0 : i32
    %c1_i32_181 = arith.constant 1 : i32
    %359 = arith.muli %c0_i32_180, %c1_i32_181 : i32
    %c0_i32_182 = arith.constant 0 : i32
    %360 = arith.addi %c0_i32_182, %359 : i32
    %c16_i32_183 = arith.constant 16 : i32
    %361 = arith.muli %360, %c16_i32_183 : i32
    %362 = tpu.assume_multiple %361, 16 : i32
    %c0_184 = arith.constant 0 : index
    %c0_185 = arith.constant 0 : index
    %363 = vector.load %arg13[%c0_184, %c0_185] : memref<16x128xf32, #tpu.memory_space<vmem>>, vector<16x128xf32>
    %364 = arith.index_cast %362 : i32 to index
    %c0_186 = arith.constant 0 : index
    %365 = vector.load %arg11[%364, %c0_186] : memref<128x512xf32, #tpu.memory_space<vmem>>, vector<16x512xf32>
    %366 = arith.truncf %363 : vector<16x128xf32> to vector<16x128xbf16>
    %c0_187 = arith.constant 0 : index
    %c0_188 = arith.constant 0 : index
    %367 = vector.load %arg6[%c0_187, %c0_188] : memref<128x512xbf16, #tpu.memory_space<vmem>>, vector<128x512xbf16>
    %cst_189 = arith.constant dense<0.000000e+00> : vector<16x512xf32>
    %368 = tpu.matmul %366, %367, %cst_189 {dimension_numbers = #tpu.dot_dimension_numbers<[1], [0], [0], [1], [0, 0, 1, 1], [], []>} : vector<16x128xbf16>, vector<128x512xbf16>, vector<16x512xf32> -> vector<16x512xf32>
    %369 = arith.addf %365, %368 : vector<16x512xf32>
    %370 = vector.extract_strided_slice %369 {offsets = [0, 0], sizes = [16, 128], strides = [1, 1]} : vector<16x512xf32> to vector<16x128xf32>
    %371 = arith.negf %370 : vector<16x128xf32>
    %372 = math.exp %371 : vector<16x128xf32>
    %cst_190 = arith.constant 1.000000e+00 : f32
    %373 = vector.broadcast %cst_190 : f32 to vector<16x128xf32>
    %374 = arith.addf %373, %372 : vector<16x128xf32>
    %375 = arith.divf %373, %374 : vector<16x128xf32>
    %376 = vector.extract_strided_slice %369 {offsets = [0, 128], sizes = [16, 128], strides = [1, 1]} : vector<16x512xf32> to vector<16x128xf32>
    %377 = arith.negf %376 : vector<16x128xf32>
    %378 = math.exp %377 : vector<16x128xf32>
    %cst_191 = arith.constant 1.000000e+00 : f32
    %379 = vector.broadcast %cst_191 : f32 to vector<16x128xf32>
    %380 = arith.addf %379, %378 : vector<16x128xf32>
    %381 = arith.divf %379, %380 : vector<16x128xf32>
    %382 = vector.extract_strided_slice %369 {offsets = [0, 256], sizes = [16, 128], strides = [1, 1]} : vector<16x512xf32> to vector<16x128xf32>
    %383 = math.tanh %382 : vector<16x128xf32>
    %384 = vector.extract_strided_slice %369 {offsets = [0, 384], sizes = [16, 128], strides = [1, 1]} : vector<16x512xf32> to vector<16x128xf32>
    %385 = arith.negf %384 : vector<16x128xf32>
    %386 = math.exp %385 : vector<16x128xf32>
    %cst_192 = arith.constant 1.000000e+00 : f32
    %387 = vector.broadcast %cst_192 : f32 to vector<16x128xf32>
    %388 = arith.addf %387, %386 : vector<16x128xf32>
    %389 = arith.divf %387, %388 : vector<16x128xf32>
    %c0_193 = arith.constant 0 : index
    %c0_194 = arith.constant 0 : index
    %390 = vector.load %arg14[%c0_193, %c0_194] : memref<16x128xf32, #tpu.memory_space<vmem>>, vector<16x128xf32>
    %391 = arith.mulf %381, %390 : vector<16x128xf32>
    %392 = arith.mulf %375, %383 : vector<16x128xf32>
    %393 = arith.addf %391, %392 : vector<16x128xf32>
    %394 = math.tanh %393 : vector<16x128xf32>
    %395 = arith.mulf %389, %394 : vector<16x128xf32>
    %c0_195 = arith.constant 0 : index
    %c0_196 = arith.constant 0 : index
    %396 = vector.load %arg14[%c0_195, %c0_196] : memref<16x128xf32, #tpu.memory_space<vmem>>, vector<16x128xf32>
    tpu.vector_store %arg14[%c0_195, %c0_196], %393 {strides = array<i32>} : memref<16x128xf32, #tpu.memory_space<vmem>>, vector<16x128xf32>,
    %c0_197 = arith.constant 0 : index
    %c0_198 = arith.constant 0 : index
    %397 = vector.load %arg13[%c0_197, %c0_198] : memref<16x128xf32, #tpu.memory_space<vmem>>, vector<16x128xf32>
    tpu.vector_store %arg13[%c0_197, %c0_198], %395 {strides = array<i32>} : memref<16x128xf32, #tpu.memory_space<vmem>>, vector<16x128xf32>,
    %c1_i32_199 = arith.constant 1 : i32
    %c1_i32_200 = arith.constant 1 : i32
    %398 = arith.muli %c1_i32_199, %c1_i32_200 : i32
    %c0_i32_201 = arith.constant 0 : i32
    %399 = arith.addi %c0_i32_201, %398 : i32
    %c16_i32_202 = arith.constant 16 : i32
    %400 = arith.muli %399, %c16_i32_202 : i32
    %401 = tpu.assume_multiple %400, 16 : i32
    %c0_203 = arith.constant 0 : index
    %c0_204 = arith.constant 0 : index
    %402 = vector.load %arg13[%c0_203, %c0_204] : memref<16x128xf32, #tpu.memory_space<vmem>>, vector<16x128xf32>
    %403 = arith.index_cast %401 : i32 to index
    %c0_205 = arith.constant 0 : index
    %404 = vector.load %arg11[%403, %c0_205] : memref<128x512xf32, #tpu.memory_space<vmem>>, vector<16x512xf32>
    %405 = arith.truncf %402 : vector<16x128xf32> to vector<16x128xbf16>
    %c0_206 = arith.constant 0 : index
    %c0_207 = arith.constant 0 : index
    %406 = vector.load %arg6[%c0_206, %c0_207] : memref<128x512xbf16, #tpu.memory_space<vmem>>, vector<128x512xbf16>
    %cst_208 = arith.constant dense<0.000000e+00> : vector<16x512xf32>
    %407 = tpu.matmul %405, %406, %cst_208 {dimension_numbers = #tpu.dot_dimension_numbers<[1], [0], [0], [1], [0, 0, 1, 1], [], []>} : vector<16x128xbf16>, vector<128x512xbf16>, vector<16x512xf32> -> vector<16x512xf32>
    %408 = arith.addf %404, %407 : vector<16x512xf32>
    %409 = vector.extract_strided_slice %408 {offsets = [0, 0], sizes = [16, 128], strides = [1, 1]} : vector<16x512xf32> to vector<16x128xf32>
    %410 = arith.negf %409 : vector<16x128xf32>
    %411 = math.exp %410 : vector<16x128xf32>
    %cst_209 = arith.constant 1.000000e+00 : f32
    %412 = vector.broadcast %cst_209 : f32 to vector<16x128xf32>
    %413 = arith.addf %412, %411 : vector<16x128xf32>
    %414 = arith.divf %412, %413 : vector<16x128xf32>
    %415 = vector.extract_strided_slice %408 {offsets = [0, 128], sizes = [16, 128], strides = [1, 1]} : vector<16x512xf32> to vector<16x128xf32>
    %416 = arith.negf %415 : vector<16x128xf32>
    %417 = math.exp %416 : vector<16x128xf32>
    %cst_210 = arith.constant 1.000000e+00 : f32
    %418 = vector.broadcast %cst_210 : f32 to vector<16x128xf32>
    %419 = arith.addf %418, %417 : vector<16x128xf32>
    %420 = arith.divf %418, %419 : vector<16x128xf32>
    %421 = vector.extract_strided_slice %408 {offsets = [0, 256], sizes = [16, 128], strides = [1, 1]} : vector<16x512xf32> to vector<16x128xf32>
    %422 = math.tanh %421 : vector<16x128xf32>
    %423 = vector.extract_strided_slice %408 {offsets = [0, 384], sizes = [16, 128], strides = [1, 1]} : vector<16x512xf32> to vector<16x128xf32>
    %424 = arith.negf %423 : vector<16x128xf32>
    %425 = math.exp %424 : vector<16x128xf32>
    %cst_211 = arith.constant 1.000000e+00 : f32
    %426 = vector.broadcast %cst_211 : f32 to vector<16x128xf32>
    %427 = arith.addf %426, %425 : vector<16x128xf32>
    %428 = arith.divf %426, %427 : vector<16x128xf32>
    %c0_212 = arith.constant 0 : index
    %c0_213 = arith.constant 0 : index
    %429 = vector.load %arg14[%c0_212, %c0_213] : memref<16x128xf32, #tpu.memory_space<vmem>>, vector<16x128xf32>
    %430 = arith.mulf %420, %429 : vector<16x128xf32>
    %431 = arith.mulf %414, %422 : vector<16x128xf32>
    %432 = arith.addf %430, %431 : vector<16x128xf32>
    %433 = math.tanh %432 : vector<16x128xf32>
    %434 = arith.mulf %428, %433 : vector<16x128xf32>
    %c0_214 = arith.constant 0 : index
    %c0_215 = arith.constant 0 : index
    %435 = vector.load %arg14[%c0_214, %c0_215] : memref<16x128xf32, #tpu.memory_space<vmem>>, vector<16x128xf32>
    tpu.vector_store %arg14[%c0_214, %c0_215], %432 {strides = array<i32>} : memref<16x128xf32, #tpu.memory_space<vmem>>, vector<16x128xf32>,
    %c0_216 = arith.constant 0 : index
    %c0_217 = arith.constant 0 : index
    %436 = vector.load %arg13[%c0_216, %c0_217] : memref<16x128xf32, #tpu.memory_space<vmem>>, vector<16x128xf32>
    tpu.vector_store %arg13[%c0_216, %c0_217], %434 {strides = array<i32>} : memref<16x128xf32, #tpu.memory_space<vmem>>, vector<16x128xf32>,
    %c2_i32_218 = arith.constant 2 : i32
    %c1_i32_219 = arith.constant 1 : i32
    %437 = arith.muli %c2_i32_218, %c1_i32_219 : i32
    %c0_i32_220 = arith.constant 0 : i32
    %438 = arith.addi %c0_i32_220, %437 : i32
    %c16_i32_221 = arith.constant 16 : i32
    %439 = arith.muli %438, %c16_i32_221 : i32
    %440 = tpu.assume_multiple %439, 16 : i32
    %c0_222 = arith.constant 0 : index
    %c0_223 = arith.constant 0 : index
    %441 = vector.load %arg13[%c0_222, %c0_223] : memref<16x128xf32, #tpu.memory_space<vmem>>, vector<16x128xf32>
    %442 = arith.index_cast %440 : i32 to index
    %c0_224 = arith.constant 0 : index
    %443 = vector.load %arg11[%442, %c0_224] : memref<128x512xf32, #tpu.memory_space<vmem>>, vector<16x512xf32>
    %444 = arith.truncf %441 : vector<16x128xf32> to vector<16x128xbf16>
    %c0_225 = arith.constant 0 : index
    %c0_226 = arith.constant 0 : index
    %445 = vector.load %arg6[%c0_225, %c0_226] : memref<128x512xbf16, #tpu.memory_space<vmem>>, vector<128x512xbf16>
    %cst_227 = arith.constant dense<0.000000e+00> : vector<16x512xf32>
    %446 = tpu.matmul %444, %445, %cst_227 {dimension_numbers = #tpu.dot_dimension_numbers<[1], [0], [0], [1], [0, 0, 1, 1], [], []>} : vector<16x128xbf16>, vector<128x512xbf16>, vector<16x512xf32> -> vector<16x512xf32>
    %447 = arith.addf %443, %446 : vector<16x512xf32>
    %448 = vector.extract_strided_slice %447 {offsets = [0, 0], sizes = [16, 128], strides = [1, 1]} : vector<16x512xf32> to vector<16x128xf32>
    %449 = arith.negf %448 : vector<16x128xf32>
    %450 = math.exp %449 : vector<16x128xf32>
    %cst_228 = arith.constant 1.000000e+00 : f32
    %451 = vector.broadcast %cst_228 : f32 to vector<16x128xf32>
    %452 = arith.addf %451, %450 : vector<16x128xf32>
    %453 = arith.divf %451, %452 : vector<16x128xf32>
    %454 = vector.extract_strided_slice %447 {offsets = [0, 128], sizes = [16, 128], strides = [1, 1]} : vector<16x512xf32> to vector<16x128xf32>
    %455 = arith.negf %454 : vector<16x128xf32>
    %456 = math.exp %455 : vector<16x128xf32>
    %cst_229 = arith.constant 1.000000e+00 : f32
    %457 = vector.broadcast %cst_229 : f32 to vector<16x128xf32>
    %458 = arith.addf %457, %456 : vector<16x128xf32>
    %459 = arith.divf %457, %458 : vector<16x128xf32>
    %460 = vector.extract_strided_slice %447 {offsets = [0, 256], sizes = [16, 128], strides = [1, 1]} : vector<16x512xf32> to vector<16x128xf32>
    %461 = math.tanh %460 : vector<16x128xf32>
    %462 = vector.extract_strided_slice %447 {offsets = [0, 384], sizes = [16, 128], strides = [1, 1]} : vector<16x512xf32> to vector<16x128xf32>
    %463 = arith.negf %462 : vector<16x128xf32>
    %464 = math.exp %463 : vector<16x128xf32>
    %cst_230 = arith.constant 1.000000e+00 : f32
    %465 = vector.broadcast %cst_230 : f32 to vector<16x128xf32>
    %466 = arith.addf %465, %464 : vector<16x128xf32>
    %467 = arith.divf %465, %466 : vector<16x128xf32>
    %c0_231 = arith.constant 0 : index
    %c0_232 = arith.constant 0 : index
    %468 = vector.load %arg14[%c0_231, %c0_232] : memref<16x128xf32, #tpu.memory_space<vmem>>, vector<16x128xf32>
    %469 = arith.mulf %459, %468 : vector<16x128xf32>
    %470 = arith.mulf %453, %461 : vector<16x128xf32>
    %471 = arith.addf %469, %470 : vector<16x128xf32>
    %472 = math.tanh %471 : vector<16x128xf32>
    %473 = arith.mulf %467, %472 : vector<16x128xf32>
    %c0_233 = arith.constant 0 : index
    %c0_234 = arith.constant 0 : index
    %474 = vector.load %arg14[%c0_233, %c0_234] : memref<16x128xf32, #tpu.memory_space<vmem>>, vector<16x128xf32>
    tpu.vector_store %arg14[%c0_233, %c0_234], %471 {strides = array<i32>} : memref<16x128xf32, #tpu.memory_space<vmem>>, vector<16x128xf32>,
    %c0_235 = arith.constant 0 : index
    %c0_236 = arith.constant 0 : index
    %475 = vector.load %arg13[%c0_235, %c0_236] : memref<16x128xf32, #tpu.memory_space<vmem>>, vector<16x128xf32>
    tpu.vector_store %arg13[%c0_235, %c0_236], %473 {strides = array<i32>} : memref<16x128xf32, #tpu.memory_space<vmem>>, vector<16x128xf32>,
    %c3_i32_237 = arith.constant 3 : i32
    %c1_i32_238 = arith.constant 1 : i32
    %476 = arith.muli %c3_i32_237, %c1_i32_238 : i32
    %c0_i32_239 = arith.constant 0 : i32
    %477 = arith.addi %c0_i32_239, %476 : i32
    %c16_i32_240 = arith.constant 16 : i32
    %478 = arith.muli %477, %c16_i32_240 : i32
    %479 = tpu.assume_multiple %478, 16 : i32
    %c0_241 = arith.constant 0 : index
    %c0_242 = arith.constant 0 : index
    %480 = vector.load %arg13[%c0_241, %c0_242] : memref<16x128xf32, #tpu.memory_space<vmem>>, vector<16x128xf32>
    %481 = arith.index_cast %479 : i32 to index
    %c0_243 = arith.constant 0 : index
    %482 = vector.load %arg11[%481, %c0_243] : memref<128x512xf32, #tpu.memory_space<vmem>>, vector<16x512xf32>
    %483 = arith.truncf %480 : vector<16x128xf32> to vector<16x128xbf16>
    %c0_244 = arith.constant 0 : index
    %c0_245 = arith.constant 0 : index
    %484 = vector.load %arg6[%c0_244, %c0_245] : memref<128x512xbf16, #tpu.memory_space<vmem>>, vector<128x512xbf16>
    %cst_246 = arith.constant dense<0.000000e+00> : vector<16x512xf32>
    %485 = tpu.matmul %483, %484, %cst_246 {dimension_numbers = #tpu.dot_dimension_numbers<[1], [0], [0], [1], [0, 0, 1, 1], [], []>} : vector<16x128xbf16>, vector<128x512xbf16>, vector<16x512xf32> -> vector<16x512xf32>
    %486 = arith.addf %482, %485 : vector<16x512xf32>
    %487 = vector.extract_strided_slice %486 {offsets = [0, 0], sizes = [16, 128], strides = [1, 1]} : vector<16x512xf32> to vector<16x128xf32>
    %488 = arith.negf %487 : vector<16x128xf32>
    %489 = math.exp %488 : vector<16x128xf32>
    %cst_247 = arith.constant 1.000000e+00 : f32
    %490 = vector.broadcast %cst_247 : f32 to vector<16x128xf32>
    %491 = arith.addf %490, %489 : vector<16x128xf32>
    %492 = arith.divf %490, %491 : vector<16x128xf32>
    %493 = vector.extract_strided_slice %486 {offsets = [0, 128], sizes = [16, 128], strides = [1, 1]} : vector<16x512xf32> to vector<16x128xf32>
    %494 = arith.negf %493 : vector<16x128xf32>
    %495 = math.exp %494 : vector<16x128xf32>
    %cst_248 = arith.constant 1.000000e+00 : f32
    %496 = vector.broadcast %cst_248 : f32 to vector<16x128xf32>
    %497 = arith.addf %496, %495 : vector<16x128xf32>
    %498 = arith.divf %496, %497 : vector<16x128xf32>
    %499 = vector.extract_strided_slice %486 {offsets = [0, 256], sizes = [16, 128], strides = [1, 1]} : vector<16x512xf32> to vector<16x128xf32>
    %500 = math.tanh %499 : vector<16x128xf32>
    %501 = vector.extract_strided_slice %486 {offsets = [0, 384], sizes = [16, 128], strides = [1, 1]} : vector<16x512xf32> to vector<16x128xf32>
    %502 = arith.negf %501 : vector<16x128xf32>
    %503 = math.exp %502 : vector<16x128xf32>
    %cst_249 = arith.constant 1.000000e+00 : f32
    %504 = vector.broadcast %cst_249 : f32 to vector<16x128xf32>
    %505 = arith.addf %504, %503 : vector<16x128xf32>
    %506 = arith.divf %504, %505 : vector<16x128xf32>
    %c0_250 = arith.constant 0 : index
    %c0_251 = arith.constant 0 : index
    %507 = vector.load %arg14[%c0_250, %c0_251] : memref<16x128xf32, #tpu.memory_space<vmem>>, vector<16x128xf32>
    %508 = arith.mulf %498, %507 : vector<16x128xf32>
    %509 = arith.mulf %492, %500 : vector<16x128xf32>
    %510 = arith.addf %508, %509 : vector<16x128xf32>
    %511 = math.tanh %510 : vector<16x128xf32>
    %512 = arith.mulf %506, %511 : vector<16x128xf32>
    %c0_252 = arith.constant 0 : index
    %c0_253 = arith.constant 0 : index
    %513 = vector.load %arg14[%c0_252, %c0_253] : memref<16x128xf32, #tpu.memory_space<vmem>>, vector<16x128xf32>
    tpu.vector_store %arg14[%c0_252, %c0_253], %510 {strides = array<i32>} : memref<16x128xf32, #tpu.memory_space<vmem>>, vector<16x128xf32>,
    %c0_254 = arith.constant 0 : index
    %c0_255 = arith.constant 0 : index
    %514 = vector.load %arg13[%c0_254, %c0_255] : memref<16x128xf32, #tpu.memory_space<vmem>>, vector<16x128xf32>
    tpu.vector_store %arg13[%c0_254, %c0_255], %512 {strides = array<i32>} : memref<16x128xf32, #tpu.memory_space<vmem>>, vector<16x128xf32>,
    %c4_i32_256 = arith.constant 4 : i32
    %c1_i32_257 = arith.constant 1 : i32
    %515 = arith.muli %c4_i32_256, %c1_i32_257 : i32
    %c0_i32_258 = arith.constant 0 : i32
    %516 = arith.addi %c0_i32_258, %515 : i32
    %c16_i32_259 = arith.constant 16 : i32
    %517 = arith.muli %516, %c16_i32_259 : i32
    %518 = tpu.assume_multiple %517, 16 : i32
    %c0_260 = arith.constant 0 : index
    %c0_261 = arith.constant 0 : index
    %519 = vector.load %arg13[%c0_260, %c0_261] : memref<16x128xf32, #tpu.memory_space<vmem>>, vector<16x128xf32>
    %520 = arith.index_cast %518 : i32 to index
    %c0_262 = arith.constant 0 : index
    %521 = vector.load %arg11[%520, %c0_262] : memref<128x512xf32, #tpu.memory_space<vmem>>, vector<16x512xf32>
    %522 = arith.truncf %519 : vector<16x128xf32> to vector<16x128xbf16>
    %c0_263 = arith.constant 0 : index
    %c0_264 = arith.constant 0 : index
    %523 = vector.load %arg6[%c0_263, %c0_264] : memref<128x512xbf16, #tpu.memory_space<vmem>>, vector<128x512xbf16>
    %cst_265 = arith.constant dense<0.000000e+00> : vector<16x512xf32>
    %524 = tpu.matmul %522, %523, %cst_265 {dimension_numbers = #tpu.dot_dimension_numbers<[1], [0], [0], [1], [0, 0, 1, 1], [], []>} : vector<16x128xbf16>, vector<128x512xbf16>, vector<16x512xf32> -> vector<16x512xf32>
    %525 = arith.addf %521, %524 : vector<16x512xf32>
    %526 = vector.extract_strided_slice %525 {offsets = [0, 0], sizes = [16, 128], strides = [1, 1]} : vector<16x512xf32> to vector<16x128xf32>
    %527 = arith.negf %526 : vector<16x128xf32>
    %528 = math.exp %527 : vector<16x128xf32>
    %cst_266 = arith.constant 1.000000e+00 : f32
    %529 = vector.broadcast %cst_266 : f32 to vector<16x128xf32>
    %530 = arith.addf %529, %528 : vector<16x128xf32>
    %531 = arith.divf %529, %530 : vector<16x128xf32>
    %532 = vector.extract_strided_slice %525 {offsets = [0, 128], sizes = [16, 128], strides = [1, 1]} : vector<16x512xf32> to vector<16x128xf32>
    %533 = arith.negf %532 : vector<16x128xf32>
    %534 = math.exp %533 : vector<16x128xf32>
    %cst_267 = arith.constant 1.000000e+00 : f32
    %535 = vector.broadcast %cst_267 : f32 to vector<16x128xf32>
    %536 = arith.addf %535, %534 : vector<16x128xf32>
    %537 = arith.divf %535, %536 : vector<16x128xf32>
    %538 = vector.extract_strided_slice %525 {offsets = [0, 256], sizes = [16, 128], strides = [1, 1]} : vector<16x512xf32> to vector<16x128xf32>
    %539 = math.tanh %538 : vector<16x128xf32>
    %540 = vector.extract_strided_slice %525 {offsets = [0, 384], sizes = [16, 128], strides = [1, 1]} : vector<16x512xf32> to vector<16x128xf32>
    %541 = arith.negf %540 : vector<16x128xf32>
    %542 = math.exp %541 : vector<16x128xf32>
    %cst_268 = arith.constant 1.000000e+00 : f32
    %543 = vector.broadcast %cst_268 : f32 to vector<16x128xf32>
    %544 = arith.addf %543, %542 : vector<16x128xf32>
    %545 = arith.divf %543, %544 : vector<16x128xf32>
    %c0_269 = arith.constant 0 : index
    %c0_270 = arith.constant 0 : index
    %546 = vector.load %arg14[%c0_269, %c0_270] : memref<16x128xf32, #tpu.memory_space<vmem>>, vector<16x128xf32>
    %547 = arith.mulf %537, %546 : vector<16x128xf32>
    %548 = arith.mulf %531, %539 : vector<16x128xf32>
    %549 = arith.addf %547, %548 : vector<16x128xf32>
    %550 = math.tanh %549 : vector<16x128xf32>
    %551 = arith.mulf %545, %550 : vector<16x128xf32>
    %c0_271 = arith.constant 0 : index
    %c0_272 = arith.constant 0 : index
    %552 = vector.load %arg14[%c0_271, %c0_272] : memref<16x128xf32, #tpu.memory_space<vmem>>, vector<16x128xf32>
    tpu.vector_store %arg14[%c0_271, %c0_272], %549 {strides = array<i32>} : memref<16x128xf32, #tpu.memory_space<vmem>>, vector<16x128xf32>,
    %c0_273 = arith.constant 0 : index
    %c0_274 = arith.constant 0 : index
    %553 = vector.load %arg13[%c0_273, %c0_274] : memref<16x128xf32, #tpu.memory_space<vmem>>, vector<16x128xf32>
    tpu.vector_store %arg13[%c0_273, %c0_274], %551 {strides = array<i32>} : memref<16x128xf32, #tpu.memory_space<vmem>>, vector<16x128xf32>,
    %c5_i32_275 = arith.constant 5 : i32
    %c1_i32_276 = arith.constant 1 : i32
    %554 = arith.muli %c5_i32_275, %c1_i32_276 : i32
    %c0_i32_277 = arith.constant 0 : i32
    %555 = arith.addi %c0_i32_277, %554 : i32
    %c16_i32_278 = arith.constant 16 : i32
    %556 = arith.muli %555, %c16_i32_278 : i32
    %557 = tpu.assume_multiple %556, 16 : i32
    %c0_279 = arith.constant 0 : index
    %c0_280 = arith.constant 0 : index
    %558 = vector.load %arg13[%c0_279, %c0_280] : memref<16x128xf32, #tpu.memory_space<vmem>>, vector<16x128xf32>
    %559 = arith.index_cast %557 : i32 to index
    %c0_281 = arith.constant 0 : index
    %560 = vector.load %arg11[%559, %c0_281] : memref<128x512xf32, #tpu.memory_space<vmem>>, vector<16x512xf32>
    %561 = arith.truncf %558 : vector<16x128xf32> to vector<16x128xbf16>
    %c0_282 = arith.constant 0 : index
    %c0_283 = arith.constant 0 : index
    %562 = vector.load %arg6[%c0_282, %c0_283] : memref<128x512xbf16, #tpu.memory_space<vmem>>, vector<128x512xbf16>
    %cst_284 = arith.constant dense<0.000000e+00> : vector<16x512xf32>
    %563 = tpu.matmul %561, %562, %cst_284 {dimension_numbers = #tpu.dot_dimension_numbers<[1], [0], [0], [1], [0, 0, 1, 1], [], []>} : vector<16x128xbf16>, vector<128x512xbf16>, vector<16x512xf32> -> vector<16x512xf32>
    %564 = arith.addf %560, %563 : vector<16x512xf32>
    %565 = vector.extract_strided_slice %564 {offsets = [0, 0], sizes = [16, 128], strides = [1, 1]} : vector<16x512xf32> to vector<16x128xf32>
    %566 = arith.negf %565 : vector<16x128xf32>
    %567 = math.exp %566 : vector<16x128xf32>
    %cst_285 = arith.constant 1.000000e+00 : f32
    %568 = vector.broadcast %cst_285 : f32 to vector<16x128xf32>
    %569 = arith.addf %568, %567 : vector<16x128xf32>
    %570 = arith.divf %568, %569 : vector<16x128xf32>
    %571 = vector.extract_strided_slice %564 {offsets = [0, 128], sizes = [16, 128], strides = [1, 1]} : vector<16x512xf32> to vector<16x128xf32>
    %572 = arith.negf %571 : vector<16x128xf32>
    %573 = math.exp %572 : vector<16x128xf32>
    %cst_286 = arith.constant 1.000000e+00 : f32
    %574 = vector.broadcast %cst_286 : f32 to vector<16x128xf32>
    %575 = arith.addf %574, %573 : vector<16x128xf32>
    %576 = arith.divf %574, %575 : vector<16x128xf32>
    %577 = vector.extract_strided_slice %564 {offsets = [0, 256], sizes = [16, 128], strides = [1, 1]} : vector<16x512xf32> to vector<16x128xf32>
    %578 = math.tanh %577 : vector<16x128xf32>
    %579 = vector.extract_strided_slice %564 {offsets = [0, 384], sizes = [16, 128], strides = [1, 1]} : vector<16x512xf32> to vector<16x128xf32>
    %580 = arith.negf %579 : vector<16x128xf32>
    %581 = math.exp %580 : vector<16x128xf32>
    %cst_287 = arith.constant 1.000000e+00 : f32
    %582 = vector.broadcast %cst_287 : f32 to vector<16x128xf32>
    %583 = arith.addf %582, %581 : vector<16x128xf32>
    %584 = arith.divf %582, %583 : vector<16x128xf32>
    %c0_288 = arith.constant 0 : index
    %c0_289 = arith.constant 0 : index
    %585 = vector.load %arg14[%c0_288, %c0_289] : memref<16x128xf32, #tpu.memory_space<vmem>>, vector<16x128xf32>
    %586 = arith.mulf %576, %585 : vector<16x128xf32>
    %587 = arith.mulf %570, %578 : vector<16x128xf32>
    %588 = arith.addf %586, %587 : vector<16x128xf32>
    %589 = math.tanh %588 : vector<16x128xf32>
    %590 = arith.mulf %584, %589 : vector<16x128xf32>
    %c0_290 = arith.constant 0 : index
    %c0_291 = arith.constant 0 : index
    %591 = vector.load %arg14[%c0_290, %c0_291] : memref<16x128xf32, #tpu.memory_space<vmem>>, vector<16x128xf32>
    tpu.vector_store %arg14[%c0_290, %c0_291], %588 {strides = array<i32>} : memref<16x128xf32, #tpu.memory_space<vmem>>, vector<16x128xf32>,
    %c0_292 = arith.constant 0 : index
    %c0_293 = arith.constant 0 : index
    %592 = vector.load %arg13[%c0_292, %c0_293] : memref<16x128xf32, #tpu.memory_space<vmem>>, vector<16x128xf32>
    tpu.vector_store %arg13[%c0_292, %c0_293], %590 {strides = array<i32>} : memref<16x128xf32, #tpu.memory_space<vmem>>, vector<16x128xf32>,
    %c6_i32_294 = arith.constant 6 : i32
    %c1_i32_295 = arith.constant 1 : i32
    %593 = arith.muli %c6_i32_294, %c1_i32_295 : i32
    %c0_i32_296 = arith.constant 0 : i32
    %594 = arith.addi %c0_i32_296, %593 : i32
    %c16_i32_297 = arith.constant 16 : i32
    %595 = arith.muli %594, %c16_i32_297 : i32
    %596 = tpu.assume_multiple %595, 16 : i32
    %c0_298 = arith.constant 0 : index
    %c0_299 = arith.constant 0 : index
    %597 = vector.load %arg13[%c0_298, %c0_299] : memref<16x128xf32, #tpu.memory_space<vmem>>, vector<16x128xf32>
    %598 = arith.index_cast %596 : i32 to index
    %c0_300 = arith.constant 0 : index
    %599 = vector.load %arg11[%598, %c0_300] : memref<128x512xf32, #tpu.memory_space<vmem>>, vector<16x512xf32>
    %600 = arith.truncf %597 : vector<16x128xf32> to vector<16x128xbf16>
    %c0_301 = arith.constant 0 : index
    %c0_302 = arith.constant 0 : index
    %601 = vector.load %arg6[%c0_301, %c0_302] : memref<128x512xbf16, #tpu.memory_space<vmem>>, vector<128x512xbf16>
    %cst_303 = arith.constant dense<0.000000e+00> : vector<16x512xf32>
    %602 = tpu.matmul %600, %601, %cst_303 {dimension_numbers = #tpu.dot_dimension_numbers<[1], [0], [0], [1], [0, 0, 1, 1], [], []>} : vector<16x128xbf16>, vector<128x512xbf16>, vector<16x512xf32> -> vector<16x512xf32>
    %603 = arith.addf %599, %602 : vector<16x512xf32>
    %604 = vector.extract_strided_slice %603 {offsets = [0, 0], sizes = [16, 128], strides = [1, 1]} : vector<16x512xf32> to vector<16x128xf32>
    %605 = arith.negf %604 : vector<16x128xf32>
    %606 = math.exp %605 : vector<16x128xf32>
    %cst_304 = arith.constant 1.000000e+00 : f32
    %607 = vector.broadcast %cst_304 : f32 to vector<16x128xf32>
    %608 = arith.addf %607, %606 : vector<16x128xf32>
    %609 = arith.divf %607, %608 : vector<16x128xf32>
    %610 = vector.extract_strided_slice %603 {offsets = [0, 128], sizes = [16, 128], strides = [1, 1]} : vector<16x512xf32> to vector<16x128xf32>
    %611 = arith.negf %610 : vector<16x128xf32>
    %612 = math.exp %611 : vector<16x128xf32>
    %cst_305 = arith.constant 1.000000e+00 : f32
    %613 = vector.broadcast %cst_305 : f32 to vector<16x128xf32>
    %614 = arith.addf %613, %612 : vector<16x128xf32>
    %615 = arith.divf %613, %614 : vector<16x128xf32>
    %616 = vector.extract_strided_slice %603 {offsets = [0, 256], sizes = [16, 128], strides = [1, 1]} : vector<16x512xf32> to vector<16x128xf32>
    %617 = math.tanh %616 : vector<16x128xf32>
    %618 = vector.extract_strided_slice %603 {offsets = [0, 384], sizes = [16, 128], strides = [1, 1]} : vector<16x512xf32> to vector<16x128xf32>
    %619 = arith.negf %618 : vector<16x128xf32>
    %620 = math.exp %619 : vector<16x128xf32>
    %cst_306 = arith.constant 1.000000e+00 : f32
    %621 = vector.broadcast %cst_306 : f32 to vector<16x128xf32>
    %622 = arith.addf %621, %620 : vector<16x128xf32>
    %623 = arith.divf %621, %622 : vector<16x128xf32>
    %c0_307 = arith.constant 0 : index
    %c0_308 = arith.constant 0 : index
    %624 = vector.load %arg14[%c0_307, %c0_308] : memref<16x128xf32, #tpu.memory_space<vmem>>, vector<16x128xf32>
    %625 = arith.mulf %615, %624 : vector<16x128xf32>
    %626 = arith.mulf %609, %617 : vector<16x128xf32>
    %627 = arith.addf %625, %626 : vector<16x128xf32>
    %628 = math.tanh %627 : vector<16x128xf32>
    %629 = arith.mulf %623, %628 : vector<16x128xf32>
    %c0_309 = arith.constant 0 : index
    %c0_310 = arith.constant 0 : index
    %630 = vector.load %arg14[%c0_309, %c0_310] : memref<16x128xf32, #tpu.memory_space<vmem>>, vector<16x128xf32>
    tpu.vector_store %arg14[%c0_309, %c0_310], %627 {strides = array<i32>} : memref<16x128xf32, #tpu.memory_space<vmem>>, vector<16x128xf32>,
    %c0_311 = arith.constant 0 : index
    %c0_312 = arith.constant 0 : index
    %631 = vector.load %arg13[%c0_311, %c0_312] : memref<16x128xf32, #tpu.memory_space<vmem>>, vector<16x128xf32>
    tpu.vector_store %arg13[%c0_311, %c0_312], %629 {strides = array<i32>} : memref<16x128xf32, #tpu.memory_space<vmem>>, vector<16x128xf32>,
    %c7_i32_313 = arith.constant 7 : i32
    %c1_i32_314 = arith.constant 1 : i32
    %632 = arith.muli %c7_i32_313, %c1_i32_314 : i32
    %c0_i32_315 = arith.constant 0 : i32
    %633 = arith.addi %c0_i32_315, %632 : i32
    %c16_i32_316 = arith.constant 16 : i32
    %634 = arith.muli %633, %c16_i32_316 : i32
    %635 = tpu.assume_multiple %634, 16 : i32
    %c0_317 = arith.constant 0 : index
    %c0_318 = arith.constant 0 : index
    %636 = vector.load %arg13[%c0_317, %c0_318] : memref<16x128xf32, #tpu.memory_space<vmem>>, vector<16x128xf32>
    %637 = arith.index_cast %635 : i32 to index
    %c0_319 = arith.constant 0 : index
    %638 = vector.load %arg11[%637, %c0_319] : memref<128x512xf32, #tpu.memory_space<vmem>>, vector<16x512xf32>
    %639 = arith.truncf %636 : vector<16x128xf32> to vector<16x128xbf16>
    %c0_320 = arith.constant 0 : index
    %c0_321 = arith.constant 0 : index
    %640 = vector.load %arg6[%c0_320, %c0_321] : memref<128x512xbf16, #tpu.memory_space<vmem>>, vector<128x512xbf16>
    %cst_322 = arith.constant dense<0.000000e+00> : vector<16x512xf32>
    %641 = tpu.matmul %639, %640, %cst_322 {dimension_numbers = #tpu.dot_dimension_numbers<[1], [0], [0], [1], [0, 0, 1, 1], [], []>} : vector<16x128xbf16>, vector<128x512xbf16>, vector<16x512xf32> -> vector<16x512xf32>
    %642 = arith.addf %638, %641 : vector<16x512xf32>
    %643 = vector.extract_strided_slice %642 {offsets = [0, 0], sizes = [16, 128], strides = [1, 1]} : vector<16x512xf32> to vector<16x128xf32>
    %644 = arith.negf %643 : vector<16x128xf32>
    %645 = math.exp %644 : vector<16x128xf32>
    %cst_323 = arith.constant 1.000000e+00 : f32
    %646 = vector.broadcast %cst_323 : f32 to vector<16x128xf32>
    %647 = arith.addf %646, %645 : vector<16x128xf32>
    %648 = arith.divf %646, %647 : vector<16x128xf32>
    %649 = vector.extract_strided_slice %642 {offsets = [0, 128], sizes = [16, 128], strides = [1, 1]} : vector<16x512xf32> to vector<16x128xf32>
    %650 = arith.negf %649 : vector<16x128xf32>
    %651 = math.exp %650 : vector<16x128xf32>
    %cst_324 = arith.constant 1.000000e+00 : f32
    %652 = vector.broadcast %cst_324 : f32 to vector<16x128xf32>
    %653 = arith.addf %652, %651 : vector<16x128xf32>
    %654 = arith.divf %652, %653 : vector<16x128xf32>
    %655 = vector.extract_strided_slice %642 {offsets = [0, 256], sizes = [16, 128], strides = [1, 1]} : vector<16x512xf32> to vector<16x128xf32>
    %656 = math.tanh %655 : vector<16x128xf32>
    %657 = vector.extract_strided_slice %642 {offsets = [0, 384], sizes = [16, 128], strides = [1, 1]} : vector<16x512xf32> to vector<16x128xf32>
    %658 = arith.negf %657 : vector<16x128xf32>
    %659 = math.exp %658 : vector<16x128xf32>
    %cst_325 = arith.constant 1.000000e+00 : f32
    %660 = vector.broadcast %cst_325 : f32 to vector<16x128xf32>
    %661 = arith.addf %660, %659 : vector<16x128xf32>
    %662 = arith.divf %660, %661 : vector<16x128xf32>
    %c0_326 = arith.constant 0 : index
    %c0_327 = arith.constant 0 : index
    %663 = vector.load %arg14[%c0_326, %c0_327] : memref<16x128xf32, #tpu.memory_space<vmem>>, vector<16x128xf32>
    %664 = arith.mulf %654, %663 : vector<16x128xf32>
    %665 = arith.mulf %648, %656 : vector<16x128xf32>
    %666 = arith.addf %664, %665 : vector<16x128xf32>
    %667 = math.tanh %666 : vector<16x128xf32>
    %668 = arith.mulf %662, %667 : vector<16x128xf32>
    %c0_328 = arith.constant 0 : index
    %c0_329 = arith.constant 0 : index
    %669 = vector.load %arg14[%c0_328, %c0_329] : memref<16x128xf32, #tpu.memory_space<vmem>>, vector<16x128xf32>
    tpu.vector_store %arg14[%c0_328, %c0_329], %666 {strides = array<i32>} : memref<16x128xf32, #tpu.memory_space<vmem>>, vector<16x128xf32>,
    %c0_330 = arith.constant 0 : index
    %c0_331 = arith.constant 0 : index
    %670 = vector.load %arg13[%c0_330, %c0_331] : memref<16x128xf32, #tpu.memory_space<vmem>>, vector<16x128xf32>
    tpu.vector_store %arg13[%c0_330, %c0_331], %668 {strides = array<i32>} : memref<16x128xf32, #tpu.memory_space<vmem>>, vector<16x128xf32>,
    %c8_i32_332 = arith.constant 8 : i32
    %c0_333 = arith.constant 0 : index
    %c0_334 = arith.constant 0 : index
    %671 = vector.load %arg13[%c0_333, %c0_334] : memref<16x128xf32, #tpu.memory_space<vmem>>, vector<16x128xf32>
    %672 = arith.truncf %671 : vector<16x128xf32> to vector<16x128xbf16>
    %c0_335 = arith.constant 0 : index
    %c0_336 = arith.constant 0 : index
    %673 = vector.load %arg8[%c0_335, %c0_336] : memref<128x256xbf16, #tpu.memory_space<vmem>>, vector<128x256xbf16>
    %cst_337 = arith.constant dense<0.000000e+00> : vector<16x256xf32>
    %674 = tpu.matmul %672, %673, %cst_337 {dimension_numbers = #tpu.dot_dimension_numbers<[1], [0], [0], [1], [0, 0, 1, 1], [], []>} : vector<16x128xbf16>, vector<128x256xbf16>, vector<16x256xf32> -> vector<16x256xf32>
    %c0_338 = arith.constant 0 : index
    %c0_339 = arith.constant 0 : index
    %675 = vector.load %arg9[%c0_338, %c0_339] : memref<1x256xf32, #tpu.memory_space<vmem>>, vector<1x256xf32>
    %676 = vector.broadcast %675 : vector<1x256xf32> to vector<16x256xf32>
    %677 = arith.addf %674, %676 : vector<16x256xf32>
    %c0_340 = arith.constant 0 : index
    %c0_341 = arith.constant 0 : index
    %678 = vector.load %arg10[%c0_340, %c0_341] : memref<16x256xf32, #tpu.memory_space<vmem>>, vector<16x256xf32>
    tpu.vector_store %arg10[%c0_340, %c0_341], %677 {strides = array<i32>} : memref<16x256xf32, #tpu.memory_space<vmem>>, vector<16x256xf32>,
    return
  }
  func.func @transform_0(%arg0: i32) -> (i32, i32, i32) {
    %c0_i32 = arith.constant 0 : i32
    %c0_i32_0 = arith.constant 0 : i32
    %c0_i32_1 = arith.constant 0 : i32
    return %c0_i32, %arg0, %c0_i32_0 : i32, i32, i32
  }
  func.func @transform_1(%arg0: i32) -> (i32, i32) {
    %c0_i32 = arith.constant 0 : i32
    %c0_i32_0 = arith.constant 0 : i32
    %c0_i32_1 = arith.constant 0 : i32
    return %c0_i32, %c0_i32_0 : i32, i32
  }
  func.func @transform_2(%arg0: i32) -> (i32, i32) {
    %c0_i32 = arith.constant 0 : i32
    %c0_i32_0 = arith.constant 0 : i32
    %c0_i32_1 = arith.constant 0 : i32
    return %c0_i32, %c0_i32_0 : i32, i32
  }
  func.func @transform_3(%arg0: i32) -> (i32, i32) {
    %c0_i32 = arith.constant 0 : i32
    %c0_i32_0 = arith.constant 0 : i32
    %c0_i32_1 = arith.constant 0 : i32
    return %c0_i32, %c0_i32_0 : i32, i32
  }
  func.func @transform_4(%arg0: i32) -> (i32, i32) {
    %c0_i32 = arith.constant 0 : i32
    %c0_i32_0 = arith.constant 0 : i32
    %c0_i32_1 = arith.constant 0 : i32
    return %c0_i32, %c0_i32_0 : i32, i32
  }
  func.func @transform_5(%arg0: i32) -> (i32, i32) {
    %c0_i32 = arith.constant 0 : i32
    %c0_i32_0 = arith.constant 0 : i32
    %c0_i32_1 = arith.constant 0 : i32
    return %c0_i32, %c0_i32_0 : i32, i32
  }
  func.func @transform_6(%arg0: i32) -> (i32, i32) {
    %c0_i32 = arith.constant 0 : i32
    %c0_i32_0 = arith.constant 0 : i32
    %c0_i32_1 = arith.constant 0 : i32
    return %c0_i32, %c0_i32_0 : i32, i32
  }
  func.func @transform_7(%arg0: i32) -> (i32, i32) {
    %c0_i32 = arith.constant 0 : i32
    %c0_i32_0 = arith.constant 0 : i32
    %c0_i32_1 = arith.constant 0 : i32
    return %c0_i32, %c0_i32_0 : i32, i32
  }
  func.func @transform_8(%arg0: i32) -> (i32, i32) {
    %c0_i32 = arith.constant 0 : i32
    %c0_i32_0 = arith.constant 0 : i32
    %c0_i32_1 = arith.constant 0 : i32
    return %c0_i32, %c0_i32_0 : i32, i32
  }
  func.func @transform_9(%arg0: i32) -> (i32, i32) {
    %c0_i32 = arith.constant 0 : i32
    %c0_i32_0 = arith.constant 0 : i32
    return %arg0, %c0_i32 : i32, i32
  }
}

</mosaic_0001>

<llo_original>
// kernel: lstm_word_net_forward.1
$region0: #{lstm_word_net_forward.1}
  #allocation0 [shape = 'u32[]', space=smem, size = 0x4, offset = 0x4, fixed_abs, tag = 'smem constant byte address 0x4 - core index']
  #allocation1 [shape = 'u32[144,128]{1,0:T(1,128)}', space=vmem, size = 0x12000, scoped, tag = 'internal scratch']
  #allocation2 [shape = 'f32[128,512]{1,0:T(8,128)}', space=vmem, size = 0x40000, scoped, tag = 'scratch operand']
  #allocation3 [shape = 'bf16[128,128]{1,0:T(8,128)(2,1)}', space=vmem, size = 0x8000, scoped, tag = 'scratch operand']
  #allocation4 [shape = 'f32[16,128]{1,0:T(8,128)}', space=vmem, size = 0x2000, scoped, tag = 'scratch operand']
  #allocation5 [shape = 'f32[16,128]{1,0:T(8,128)}', space=vmem, size = 0x2000, scoped, tag = 'scratch operand']
  %s0 = inlined_call_operand.vmem [shape: bf16[8,16,128], index: 0, kind: input, shape index: {}]
  %s1 = inlined_call_operand.vmem [shape: bf16[128,512], index: 1, kind: input, shape index: {}]
  %s2 = inlined_call_operand.vmem [shape: bf16[128,512], index: 2, kind: input, shape index: {}]
  %s3 = inlined_call_operand.vmem [shape: f32[1,512], index: 3, kind: input, shape index: {}]
  %s4 = inlined_call_operand.vmem [shape: bf16[128,512], index: 4, kind: input, shape index: {}]
  %s5 = inlined_call_operand.vmem [shape: bf16[128,512], index: 5, kind: input, shape index: {}]
  %s6 = inlined_call_operand.vmem [shape: f32[1,512], index: 6, kind: input, shape index: {}]
  %s7 = inlined_call_operand.vmem [shape: bf16[128,256], index: 7, kind: input, shape index: {}]
  %s8 = inlined_call_operand.vmem [shape: f32[1,256], index: 8, kind: input, shape index: {}]
  %s9 = inlined_call_operand.hbm [shape: f32[16,256], index: 9, kind: output, shape index: {}]
  %s10 = sld [smem:[#allocation0]]
  $region46: #{lstm_word_net_forward.1} parent=0
    _
  %s12 = ssub.s32 1, %s10
  %s13 = scalar_select 0, %s12, %s10
  $region1: #{lstm_word_net_forward.1} parent=0
    #allocation6 [shape = 'u8[16384]{0}', space=vmem, size = 0x4000, scoped, tag = 'output window, operand 0, single buffered']
    #allocation7 [shape = 's32[1]{0}', space=sflag, size = 0x4, scoped, tag = 'scoped memory for lstm_word_net_forward.1']
    %14 = vsyncpa [#allocation7], 0
    // Predicated region
    $region2: #{lstm_word_net_forward.1} parent=1 // pred_check
      _
    $region3: #{lstm_word_net_forward.1} parent=1 // pred_check_branch
      %16 = sbr.rel (0) target = $region5
    $region4: #{lstm_word_net_forward.1} parent=1 // pred_region
      _
    $region5: #{lstm_word_net_forward.1} parent=1 // pred_fallthru
      _
    // Predicated region
    $region6: #{lstm_word_net_forward.1} parent=1 // pred_check
      _
    $region7: #{lstm_word_net_forward.1} parent=1 // pred_check_branch
      %18 = sbr.rel (0) target = $region9
    $region8: #{lstm_word_net_forward.1} parent=1 // pred_region
      _
    $region9: #{lstm_word_net_forward.1} parent=1 // pred_fallthru
      _
    // Predicated region
    $region10: #{lstm_word_net_forward.1} parent=1 // pred_check
      _
    $region11: #{lstm_word_net_forward.1} parent=1 // pred_check_branch
      %20 = sbr.rel (0) target = $region13
    $region12: #{lstm_word_net_forward.1} parent=1 // pred_region
      _
    $region13: #{lstm_word_net_forward.1} parent=1 // pred_fallthru
      _
    // Predicated region
    $region14: #{lstm_word_net_forward.1} parent=1 // pred_check
      _
    $region15: #{lstm_word_net_forward.1} parent=1 // pred_check_branch
      %22 = sbr.rel (0) target = $region17
    $region16: #{lstm_word_net_forward.1} parent=1 // pred_region
      _
    $region17: #{lstm_word_net_forward.1} parent=1 // pred_fallthru
      _
    // Predicated region
    $region18: #{lstm_word_net_forward.1} parent=1 // pred_check
      _
    $region19: #{lstm_word_net_forward.1} parent=1 // pred_check_branch
      %24 = sbr.rel (0) target = $region21
    $region20: #{lstm_word_net_forward.1} parent=1 // pred_region
      _
    $region21: #{lstm_word_net_forward.1} parent=1 // pred_fallthru
      _
    // Predicated region
    $region22: #{lstm_word_net_forward.1} parent=1 // pred_check
      _
    $region23: #{lstm_word_net_forward.1} parent=1 // pred_check_branch
      %26 = sbr.rel (0) target = $region25
    $region24: #{lstm_word_net_forward.1} parent=1 // pred_region
      _
    $region25: #{lstm_word_net_forward.1} parent=1 // pred_fallthru
      _
    // Predicated region
    $region26: #{lstm_word_net_forward.1} parent=1 // pred_check
      _
    $region27: #{lstm_word_net_forward.1} parent=1 // pred_check_branch
      %28 = sbr.rel (0) target = $region29
    $region28: #{lstm_word_net_forward.1} parent=1 // pred_region
      _
    $region29: #{lstm_word_net_forward.1} parent=1 // pred_fallthru
      _
    // Predicated region
    $region30: #{lstm_word_net_forward.1} parent=1 // pred_check
      _
    $region31: #{lstm_word_net_forward.1} parent=1 // pred_check_branch
      %30 = sbr.rel (0) target = $region33
    $region32: #{lstm_word_net_forward.1} parent=1 // pred_region
      _
    $region33: #{lstm_word_net_forward.1} parent=1 // pred_fallthru
      _
    // Predicated region
    $region34: #{lstm_word_net_forward.1} parent=1 // pred_check
      _
    $region35: #{lstm_word_net_forward.1} parent=1 // pred_check_branch
      %32 = sbr.rel (0) target = $region37
    $region36: #{lstm_word_net_forward.1} parent=1 // pred_region
      _
    $region37: #{lstm_word_net_forward.1} parent=1 // pred_fallthru
      _
    %v34 = vld [vmem:[%s0] sm:$0xf]
    %v35 = vld [vmem:[%s0 + $0x4] sm:$0xf]
    %v36 = vld [vmem:[%s0 + $0x8] sm:$0xf]
    %v37 = vld [vmem:[%s0 + $0xc] sm:$0xf]
    %v38 = vld [vmem:[%s0 + $0x10] sm:$0xf]
    %v39 = vld [vmem:[%s0 + $0x14] sm:$0xf]
    %v40 = vld [vmem:[%s0 + $0x18] sm:$0xf]
    %v41 = vld [vmem:[%s0 + $0x1c] sm:$0xf]
    %v42 = vld [vmem:[%s0 + $0x20] sm:$0xf]
    %v43 = vld [vmem:[%s0 + $0x24] sm:$0xf]
    %v44 = vld [vmem:[%s0 + $0x28] sm:$0xf]
    %v45 = vld [vmem:[%s0 + $0x2c] sm:$0xf]
    %v46 = vld [vmem:[%s0 + $0x30] sm:$0xf]
    %v47 = vld [vmem:[%s0 + $0x34] sm:$0xf]
    %v48 = vld [vmem:[%s0 + $0x38] sm:$0xf]
    %v49 = vld [vmem:[%s0 + $0x3c] sm:$0xf]
    %v50 = vld [vmem:[%s1] sm:$0xff]
    %v51 = vld [vmem:[%s1 + $0x8] sm:$0xff]
    %v52 = vld [vmem:[%s1 + $0x10] sm:$0xff]
    %v53 = vld [vmem:[%s1 + $0x18] sm:$0xff]
    %v54 = vld [vmem:[%s1 + $0x20] sm:$0xff]
    %v55 = vld [vmem:[%s1 + $0x28] sm:$0xff]
    %v56 = vld [vmem:[%s1 + $0x30] sm:$0xff]
    %v57 = vld [vmem:[%s1 + $0x38] sm:$0xff]
    %v58 = vld [vmem:[%s1 + $0x40] sm:$0xff]
    %v59 = vld [vmem:[%s1 + $0x48] sm:$0xff]
    %v60 = vld [vmem:[%s1 + $0x50] sm:$0xff]
    %v61 = vld [vmem:[%s1 + $0x58] sm:$0xff]
    %v62 = vld [vmem:[%s1 + $0x60] sm:$0xff]
    %v63 = vld [vmem:[%s1 + $0x68] sm:$0xff]
    %v64 = vld [vmem:[%s1 + $0x70] sm:$0xff]
    %v65 = vld [vmem:[%s1 + $0x78] sm:$0xff]
    %v66 = vld [vmem:[%s1 + $0x80] sm:$0xff]
    %v67 = vld [vmem:[%s1 + $0x88] sm:$0xff]
    %v68 = vld [vmem:[%s1 + $0x90] sm:$0xff]
    %v69 = vld [vmem:[%s1 + $0x98] sm:$0xff]
    %v70 = vld [vmem:[%s1 + $0xa0] sm:$0xff]
    %v71 = vld [vmem:[%s1 + $0xa8] sm:$0xff]
    %v72 = vld [vmem:[%s1 + $0xb0] sm:$0xff]
    %v73 = vld [vmem:[%s1 + $0xb8] sm:$0xff]
    %v74 = vld [vmem:[%s1 + $0xc0] sm:$0xff]
    %v75 = vld [vmem:[%s1 + $0xc8] sm:$0xff]
    %v76 = vld [vmem:[%s1 + $0xd0] sm:$0xff]
    %v77 = vld [vmem:[%s1 + $0xd8] sm:$0xff]
    %v78 = vld [vmem:[%s1 + $0xe0] sm:$0xff]
    %v79 = vld [vmem:[%s1 + $0xe8] sm:$0xff]
    %v80 = vld [vmem:[%s1 + $0xf0] sm:$0xff]
    %v81 = vld [vmem:[%s1 + $0xf8] sm:$0xff]
    %v82 = vld [vmem:[%s3] sm:$0xf]
    %v84 = vlaneseq
    %v85 = vshrl.u32 %v84, 7
    %v86 = vsub.s32 0, %v85
    %v87 = vrot.slane %v82, %v86
    %v88 = vlaneseq
    %v89 = vshrl.u32 %v88, 7
    %v90 = vsub.s32 1, %v89
    %v91 = vrot.slane %v82, %v90
    %v92 = vlaneseq
    %v93 = vshrl.u32 %v92, 7
    %v94 = vsub.s32 2, %v93
    %v95 = vrot.slane %v82, %v94
    %v96 = vlaneseq
    %v97 = vshrl.u32 %v96, 7
    %v98 = vsub.s32 3, %v97
    %v99 = vrot.slane %v82, %v98
    %v120 = vunpack.c.l.b16 %v34
    %v121 = vunpack.c.l.b16 %v35
    %v122 = vunpack.c.l.b16 %v36
    %v123 = vunpack.c.l.b16 %v37
    %v124 = vunpack.c.l.b16 %v38
    %v125 = vunpack.c.l.b16 %v39
    %v126 = vunpack.c.l.b16 %v40
    %v127 = vunpack.c.l.b16 %v41
    %v128 = vunpack.c.l.b16 %v42
    %v129 = vunpack.c.l.b16 %v43
    %v130 = vunpack.c.l.b16 %v44
    %v131 = vunpack.c.l.b16 %v45
    %v132 = vunpack.c.l.b16 %v46
    %v133 = vunpack.c.l.b16 %v47
    %v134 = vunpack.c.l.b16 %v48
    %v135 = vunpack.c.l.b16 %v49
    %v136 = vpack.c.b16 %v121, %v120
    %v137 = vpack.c.b16 %v123, %v122
    %v138 = vpack.c.b16 %v125, %v124
    %v139 = vpack.c.b16 %v127, %v126
    %v140 = vpack.c.b16 %v129, %v128
    %v141 = vpack.c.b16 %v131, %v130
    %v142 = vpack.c.b16 %v133, %v132
    %v143 = vpack.c.b16 %v135, %v134
    %v184 = vunpack.c.l.b16 %v50
    %v185 = vunpack.c.h.b16 %v50
    %v186 = vunpack.c.l.b16 %v51
    %v187 = vunpack.c.h.b16 %v51
    %v188 = vunpack.c.l.b16 %v52
    %v189 = vunpack.c.h.b16 %v52
    %v190 = vunpack.c.l.b16 %v53
    %v191 = vunpack.c.h.b16 %v53
    %v192 = vunpack.c.l.b16 %v54
    %v193 = vunpack.c.h.b16 %v54
    %v194 = vunpack.c.l.b16 %v55
    %v195 = vunpack.c.h.b16 %v55
    %v196 = vunpack.c.l.b16 %v56
    %v197 = vunpack.c.h.b16 %v56
    %v198 = vunpack.c.l.b16 %v57
    %v199 = vunpack.c.h.b16 %v57
    %v200 = vunpack.c.l.b16 %v58
    %v201 = vunpack.c.h.b16 %v58
    %v202 = vunpack.c.l.b16 %v59
    %v203 = vunpack.c.h.b16 %v59
    %v204 = vunpack.c.l.b16 %v60
    %v205 = vunpack.c.h.b16 %v60
    %v206 = vunpack.c.l.b16 %v61
    %v207 = vunpack.c.h.b16 %v61
    %v208 = vunpack.c.l.b16 %v62
    %v209 = vunpack.c.h.b16 %v62
    %v210 = vunpack.c.l.b16 %v63
    %v211 = vunpack.c.h.b16 %v63
    %v212 = vunpack.c.l.b16 %v64
    %v213 = vunpack.c.h.b16 %v64
    %v214 = vunpack.c.l.b16 %v65
    %v215 = vunpack.c.h.b16 %v65
    %v216 = vunpack.c.l.b16 %v66
    %v217 = vunpack.c.h.b16 %v66
    %v218 = vunpack.c.l.b16 %v67
    %v219 = vunpack.c.h.b16 %v67
    %v220 = vunpack.c.l.b16 %v68
    %v221 = vunpack.c.h.b16 %v68
    %v222 = vunpack.c.l.b16 %v69
    %v223 = vunpack.c.h.b16 %v69
    %v224 = vunpack.c.l.b16 %v70
    %v225 = vunpack.c.h.b16 %v70
    %v226 = vunpack.c.l.b16 %v71
    %v227 = vunpack.c.h.b16 %v71
    %v228 = vunpack.c.l.b16 %v72
    %v229 = vunpack.c.h.b16 %v72
    %v230 = vunpack.c.l.b16 %v73
    %v231 = vunpack.c.h.b16 %v73
    %v232 = vunpack.c.l.b16 %v74
    %v233 = vunpack.c.h.b16 %v74
    %v234 = vunpack.c.l.b16 %v75
    %v235 = vunpack.c.h.b16 %v75
    %v236 = vunpack.c.l.b16 %v76
    %v237 = vunpack.c.h.b16 %v76
    %v238 = vunpack.c.l.b16 %v77
    %v239 = vunpack.c.h.b16 %v77
    %v240 = vunpack.c.l.b16 %v78
    %v241 = vunpack.c.h.b16 %v78
    %v242 = vunpack.c.l.b16 %v79
    %v243 = vunpack.c.h.b16 %v79
    %v244 = vunpack.c.l.b16 %v80
    %v245 = vunpack.c.h.b16 %v80
    %v246 = vunpack.c.l.b16 %v81
    %v247 = vunpack.c.h.b16 %v81
    %v248 = vpack.c.b16 %v188, %v184
    %v249 = vpack.c.b16 %v189, %v185
    %v250 = vpack.c.b16 %v190, %v186
    %v251 = vpack.c.b16 %v191, %v187
    %v252 = vpack.c.b16 %v196, %v192
    %v253 = vpack.c.b16 %v197, %v193
    %v254 = vpack.c.b16 %v198, %v194
    %v255 = vpack.c.b16 %v199, %v195
    %v256 = vpack.c.b16 %v204, %v200
    %v257 = vpack.c.b16 %v205, %v201
    %v258 = vpack.c.b16 %v206, %v202
    %v259 = vpack.c.b16 %v207, %v203
    %v260 = vpack.c.b16 %v212, %v208
    %v261 = vpack.c.b16 %v213, %v209
    %v262 = vpack.c.b16 %v214, %v210
    %v263 = vpack.c.b16 %v215, %v211
    %v264 = vpack.c.b16 %v220, %v216
    %v265 = vpack.c.b16 %v221, %v217
    %v266 = vpack.c.b16 %v222, %v218
    %v267 = vpack.c.b16 %v223, %v219
    %v268 = vpack.c.b16 %v228, %v224
    %v269 = vpack.c.b16 %v229, %v225
    %v270 = vpack.c.b16 %v230, %v226
    %v271 = vpack.c.b16 %v231, %v227
    %v272 = vpack.c.b16 %v236, %v232
    %v273 = vpack.c.b16 %v237, %v233
    %v274 = vpack.c.b16 %v238, %v234
    %v275 = vpack.c.b16 %v239, %v235
    %v276 = vpack.c.b16 %v244, %v240
    %v277 = vpack.c.b16 %v245, %v241
    %v278 = vpack.c.b16 %v246, %v242
    %v279 = vpack.c.b16 %v247, %v243
    %312 = vmatprep.subr.bf16.mxu0 %v277
    %313 = vmatpush1.bf16.msra.mxu0 %v276
    %314 = vmatprep.subr.bf16.mxu0 %v273
    %315 = vmatpush1.bf16.msra.mxu0 %v272
    %316 = vmatprep.subr.bf16.mxu0 %v269
    %317 = vmatpush1.bf16.msra.mxu0 %v268
    %318 = vmatprep.subr.bf16.mxu0 %v265
    %319 = vmatpush1.bf16.msra.mxu0 %v264
    %320 = vmatprep.subr.bf16.mxu0 %v261
    %321 = vmatpush1.bf16.msra.mxu0 %v260
    %322 = vmatprep.subr.bf16.mxu0 %v257
    %323 = vmatpush1.bf16.msra.mxu0 %v256
    %324 = vmatprep.subr.bf16.mxu0 %v253
    %325 = vmatpush1.bf16.msra.mxu0 %v252
    %326 = vmatprep.subr.bf16.mxu0 %v249
    %327 = vmatpush1.bf16.msra.mxu0 %v248
    %328 = vmatprep.subr.bf16.mxu0 0
    %329 = vmatpush2.bf16.msra.mxu0 0
    %330 = vmatprep.subr.bf16.mxu0 0
    %331 = vmatpush2.bf16.msra.mxu0 0
    %332 = vmatprep.subr.bf16.mxu0 0
    %333 = vmatpush2.bf16.msra.mxu0 0
    %334 = vmatprep.subr.bf16.mxu0 0
    %335 = vmatpush2.bf16.msra.mxu0 0
    %336 = vmatprep.subr.bf16.mxu0 0
    %337 = vmatpush2.bf16.msra.mxu0 0
    %338 = vmatprep.subr.bf16.mxu0 0
    %339 = vmatpush2.bf16.msra.mxu0 0
    %340 = vmatprep.subr.bf16.mxu0 0
    %341 = vmatpush2.bf16.msra.mxu0 0
    %342 = vmatprep.subr.bf16.mxu0 0
    %343 = vmatpush2.bf16.msra.mxu0 0
    %344 = vmatprep.mubr.bf16.mxu0 0
    %345 = vmatmul.mubr.bf16.gmra.mxu0 %v136
    %v346 = vpop.f32.mrf.mxu0
    %v347 = vadd.f32 %v87, %v346
    %v348 = vpop.f32.mrf.mxu0
    %v349 = vadd.f32 %v91, %v348
    %v350 = vpop.f32.mrf.mxu0
    %v351 = vadd.f32 %v87, %v350
    %v352 = vpop.f32.mrf.mxu0
    %v353 = vadd.f32 %v91, %v352
    %354 = vmatprep.mubr.bf16.mxu0 0
    %355 = vmatmul.mubr.bf16.gmra.mxu0 %v137
    %v356 = vpop.f32.mrf.mxu0
    %v357 = vadd.f32 %v87, %v356
    %v358 = vpop.f32.mrf.mxu0
    %v359 = vadd.f32 %v91, %v358
    %v360 = vpop.f32.mrf.mxu0
    %v361 = vadd.f32 %v87, %v360
    %v362 = vpop.f32.mrf.mxu0
    %v363 = vadd.f32 %v91, %v362
    %364 = vmatprep.mubr.bf16.mxu0 0
    %365 = vmatmul.mubr.bf16.gmra.mxu0 %v138
    %v366 = vpop.f32.mrf.mxu0
    %v367 = vadd.f32 %v87, %v366
    %v368 = vpop.f32.mrf.mxu0
    %v369 = vadd.f32 %v91, %v368
    %v370 = vpop.f32.mrf.mxu0
    %v371 = vadd.f32 %v87, %v370
    %v372 = vpop.f32.mrf.mxu0
    %v373 = vadd.f32 %v91, %v372
    %374 = vmatprep.mubr.bf16.mxu0 0
    %375 = vmatmul.mubr.bf16.gmra.mxu0 %v139
    %v376 = vpop.f32.mrf.mxu0
    %v377 = vadd.f32 %v87, %v376
    %v378 = vpop.f32.mrf.mxu0
    %v379 = vadd.f32 %v91, %v378
    %v380 = vpop.f32.mrf.mxu0
    %v381 = vadd.f32 %v87, %v380
    %v382 = vpop.f32.mrf.mxu0
    %v383 = vadd.f32 %v91, %v382
    %384 = vmatprep.mubr.bf16.mxu0 0
    %385 = vmatmul.mubr.bf16.gmra.mxu0 %v140
    %v386 = vpop.f32.mrf.mxu0
    %v387 = vadd.f32 %v87, %v386
    %v388 = vpop.f32.mrf.mxu0
    %v389 = vadd.f32 %v91, %v388
    %v390 = vpop.f32.mrf.mxu0
    %v391 = vadd.f32 %v87, %v390
    %v392 = vpop.f32.mrf.mxu0
    %v393 = vadd.f32 %v91, %v392
    %394 = vmatprep.mubr.bf16.mxu0 0
    %395 = vmatmul.mubr.bf16.gmra.mxu0 %v141
    %v396 = vpop.f32.mrf.mxu0
    %v397 = vadd.f32 %v87, %v396
    %v398 = vpop.f32.mrf.mxu0
    %v399 = vadd.f32 %v91, %v398
    %v400 = vpop.f32.mrf.mxu0
    %v401 = vadd.f32 %v87, %v400
    %v402 = vpop.f32.mrf.mxu0
    %v403 = vadd.f32 %v91, %v402
    %404 = vmatprep.mubr.bf16.mxu0 0
    %405 = vmatmul.mubr.bf16.gmra.mxu0 %v142
    %v406 = vpop.f32.mrf.mxu0
    %v407 = vadd.f32 %v87, %v406
    %v408 = vpop.f32.mrf.mxu0
    %v409 = vadd.f32 %v91, %v408
    %v410 = vpop.f32.mrf.mxu0
    %v411 = vadd.f32 %v87, %v410
    %v412 = vpop.f32.mrf.mxu0
    %v413 = vadd.f32 %v91, %v412
    %414 = vmatprep.mubr.bf16.mxu0 0
    %415 = vmatmul.mubr.bf16.gmra.mxu0 %v143
    %v416 = vpop.f32.mrf.mxu0
    %v417 = vadd.f32 %v87, %v416
    %v418 = vpop.f32.mrf.mxu0
    %v419 = vadd.f32 %v91, %v418
    %v420 = vpop.f32.mrf.mxu0
    %v421 = vadd.f32 %v87, %v420
    %v422 = vpop.f32.mrf.mxu0
    %v423 = vadd.f32 %v91, %v422
    %424 = vdwg.mxu0
    %425 = vmatprep.subr.bf16.mxu0 %v279
    %426 = vmatpush1.bf16.msra.mxu0 %v278
    %427 = vmatprep.subr.bf16.mxu0 %v275
    %428 = vmatpush1.bf16.msra.mxu0 %v274
    %429 = vmatprep.subr.bf16.mxu0 %v271
    %430 = vmatpush1.bf16.msra.mxu0 %v270
    %431 = vmatprep.subr.bf16.mxu0 %v267
    %432 = vmatpush1.bf16.msra.mxu0 %v266
    %433 = vmatprep.subr.bf16.mxu0 %v263
    %434 = vmatpush1.bf16.msra.mxu0 %v262
    %435 = vmatprep.subr.bf16.mxu0 %v259
    %436 = vmatpush1.bf16.msra.mxu0 %v258
    %437 = vmatprep.subr.bf16.mxu0 %v255
    %438 = vmatpush1.bf16.msra.mxu0 %v254
    %439 = vmatprep.subr.bf16.mxu0 %v251
    %440 = vmatpush1.bf16.msra.mxu0 %v250
    %441 = vmatprep.subr.bf16.mxu0 0
    %442 = vmatpush2.bf16.msra.mxu0 0
    %443 = vmatprep.subr.bf16.mxu0 0
    %444 = vmatpush2.bf16.msra.mxu0 0
    %445 = vmatprep.subr.bf16.mxu0 0
    %446 = vmatpush2.bf16.msra.mxu0 0
    %447 = vmatprep.subr.bf16.mxu0 0
    %448 = vmatpush2.bf16.msra.mxu0 0
    %449 = vmatprep.subr.bf16.mxu0 0
    %450 = vmatpush2.bf16.msra.mxu0 0
    %451 = vmatprep.subr.bf16.mxu0 0
    %452 = vmatpush2.bf16.msra.mxu0 0
    %453 = vmatprep.subr.bf16.mxu0 0
    %454 = vmatpush2.bf16.msra.mxu0 0
    %455 = vmatprep.subr.bf16.mxu0 0
    %456 = vmatpush2.bf16.msra.mxu0 0
    %457 = vmatprep.mubr.bf16.mxu0 0
    %458 = vmatmul.mubr.bf16.gmra.mxu0 %v136
    %v459 = vpop.f32.mrf.mxu0
    %v460 = vadd.f32 %v95, %v459
    %v461 = vpop.f32.mrf.mxu0
    %v462 = vadd.f32 %v99, %v461
    %v463 = vpop.f32.mrf.mxu0
    %v464 = vadd.f32 %v95, %v463
    %v465 = vpop.f32.mrf.mxu0
    %v466 = vadd.f32 %v99, %v465
    %467 = vmatprep.mubr.bf16.mxu0 0
    %468 = vmatmul.mubr.bf16.gmra.mxu0 %v137
    %v469 = vpop.f32.mrf.mxu0
    %v470 = vadd.f32 %v95, %v469
    %v471 = vpop.f32.mrf.mxu0
    %v472 = vadd.f32 %v99, %v471
    %v473 = vpop.f32.mrf.mxu0
    %v474 = vadd.f32 %v95, %v473
    %v475 = vpop.f32.mrf.mxu0
    %v476 = vadd.f32 %v99, %v475
    %477 = vmatprep.mubr.bf16.mxu0 0
    %478 = vmatmul.mubr.bf16.gmra.mxu0 %v138
    %v479 = vpop.f32.mrf.mxu0
    %v480 = vadd.f32 %v95, %v479
    %v481 = vpop.f32.mrf.mxu0
    %v482 = vadd.f32 %v99, %v481
    %v483 = vpop.f32.mrf.mxu0
    %v484 = vadd.f32 %v95, %v483
    %v485 = vpop.f32.mrf.mxu0
    %v486 = vadd.f32 %v99, %v485
    %487 = vmatprep.mubr.bf16.mxu0 0
    %488 = vmatmul.mubr.bf16.gmra.mxu0 %v139
    %v489 = vpop.f32.mrf.mxu0
    %v490 = vadd.f32 %v95, %v489
    %v491 = vpop.f32.mrf.mxu0
    %v492 = vadd.f32 %v99, %v491
    %v493 = vpop.f32.mrf.mxu0
    %v494 = vadd.f32 %v95, %v493
    %v495 = vpop.f32.mrf.mxu0
    %v496 = vadd.f32 %v99, %v495
    %497 = vmatprep.mubr.bf16.mxu0 0
    %498 = vmatmul.mubr.bf16.gmra.mxu0 %v140
    %v499 = vpop.f32.mrf.mxu0
    %v500 = vadd.f32 %v95, %v499
    %v501 = vpop.f32.mrf.mxu0
    %v502 = vadd.f32 %v99, %v501
    %v503 = vpop.f32.mrf.mxu0
    %v504 = vadd.f32 %v95, %v503
    %v505 = vpop.f32.mrf.mxu0
    %v506 = vadd.f32 %v99, %v505
    %507 = vmatprep.mubr.bf16.mxu0 0
    %508 = vmatmul.mubr.bf16.gmra.mxu0 %v141
    %v509 = vpop.f32.mrf.mxu0
    %v510 = vadd.f32 %v95, %v509
    %v511 = vpop.f32.mrf.mxu0
    %v512 = vadd.f32 %v99, %v511
    %v513 = vpop.f32.mrf.mxu0
    %v514 = vadd.f32 %v95, %v513
    %v515 = vpop.f32.mrf.mxu0
    %v516 = vadd.f32 %v99, %v515
    %517 = vmatprep.mubr.bf16.mxu0 0
    %518 = vmatmul.mubr.bf16.gmra.mxu0 %v142
    %v519 = vpop.f32.mrf.mxu0
    %v520 = vadd.f32 %v95, %v519
    %v521 = vpop.f32.mrf.mxu0
    %v522 = vadd.f32 %v99, %v521
    %v523 = vpop.f32.mrf.mxu0
    %v524 = vadd.f32 %v95, %v523
    %v525 = vpop.f32.mrf.mxu0
    %v526 = vadd.f32 %v99, %v525
    %527 = vmatprep.mubr.bf16.mxu0 0
    %528 = vmatmul.mubr.bf16.gmra.mxu0 %v143
    %v529 = vpop.f32.mrf.mxu0
    %v530 = vadd.f32 %v95, %v529
    %v531 = vpop.f32.mrf.mxu0
    %v532 = vadd.f32 %v99, %v531
    %v533 = vpop.f32.mrf.mxu0
    %v534 = vadd.f32 %v95, %v533
    %v535 = vpop.f32.mrf.mxu0
    %v536 = vadd.f32 %v99, %v535
    %537 = vdwg.mxu0
    %538 = vst [vmem:[#allocation2] sm:$0xff] %v347
    %539 = vst [vmem:[#allocation2 + $0x8] sm:$0xff] %v349
    %540 = vst [vmem:[#allocation2 + $0x10] sm:$0xff] %v460
    %541 = vst [vmem:[#allocation2 + $0x18] sm:$0xff] %v462
    %542 = vst [vmem:[#allocation2 + $0x20] sm:$0xff] %v351
    %543 = vst [vmem:[#allocation2 + $0x28] sm:$0xff] %v353
    %544 = vst [vmem:[#allocation2 + $0x30] sm:$0xff] %v464
    %545 = vst [vmem:[#allocation2 + $0x38] sm:$0xff] %v466
    %546 = vst [vmem:[#allocation2 + $0x40] sm:$0xff] %v357
    %547 = vst [vmem:[#allocation2 + $0x48] sm:$0xff] %v359
    %548 = vst [vmem:[#allocation2 + $0x50] sm:$0xff] %v470
    %549 = vst [vmem:[#allocation2 + $0x58] sm:$0xff] %v472
    %550 = vst [vmem:[#allocation2 + $0x60] sm:$0xff] %v361
    %551 = vst [vmem:[#allocation2 + $0x68] sm:$0xff] %v363
    %552 = vst [vmem:[#allocation2 + $0x70] sm:$0xff] %v474
    %553 = vst [vmem:[#allocation2 + $0x78] sm:$0xff] %v476
    %554 = vst [vmem:[#allocation2 + $0x80] sm:$0xff] %v367
    %555 = vst [vmem:[#allocation2 + $0x88] sm:$0xff] %v369
    %556 = vst [vmem:[#allocation2 + $0x90] sm:$0xff] %v480
    %557 = vst [vmem:[#allocation2 + $0x98] sm:$0xff] %v482
    %558 = vst [vmem:[#allocation2 + $0xa0] sm:$0xff] %v371
    %559 = vst [vmem:[#allocation2 + $0xa8] sm:$0xff] %v373
    %560 = vst [vmem:[#allocation2 + $0xb0] sm:$0xff] %v484
    %561 = vst [vmem:[#allocation2 + $0xb8] sm:$0xff] %v486
    %562 = vst [vmem:[#allocation2 + $0xc0] sm:$0xff] %v377
    %563 = vst [vmem:[#allocation2 + $0xc8] sm:$0xff] %v379
    %564 = vst [vmem:[#allocation2 + $0xd0] sm:$0xff] %v490
    %565 = vst [vmem:[#allocation2 + $0xd8] sm:$0xff] %v492
    %566 = vst [vmem:[#allocation2 + $0xe0] sm:$0xff] %v381
    %567 = vst [vmem:[#allocation2 + $0xe8] sm:$0xff] %v383
    %568 = vst [vmem:[#allocation2 + $0xf0] sm:$0xff] %v494
    %569 = vst [vmem:[#allocation2 + $0xf8] sm:$0xff] %v496
    %570 = vst [vmem:[#allocation2 + $0x100] sm:$0xff] %v387
    %571 = vst [vmem:[#allocation2 + $0x108] sm:$0xff] %v389
    %572 = vst [vmem:[#allocation2 + $0x110] sm:$0xff] %v500
    %573 = vst [vmem:[#allocation2 + $0x118] sm:$0xff] %v502
    %574 = vst [vmem:[#allocation2 + $0x120] sm:$0xff] %v391
    %575 = vst [vmem:[#allocation2 + $0x128] sm:$0xff] %v393
    %576 = vst [vmem:[#allocation2 + $0x130] sm:$0xff] %v504
    %577 = vst [vmem:[#allocation2 + $0x138] sm:$0xff] %v506
    %578 = vst [vmem:[#allocation2 + $0x140] sm:$0xff] %v397
    %579 = vst [vmem:[#allocation2 + $0x148] sm:$0xff] %v399
    %580 = vst [vmem:[#allocation2 + $0x150] sm:$0xff] %v510
    %581 = vst [vmem:[#allocation2 + $0x158] sm:$0xff] %v512
    %582 = vst [vmem:[#allocation2 + $0x160] sm:$0xff] %v401
    %583 = vst [vmem:[#allocation2 + $0x168] sm:$0xff] %v403
    %584 = vst [vmem:[#allocation2 + $0x170] sm:$0xff] %v514
    %585 = vst [vmem:[#allocation2 + $0x178] sm:$0xff] %v516
    %586 = vst [vmem:[#allocation2 + $0x180] sm:$0xff] %v407
    %587 = vst [vmem:[#allocation2 + $0x188] sm:$0xff] %v409
    %588 = vst [vmem:[#allocation2 + $0x190] sm:$0xff] %v520
    %589 = vst [vmem:[#allocation2 + $0x198] sm:$0xff] %v522
    %590 = vst [vmem:[#allocation2 + $0x1a0] sm:$0xff] %v411
    %591 = vst [vmem:[#allocation2 + $0x1a8] sm:$0xff] %v413
    %592 = vst [vmem:[#allocation2 + $0x1b0] sm:$0xff] %v524
    %593 = vst [vmem:[#allocation2 + $0x1b8] sm:$0xff] %v526
    %594 = vst [vmem:[#allocation2 + $0x1c0] sm:$0xff] %v417
    %595 = vst [vmem:[#allocation2 + $0x1c8] sm:$0xff] %v419
    %596 = vst [vmem:[#allocation2 + $0x1d0] sm:$0xff] %v530
    %597 = vst [vmem:[#allocation2 + $0x1d8] sm:$0xff] %v532
    %598 = vst [vmem:[#allocation2 + $0x1e0] sm:$0xff] %v421
    %599 = vst [vmem:[#allocation2 + $0x1e8] sm:$0xff] %v423
    %600 = vst [vmem:[#allocation2 + $0x1f0] sm:$0xff] %v534
    %601 = vst [vmem:[#allocation2 + $0x1f8] sm:$0xff] %v536
    %602 = vst [vmem:[#allocation4] sm:$0xff] 0.0
    %603 = vst [vmem:[#allocation4 + $0x8] sm:$0xff] 0.0
    %604 = vst [vmem:[#allocation5] sm:$0xff] 0.0
    %605 = vst [vmem:[#allocation5 + $0x8] sm:$0xff] 0.0
    %v606 = vld [vmem:[#allocation4] sm:$0xff]
    %v607 = vld [vmem:[#allocation4 + $0x8] sm:$0xff]
    %s608 = smul.u32 0, 4
    %s609 = smul.addr %s608, 8
    %s610 = scalar_lea.vmem [#allocation2], %s609
    %v611 = vld [vmem:[%s610] sm:$0xff]
    %v612 = vld [vmem:[%s610 + $0x8] sm:$0xff]
    %v613 = vld [vmem:[%s610 + $0x10] sm:$0xff]
    %v614 = vld [vmem:[%s610 + $0x18] sm:$0xff]
    %v615 = vld [vmem:[%s610 + $0x20] sm:$0xff]
    %v616 = vld [vmem:[%s610 + $0x28] sm:$0xff]
    %v617 = vld [vmem:[%s610 + $0x30] sm:$0xff]
    %v618 = vld [vmem:[%s610 + $0x38] sm:$0xff]
    %v619 = vpack.c.bf16 %v607, %v606
    %v620 = vld [vmem:[%s2] sm:$0xff]
    %v621 = vld [vmem:[%s2 + $0x8] sm:$0xff]
    %v622 = vld [vmem:[%s2 + $0x10] sm:$0xff]
    %v623 = vld [vmem:[%s2 + $0x18] sm:$0xff]
    %v624 = vld [vmem:[%s2 + $0x20] sm:$0xff]
    %v625 = vld [vmem:[%s2 + $0x28] sm:$0xff]
    %v626 = vld [vmem:[%s2 + $0x30] sm:$0xff]
    %v627 = vld [vmem:[%s2 + $0x38] sm:$0xff]
    %v628 = vld [vmem:[%s2 + $0x40] sm:$0xff]
    %v629 = vld [vmem:[%s2 + $0x48] sm:$0xff]
    %v630 = vld [vmem:[%s2 + $0x50] sm:$0xff]
    %v631 = vld [vmem:[%s2 + $0x58] sm:$0xff]
    %v632 = vld [vmem:[%s2 + $0x60] sm:$0xff]
    %v633 = vld [vmem:[%s2 + $0x68] sm:$0xff]
    %v634 = vld [vmem:[%s2 + $0x70] sm:$0xff]
    %v635 = vld [vmem:[%s2 + $0x78] sm:$0xff]
    %v636 = vld [vmem:[%s2 + $0x80] sm:$0xff]
    %v637 = vld [vmem:[%s2 + $0x88] sm:$0xff]
    %v638 = vld [vmem:[%s2 + $0x90] sm:$0xff]
    %v639 = vld [vmem:[%s2 + $0x98] sm:$0xff]
    %v640 = vld [vmem:[%s2 + $0xa0] sm:$0xff]
    %v641 = vld [vmem:[%s2 + $0xa8] sm:$0xff]
    %v642 = vld [vmem:[%s2 + $0xb0] sm:$0xff]
    %v643 = vld [vmem:[%s2 + $0xb8] sm:$0xff]
    %v644 = vld [vmem:[%s2 + $0xc0] sm:$0xff]
    %v645 = vld [vmem:[%s2 + $0xc8] sm:$0xff]
    %v646 = vld [vmem:[%s2 + $0xd0] sm:$0xff]
    %v647 = vld [vmem:[%s2 + $0xd8] sm:$0xff]
    %v648 = vld [vmem:[%s2 + $0xe0] sm:$0xff]
    %v649 = vld [vmem:[%s2 + $0xe8] sm:$0xff]
    %v650 = vld [vmem:[%s2 + $0xf0] sm:$0xff]
    %v651 = vld [vmem:[%s2 + $0xf8] sm:$0xff]
    %v684 = vunpack.c.l.b16 %v620
    %v685 = vunpack.c.h.b16 %v620
    %v686 = vunpack.c.l.b16 %v621
    %v687 = vunpack.c.h.b16 %v621
    %v688 = vunpack.c.l.b16 %v622
    %v689 = vunpack.c.h.b16 %v622
    %v690 = vunpack.c.l.b16 %v623
    %v691 = vunpack.c.h.b16 %v623
    %v692 = vunpack.c.l.b16 %v624
    %v693 = vunpack.c.h.b16 %v624
    %v694 = vunpack.c.l.b16 %v625
    %v695 = vunpack.c.h.b16 %v625
    %v696 = vunpack.c.l.b16 %v626
    %v697 = vunpack.c.h.b16 %v626
    %v698 = vunpack.c.l.b16 %v627
    %v699 = vunpack.c.h.b16 %v627
    %v700 = vunpack.c.l.b16 %v628
    %v701 = vunpack.c.h.b16 %v628
    %v702 = vunpack.c.l.b16 %v629
    %v703 = vunpack.c.h.b16 %v629
    %v704 = vunpack.c.l.b16 %v630
    %v705 = vunpack.c.h.b16 %v630
    %v706 = vunpack.c.l.b16 %v631
    %v707 = vunpack.c.h.b16 %v631
    %v708 = vunpack.c.l.b16 %v632
    %v709 = vunpack.c.h.b16 %v632
    %v710 = vunpack.c.l.b16 %v633
    %v711 = vunpack.c.h.b16 %v633
    %v712 = vunpack.c.l.b16 %v634
    %v713 = vunpack.c.h.b16 %v634
    %v714 = vunpack.c.l.b16 %v635
    %v715 = vunpack.c.h.b16 %v635
    %v716 = vunpack.c.l.b16 %v636
    %v717 = vunpack.c.h.b16 %v636
    %v718 = vunpack.c.l.b16 %v637
    %v719 = vunpack.c.h.b16 %v637
    %v720 = vunpack.c.l.b16 %v638
    %v721 = vunpack.c.h.b16 %v638
    %v722 = vunpack.c.l.b16 %v639
    %v723 = vunpack.c.h.b16 %v639
    %v724 = vunpack.c.l.b16 %v640
    %v725 = vunpack.c.h.b16 %v640
    %v726 = vunpack.c.l.b16 %v641
    %v727 = vunpack.c.h.b16 %v641
    %v728 = vunpack.c.l.b16 %v642
    %v729 = vunpack.c.h.b16 %v642
    %v730 = vunpack.c.l.b16 %v643
    %v731 = vunpack.c.h.b16 %v643
    %v732 = vunpack.c.l.b16 %v644
    %v733 = vunpack.c.h.b16 %v644
    %v734 = vunpack.c.l.b16 %v645
    %v735 = vunpack.c.h.b16 %v645
    %v736 = vunpack.c.l.b16 %v646
    %v737 = vunpack.c.h.b16 %v646
    %v738 = vunpack.c.l.b16 %v647
    %v739 = vunpack.c.h.b16 %v647
    %v740 = vunpack.c.l.b16 %v648
    %v741 = vunpack.c.h.b16 %v648
    %v742 = vunpack.c.l.b16 %v649
    %v743 = vunpack.c.h.b16 %v649
    %v744 = vunpack.c.l.b16 %v650
    %v745 = vunpack.c.h.b16 %v650
    %v746 = vunpack.c.l.b16 %v651
    %v747 = vunpack.c.h.b16 %v651
    %v748 = vpack.c.b16 %v688, %v684
    %v749 = vpack.c.b16 %v689, %v685
    %v750 = vpack.c.b16 %v690, %v686
    %v751 = vpack.c.b16 %v691, %v687
    %v752 = vpack.c.b16 %v696, %v692
    %v753 = vpack.c.b16 %v697, %v693
    %v754 = vpack.c.b16 %v698, %v694
    %v755 = vpack.c.b16 %v699, %v695
    %v756 = vpack.c.b16 %v704, %v700
    %v757 = vpack.c.b16 %v705, %v701
    %v758 = vpack.c.b16 %v706, %v702
    %v759 = vpack.c.b16 %v707, %v703
    %v760 = vpack.c.b16 %v712, %v708
    %v761 = vpack.c.b16 %v713, %v709
    %v762 = vpack.c.b16 %v714, %v710
    %v763 = vpack.c.b16 %v715, %v711
    %v764 = vpack.c.b16 %v720, %v716
    %v765 = vpack.c.b16 %v721, %v717
    %v766 = vpack.c.b16 %v722, %v718
    %v767 = vpack.c.b16 %v723, %v719
    %v768 = vpack.c.b16 %v728, %v724
    %v769 = vpack.c.b16 %v729, %v725
    %v770 = vpack.c.b16 %v730, %v726
    %v771 = vpack.c.b16 %v731, %v727
    %v772 = vpack.c.b16 %v736, %v732
    %v773 = vpack.c.b16 %v737, %v733
    %v774 = vpack.c.b16 %v738, %v734
    %v775 = vpack.c.b16 %v739, %v735
    %v776 = vpack.c.b16 %v744, %v740
    %v777 = vpack.c.b16 %v745, %v741
    %v778 = vpack.c.b16 %v746, %v742
    %v779 = vpack.c.b16 %v747, %v743
    %812 = vmatprep.subr.bf16.mxu0 %v777
    %813 = vmatpush1.bf16.msra.mxu0 %v776
    %814 = vmatprep.subr.bf16.mxu0 %v773
    %815 = vmatpush1.bf16.msra.mxu0 %v772
    %816 = vmatprep.subr.bf16.mxu0 %v769
    %817 = vmatpush1.bf16.msra.mxu0 %v768
    %818 = vmatprep.subr.bf16.mxu0 %v765
    %819 = vmatpush1.bf16.msra.mxu0 %v764
    %820 = vmatprep.subr.bf16.mxu0 %v761
    %821 = vmatpush1.bf16.msra.mxu0 %v760
    %822 = vmatprep.subr.bf16.mxu0 %v757
    %823 = vmatpush1.bf16.msra.mxu0 %v756
    %824 = vmatprep.subr.bf16.mxu0 %v753
    %825 = vmatpush1.bf16.msra.mxu0 %v752
    %826 = vmatprep.subr.bf16.mxu0 %v749
    %827 = vmatpush1.bf16.msra.mxu0 %v748
    %828 = vmatprep.subr.bf16.mxu0 0
    %829 = vmatpush2.bf16.msra.mxu0 0
    %830 = vmatprep.subr.bf16.mxu0 0
    %831 = vmatpush2.bf16.msra.mxu0 0
    %832 = vmatprep.subr.bf16.mxu0 0
    %833 = vmatpush2.bf16.msra.mxu0 0
    %834 = vmatprep.subr.bf16.mxu0 0
    %835 = vmatpush2.bf16.msra.mxu0 0
    %836 = vmatprep.subr.bf16.mxu0 0
    %837 = vmatpush2.bf16.msra.mxu0 0
    %838 = vmatprep.subr.bf16.mxu0 0
    %839 = vmatpush2.bf16.msra.mxu0 0
    %840 = vmatprep.subr.bf16.mxu0 0
    %841 = vmatpush2.bf16.msra.mxu0 0
    %842 = vmatprep.subr.bf16.mxu0 0
    %843 = vmatpush2.bf16.msra.mxu0 0
    %844 = vmatprep.mubr.bf16.mxu0 0
    %845 = vmatmul.mubr.bf16.gmra.mxu0 %v619
    %v846 = vpop.f32.mrf.mxu0
    %v847 = vadd.f32 0.0, %v846
    %v848 = vpop.f32.mrf.mxu0
    %v849 = vadd.f32 0.0, %v848
    %v850 = vpop.f32.mrf.mxu0
    %v851 = vadd.f32 0.0, %v850
    %v852 = vpop.f32.mrf.mxu0
    %v853 = vadd.f32 0.0, %v852
    %854 = vdwg.mxu0
    %855 = vmatprep.subr.bf16.mxu0 %v779
    %856 = vmatpush1.bf16.msra.mxu0 %v778
    %857 = vmatprep.subr.bf16.mxu0 %v775
    %858 = vmatpush1.bf16.msra.mxu0 %v774
    %859 = vmatprep.subr.bf16.mxu0 %v771
    %860 = vmatpush1.bf16.msra.mxu0 %v770
    %861 = vmatprep.subr.bf16.mxu0 %v767
    %862 = vmatpush1.bf16.msra.mxu0 %v766
    %863 = vmatprep.subr.bf16.mxu0 %v763
    %864 = vmatpush1.bf16.msra.mxu0 %v762
    %865 = vmatprep.subr.bf16.mxu0 %v759
    %866 = vmatpush1.bf16.msra.mxu0 %v758
    %867 = vmatprep.subr.bf16.mxu0 %v755
    %868 = vmatpush1.bf16.msra.mxu0 %v754
    %869 = vmatprep.subr.bf16.mxu0 %v751
    %870 = vmatpush1.bf16.msra.mxu0 %v750
    %871 = vmatprep.subr.bf16.mxu0 0
    %872 = vmatpush2.bf16.msra.mxu0 0
    %873 = vmatprep.subr.bf16.mxu0 0
    %874 = vmatpush2.bf16.msra.mxu0 0
    %875 = vmatprep.subr.bf16.mxu0 0
    %876 = vmatpush2.bf16.msra.mxu0 0
    %877 = vmatprep.subr.bf16.mxu0 0
    %878 = vmatpush2.bf16.msra.mxu0 0
    %879 = vmatprep.subr.bf16.mxu0 0
    %880 = vmatpush2.bf16.msra.mxu0 0
    %881 = vmatprep.subr.bf16.mxu0 0
    %882 = vmatpush2.bf16.msra.mxu0 0
    %883 = vmatprep.subr.bf16.mxu0 0
    %884 = vmatpush2.bf16.msra.mxu0 0
    %885 = vmatprep.subr.bf16.mxu0 0
    %886 = vmatpush2.bf16.msra.mxu0 0
    %887 = vmatprep.mubr.bf16.mxu0 0
    %888 = vmatmul.mubr.bf16.gmra.mxu0 %v619
    %v889 = vpop.f32.mrf.mxu0
    %v890 = vadd.f32 0.0, %v889
    %v891 = vpop.f32.mrf.mxu0
    %v892 = vadd.f32 0.0, %v891
    %v893 = vpop.f32.mrf.mxu0
    %v894 = vadd.f32 0.0, %v893
    %v895 = vpop.f32.mrf.mxu0
    %v896 = vadd.f32 0.0, %v895
    %897 = vdwg.mxu0
    %v898 = vadd.f32 %v611, %v847
    %v899 = vadd.f32 %v612, %v849
    %v900 = vadd.f32 %v613, %v890
    %v901 = vadd.f32 %v614, %v892
    %v902 = vadd.f32 %v615, %v851
    %v903 = vadd.f32 %v616, %v853
    %v904 = vadd.f32 %v617, %v894
    %v905 = vadd.f32 %v618, %v896
    %v906 = vxor.u32 %v898, 2147483648
    %v907 = vxor.u32 %v902, 2147483648
    %v908 = vmul.f32 %v906, 1.442695
    %v909 = vpow.pop %v908
    %v910 = vmul.f32 %v907, 1.442695
    %v911 = vpow.pop %v910
    %v912 = vadd.f32 %v909, 1.0
    %v913 = vadd.f32 %v911, 1.0
    %v914 = vrcp.pop %v912
    %v915 = vmul.f32 1.0, %v914
    %v916 = vrcp.pop %v913
    %v917 = vmul.f32 1.0, %v916
    %v918 = vxor.u32 %v899, 2147483648
    %v919 = vxor.u32 %v903, 2147483648
    %v920 = vmul.f32 %v918, 1.442695
    %v921 = vpow.pop %v920
    %v922 = vmul.f32 %v919, 1.442695
    %v923 = vpow.pop %v922
    %v924 = vadd.f32 %v921, 1.0
    %v925 = vadd.f32 %v923, 1.0
    %v926 = vrcp.pop %v924
    %v927 = vmul.f32 1.0, %v926
    %v928 = vrcp.pop %v925
    %v929 = vmul.f32 1.0, %v928
    %v930 = vtanh.pop %v900
    %v931 = vtanh.pop %v904
    %v932 = vxor.u32 %v901, 2147483648
    %v933 = vxor.u32 %v905, 2147483648
    %v934 = vmul.f32 %v932, 1.442695
    %v935 = vpow.pop %v934
    %v936 = vmul.f32 %v933, 1.442695
    %v937 = vpow.pop %v936
    %v938 = vadd.f32 %v935, 1.0
    %v939 = vadd.f32 %v937, 1.0
    %v940 = vrcp.pop %v938
    %v941 = vmul.f32 1.0, %v940
    %v942 = vrcp.pop %v939
    %v943 = vmul.f32 1.0, %v942
    %v944 = vld [vmem:[#allocation5] sm:$0xff]
    %v945 = vld [vmem:[#allocation5 + $0x8] sm:$0xff]
    %v946 = vmul.f32 %v927, %v944
    %v947 = vmul.f32 %v929, %v945
    %v948 = vmul.f32 %v915, %v930
    %v949 = vmul.f32 %v917, %v931
    %v950 = vadd.f32 %v946, %v948
    %v951 = vadd.f32 %v947, %v949
    %v952 = vtanh.pop %v950
    %v953 = vtanh.pop %v951
    %v954 = vmul.f32 %v941, %v952
    %v955 = vmul.f32 %v943, %v953
    %956 = vst [vmem:[#allocation5] sm:$0xff] %v950
    %957 = vst [vmem:[#allocation5 + $0x8] sm:$0xff] %v951
    %958 = vst [vmem:[#allocation4] sm:$0xff] %v954
    %959 = vst [vmem:[#allocation4 + $0x8] sm:$0xff] %v955
    %v960 = vpack.c.bf16 %v955, %v954
    %v962 = vunpack.c.l.b16 %v960
    %v963 = vunpack.c.h.b16 %v960
    %v964 = vpack.c.b16 %v962, %v962
    %v965 = vpack.c.b16 %v963, %v963
    %968 = vst [vmem:[#allocation3] sm:$0xf] %v964
    %969 = vst [vmem:[#allocation3 + $0x4] sm:$0xf] %v965
    %v970 = vld [vmem:[#allocation4] sm:$0xff]
    %v971 = vld [vmem:[#allocation4 + $0x8] sm:$0xff]
    %s972 = smul.u32 2, 4
    %s973 = smul.addr %s972, 8
    %s974 = scalar_lea.vmem [#allocation2], %s973
    %v975 = vld [vmem:[%s974] sm:$0xff]
    %v976 = vld [vmem:[%s974 + $0x8] sm:$0xff]
    %v977 = vld [vmem:[%s974 + $0x10] sm:$0xff]
    %v978 = vld [vmem:[%s974 + $0x18] sm:$0xff]
    %v979 = vld [vmem:[%s974 + $0x20] sm:$0xff]
    %v980 = vld [vmem:[%s974 + $0x28] sm:$0xff]
    %v981 = vld [vmem:[%s974 + $0x30] sm:$0xff]
    %v982 = vld [vmem:[%s974 + $0x38] sm:$0xff]
    %v983 = vpack.c.bf16 %v971, %v970
    %v984 = vld [vmem:[%s2] sm:$0xff]
    %v985 = vld [vmem:[%s2 + $0x8] sm:$0xff]
    %v986 = vld [vmem:[%s2 + $0x10] sm:$0xff]
    %v987 = vld [vmem:[%s2 + $0x18] sm:$0xff]
    %v988 = vld [vmem:[%s2 + $0x20] sm:$0xff]
    %v989 = vld [vmem:[%s2 + $0x28] sm:$0xff]
    %v990 = vld [vmem:[%s2 + $0x30] sm:$0xff]
    %v991 = vld [vmem:[%s2 + $0x38] sm:$0xff]
    %v992 = vld [vmem:[%s2 + $0x40] sm:$0xff]
    %v993 = vld [vmem:[%s2 + $0x48] sm:$0xff]
    %v994 = vld [vmem:[%s2 + $0x50] sm:$0xff]
    %v995 = vld [vmem:[%s2 + $0x58] sm:$0xff]
    %v996 = vld [vmem:[%s2 + $0x60] sm:$0xff]
    %v997 = vld [vmem:[%s2 + $0x68] sm:$0xff]
    %v998 = vld [vmem:[%s2 + $0x70] sm:$0xff]
    %v999 = vld [vmem:[%s2 + $0x78] sm:$0xff]
    %v1000 = vld [vmem:[%s2 + $0x80] sm:$0xff]
    %v1001 = vld [vmem:[%s2 + $0x88] sm:$0xff]
    %v1002 = vld [vmem:[%s2 + $0x90] sm:$0xff]
    %v1003 = vld [vmem:[%s2 + $0x98] sm:$0xff]
    %v1004 = vld [vmem:[%s2 + $0xa0] sm:$0xff]
    %v1005 = vld [vmem:[%s2 + $0xa8] sm:$0xff]
    %v1006 = vld [vmem:[%s2 + $0xb0] sm:$0xff]
    %v1007 = vld [vmem:[%s2 + $0xb8] sm:$0xff]
    %v1008 = vld [vmem:[%s2 + $0xc0] sm:$0xff]
    %v1009 = vld [vmem:[%s2 + $0xc8] sm:$0xff]
    %v1010 = vld [vmem:[%s2 + $0xd0] sm:$0xff]
    %v1011 = vld [vmem:[%s2 + $0xd8] sm:$0xff]
    %v1012 = vld [vmem:[%s2 + $0xe0] sm:$0xff]
    %v1013 = vld [vmem:[%s2 + $0xe8] sm:$0xff]
    %v1014 = vld [vmem:[%s2 + $0xf0] sm:$0xff]
    %v1015 = vld [vmem:[%s2 + $0xf8] sm:$0xff]
    %v1048 = vunpack.c.l.b16 %v984
    %v1049 = vunpack.c.h.b16 %v984
    %v1050 = vunpack.c.l.b16 %v985
    %v1051 = vunpack.c.h.b16 %v985
    %v1052 = vunpack.c.l.b16 %v986
    %v1053 = vunpack.c.h.b16 %v986
    %v1054 = vunpack.c.l.b16 %v987
    %v1055 = vunpack.c.h.b16 %v987
    %v1056 = vunpack.c.l.b16 %v988
    %v1057 = vunpack.c.h.b16 %v988
    %v1058 = vunpack.c.l.b16 %v989
    %v1059 = vunpack.c.h.b16 %v989
    %v1060 = vunpack.c.l.b16 %v990
    %v1061 = vunpack.c.h.b16 %v990
    %v1062 = vunpack.c.l.b16 %v991
    %v1063 = vunpack.c.h.b16 %v991
    %v1064 = vunpack.c.l.b16 %v992
    %v1065 = vunpack.c.h.b16 %v992
    %v1066 = vunpack.c.l.b16 %v993
    %v1067 = vunpack.c.h.b16 %v993
    %v1068 = vunpack.c.l.b16 %v994
    %v1069 = vunpack.c.h.b16 %v994
    %v1070 = vunpack.c.l.b16 %v995
    %v1071 = vunpack.c.h.b16 %v995
    %v1072 = vunpack.c.l.b16 %v996
    %v1073 = vunpack.c.h.b16 %v996
    %v1074 = vunpack.c.l.b16 %v997
    %v1075 = vunpack.c.h.b16 %v997
    %v1076 = vunpack.c.l.b16 %v998
    %v1077 = vunpack.c.h.b16 %v998
    %v1078 = vunpack.c.l.b16 %v999
    %v1079 = vunpack.c.h.b16 %v999
    %v1080 = vunpack.c.l.b16 %v1000
    %v1081 = vunpack.c.h.b16 %v1000
    %v1082 = vunpack.c.l.b16 %v1001
    %v1083 = vunpack.c.h.b16 %v1001
    %v1084 = vunpack.c.l.b16 %v1002
    %v1085 = vunpack.c.h.b16 %v1002
    %v1086 = vunpack.c.l.b16 %v1003
    %v1087 = vunpack.c.h.b16 %v1003
    %v1088 = vunpack.c.l.b16 %v1004
    %v1089 = vunpack.c.h.b16 %v1004
    %v1090 = vunpack.c.l.b16 %v1005
    %v1091 = vunpack.c.h.b16 %v1005
    %v1092 = vunpack.c.l.b16 %v1006
    %v1093 = vunpack.c.h.b16 %v1006
    %v1094 = vunpack.c.l.b16 %v1007
    %v1095 = vunpack.c.h.b16 %v1007
    %v1096 = vunpack.c.l.b16 %v1008
    %v1097 = vunpack.c.h.b16 %v1008
    %v1098 = vunpack.c.l.b16 %v1009
    %v1099 = vunpack.c.h.b16 %v1009
    %v1100 = vunpack.c.l.b16 %v1010
    %v1101 = vunpack.c.h.b16 %v1010
    %v1102 = vunpack.c.l.b16 %v1011
    %v1103 = vunpack.c.h.b16 %v1011
    %v1104 = vunpack.c.l.b16 %v1012
    %v1105 = vunpack.c.h.b16 %v1012
    %v1106 = vunpack.c.l.b16 %v1013
    %v1107 = vunpack.c.h.b16 %v1013
    %v1108 = vunpack.c.l.b16 %v1014
    %v1109 = vunpack.c.h.b16 %v1014
    %v1110 = vunpack.c.l.b16 %v1015
    %v1111 = vunpack.c.h.b16 %v1015
    %v1112 = vpack.c.b16 %v1052, %v1048
    %v1113 = vpack.c.b16 %v1053, %v1049
    %v1114 = vpack.c.b16 %v1054, %v1050
    %v1115 = vpack.c.b16 %v1055, %v1051
    %v1116 = vpack.c.b16 %v1060, %v1056
    %v1117 = vpack.c.b16 %v1061, %v1057
    %v1118 = vpack.c.b16 %v1062, %v1058
    %v1119 = vpack.c.b16 %v1063, %v1059
    %v1120 = vpack.c.b16 %v1068, %v1064
    %v1121 = vpack.c.b16 %v1069, %v1065
    %v1122 = vpack.c.b16 %v1070, %v1066
    %v1123 = vpack.c.b16 %v1071, %v1067
    %v1124 = vpack.c.b16 %v1076, %v1072
    %v1125 = vpack.c.b16 %v1077, %v1073
    %v1126 = vpack.c.b16 %v1078, %v1074
    %v1127 = vpack.c.b16 %v1079, %v1075
    %v1128 = vpack.c.b16 %v1084, %v1080
    %v1129 = vpack.c.b16 %v1085, %v1081
    %v1130 = vpack.c.b16 %v1086, %v1082
    %v1131 = vpack.c.b16 %v1087, %v1083
    %v1132 = vpack.c.b16 %v1092, %v1088
    %v1133 = vpack.c.b16 %v1093, %v1089
    %v1134 = vpack.c.b16 %v1094, %v1090
    %v1135 = vpack.c.b16 %v1095, %v1091
    %v1136 = vpack.c.b16 %v1100, %v1096
    %v1137 = vpack.c.b16 %v1101, %v1097
    %v1138 = vpack.c.b16 %v1102, %v1098
    %v1139 = vpack.c.b16 %v1103, %v1099
    %v1140 = vpack.c.b16 %v1108, %v1104
    %v1141 = vpack.c.b16 %v1109, %v1105
    %v1142 = vpack.c.b16 %v1110, %v1106
    %v1143 = vpack.c.b16 %v1111, %v1107
    %1176 = vmatprep.subr.bf16.mxu0 %v1141
    %1177 = vmatpush1.bf16.msra.mxu0 %v1140
    %1178 = vmatprep.subr.bf16.mxu0 %v1137
    %1179 = vmatpush1.bf16.msra.mxu0 %v1136
    %1180 = vmatprep.subr.bf16.mxu0 %v1133
    %1181 = vmatpush1.bf16.msra.mxu0 %v1132
    %1182 = vmatprep.subr.bf16.mxu0 %v1129
    %1183 = vmatpush1.bf16.msra.mxu0 %v1128
    %1184 = vmatprep.subr.bf16.mxu0 %v1125
    %1185 = vmatpush1.bf16.msra.mxu0 %v1124
    %1186 = vmatprep.subr.bf16.mxu0 %v1121
    %1187 = vmatpush1.bf16.msra.mxu0 %v1120
    %1188 = vmatprep.subr.bf16.mxu0 %v1117
    %1189 = vmatpush1.bf16.msra.mxu0 %v1116
    %1190 = vmatprep.subr.bf16.mxu0 %v1113
    %1191 = vmatpush1.bf16.msra.mxu0 %v1112
    %1192 = vmatprep.subr.bf16.mxu0 0
    %1193 = vmatpush2.bf16.msra.mxu0 0
    %1194 = vmatprep.subr.bf16.mxu0 0
    %1195 = vmatpush2.bf16.msra.mxu0 0
    %1196 = vmatprep.subr.bf16.mxu0 0
    %1197 = vmatpush2.bf16.msra.mxu0 0
    %1198 = vmatprep.subr.bf16.mxu0 0
    %1199 = vmatpush2.bf16.msra.mxu0 0
    %1200 = vmatprep.subr.bf16.mxu0 0
    %1201 = vmatpush2.bf16.msra.mxu0 0
    %1202 = vmatprep.subr.bf16.mxu0 0
    %1203 = vmatpush2.bf16.msra.mxu0 0
    %1204 = vmatprep.subr.bf16.mxu0 0
    %1205 = vmatpush2.bf16.msra.mxu0 0
    %1206 = vmatprep.subr.bf16.mxu0 0
    %1207 = vmatpush2.bf16.msra.mxu0 0
    %1208 = vmatprep.mubr.bf16.mxu0 0
    %1209 = vmatmul.mubr.bf16.gmra.mxu0 %v983
    %v1210 = vpop.f32.mrf.mxu0
    %v1211 = vadd.f32 0.0, %v1210
    %v1212 = vpop.f32.mrf.mxu0
    %v1213 = vadd.f32 0.0, %v1212
    %v1214 = vpop.f32.mrf.mxu0
    %v1215 = vadd.f32 0.0, %v1214
    %v1216 = vpop.f32.mrf.mxu0
    %v1217 = vadd.f32 0.0, %v1216
    %1218 = vdwg.mxu0
    %1219 = vmatprep.subr.bf16.mxu0 %v1143
    %1220 = vmatpush1.bf16.msra.mxu0 %v1142
    %1221 = vmatprep.subr.bf16.mxu0 %v1139
    %1222 = vmatpush1.bf16.msra.mxu0 %v1138
    %1223 = vmatprep.subr.bf16.mxu0 %v1135
    %1224 = vmatpush1.bf16.msra.mxu0 %v1134
    %1225 = vmatprep.subr.bf16.mxu0 %v1131
    %1226 = vmatpush1.bf16.msra.mxu0 %v1130
    %1227 = vmatprep.subr.bf16.mxu0 %v1127
    %1228 = vmatpush1.bf16.msra.mxu0 %v1126
    %1229 = vmatprep.subr.bf16.mxu0 %v1123
    %1230 = vmatpush1.bf16.msra.mxu0 %v1122
    %1231 = vmatprep.subr.bf16.mxu0 %v1119
    %1232 = vmatpush1.bf16.msra.mxu0 %v1118
    %1233 = vmatprep.subr.bf16.mxu0 %v1115
    %1234 = vmatpush1.bf16.msra.mxu0 %v1114
    %1235 = vmatprep.subr.bf16.mxu0 0
    %1236 = vmatpush2.bf16.msra.mxu0 0
    %1237 = vmatprep.subr.bf16.mxu0 0
    %1238 = vmatpush2.bf16.msra.mxu0 0
    %1239 = vmatprep.subr.bf16.mxu0 0
    %1240 = vmatpush2.bf16.msra.mxu0 0
    %1241 = vmatprep.subr.bf16.mxu0 0
    %1242 = vmatpush2.bf16.msra.mxu0 0
    %1243 = vmatprep.subr.bf16.mxu0 0
    %1244 = vmatpush2.bf16.msra.mxu0 0
    %1245 = vmatprep.subr.bf16.mxu0 0
    %1246 = vmatpush2.bf16.msra.mxu0 0
    %1247 = vmatprep.subr.bf16.mxu0 0
    %1248 = vmatpush2.bf16.msra.mxu0 0
    %1249 = vmatprep.subr.bf16.mxu0 0
    %1250 = vmatpush2.bf16.msra.mxu0 0
    %1251 = vmatprep.mubr.bf16.mxu0 0
    %1252 = vmatmul.mubr.bf16.gmra.mxu0 %v983
    %v1253 = vpop.f32.mrf.mxu0
    %v1254 = vadd.f32 0.0, %v1253
    %v1255 = vpop.f32.mrf.mxu0
    %v1256 = vadd.f32 0.0, %v1255
    %v1257 = vpop.f32.mrf.mxu0
    %v1258 = vadd.f32 0.0, %v1257
    %v1259 = vpop.f32.mrf.mxu0
    %v1260 = vadd.f32 0.0, %v1259
    %1261 = vdwg.mxu0
    %v1262 = vadd.f32 %v975, %v1211
    %v1263 = vadd.f32 %v976, %v1213
    %v1264 = vadd.f32 %v977, %v1254
    %v1265 = vadd.f32 %v978, %v1256
    %v1266 = vadd.f32 %v979, %v1215
    %v1267 = vadd.f32 %v980, %v1217
    %v1268 = vadd.f32 %v981, %v1258
    %v1269 = vadd.f32 %v982, %v1260
    %v1270 = vxor.u32 %v1262, 2147483648
    %v1271 = vxor.u32 %v1266, 2147483648
    %v1272 = vmul.f32 %v1270, 1.442695
    %v1273 = vpow.pop %v1272
    %v1274 = vmul.f32 %v1271, 1.442695
    %v1275 = vpow.pop %v1274
    %v1276 = vadd.f32 %v1273, 1.0
    %v1277 = vadd.f32 %v1275, 1.0
    %v1278 = vrcp.pop %v1276
    %v1279 = vmul.f32 1.0, %v1278
    %v1280 = vrcp.pop %v1277
    %v1281 = vmul.f32 1.0, %v1280
    %v1282 = vxor.u32 %v1263, 2147483648
    %v1283 = vxor.u32 %v1267, 2147483648
    %v1284 = vmul.f32 %v1282, 1.442695
    %v1285 = vpow.pop %v1284
    %v1286 = vmul.f32 %v1283, 1.442695
    %v1287 = vpow.pop %v1286
    %v1288 = vadd.f32 %v1285, 1.0
    %v1289 = vadd.f32 %v1287, 1.0
    %v1290 = vrcp.pop %v1288
    %v1291 = vmul.f32 1.0, %v1290
    %v1292 = vrcp.pop %v1289
    %v1293 = vmul.f32 1.0, %v1292
    %v1294 = vtanh.pop %v1264
    %v1295 = vtanh.pop %v1268
    %v1296 = vxor.u32 %v1265, 2147483648
    %v1297 = vxor.u32 %v1269, 2147483648
    %v1298 = vmul.f32 %v1296, 1.442695
    %v1299 = vpow.pop %v1298
    %v1300 = vmul.f32 %v1297, 1.442695
    %v1301 = vpow.pop %v1300
    %v1302 = vadd.f32 %v1299, 1.0
    %v1303 = vadd.f32 %v1301, 1.0
    %v1304 = vrcp.pop %v1302
    %v1305 = vmul.f32 1.0, %v1304
    %v1306 = vrcp.pop %v1303
    %v1307 = vmul.f32 1.0, %v1306
    %v1308 = vld [vmem:[#allocation5] sm:$0xff]
    %v1309 = vld [vmem:[#allocation5 + $0x8] sm:$0xff]
    %v1310 = vmul.f32 %v1291, %v1308
    %v1311 = vmul.f32 %v1293, %v1309
    %v1312 = vmul.f32 %v1279, %v1294
    %v1313 = vmul.f32 %v1281, %v1295
    %v1314 = vadd.f32 %v1310, %v1312
    %v1315 = vadd.f32 %v1311, %v1313
    %v1316 = vtanh.pop %v1314
    %v1317 = vtanh.pop %v1315
    %v1318 = vmul.f32 %v1305, %v1316
    %v1319 = vmul.f32 %v1307, %v1317
    %1320 = vst [vmem:[#allocation5] sm:$0xff] %v1314
    %1321 = vst [vmem:[#allocation5 + $0x8] sm:$0xff] %v1315
    %1322 = vst [vmem:[#allocation4] sm:$0xff] %v1318
    %1323 = vst [vmem:[#allocation4 + $0x8] sm:$0xff] %v1319
    %v1324 = vpack.c.bf16 %v1319, %v1318
    %v1326 = vunpack.c.l.b16 %v1324
    %v1327 = vunpack.c.h.b16 %v1324
    %v1328 = vpack.c.b16 %v1326, %v1326
    %v1329 = vpack.c.b16 %v1327, %v1327
    %s1332 = scalar_lea.vmem [#allocation3], 8
    %1333 = vst [vmem:[%s1332] sm:$0xf] %v1328
    %1334 = vst [vmem:[%s1332 + $0x4] sm:$0xf] %v1329
    %v1335 = vld [vmem:[#allocation4] sm:$0xff]
    %v1336 = vld [vmem:[#allocation4 + $0x8] sm:$0xff]
    %s1337 = smul.u32 4, 4
    %s1338 = smul.addr %s1337, 8
    %s1339 = scalar_lea.vmem [#allocation2], %s1338
    %v1340 = vld [vmem:[%s1339] sm:$0xff]
    %v1341 = vld [vmem:[%s1339 + $0x8] sm:$0xff]
    %v1342 = vld [vmem:[%s1339 + $0x10] sm:$0xff]
    %v1343 = vld [vmem:[%s1339 + $0x18] sm:$0xff]
    %v1344 = vld [vmem:[%s1339 + $0x20] sm:$0xff]
    %v1345 = vld [vmem:[%s1339 + $0x28] sm:$0xff]
    %v1346 = vld [vmem:[%s1339 + $0x30] sm:$0xff]
    %v1347 = vld [vmem:[%s1339 + $0x38] sm:$0xff]
    %v1348 = vpack.c.bf16 %v1336, %v1335
    %v1349 = vld [vmem:[%s2] sm:$0xff]
    %v1350 = vld [vmem:[%s2 + $0x8] sm:$0xff]
    %v1351 = vld [vmem:[%s2 + $0x10] sm:$0xff]
    %v1352 = vld [vmem:[%s2 + $0x18] sm:$0xff]
    %v1353 = vld [vmem:[%s2 + $0x20] sm:$0xff]
    %v1354 = vld [vmem:[%s2 + $0x28] sm:$0xff]
    %v1355 = vld [vmem:[%s2 + $0x30] sm:$0xff]
    %v1356 = vld [vmem:[%s2 + $0x38] sm:$0xff]
    %v1357 = vld [vmem:[%s2 + $0x40] sm:$0xff]
    %v1358 = vld [vmem:[%s2 + $0x48] sm:$0xff]
    %v1359 = vld [vmem:[%s2 + $0x50] sm:$0xff]
    %v1360 = vld [vmem:[%s2 + $0x58] sm:$0xff]
    %v1361 = vld [vmem:[%s2 + $0x60] sm:$0xff]
    %v1362 = vld [vmem:[%s2 + $0x68] sm:$0xff]
    %v1363 = vld [vmem:[%s2 + $0x70] sm:$0xff]
    %v1364 = vld [vmem:[%s2 + $0x78] sm:$0xff]
    %v1365 = vld [vmem:[%s2 + $0x80] sm:$0xff]
    %v1366 = vld [vmem:[%s2 + $0x88] sm:$0xff]
    %v1367 = vld [vmem:[%s2 + $0x90] sm:$0xff]
    %v1368 = vld [vmem:[%s2 + $0x98] sm:$0xff]
    %v1369 = vld [vmem:[%s2 + $0xa0] sm:$0xff]
    %v1370 = vld [vmem:[%s2 + $0xa8] sm:$0xff]
    %v1371 = vld [vmem:[%s2 + $0xb0] sm:$0xff]
    %v1372 = vld [vmem:[%s2 + $0xb8] sm:$0xff]
    %v1373 = vld [vmem:[%s2 + $0xc0] sm:$0xff]
    %v1374 = vld [vmem:[%s2 + $0xc8] sm:$0xff]
    %v1375 = vld [vmem:[%s2 + $0xd0] sm:$0xff]
    %v1376 = vld [vmem:[%s2 + $0xd8] sm:$0xff]
    %v1377 = vld [vmem:[%s2 + $0xe0] sm:$0xff]
    %v1378 = vld [vmem:[%s2 + $0xe8] sm:$0xff]
    %v1379 = vld [vmem:[%s2 + $0xf0] sm:$0xff]
    %v1380 = vld [vmem:[%s2 + $0xf8] sm:$0xff]
    %v1413 = vunpack.c.l.b16 %v1349
    %v1414 = vunpack.c.h.b16 %v1349
    %v1415 = vunpack.c.l.b16 %v1350
    %v1416 = vunpack.c.h.b16 %v1350
    %v1417 = vunpack.c.l.b16 %v1351
    %v1418 = vunpack.c.h.b16 %v1351
    %v1419 = vunpack.c.l.b16 %v1352
    %v1420 = vunpack.c.h.b16 %v1352
    %v1421 = vunpack.c.l.b16 %v1353
    %v1422 = vunpack.c.h.b16 %v1353
    %v1423 = vunpack.c.l.b16 %v1354
    %v1424 = vunpack.c.h.b16 %v1354
    %v1425 = vunpack.c.l.b16 %v1355
    %v1426 = vunpack.c.h.b16 %v1355
    %v1427 = vunpack.c.l.b16 %v1356
    %v1428 = vunpack.c.h.b16 %v1356
    %v1429 = vunpack.c.l.b16 %v1357
    %v1430 = vunpack.c.h.b16 %v1357
    %v1431 = vunpack.c.l.b16 %v1358
    %v1432 = vunpack.c.h.b16 %v1358
    %v1433 = vunpack.c.l.b16 %v1359
    %v1434 = vunpack.c.h.b16 %v1359
    %v1435 = vunpack.c.l.b16 %v1360
    %v1436 = vunpack.c.h.b16 %v1360
    %v1437 = vunpack.c.l.b16 %v1361
    %v1438 = vunpack.c.h.b16 %v1361
    %v1439 = vunpack.c.l.b16 %v1362
    %v1440 = vunpack.c.h.b16 %v1362
    %v1441 = vunpack.c.l.b16 %v1363
    %v1442 = vunpack.c.h.b16 %v1363
    %v1443 = vunpack.c.l.b16 %v1364
    %v1444 = vunpack.c.h.b16 %v1364
    %v1445 = vunpack.c.l.b16 %v1365
    %v1446 = vunpack.c.h.b16 %v1365
    %v1447 = vunpack.c.l.b16 %v1366
    %v1448 = vunpack.c.h.b16 %v1366
    %v1449 = vunpack.c.l.b16 %v1367
    %v1450 = vunpack.c.h.b16 %v1367
    %v1451 = vunpack.c.l.b16 %v1368
    %v1452 = vunpack.c.h.b16 %v1368
    %v1453 = vunpack.c.l.b16 %v1369
    %v1454 = vunpack.c.h.b16 %v1369
    %v1455 = vunpack.c.l.b16 %v1370
    %v1456 = vunpack.c.h.b16 %v1370
    %v1457 = vunpack.c.l.b16 %v1371
    %v1458 = vunpack.c.h.b16 %v1371
    %v1459 = vunpack.c.l.b16 %v1372
    %v1460 = vunpack.c.h.b16 %v1372
    %v1461 = vunpack.c.l.b16 %v1373
    %v1462 = vunpack.c.h.b16 %v1373
    %v1463 = vunpack.c.l.b16 %v1374
    %v1464 = vunpack.c.h.b16 %v1374
    %v1465 = vunpack.c.l.b16 %v1375
    %v1466 = vunpack.c.h.b16 %v1375
    %v1467 = vunpack.c.l.b16 %v1376
    %v1468 = vunpack.c.h.b16 %v1376
    %v1469 = vunpack.c.l.b16 %v1377
    %v1470 = vunpack.c.h.b16 %v1377
    %v1471 = vunpack.c.l.b16 %v1378
    %v1472 = vunpack.c.h.b16 %v1378
    %v1473 = vunpack.c.l.b16 %v1379
    %v1474 = vunpack.c.h.b16 %v1379
    %v1475 = vunpack.c.l.b16 %v1380
    %v1476 = vunpack.c.h.b16 %v1380
    %v1477 = vpack.c.b16 %v1417, %v1413
    %v1478 = vpack.c.b16 %v1418, %v1414
    %v1479 = vpack.c.b16 %v1419, %v1415
    %v1480 = vpack.c.b16 %v1420, %v1416
    %v1481 = vpack.c.b16 %v1425, %v1421
    %v1482 = vpack.c.b16 %v1426, %v1422
    %v1483 = vpack.c.b16 %v1427, %v1423
    %v1484 = vpack.c.b16 %v1428, %v1424
    %v1485 = vpack.c.b16 %v1433, %v1429
    %v1486 = vpack.c.b16 %v1434, %v1430
    %v1487 = vpack.c.b16 %v1435, %v1431
    %v1488 = vpack.c.b16 %v1436, %v1432
    %v1489 = vpack.c.b16 %v1441, %v1437
    %v1490 = vpack.c.b16 %v1442, %v1438
    %v1491 = vpack.c.b16 %v1443, %v1439
    %v1492 = vpack.c.b16 %v1444, %v1440
    %v1493 = vpack.c.b16 %v1449, %v1445
    %v1494 = vpack.c.b16 %v1450, %v1446
    %v1495 = vpack.c.b16 %v1451, %v1447
    %v1496 = vpack.c.b16 %v1452, %v1448
    %v1497 = vpack.c.b16 %v1457, %v1453
    %v1498 = vpack.c.b16 %v1458, %v1454
    %v1499 = vpack.c.b16 %v1459, %v1455
    %v1500 = vpack.c.b16 %v1460, %v1456
    %v1501 = vpack.c.b16 %v1465, %v1461
    %v1502 = vpack.c.b16 %v1466, %v1462
    %v1503 = vpack.c.b16 %v1467, %v1463
    %v1504 = vpack.c.b16 %v1468, %v1464
    %v1505 = vpack.c.b16 %v1473, %v1469
    %v1506 = vpack.c.b16 %v1474, %v1470
    %v1507 = vpack.c.b16 %v1475, %v1471
    %v1508 = vpack.c.b16 %v1476, %v1472
    %1541 = vmatprep.subr.bf16.mxu0 %v1506
    %1542 = vmatpush1.bf16.msra.mxu0 %v1505
    %1543 = vmatprep.subr.bf16.mxu0 %v1502
    %1544 = vmatpush1.bf16.msra.mxu0 %v1501
    %1545 = vmatprep.subr.bf16.mxu0 %v1498
    %1546 = vmatpush1.bf16.msra.mxu0 %v1497
    %1547 = vmatprep.subr.bf16.mxu0 %v1494
    %1548 = vmatpush1.bf16.msra.mxu0 %v1493
    %1549 = vmatprep.subr.bf16.mxu0 %v1490
    %1550 = vmatpush1.bf16.msra.mxu0 %v1489
    %1551 = vmatprep.subr.bf16.mxu0 %v1486
    %1552 = vmatpush1.bf16.msra.mxu0 %v1485
    %1553 = vmatprep.subr.bf16.mxu0 %v1482
    %1554 = vmatpush1.bf16.msra.mxu0 %v1481
    %1555 = vmatprep.subr.bf16.mxu0 %v1478
    %1556 = vmatpush1.bf16.msra.mxu0 %v1477
    %1557 = vmatprep.subr.bf16.mxu0 0
    %1558 = vmatpush2.bf16.msra.mxu0 0
    %1559 = vmatprep.subr.bf16.mxu0 0
    %1560 = vmatpush2.bf16.msra.mxu0 0
    %1561 = vmatprep.subr.bf16.mxu0 0
    %1562 = vmatpush2.bf16.msra.mxu0 0
    %1563 = vmatprep.subr.bf16.mxu0 0
    %1564 = vmatpush2.bf16.msra.mxu0 0
    %1565 = vmatprep.subr.bf16.mxu0 0
    %1566 = vmatpush2.bf16.msra.mxu0 0
    %1567 = vmatprep.subr.bf16.mxu0 0
    %1568 = vmatpush2.bf16.msra.mxu0 0
    %1569 = vmatprep.subr.bf16.mxu0 0
    %1570 = vmatpush2.bf16.msra.mxu0 0
    %1571 = vmatprep.subr.bf16.mxu0 0
    %1572 = vmatpush2.bf16.msra.mxu0 0
    %1573 = vmatprep.mubr.bf16.mxu0 0
    %1574 = vmatmul.mubr.bf16.gmra.mxu0 %v1348
    %v1575 = vpop.f32.mrf.mxu0
    %v1576 = vadd.f32 0.0, %v1575
    %v1577 = vpop.f32.mrf.mxu0
    %v1578 = vadd.f32 0.0, %v1577
    %v1579 = vpop.f32.mrf.mxu0
    %v1580 = vadd.f32 0.0, %v1579
    %v1581 = vpop.f32.mrf.mxu0
    %v1582 = vadd.f32 0.0, %v1581
    %1583 = vdwg.mxu0
    %1584 = vmatprep.subr.bf16.mxu0 %v1508
    %1585 = vmatpush1.bf16.msra.mxu0 %v1507
    %1586 = vmatprep.subr.bf16.mxu0 %v1504
    %1587 = vmatpush1.bf16.msra.mxu0 %v1503
    %1588 = vmatprep.subr.bf16.mxu0 %v1500
    %1589 = vmatpush1.bf16.msra.mxu0 %v1499
    %1590 = vmatprep.subr.bf16.mxu0 %v1496
    %1591 = vmatpush1.bf16.msra.mxu0 %v1495
    %1592 = vmatprep.subr.bf16.mxu0 %v1492
    %1593 = vmatpush1.bf16.msra.mxu0 %v1491
    %1594 = vmatprep.subr.bf16.mxu0 %v1488
    %1595 = vmatpush1.bf16.msra.mxu0 %v1487
    %1596 = vmatprep.subr.bf16.mxu0 %v1484
    %1597 = vmatpush1.bf16.msra.mxu0 %v1483
    %1598 = vmatprep.subr.bf16.mxu0 %v1480
    %1599 = vmatpush1.bf16.msra.mxu0 %v1479
    %1600 = vmatprep.subr.bf16.mxu0 0
    %1601 = vmatpush2.bf16.msra.mxu0 0
    %1602 = vmatprep.subr.bf16.mxu0 0
    %1603 = vmatpush2.bf16.msra.mxu0 0
    %1604 = vmatprep.subr.bf16.mxu0 0
    %1605 = vmatpush2.bf16.msra.mxu0 0
    %1606 = vmatprep.subr.bf16.mxu0 0
    %1607 = vmatpush2.bf16.msra.mxu0 0
    %1608 = vmatprep.subr.bf16.mxu0 0
    %1609 = vmatpush2.bf16.msra.mxu0 0
    %1610 = vmatprep.subr.bf16.mxu0 0
    %1611 = vmatpush2.bf16.msra.mxu0 0
    %1612 = vmatprep.subr.bf16.mxu0 0
    %1613 = vmatpush2.bf16.msra.mxu0 0
    %1614 = vmatprep.subr.bf16.mxu0 0
    %1615 = vmatpush2.bf16.msra.mxu0 0
    %1616 = vmatprep.mubr.bf16.mxu0 0
    %1617 = vmatmul.mubr.bf16.gmra.mxu0 %v1348
    %v1618 = vpop.f32.mrf.mxu0
    %v1619 = vadd.f32 0.0, %v1618
    %v1620 = vpop.f32.mrf.mxu0
    %v1621 = vadd.f32 0.0, %v1620
    %v1622 = vpop.f32.mrf.mxu0
    %v1623 = vadd.f32 0.0, %v1622
    %v1624 = vpop.f32.mrf.mxu0
    %v1625 = vadd.f32 0.0, %v1624
    %1626 = vdwg.mxu0
    %v1627 = vadd.f32 %v1340, %v1576
    %v1628 = vadd.f32 %v1341, %v1578
    %v1629 = vadd.f32 %v1342, %v1619
    %v1630 = vadd.f32 %v1343, %v1621
    %v1631 = vadd.f32 %v1344, %v1580
    %v1632 = vadd.f32 %v1345, %v1582
    %v1633 = vadd.f32 %v1346, %v1623
    %v1634 = vadd.f32 %v1347, %v1625
    %v1635 = vxor.u32 %v1627, 2147483648
    %v1636 = vxor.u32 %v1631, 2147483648
    %v1637 = vmul.f32 %v1635, 1.442695
    %v1638 = vpow.pop %v1637
    %v1639 = vmul.f32 %v1636, 1.442695
    %v1640 = vpow.pop %v1639
    %v1641 = vadd.f32 %v1638, 1.0
    %v1642 = vadd.f32 %v1640, 1.0
    %v1643 = vrcp.pop %v1641
    %v1644 = vmul.f32 1.0, %v1643
    %v1645 = vrcp.pop %v1642
    %v1646 = vmul.f32 1.0, %v1645
    %v1647 = vxor.u32 %v1628, 2147483648
    %v1648 = vxor.u32 %v1632, 2147483648
    %v1649 = vmul.f32 %v1647, 1.442695
    %v1650 = vpow.pop %v1649
    %v1651 = vmul.f32 %v1648, 1.442695
    %v1652 = vpow.pop %v1651
    %v1653 = vadd.f32 %v1650, 1.0
    %v1654 = vadd.f32 %v1652, 1.0
    %v1655 = vrcp.pop %v1653
    %v1656 = vmul.f32 1.0, %v1655
    %v1657 = vrcp.pop %v1654
    %v1658 = vmul.f32 1.0, %v1657
    %v1659 = vtanh.pop %v1629
    %v1660 = vtanh.pop %v1633
    %v1661 = vxor.u32 %v1630, 2147483648
    %v1662 = vxor.u32 %v1634, 2147483648
    %v1663 = vmul.f32 %v1661, 1.442695
    %v1664 = vpow.pop %v1663
    %v1665 = vmul.f32 %v1662, 1.442695
    %v1666 = vpow.pop %v1665
    %v1667 = vadd.f32 %v1664, 1.0
    %v1668 = vadd.f32 %v1666, 1.0
    %v1669 = vrcp.pop %v1667
    %v1670 = vmul.f32 1.0, %v1669
    %v1671 = vrcp.pop %v1668
    %v1672 = vmul.f32 1.0, %v1671
    %v1673 = vld [vmem:[#allocation5] sm:$0xff]
    %v1674 = vld [vmem:[#allocation5 + $0x8] sm:$0xff]
    %v1675 = vmul.f32 %v1656, %v1673
    %v1676 = vmul.f32 %v1658, %v1674
    %v1677 = vmul.f32 %v1644, %v1659
    %v1678 = vmul.f32 %v1646, %v1660
    %v1679 = vadd.f32 %v1675, %v1677
    %v1680 = vadd.f32 %v1676, %v1678
    %v1681 = vtanh.pop %v1679
    %v1682 = vtanh.pop %v1680
    %v1683 = vmul.f32 %v1670, %v1681
    %v1684 = vmul.f32 %v1672, %v1682
    %1685 = vst [vmem:[#allocation5] sm:$0xff] %v1679
    %1686 = vst [vmem:[#allocation5 + $0x8] sm:$0xff] %v1680
    %1687 = vst [vmem:[#allocation4] sm:$0xff] %v1683
    %1688 = vst [vmem:[#allocation4 + $0x8] sm:$0xff] %v1684
    %v1689 = vpack.c.bf16 %v1684, %v1683
    %v1691 = vunpack.c.l.b16 %v1689
    %v1692 = vunpack.c.h.b16 %v1689
    %v1693 = vpack.c.b16 %v1691, %v1691
    %v1694 = vpack.c.b16 %v1692, %v1692
    %s1697 = scalar_lea.vmem [#allocation3], 16
    %1698 = vst [vmem:[%s1697] sm:$0xf] %v1693
    %1699 = vst [vmem:[%s1697 + $0x4] sm:$0xf] %v1694
    %v1700 = vld [vmem:[#allocation4] sm:$0xff]
    %v1701 = vld [vmem:[#allocation4 + $0x8] sm:$0xff]
    %s1702 = smul.u32 6, 4
    %s1703 = smul.addr %s1702, 8
    %s1704 = scalar_lea.vmem [#allocation2], %s1703
    %v1705 = vld [vmem:[%s1704] sm:$0xff]
    %v1706 = vld [vmem:[%s1704 + $0x8] sm:$0xff]
    %v1707 = vld [vmem:[%s1704 + $0x10] sm:$0xff]
    %v1708 = vld [vmem:[%s1704 + $0x18] sm:$0xff]
    %v1709 = vld [vmem:[%s1704 + $0x20] sm:$0xff]
    %v1710 = vld [vmem:[%s1704 + $0x28] sm:$0xff]
    %v1711 = vld [vmem:[%s1704 + $0x30] sm:$0xff]
    %v1712 = vld [vmem:[%s1704 + $0x38] sm:$0xff]
    %v1713 = vpack.c.bf16 %v1701, %v1700
    %v1714 = vld [vmem:[%s2] sm:$0xff]
    %v1715 = vld [vmem:[%s2 + $0x8] sm:$0xff]
    %v1716 = vld [vmem:[%s2 + $0x10] sm:$0xff]
    %v1717 = vld [vmem:[%s2 + $0x18] sm:$0xff]
    %v1718 = vld [vmem:[%s2 + $0x20] sm:$0xff]
    %v1719 = vld [vmem:[%s2 + $0x28] sm:$0xff]
    %v1720 = vld [vmem:[%s2 + $0x30] sm:$0xff]
    %v1721 = vld [vmem:[%s2 + $0x38] sm:$0xff]
    %v1722 = vld [vmem:[%s2 + $0x40] sm:$0xff]
    %v1723 = vld [vmem:[%s2 + $0x48] sm:$0xff]
    %v1724 = vld [vmem:[%s2 + $0x50] sm:$0xff]
    %v1725 = vld [vmem:[%s2 + $0x58] sm:$0xff]
    %v1726 = vld [vmem:[%s2 + $0x60] sm:$0xff]
    %v1727 = vld [vmem:[%s2 + $0x68] sm:$0xff]
    %v1728 = vld [vmem:[%s2 + $0x70] sm:$0xff]
    %v1729 = vld [vmem:[%s2 + $0x78] sm:$0xff]
    %v1730 = vld [vmem:[%s2 + $0x80] sm:$0xff]
    %v1731 = vld [vmem:[%s2 + $0x88] sm:$0xff]
    %v1732 = vld [vmem:[%s2 + $0x90] sm:$0xff]
    %v1733 = vld [vmem:[%s2 + $0x98] sm:$0xff]
    %v1734 = vld [vmem:[%s2 + $0xa0] sm:$0xff]
    %v1735 = vld [vmem:[%s2 + $0xa8] sm:$0xff]
    %v1736 = vld [vmem:[%s2 + $0xb0] sm:$0xff]
    %v1737 = vld [vmem:[%s2 + $0xb8] sm:$0xff]
    %v1738 = vld [vmem:[%s2 + $0xc0] sm:$0xff]
    %v1739 = vld [vmem:[%s2 + $0xc8] sm:$0xff]
    %v1740 = vld [vmem:[%s2 + $0xd0] sm:$0xff]
    %v1741 = vld [vmem:[%s2 + $0xd8] sm:$0xff]
    %v1742 = vld [vmem:[%s2 + $0xe0] sm:$0xff]
    %v1743 = vld [vmem:[%s2 + $0xe8] sm:$0xff]
    %v1744 = vld [vmem:[%s2 + $0xf0] sm:$0xff]
    %v1745 = vld [vmem:[%s2 + $0xf8] sm:$0xff]
    %v1778 = vunpack.c.l.b16 %v1714
    %v1779 = vunpack.c.h.b16 %v1714
    %v1780 = vunpack.c.l.b16 %v1715
    %v1781 = vunpack.c.h.b16 %v1715
    %v1782 = vunpack.c.l.b16 %v1716
    %v1783 = vunpack.c.h.b16 %v1716
    %v1784 = vunpack.c.l.b16 %v1717
    %v1785 = vunpack.c.h.b16 %v1717
    %v1786 = vunpack.c.l.b16 %v1718
    %v1787 = vunpack.c.h.b16 %v1718
    %v1788 = vunpack.c.l.b16 %v1719
    %v1789 = vunpack.c.h.b16 %v1719
    %v1790 = vunpack.c.l.b16 %v1720
    %v1791 = vunpack.c.h.b16 %v1720
    %v1792 = vunpack.c.l.b16 %v1721
    %v1793 = vunpack.c.h.b16 %v1721
    %v1794 = vunpack.c.l.b16 %v1722
    %v1795 = vunpack.c.h.b16 %v1722
    %v1796 = vunpack.c.l.b16 %v1723
    %v1797 = vunpack.c.h.b16 %v1723
    %v1798 = vunpack.c.l.b16 %v1724
    %v1799 = vunpack.c.h.b16 %v1724
    %v1800 = vunpack.c.l.b16 %v1725
    %v1801 = vunpack.c.h.b16 %v1725
    %v1802 = vunpack.c.l.b16 %v1726
    %v1803 = vunpack.c.h.b16 %v1726
    %v1804 = vunpack.c.l.b16 %v1727
    %v1805 = vunpack.c.h.b16 %v1727
    %v1806 = vunpack.c.l.b16 %v1728
    %v1807 = vunpack.c.h.b16 %v1728
    %v1808 = vunpack.c.l.b16 %v1729
    %v1809 = vunpack.c.h.b16 %v1729
    %v1810 = vunpack.c.l.b16 %v1730
    %v1811 = vunpack.c.h.b16 %v1730
    %v1812 = vunpack.c.l.b16 %v1731
    %v1813 = vunpack.c.h.b16 %v1731
    %v1814 = vunpack.c.l.b16 %v1732
    %v1815 = vunpack.c.h.b16 %v1732
    %v1816 = vunpack.c.l.b16 %v1733
    %v1817 = vunpack.c.h.b16 %v1733
    %v1818 = vunpack.c.l.b16 %v1734
    %v1819 = vunpack.c.h.b16 %v1734
    %v1820 = vunpack.c.l.b16 %v1735
    %v1821 = vunpack.c.h.b16 %v1735
    %v1822 = vunpack.c.l.b16 %v1736
    %v1823 = vunpack.c.h.b16 %v1736
    %v1824 = vunpack.c.l.b16 %v1737
    %v1825 = vunpack.c.h.b16 %v1737
    %v1826 = vunpack.c.l.b16 %v1738
    %v1827 = vunpack.c.h.b16 %v1738
    %v1828 = vunpack.c.l.b16 %v1739
    %v1829 = vunpack.c.h.b16 %v1739
    %v1830 = vunpack.c.l.b16 %v1740
    %v1831 = vunpack.c.h.b16 %v1740
    %v1832 = vunpack.c.l.b16 %v1741
    %v1833 = vunpack.c.h.b16 %v1741
    %v1834 = vunpack.c.l.b16 %v1742
    %v1835 = vunpack.c.h.b16 %v1742
    %v1836 = vunpack.c.l.b16 %v1743
    %v1837 = vunpack.c.h.b16 %v1743
    %v1838 = vunpack.c.l.b16 %v1744
    %v1839 = vunpack.c.h.b16 %v1744
    %v1840 = vunpack.c.l.b16 %v1745
    %v1841 = vunpack.c.h.b16 %v1745
    %v1842 = vpack.c.b16 %v1782, %v1778
    %v1843 = vpack.c.b16 %v1783, %v1779
    %v1844 = vpack.c.b16 %v1784, %v1780
    %v1845 = vpack.c.b16 %v1785, %v1781
    %v1846 = vpack.c.b16 %v1790, %v1786
    %v1847 = vpack.c.b16 %v1791, %v1787
    %v1848 = vpack.c.b16 %v1792, %v1788
    %v1849 = vpack.c.b16 %v1793, %v1789
    %v1850 = vpack.c.b16 %v1798, %v1794
    %v1851 = vpack.c.b16 %v1799, %v1795
    %v1852 = vpack.c.b16 %v1800, %v1796
    %v1853 = vpack.c.b16 %v1801, %v1797
    %v1854 = vpack.c.b16 %v1806, %v1802
    %v1855 = vpack.c.b16 %v1807, %v1803
    %v1856 = vpack.c.b16 %v1808, %v1804
    %v1857 = vpack.c.b16 %v1809, %v1805
    %v1858 = vpack.c.b16 %v1814, %v1810
    %v1859 = vpack.c.b16 %v1815, %v1811
    %v1860 = vpack.c.b16 %v1816, %v1812
    %v1861 = vpack.c.b16 %v1817, %v1813
    %v1862 = vpack.c.b16 %v1822, %v1818
    %v1863 = vpack.c.b16 %v1823, %v1819
    %v1864 = vpack.c.b16 %v1824, %v1820
    %v1865 = vpack.c.b16 %v1825, %v1821
    %v1866 = vpack.c.b16 %v1830, %v1826
    %v1867 = vpack.c.b16 %v1831, %v1827
    %v1868 = vpack.c.b16 %v1832, %v1828
    %v1869 = vpack.c.b16 %v1833, %v1829
    %v1870 = vpack.c.b16 %v1838, %v1834
    %v1871 = vpack.c.b16 %v1839, %v1835
    %v1872 = vpack.c.b16 %v1840, %v1836
    %v1873 = vpack.c.b16 %v1841, %v1837
    %1906 = vmatprep.subr.bf16.mxu0 %v1871
    %1907 = vmatpush1.bf16.msra.mxu0 %v1870
    %1908 = vmatprep.subr.bf16.mxu0 %v1867
    %1909 = vmatpush1.bf16.msra.mxu0 %v1866
    %1910 = vmatprep.subr.bf16.mxu0 %v1863
    %1911 = vmatpush1.bf16.msra.mxu0 %v1862
    %1912 = vmatprep.subr.bf16.mxu0 %v1859
    %1913 = vmatpush1.bf16.msra.mxu0 %v1858
    %1914 = vmatprep.subr.bf16.mxu0 %v1855
    %1915 = vmatpush1.bf16.msra.mxu0 %v1854
    %1916 = vmatprep.subr.bf16.mxu0 %v1851
    %1917 = vmatpush1.bf16.msra.mxu0 %v1850
    %1918 = vmatprep.subr.bf16.mxu0 %v1847
    %1919 = vmatpush1.bf16.msra.mxu0 %v1846
    %1920 = vmatprep.subr.bf16.mxu0 %v1843
    %1921 = vmatpush1.bf16.msra.mxu0 %v1842
    %1922 = vmatprep.subr.bf16.mxu0 0
    %1923 = vmatpush2.bf16.msra.mxu0 0
    %1924 = vmatprep.subr.bf16.mxu0 0
    %1925 = vmatpush2.bf16.msra.mxu0 0
    %1926 = vmatprep.subr.bf16.mxu0 0
    %1927 = vmatpush2.bf16.msra.mxu0 0
    %1928 = vmatprep.subr.bf16.mxu0 0
    %1929 = vmatpush2.bf16.msra.mxu0 0
    %1930 = vmatprep.subr.bf16.mxu0 0
    %1931 = vmatpush2.bf16.msra.mxu0 0
    %1932 = vmatprep.subr.bf16.mxu0 0
    %1933 = vmatpush2.bf16.msra.mxu0 0
    %1934 = vmatprep.subr.bf16.mxu0 0
    %1935 = vmatpush2.bf16.msra.mxu0 0
    %1936 = vmatprep.subr.bf16.mxu0 0
    %1937 = vmatpush2.bf16.msra.mxu0 0
    %1938 = vmatprep.mubr.bf16.mxu0 0
    %1939 = vmatmul.mubr.bf16.gmra.mxu0 %v1713
    %v1940 = vpop.f32.mrf.mxu0
    %v1941 = vadd.f32 0.0, %v1940
    %v1942 = vpop.f32.mrf.mxu0
    %v1943 = vadd.f32 0.0, %v1942
    %v1944 = vpop.f32.mrf.mxu0
    %v1945 = vadd.f32 0.0, %v1944
    %v1946 = vpop.f32.mrf.mxu0
    %v1947 = vadd.f32 0.0, %v1946
    %1948 = vdwg.mxu0
    %1949 = vmatprep.subr.bf16.mxu0 %v1873
    %1950 = vmatpush1.bf16.msra.mxu0 %v1872
    %1951 = vmatprep.subr.bf16.mxu0 %v1869
    %1952 = vmatpush1.bf16.msra.mxu0 %v1868
    %1953 = vmatprep.subr.bf16.mxu0 %v1865
    %1954 = vmatpush1.bf16.msra.mxu0 %v1864
    %1955 = vmatprep.subr.bf16.mxu0 %v1861
    %1956 = vmatpush1.bf16.msra.mxu0 %v1860
    %1957 = vmatprep.subr.bf16.mxu0 %v1857
    %1958 = vmatpush1.bf16.msra.mxu0 %v1856
    %1959 = vmatprep.subr.bf16.mxu0 %v1853
    %1960 = vmatpush1.bf16.msra.mxu0 %v1852
    %1961 = vmatprep.subr.bf16.mxu0 %v1849
    %1962 = vmatpush1.bf16.msra.mxu0 %v1848
    %1963 = vmatprep.subr.bf16.mxu0 %v1845
    %1964 = vmatpush1.bf16.msra.mxu0 %v1844
    %1965 = vmatprep.subr.bf16.mxu0 0
    %1966 = vmatpush2.bf16.msra.mxu0 0
    %1967 = vmatprep.subr.bf16.mxu0 0
    %1968 = vmatpush2.bf16.msra.mxu0 0
    %1969 = vmatprep.subr.bf16.mxu0 0
    %1970 = vmatpush2.bf16.msra.mxu0 0
    %1971 = vmatprep.subr.bf16.mxu0 0
    %1972 = vmatpush2.bf16.msra.mxu0 0
    %1973 = vmatprep.subr.bf16.mxu0 0
    %1974 = vmatpush2.bf16.msra.mxu0 0
    %1975 = vmatprep.subr.bf16.mxu0 0
    %1976 = vmatpush2.bf16.msra.mxu0 0
    %1977 = vmatprep.subr.bf16.mxu0 0
    %1978 = vmatpush2.bf16.msra.mxu0 0
    %1979 = vmatprep.subr.bf16.mxu0 0
    %1980 = vmatpush2.bf16.msra.mxu0 0
    %1981 = vmatprep.mubr.bf16.mxu0 0
    %1982 = vmatmul.mubr.bf16.gmra.mxu0 %v1713
    %v1983 = vpop.f32.mrf.mxu0
    %v1984 = vadd.f32 0.0, %v1983
    %v1985 = vpop.f32.mrf.mxu0
    %v1986 = vadd.f32 0.0, %v1985
    %v1987 = vpop.f32.mrf.mxu0
    %v1988 = vadd.f32 0.0, %v1987
    %v1989 = vpop.f32.mrf.mxu0
    %v1990 = vadd.f32 0.0, %v1989
    %1991 = vdwg.mxu0
    %v1992 = vadd.f32 %v1705, %v1941
    %v1993 = vadd.f32 %v1706, %v1943
    %v1994 = vadd.f32 %v1707, %v1984
    %v1995 = vadd.f32 %v1708, %v1986
    %v1996 = vadd.f32 %v1709, %v1945
    %v1997 = vadd.f32 %v1710, %v1947
    %v1998 = vadd.f32 %v1711, %v1988
    %v1999 = vadd.f32 %v1712, %v1990
    %v2000 = vxor.u32 %v1992, 2147483648
    %v2001 = vxor.u32 %v1996, 2147483648
    %v2002 = vmul.f32 %v2000, 1.442695
    %v2003 = vpow.pop %v2002
    %v2004 = vmul.f32 %v2001, 1.442695
    %v2005 = vpow.pop %v2004
    %v2006 = vadd.f32 %v2003, 1.0
    %v2007 = vadd.f32 %v2005, 1.0
    %v2008 = vrcp.pop %v2006
    %v2009 = vmul.f32 1.0, %v2008
    %v2010 = vrcp.pop %v2007
    %v2011 = vmul.f32 1.0, %v2010
    %v2012 = vxor.u32 %v1993, 2147483648
    %v2013 = vxor.u32 %v1997, 2147483648
    %v2014 = vmul.f32 %v2012, 1.442695
    %v2015 = vpow.pop %v2014
    %v2016 = vmul.f32 %v2013, 1.442695
    %v2017 = vpow.pop %v2016
    %v2018 = vadd.f32 %v2015, 1.0
    %v2019 = vadd.f32 %v2017, 1.0
    %v2020 = vrcp.pop %v2018
    %v2021 = vmul.f32 1.0, %v2020
    %v2022 = vrcp.pop %v2019
    %v2023 = vmul.f32 1.0, %v2022
    %v2024 = vtanh.pop %v1994
    %v2025 = vtanh.pop %v1998
    %v2026 = vxor.u32 %v1995, 2147483648
    %v2027 = vxor.u32 %v1999, 2147483648
    %v2028 = vmul.f32 %v2026, 1.442695
    %v2029 = vpow.pop %v2028
    %v2030 = vmul.f32 %v2027, 1.442695
    %v2031 = vpow.pop %v2030
    %v2032 = vadd.f32 %v2029, 1.0
    %v2033 = vadd.f32 %v2031, 1.0
    %v2034 = vrcp.pop %v2032
    %v2035 = vmul.f32 1.0, %v2034
    %v2036 = vrcp.pop %v2033
    %v2037 = vmul.f32 1.0, %v2036
    %v2038 = vld [vmem:[#allocation5] sm:$0xff]
    %v2039 = vld [vmem:[#allocation5 + $0x8] sm:$0xff]
    %v2040 = vmul.f32 %v2021, %v2038
    %v2041 = vmul.f32 %v2023, %v2039
    %v2042 = vmul.f32 %v2009, %v2024
    %v2043 = vmul.f32 %v2011, %v2025
    %v2044 = vadd.f32 %v2040, %v2042
    %v2045 = vadd.f32 %v2041, %v2043
    %v2046 = vtanh.pop %v2044
    %v2047 = vtanh.pop %v2045
    %v2048 = vmul.f32 %v2035, %v2046
    %v2049 = vmul.f32 %v2037, %v2047
    %2050 = vst [vmem:[#allocation5] sm:$0xff] %v2044
    %2051 = vst [vmem:[#allocation5 + $0x8] sm:$0xff] %v2045
    %2052 = vst [vmem:[#allocation4] sm:$0xff] %v2048
    %2053 = vst [vmem:[#allocation4 + $0x8] sm:$0xff] %v2049
    %v2054 = vpack.c.bf16 %v2049, %v2048
    %v2056 = vunpack.c.l.b16 %v2054
    %v2057 = vunpack.c.h.b16 %v2054
    %v2058 = vpack.c.b16 %v2056, %v2056
    %v2059 = vpack.c.b16 %v2057, %v2057
    %s2062 = scalar_lea.vmem [#allocation3], 24
    %2063 = vst [vmem:[%s2062] sm:$0xf] %v2058
    %2064 = vst [vmem:[%s2062 + $0x4] sm:$0xf] %v2059
    %v2065 = vld [vmem:[#allocation4] sm:$0xff]
    %v2066 = vld [vmem:[#allocation4 + $0x8] sm:$0xff]
    %s2067 = smul.u32 8, 4
    %s2068 = smul.addr %s2067, 8
    %s2069 = scalar_lea.vmem [#allocation2], %s2068
    %v2070 = vld [vmem:[%s2069] sm:$0xff]
    %v2071 = vld [vmem:[%s2069 + $0x8] sm:$0xff]
    %v2072 = vld [vmem:[%s2069 + $0x10] sm:$0xff]
    %v2073 = vld [vmem:[%s2069 + $0x18] sm:$0xff]
    %v2074 = vld [vmem:[%s2069 + $0x20] sm:$0xff]
    %v2075 = vld [vmem:[%s2069 + $0x28] sm:$0xff]
    %v2076 = vld [vmem:[%s2069 + $0x30] sm:$0xff]
    %v2077 = vld [vmem:[%s2069 + $0x38] sm:$0xff]
    %v2078 = vpack.c.bf16 %v2066, %v2065
    %v2079 = vld [vmem:[%s2] sm:$0xff]
    %v2080 = vld [vmem:[%s2 + $0x8] sm:$0xff]
    %v2081 = vld [vmem:[%s2 + $0x10] sm:$0xff]
    %v2082 = vld [vmem:[%s2 + $0x18] sm:$0xff]
    %v2083 = vld [vmem:[%s2 + $0x20] sm:$0xff]
    %v2084 = vld [vmem:[%s2 + $0x28] sm:$0xff]
    %v2085 = vld [vmem:[%s2 + $0x30] sm:$0xff]
    %v2086 = vld [vmem:[%s2 + $0x38] sm:$0xff]
    %v2087 = vld [vmem:[%s2 + $0x40] sm:$0xff]
    %v2088 = vld [vmem:[%s2 + $0x48] sm:$0xff]
    %v2089 = vld [vmem:[%s2 + $0x50] sm:$0xff]
    %v2090 = vld [vmem:[%s2 + $0x58] sm:$0xff]
    %v2091 = vld [vmem:[%s2 + $0x60] sm:$0xff]
    %v2092 = vld [vmem:[%s2 + $0x68] sm:$0xff]
    %v2093 = vld [vmem:[%s2 + $0x70] sm:$0xff]
    %v2094 = vld [vmem:[%s2 + $0x78] sm:$0xff]
    %v2095 = vld [vmem:[%s2 + $0x80] sm:$0xff]
    %v2096 = vld [vmem:[%s2 + $0x88] sm:$0xff]
    %v2097 = vld [vmem:[%s2 + $0x90] sm:$0xff]
    %v2098 = vld [vmem:[%s2 + $0x98] sm:$0xff]
    %v2099 = vld [vmem:[%s2 + $0xa0] sm:$0xff]
    %v2100 = vld [vmem:[%s2 + $0xa8] sm:$0xff]
    %v2101 = vld [vmem:[%s2 + $0xb0] sm:$0xff]
    %v2102 = vld [vmem:[%s2 + $0xb8] sm:$0xff]
    %v2103 = vld [vmem:[%s2 + $0xc0] sm:$0xff]
    %v2104 = vld [vmem:[%s2 + $0xc8] sm:$0xff]
    %v2105 = vld [vmem:[%s2 + $0xd0] sm:$0xff]
    %v2106 = vld [vmem:[%s2 + $0xd8] sm:$0xff]
    %v2107 = vld [vmem:[%s2 + $0xe0] sm:$0xff]
    %v2108 = vld [vmem:[%s2 + $0xe8] sm:$0xff]
    %v2109 = vld [vmem:[%s2 + $0xf0] sm:$0xff]
    %v2110 = vld [vmem:[%s2 + $0xf8] sm:$0xff]
    %v2143 = vunpack.c.l.b16 %v2079
    %v2144 = vunpack.c.h.b16 %v2079
    %v2145 = vunpack.c.l.b16 %v2080
    %v2146 = vunpack.c.h.b16 %v2080
    %v2147 = vunpack.c.l.b16 %v2081
    %v2148 = vunpack.c.h.b16 %v2081
    %v2149 = vunpack.c.l.b16 %v2082
    %v2150 = vunpack.c.h.b16 %v2082
    %v2151 = vunpack.c.l.b16 %v2083
    %v2152 = vunpack.c.h.b16 %v2083
    %v2153 = vunpack.c.l.b16 %v2084
    %v2154 = vunpack.c.h.b16 %v2084
    %v2155 = vunpack.c.l.b16 %v2085
    %v2156 = vunpack.c.h.b16 %v2085
    %v2157 = vunpack.c.l.b16 %v2086
    %v2158 = vunpack.c.h.b16 %v2086
    %v2159 = vunpack.c.l.b16 %v2087
    %v2160 = vunpack.c.h.b16 %v2087
    %v2161 = vunpack.c.l.b16 %v2088
    %v2162 = vunpack.c.h.b16 %v2088
    %v2163 = vunpack.c.l.b16 %v2089
    %v2164 = vunpack.c.h.b16 %v2089
    %v2165 = vunpack.c.l.b16 %v2090
    %v2166 = vunpack.c.h.b16 %v2090
    %v2167 = vunpack.c.l.b16 %v2091
    %v2168 = vunpack.c.h.b16 %v2091
    %v2169 = vunpack.c.l.b16 %v2092
    %v2170 = vunpack.c.h.b16 %v2092
    %v2171 = vunpack.c.l.b16 %v2093
    %v2172 = vunpack.c.h.b16 %v2093
    %v2173 = vunpack.c.l.b16 %v2094
    %v2174 = vunpack.c.h.b16 %v2094
    %v2175 = vunpack.c.l.b16 %v2095
    %v2176 = vunpack.c.h.b16 %v2095
    %v2177 = vunpack.c.l.b16 %v2096
    %v2178 = vunpack.c.h.b16 %v2096
    %v2179 = vunpack.c.l.b16 %v2097
    %v2180 = vunpack.c.h.b16 %v2097
    %v2181 = vunpack.c.l.b16 %v2098
    %v2182 = vunpack.c.h.b16 %v2098
    %v2183 = vunpack.c.l.b16 %v2099
    %v2184 = vunpack.c.h.b16 %v2099
    %v2185 = vunpack.c.l.b16 %v2100
    %v2186 = vunpack.c.h.b16 %v2100
    %v2187 = vunpack.c.l.b16 %v2101
    %v2188 = vunpack.c.h.b16 %v2101
    %v2189 = vunpack.c.l.b16 %v2102
    %v2190 = vunpack.c.h.b16 %v2102
    %v2191 = vunpack.c.l.b16 %v2103
    %v2192 = vunpack.c.h.b16 %v2103
    %v2193 = vunpack.c.l.b16 %v2104
    %v2194 = vunpack.c.h.b16 %v2104
    %v2195 = vunpack.c.l.b16 %v2105
    %v2196 = vunpack.c.h.b16 %v2105
    %v2197 = vunpack.c.l.b16 %v2106
    %v2198 = vunpack.c.h.b16 %v2106
    %v2199 = vunpack.c.l.b16 %v2107
    %v2200 = vunpack.c.h.b16 %v2107
    %v2201 = vunpack.c.l.b16 %v2108
    %v2202 = vunpack.c.h.b16 %v2108
    %v2203 = vunpack.c.l.b16 %v2109
    %v2204 = vunpack.c.h.b16 %v2109
    %v2205 = vunpack.c.l.b16 %v2110
    %v2206 = vunpack.c.h.b16 %v2110
    %v2207 = vpack.c.b16 %v2147, %v2143
    %v2208 = vpack.c.b16 %v2148, %v2144
    %v2209 = vpack.c.b16 %v2149, %v2145
    %v2210 = vpack.c.b16 %v2150, %v2146
    %v2211 = vpack.c.b16 %v2155, %v2151
    %v2212 = vpack.c.b16 %v2156, %v2152
    %v2213 = vpack.c.b16 %v2157, %v2153
    %v2214 = vpack.c.b16 %v2158, %v2154
    %v2215 = vpack.c.b16 %v2163, %v2159
    %v2216 = vpack.c.b16 %v2164, %v2160
    %v2217 = vpack.c.b16 %v2165, %v2161
    %v2218 = vpack.c.b16 %v2166, %v2162
    %v2219 = vpack.c.b16 %v2171, %v2167
    %v2220 = vpack.c.b16 %v2172, %v2168
    %v2221 = vpack.c.b16 %v2173, %v2169
    %v2222 = vpack.c.b16 %v2174, %v2170
    %v2223 = vpack.c.b16 %v2179, %v2175
    %v2224 = vpack.c.b16 %v2180, %v2176
    %v2225 = vpack.c.b16 %v2181, %v2177
    %v2226 = vpack.c.b16 %v2182, %v2178
    %v2227 = vpack.c.b16 %v2187, %v2183
    %v2228 = vpack.c.b16 %v2188, %v2184
    %v2229 = vpack.c.b16 %v2189, %v2185
    %v2230 = vpack.c.b16 %v2190, %v2186
    %v2231 = vpack.c.b16 %v2195, %v2191
    %v2232 = vpack.c.b16 %v2196, %v2192
    %v2233 = vpack.c.b16 %v2197, %v2193
    %v2234 = vpack.c.b16 %v2198, %v2194
    %v2235 = vpack.c.b16 %v2203, %v2199
    %v2236 = vpack.c.b16 %v2204, %v2200
    %v2237 = vpack.c.b16 %v2205, %v2201
    %v2238 = vpack.c.b16 %v2206, %v2202
    %2271 = vmatprep.subr.bf16.mxu0 %v2236
    %2272 = vmatpush1.bf16.msra.mxu0 %v2235
    %2273 = vmatprep.subr.bf16.mxu0 %v2232
    %2274 = vmatpush1.bf16.msra.mxu0 %v2231
    %2275 = vmatprep.subr.bf16.mxu0 %v2228
    %2276 = vmatpush1.bf16.msra.mxu0 %v2227
    %2277 = vmatprep.subr.bf16.mxu0 %v2224
    %2278 = vmatpush1.bf16.msra.mxu0 %v2223
    %2279 = vmatprep.subr.bf16.mxu0 %v2220
    %2280 = vmatpush1.bf16.msra.mxu0 %v2219
    %2281 = vmatprep.subr.bf16.mxu0 %v2216
    %2282 = vmatpush1.bf16.msra.mxu0 %v2215
    %2283 = vmatprep.subr.bf16.mxu0 %v2212
    %2284 = vmatpush1.bf16.msra.mxu0 %v2211
    %2285 = vmatprep.subr.bf16.mxu0 %v2208
    %2286 = vmatpush1.bf16.msra.mxu0 %v2207
    %2287 = vmatprep.subr.bf16.mxu0 0
    %2288 = vmatpush2.bf16.msra.mxu0 0
    %2289 = vmatprep.subr.bf16.mxu0 0
    %2290 = vmatpush2.bf16.msra.mxu0 0
    %2291 = vmatprep.subr.bf16.mxu0 0
    %2292 = vmatpush2.bf16.msra.mxu0 0
    %2293 = vmatprep.subr.bf16.mxu0 0
    %2294 = vmatpush2.bf16.msra.mxu0 0
    %2295 = vmatprep.subr.bf16.mxu0 0
    %2296 = vmatpush2.bf16.msra.mxu0 0
    %2297 = vmatprep.subr.bf16.mxu0 0
    %2298 = vmatpush2.bf16.msra.mxu0 0
    %2299 = vmatprep.subr.bf16.mxu0 0
    %2300 = vmatpush2.bf16.msra.mxu0 0
    %2301 = vmatprep.subr.bf16.mxu0 0
    %2302 = vmatpush2.bf16.msra.mxu0 0
    %2303 = vmatprep.mubr.bf16.mxu0 0
    %2304 = vmatmul.mubr.bf16.gmra.mxu0 %v2078
    %v2305 = vpop.f32.mrf.mxu0
    %v2306 = vadd.f32 0.0, %v2305
    %v2307 = vpop.f32.mrf.mxu0
    %v2308 = vadd.f32 0.0, %v2307
    %v2309 = vpop.f32.mrf.mxu0
    %v2310 = vadd.f32 0.0, %v2309
    %v2311 = vpop.f32.mrf.mxu0
    %v2312 = vadd.f32 0.0, %v2311
    %2313 = vdwg.mxu0
    %2314 = vmatprep.subr.bf16.mxu0 %v2238
    %2315 = vmatpush1.bf16.msra.mxu0 %v2237
    %2316 = vmatprep.subr.bf16.mxu0 %v2234
    %2317 = vmatpush1.bf16.msra.mxu0 %v2233
    %2318 = vmatprep.subr.bf16.mxu0 %v2230
    %2319 = vmatpush1.bf16.msra.mxu0 %v2229
    %2320 = vmatprep.subr.bf16.mxu0 %v2226
    %2321 = vmatpush1.bf16.msra.mxu0 %v2225
    %2322 = vmatprep.subr.bf16.mxu0 %v2222
    %2323 = vmatpush1.bf16.msra.mxu0 %v2221
    %2324 = vmatprep.subr.bf16.mxu0 %v2218
    %2325 = vmatpush1.bf16.msra.mxu0 %v2217
    %2326 = vmatprep.subr.bf16.mxu0 %v2214
    %2327 = vmatpush1.bf16.msra.mxu0 %v2213
    %2328 = vmatprep.subr.bf16.mxu0 %v2210
    %2329 = vmatpush1.bf16.msra.mxu0 %v2209
    %2330 = vmatprep.subr.bf16.mxu0 0
    %2331 = vmatpush2.bf16.msra.mxu0 0
    %2332 = vmatprep.subr.bf16.mxu0 0
    %2333 = vmatpush2.bf16.msra.mxu0 0
    %2334 = vmatprep.subr.bf16.mxu0 0
    %2335 = vmatpush2.bf16.msra.mxu0 0
    %2336 = vmatprep.subr.bf16.mxu0 0
    %2337 = vmatpush2.bf16.msra.mxu0 0
    %2338 = vmatprep.subr.bf16.mxu0 0
    %2339 = vmatpush2.bf16.msra.mxu0 0
    %2340 = vmatprep.subr.bf16.mxu0 0
    %2341 = vmatpush2.bf16.msra.mxu0 0
    %2342 = vmatprep.subr.bf16.mxu0 0
    %2343 = vmatpush2.bf16.msra.mxu0 0
    %2344 = vmatprep.subr.bf16.mxu0 0
    %2345 = vmatpush2.bf16.msra.mxu0 0
    %2346 = vmatprep.mubr.bf16.mxu0 0
    %2347 = vmatmul.mubr.bf16.gmra.mxu0 %v2078
    %v2348 = vpop.f32.mrf.mxu0
    %v2349 = vadd.f32 0.0, %v2348
    %v2350 = vpop.f32.mrf.mxu0
    %v2351 = vadd.f32 0.0, %v2350
    %v2352 = vpop.f32.mrf.mxu0
    %v2353 = vadd.f32 0.0, %v2352
    %v2354 = vpop.f32.mrf.mxu0
    %v2355 = vadd.f32 0.0, %v2354
    %2356 = vdwg.mxu0
    %v2357 = vadd.f32 %v2070, %v2306
    %v2358 = vadd.f32 %v2071, %v2308
    %v2359 = vadd.f32 %v2072, %v2349
    %v2360 = vadd.f32 %v2073, %v2351
    %v2361 = vadd.f32 %v2074, %v2310
    %v2362 = vadd.f32 %v2075, %v2312
    %v2363 = vadd.f32 %v2076, %v2353
    %v2364 = vadd.f32 %v2077, %v2355
    %v2365 = vxor.u32 %v2357, 2147483648
    %v2366 = vxor.u32 %v2361, 2147483648
    %v2367 = vmul.f32 %v2365, 1.442695
    %v2368 = vpow.pop %v2367
    %v2369 = vmul.f32 %v2366, 1.442695
    %v2370 = vpow.pop %v2369
    %v2371 = vadd.f32 %v2368, 1.0
    %v2372 = vadd.f32 %v2370, 1.0
    %v2373 = vrcp.pop %v2371
    %v2374 = vmul.f32 1.0, %v2373
    %v2375 = vrcp.pop %v2372
    %v2376 = vmul.f32 1.0, %v2375
    %v2377 = vxor.u32 %v2358, 2147483648
    %v2378 = vxor.u32 %v2362, 2147483648
    %v2379 = vmul.f32 %v2377, 1.442695
    %v2380 = vpow.pop %v2379
    %v2381 = vmul.f32 %v2378, 1.442695
    %v2382 = vpow.pop %v2381
    %v2383 = vadd.f32 %v2380, 1.0
    %v2384 = vadd.f32 %v2382, 1.0
    %v2385 = vrcp.pop %v2383
    %v2386 = vmul.f32 1.0, %v2385
    %v2387 = vrcp.pop %v2384
    %v2388 = vmul.f32 1.0, %v2387
    %v2389 = vtanh.pop %v2359
    %v2390 = vtanh.pop %v2363
    %v2391 = vxor.u32 %v2360, 2147483648
    %v2392 = vxor.u32 %v2364, 2147483648
    %v2393 = vmul.f32 %v2391, 1.442695
    %v2394 = vpow.pop %v2393
    %v2395 = vmul.f32 %v2392, 1.442695
    %v2396 = vpow.pop %v2395
    %v2397 = vadd.f32 %v2394, 1.0
    %v2398 = vadd.f32 %v2396, 1.0
    %v2399 = vrcp.pop %v2397
    %v2400 = vmul.f32 1.0, %v2399
    %v2401 = vrcp.pop %v2398
    %v2402 = vmul.f32 1.0, %v2401
    %v2403 = vld [vmem:[#allocation5] sm:$0xff]
    %v2404 = vld [vmem:[#allocation5 + $0x8] sm:$0xff]
    %v2405 = vmul.f32 %v2386, %v2403
    %v2406 = vmul.f32 %v2388, %v2404
    %v2407 = vmul.f32 %v2374, %v2389
    %v2408 = vmul.f32 %v2376, %v2390
    %v2409 = vadd.f32 %v2405, %v2407
    %v2410 = vadd.f32 %v2406, %v2408
    %v2411 = vtanh.pop %v2409
    %v2412 = vtanh.pop %v2410
    %v2413 = vmul.f32 %v2400, %v2411
    %v2414 = vmul.f32 %v2402, %v2412
    %2415 = vst [vmem:[#allocation5] sm:$0xff] %v2409
    %2416 = vst [vmem:[#allocation5 + $0x8] sm:$0xff] %v2410
    %2417 = vst [vmem:[#allocation4] sm:$0xff] %v2413
    %2418 = vst [vmem:[#allocation4 + $0x8] sm:$0xff] %v2414
    %v2419 = vpack.c.bf16 %v2414, %v2413
    %v2421 = vunpack.c.l.b16 %v2419
    %v2422 = vunpack.c.h.b16 %v2419
    %v2423 = vpack.c.b16 %v2421, %v2421
    %v2424 = vpack.c.b16 %v2422, %v2422
    %s2427 = scalar_lea.vmem [#allocation3], 32
    %2428 = vst [vmem:[%s2427] sm:$0xf] %v2423
    %2429 = vst [vmem:[%s2427 + $0x4] sm:$0xf] %v2424
    %v2430 = vld [vmem:[#allocation4] sm:$0xff]
    %v2431 = vld [vmem:[#allocation4 + $0x8] sm:$0xff]
    %s2432 = smul.u32 10, 4
    %s2433 = smul.addr %s2432, 8
    %s2434 = scalar_lea.vmem [#allocation2], %s2433
    %v2435 = vld [vmem:[%s2434] sm:$0xff]
    %v2436 = vld [vmem:[%s2434 + $0x8] sm:$0xff]
    %v2437 = vld [vmem:[%s2434 + $0x10] sm:$0xff]
    %v2438 = vld [vmem:[%s2434 + $0x18] sm:$0xff]
    %v2439 = vld [vmem:[%s2434 + $0x20] sm:$0xff]
    %v2440 = vld [vmem:[%s2434 + $0x28] sm:$0xff]
    %v2441 = vld [vmem:[%s2434 + $0x30] sm:$0xff]
    %v2442 = vld [vmem:[%s2434 + $0x38] sm:$0xff]
    %v2443 = vpack.c.bf16 %v2431, %v2430
    %v2444 = vld [vmem:[%s2] sm:$0xff]
    %v2445 = vld [vmem:[%s2 + $0x8] sm:$0xff]
    %v2446 = vld [vmem:[%s2 + $0x10] sm:$0xff]
    %v2447 = vld [vmem:[%s2 + $0x18] sm:$0xff]
    %v2448 = vld [vmem:[%s2 + $0x20] sm:$0xff]
    %v2449 = vld [vmem:[%s2 + $0x28] sm:$0xff]
    %v2450 = vld [vmem:[%s2 + $0x30] sm:$0xff]
    %v2451 = vld [vmem:[%s2 + $0x38] sm:$0xff]
    %v2452 = vld [vmem:[%s2 + $0x40] sm:$0xff]
    %v2453 = vld [vmem:[%s2 + $0x48] sm:$0xff]
    %v2454 = vld [vmem:[%s2 + $0x50] sm:$0xff]
    %v2455 = vld [vmem:[%s2 + $0x58] sm:$0xff]
    %v2456 = vld [vmem:[%s2 + $0x60] sm:$0xff]
    %v2457 = vld [vmem:[%s2 + $0x68] sm:$0xff]
    %v2458 = vld [vmem:[%s2 + $0x70] sm:$0xff]
    %v2459 = vld [vmem:[%s2 + $0x78] sm:$0xff]
    %v2460 = vld [vmem:[%s2 + $0x80] sm:$0xff]
    %v2461 = vld [vmem:[%s2 + $0x88] sm:$0xff]
    %v2462 = vld [vmem:[%s2 + $0x90] sm:$0xff]
    %v2463 = vld [vmem:[%s2 + $0x98] sm:$0xff]
    %v2464 = vld [vmem:[%s2 + $0xa0] sm:$0xff]
    %v2465 = vld [vmem:[%s2 + $0xa8] sm:$0xff]
    %v2466 = vld [vmem:[%s2 + $0xb0] sm:$0xff]
    %v2467 = vld [vmem:[%s2 + $0xb8] sm:$0xff]
    %v2468 = vld [vmem:[%s2 + $0xc0] sm:$0xff]
    %v2469 = vld [vmem:[%s2 + $0xc8] sm:$0xff]
    %v2470 = vld [vmem:[%s2 + $0xd0] sm:$0xff]
    %v2471 = vld [vmem:[%s2 + $0xd8] sm:$0xff]
    %v2472 = vld [vmem:[%s2 + $0xe0] sm:$0xff]
    %v2473 = vld [vmem:[%s2 + $0xe8] sm:$0xff]
    %v2474 = vld [vmem:[%s2 + $0xf0] sm:$0xff]
    %v2475 = vld [vmem:[%s2 + $0xf8] sm:$0xff]
    %v2508 = vunpack.c.l.b16 %v2444
    %v2509 = vunpack.c.h.b16 %v2444
    %v2510 = vunpack.c.l.b16 %v2445
    %v2511 = vunpack.c.h.b16 %v2445
    %v2512 = vunpack.c.l.b16 %v2446
    %v2513 = vunpack.c.h.b16 %v2446
    %v2514 = vunpack.c.l.b16 %v2447
    %v2515 = vunpack.c.h.b16 %v2447
    %v2516 = vunpack.c.l.b16 %v2448
    %v2517 = vunpack.c.h.b16 %v2448
    %v2518 = vunpack.c.l.b16 %v2449
    %v2519 = vunpack.c.h.b16 %v2449
    %v2520 = vunpack.c.l.b16 %v2450
    %v2521 = vunpack.c.h.b16 %v2450
    %v2522 = vunpack.c.l.b16 %v2451
    %v2523 = vunpack.c.h.b16 %v2451
    %v2524 = vunpack.c.l.b16 %v2452
    %v2525 = vunpack.c.h.b16 %v2452
    %v2526 = vunpack.c.l.b16 %v2453
    %v2527 = vunpack.c.h.b16 %v2453
    %v2528 = vunpack.c.l.b16 %v2454
    %v2529 = vunpack.c.h.b16 %v2454
    %v2530 = vunpack.c.l.b16 %v2455
    %v2531 = vunpack.c.h.b16 %v2455
    %v2532 = vunpack.c.l.b16 %v2456
    %v2533 = vunpack.c.h.b16 %v2456
    %v2534 = vunpack.c.l.b16 %v2457
    %v2535 = vunpack.c.h.b16 %v2457
    %v2536 = vunpack.c.l.b16 %v2458
    %v2537 = vunpack.c.h.b16 %v2458
    %v2538 = vunpack.c.l.b16 %v2459
    %v2539 = vunpack.c.h.b16 %v2459
    %v2540 = vunpack.c.l.b16 %v2460
    %v2541 = vunpack.c.h.b16 %v2460
    %v2542 = vunpack.c.l.b16 %v2461
    %v2543 = vunpack.c.h.b16 %v2461
    %v2544 = vunpack.c.l.b16 %v2462
    %v2545 = vunpack.c.h.b16 %v2462
    %v2546 = vunpack.c.l.b16 %v2463
    %v2547 = vunpack.c.h.b16 %v2463
    %v2548 = vunpack.c.l.b16 %v2464
    %v2549 = vunpack.c.h.b16 %v2464
    %v2550 = vunpack.c.l.b16 %v2465
    %v2551 = vunpack.c.h.b16 %v2465
    %v2552 = vunpack.c.l.b16 %v2466
    %v2553 = vunpack.c.h.b16 %v2466
    %v2554 = vunpack.c.l.b16 %v2467
    %v2555 = vunpack.c.h.b16 %v2467
    %v2556 = vunpack.c.l.b16 %v2468
    %v2557 = vunpack.c.h.b16 %v2468
    %v2558 = vunpack.c.l.b16 %v2469
    %v2559 = vunpack.c.h.b16 %v2469
    %v2560 = vunpack.c.l.b16 %v2470
    %v2561 = vunpack.c.h.b16 %v2470
    %v2562 = vunpack.c.l.b16 %v2471
    %v2563 = vunpack.c.h.b16 %v2471
    %v2564 = vunpack.c.l.b16 %v2472
    %v2565 = vunpack.c.h.b16 %v2472
    %v2566 = vunpack.c.l.b16 %v2473
    %v2567 = vunpack.c.h.b16 %v2473
    %v2568 = vunpack.c.l.b16 %v2474
    %v2569 = vunpack.c.h.b16 %v2474
    %v2570 = vunpack.c.l.b16 %v2475
    %v2571 = vunpack.c.h.b16 %v2475
    %v2572 = vpack.c.b16 %v2512, %v2508
    %v2573 = vpack.c.b16 %v2513, %v2509
    %v2574 = vpack.c.b16 %v2514, %v2510
    %v2575 = vpack.c.b16 %v2515, %v2511
    %v2576 = vpack.c.b16 %v2520, %v2516
    %v2577 = vpack.c.b16 %v2521, %v2517
    %v2578 = vpack.c.b16 %v2522, %v2518
    %v2579 = vpack.c.b16 %v2523, %v2519
    %v2580 = vpack.c.b16 %v2528, %v2524
    %v2581 = vpack.c.b16 %v2529, %v2525
    %v2582 = vpack.c.b16 %v2530, %v2526
    %v2583 = vpack.c.b16 %v2531, %v2527
    %v2584 = vpack.c.b16 %v2536, %v2532
    %v2585 = vpack.c.b16 %v2537, %v2533
    %v2586 = vpack.c.b16 %v2538, %v2534
    %v2587 = vpack.c.b16 %v2539, %v2535
    %v2588 = vpack.c.b16 %v2544, %v2540
    %v2589 = vpack.c.b16 %v2545, %v2541
    %v2590 = vpack.c.b16 %v2546, %v2542
    %v2591 = vpack.c.b16 %v2547, %v2543
    %v2592 = vpack.c.b16 %v2552, %v2548
    %v2593 = vpack.c.b16 %v2553, %v2549
    %v2594 = vpack.c.b16 %v2554, %v2550
    %v2595 = vpack.c.b16 %v2555, %v2551
    %v2596 = vpack.c.b16 %v2560, %v2556
    %v2597 = vpack.c.b16 %v2561, %v2557
    %v2598 = vpack.c.b16 %v2562, %v2558
    %v2599 = vpack.c.b16 %v2563, %v2559
    %v2600 = vpack.c.b16 %v2568, %v2564
    %v2601 = vpack.c.b16 %v2569, %v2565
    %v2602 = vpack.c.b16 %v2570, %v2566
    %v2603 = vpack.c.b16 %v2571, %v2567
    %2636 = vmatprep.subr.bf16.mxu0 %v2601
    %2637 = vmatpush1.bf16.msra.mxu0 %v2600
    %2638 = vmatprep.subr.bf16.mxu0 %v2597
    %2639 = vmatpush1.bf16.msra.mxu0 %v2596
    %2640 = vmatprep.subr.bf16.mxu0 %v2593
    %2641 = vmatpush1.bf16.msra.mxu0 %v2592
    %2642 = vmatprep.subr.bf16.mxu0 %v2589
    %2643 = vmatpush1.bf16.msra.mxu0 %v2588
    %2644 = vmatprep.subr.bf16.mxu0 %v2585
    %2645 = vmatpush1.bf16.msra.mxu0 %v2584
    %2646 = vmatprep.subr.bf16.mxu0 %v2581
    %2647 = vmatpush1.bf16.msra.mxu0 %v2580
    %2648 = vmatprep.subr.bf16.mxu0 %v2577
    %2649 = vmatpush1.bf16.msra.mxu0 %v2576
    %2650 = vmatprep.subr.bf16.mxu0 %v2573
    %2651 = vmatpush1.bf16.msra.mxu0 %v2572
    %2652 = vmatprep.subr.bf16.mxu0 0
    %2653 = vmatpush2.bf16.msra.mxu0 0
    %2654 = vmatprep.subr.bf16.mxu0 0
    %2655 = vmatpush2.bf16.msra.mxu0 0
    %2656 = vmatprep.subr.bf16.mxu0 0
    %2657 = vmatpush2.bf16.msra.mxu0 0
    %2658 = vmatprep.subr.bf16.mxu0 0
    %2659 = vmatpush2.bf16.msra.mxu0 0
    %2660 = vmatprep.subr.bf16.mxu0 0
    %2661 = vmatpush2.bf16.msra.mxu0 0
    %2662 = vmatprep.subr.bf16.mxu0 0
    %2663 = vmatpush2.bf16.msra.mxu0 0
    %2664 = vmatprep.subr.bf16.mxu0 0
    %2665 = vmatpush2.bf16.msra.mxu0 0
    %2666 = vmatprep.subr.bf16.mxu0 0
    %2667 = vmatpush2.bf16.msra.mxu0 0
    %2668 = vmatprep.mubr.bf16.mxu0 0
    %2669 = vmatmul.mubr.bf16.gmra.mxu0 %v2443
    %v2670 = vpop.f32.mrf.mxu0
    %v2671 = vadd.f32 0.0, %v2670
    %v2672 = vpop.f32.mrf.mxu0
    %v2673 = vadd.f32 0.0, %v2672
    %v2674 = vpop.f32.mrf.mxu0
    %v2675 = vadd.f32 0.0, %v2674
    %v2676 = vpop.f32.mrf.mxu0
    %v2677 = vadd.f32 0.0, %v2676
    %2678 = vdwg.mxu0
    %2679 = vmatprep.subr.bf16.mxu0 %v2603
    %2680 = vmatpush1.bf16.msra.mxu0 %v2602
    %2681 = vmatprep.subr.bf16.mxu0 %v2599
    %2682 = vmatpush1.bf16.msra.mxu0 %v2598
    %2683 = vmatprep.subr.bf16.mxu0 %v2595
    %2684 = vmatpush1.bf16.msra.mxu0 %v2594
    %2685 = vmatprep.subr.bf16.mxu0 %v2591
    %2686 = vmatpush1.bf16.msra.mxu0 %v2590
    %2687 = vmatprep.subr.bf16.mxu0 %v2587
    %2688 = vmatpush1.bf16.msra.mxu0 %v2586
    %2689 = vmatprep.subr.bf16.mxu0 %v2583
    %2690 = vmatpush1.bf16.msra.mxu0 %v2582
    %2691 = vmatprep.subr.bf16.mxu0 %v2579
    %2692 = vmatpush1.bf16.msra.mxu0 %v2578
    %2693 = vmatprep.subr.bf16.mxu0 %v2575
    %2694 = vmatpush1.bf16.msra.mxu0 %v2574
    %2695 = vmatprep.subr.bf16.mxu0 0
    %2696 = vmatpush2.bf16.msra.mxu0 0
    %2697 = vmatprep.subr.bf16.mxu0 0
    %2698 = vmatpush2.bf16.msra.mxu0 0
    %2699 = vmatprep.subr.bf16.mxu0 0
    %2700 = vmatpush2.bf16.msra.mxu0 0
    %2701 = vmatprep.subr.bf16.mxu0 0
    %2702 = vmatpush2.bf16.msra.mxu0 0
    %2703 = vmatprep.subr.bf16.mxu0 0
    %2704 = vmatpush2.bf16.msra.mxu0 0
    %2705 = vmatprep.subr.bf16.mxu0 0
    %2706 = vmatpush2.bf16.msra.mxu0 0
    %2707 = vmatprep.subr.bf16.mxu0 0
    %2708 = vmatpush2.bf16.msra.mxu0 0
    %2709 = vmatprep.subr.bf16.mxu0 0
    %2710 = vmatpush2.bf16.msra.mxu0 0
    %2711 = vmatprep.mubr.bf16.mxu0 0
    %2712 = vmatmul.mubr.bf16.gmra.mxu0 %v2443
    %v2713 = vpop.f32.mrf.mxu0
    %v2714 = vadd.f32 0.0, %v2713
    %v2715 = vpop.f32.mrf.mxu0
    %v2716 = vadd.f32 0.0, %v2715
    %v2717 = vpop.f32.mrf.mxu0
    %v2718 = vadd.f32 0.0, %v2717
    %v2719 = vpop.f32.mrf.mxu0
    %v2720 = vadd.f32 0.0, %v2719
    %2721 = vdwg.mxu0
    %v2722 = vadd.f32 %v2435, %v2671
    %v2723 = vadd.f32 %v2436, %v2673
    %v2724 = vadd.f32 %v2437, %v2714
    %v2725 = vadd.f32 %v2438, %v2716
    %v2726 = vadd.f32 %v2439, %v2675
    %v2727 = vadd.f32 %v2440, %v2677
    %v2728 = vadd.f32 %v2441, %v2718
    %v2729 = vadd.f32 %v2442, %v2720
    %v2730 = vxor.u32 %v2722, 2147483648
    %v2731 = vxor.u32 %v2726, 2147483648
    %v2732 = vmul.f32 %v2730, 1.442695
    %v2733 = vpow.pop %v2732
    %v2734 = vmul.f32 %v2731, 1.442695
    %v2735 = vpow.pop %v2734
    %v2736 = vadd.f32 %v2733, 1.0
    %v2737 = vadd.f32 %v2735, 1.0
    %v2738 = vrcp.pop %v2736
    %v2739 = vmul.f32 1.0, %v2738
    %v2740 = vrcp.pop %v2737
    %v2741 = vmul.f32 1.0, %v2740
    %v2742 = vxor.u32 %v2723, 2147483648
    %v2743 = vxor.u32 %v2727, 2147483648
    %v2744 = vmul.f32 %v2742, 1.442695
    %v2745 = vpow.pop %v2744
    %v2746 = vmul.f32 %v2743, 1.442695
    %v2747 = vpow.pop %v2746
    %v2748 = vadd.f32 %v2745, 1.0
    %v2749 = vadd.f32 %v2747, 1.0
    %v2750 = vrcp.pop %v2748
    %v2751 = vmul.f32 1.0, %v2750
    %v2752 = vrcp.pop %v2749
    %v2753 = vmul.f32 1.0, %v2752
    %v2754 = vtanh.pop %v2724
    %v2755 = vtanh.pop %v2728
    %v2756 = vxor.u32 %v2725, 2147483648
    %v2757 = vxor.u32 %v2729, 2147483648
    %v2758 = vmul.f32 %v2756, 1.442695
    %v2759 = vpow.pop %v2758
    %v2760 = vmul.f32 %v2757, 1.442695
    %v2761 = vpow.pop %v2760
    %v2762 = vadd.f32 %v2759, 1.0
    %v2763 = vadd.f32 %v2761, 1.0
    %v2764 = vrcp.pop %v2762
    %v2765 = vmul.f32 1.0, %v2764
    %v2766 = vrcp.pop %v2763
    %v2767 = vmul.f32 1.0, %v2766
    %v2768 = vld [vmem:[#allocation5] sm:$0xff]
    %v2769 = vld [vmem:[#allocation5 + $0x8] sm:$0xff]
    %v2770 = vmul.f32 %v2751, %v2768
    %v2771 = vmul.f32 %v2753, %v2769
    %v2772 = vmul.f32 %v2739, %v2754
    %v2773 = vmul.f32 %v2741, %v2755
    %v2774 = vadd.f32 %v2770, %v2772
    %v2775 = vadd.f32 %v2771, %v2773
    %v2776 = vtanh.pop %v2774
    %v2777 = vtanh.pop %v2775
    %v2778 = vmul.f32 %v2765, %v2776
    %v2779 = vmul.f32 %v2767, %v2777
    %2780 = vst [vmem:[#allocation5] sm:$0xff] %v2774
    %2781 = vst [vmem:[#allocation5 + $0x8] sm:$0xff] %v2775
    %2782 = vst [vmem:[#allocation4] sm:$0xff] %v2778
    %2783 = vst [vmem:[#allocation4 + $0x8] sm:$0xff] %v2779
    %v2784 = vpack.c.bf16 %v2779, %v2778
    %v2786 = vunpack.c.l.b16 %v2784
    %v2787 = vunpack.c.h.b16 %v2784
    %v2788 = vpack.c.b16 %v2786, %v2786
    %v2789 = vpack.c.b16 %v2787, %v2787
    %s2792 = scalar_lea.vmem [#allocation3], 40
    %2793 = vst [vmem:[%s2792] sm:$0xf] %v2788
    %2794 = vst [vmem:[%s2792 + $0x4] sm:$0xf] %v2789
    %v2795 = vld [vmem:[#allocation4] sm:$0xff]
    %v2796 = vld [vmem:[#allocation4 + $0x8] sm:$0xff]
    %s2797 = smul.u32 12, 4
    %s2798 = smul.addr %s2797, 8
    %s2799 = scalar_lea.vmem [#allocation2], %s2798
    %v2800 = vld [vmem:[%s2799] sm:$0xff]
    %v2801 = vld [vmem:[%s2799 + $0x8] sm:$0xff]
    %v2802 = vld [vmem:[%s2799 + $0x10] sm:$0xff]
    %v2803 = vld [vmem:[%s2799 + $0x18] sm:$0xff]
    %v2804 = vld [vmem:[%s2799 + $0x20] sm:$0xff]
    %v2805 = vld [vmem:[%s2799 + $0x28] sm:$0xff]
    %v2806 = vld [vmem:[%s2799 + $0x30] sm:$0xff]
    %v2807 = vld [vmem:[%s2799 + $0x38] sm:$0xff]
    %v2808 = vpack.c.bf16 %v2796, %v2795
    %v2809 = vld [vmem:[%s2] sm:$0xff]
    %v2810 = vld [vmem:[%s2 + $0x8] sm:$0xff]
    %v2811 = vld [vmem:[%s2 + $0x10] sm:$0xff]
    %v2812 = vld [vmem:[%s2 + $0x18] sm:$0xff]
    %v2813 = vld [vmem:[%s2 + $0x20] sm:$0xff]
    %v2814 = vld [vmem:[%s2 + $0x28] sm:$0xff]
    %v2815 = vld [vmem:[%s2 + $0x30] sm:$0xff]
    %v2816 = vld [vmem:[%s2 + $0x38] sm:$0xff]
    %v2817 = vld [vmem:[%s2 + $0x40] sm:$0xff]
    %v2818 = vld [vmem:[%s2 + $0x48] sm:$0xff]
    %v2819 = vld [vmem:[%s2 + $0x50] sm:$0xff]
    %v2820 = vld [vmem:[%s2 + $0x58] sm:$0xff]
    %v2821 = vld [vmem:[%s2 + $0x60] sm:$0xff]
    %v2822 = vld [vmem:[%s2 + $0x68] sm:$0xff]
    %v2823 = vld [vmem:[%s2 + $0x70] sm:$0xff]
    %v2824 = vld [vmem:[%s2 + $0x78] sm:$0xff]
    %v2825 = vld [vmem:[%s2 + $0x80] sm:$0xff]
    %v2826 = vld [vmem:[%s2 + $0x88] sm:$0xff]
    %v2827 = vld [vmem:[%s2 + $0x90] sm:$0xff]
    %v2828 = vld [vmem:[%s2 + $0x98] sm:$0xff]
    %v2829 = vld [vmem:[%s2 + $0xa0] sm:$0xff]
    %v2830 = vld [vmem:[%s2 + $0xa8] sm:$0xff]
    %v2831 = vld [vmem:[%s2 + $0xb0] sm:$0xff]
    %v2832 = vld [vmem:[%s2 + $0xb8] sm:$0xff]
    %v2833 = vld [vmem:[%s2 + $0xc0] sm:$0xff]
    %v2834 = vld [vmem:[%s2 + $0xc8] sm:$0xff]
    %v2835 = vld [vmem:[%s2 + $0xd0] sm:$0xff]
    %v2836 = vld [vmem:[%s2 + $0xd8] sm:$0xff]
    %v2837 = vld [vmem:[%s2 + $0xe0] sm:$0xff]
    %v2838 = vld [vmem:[%s2 + $0xe8] sm:$0xff]
    %v2839 = vld [vmem:[%s2 + $0xf0] sm:$0xff]
    %v2840 = vld [vmem:[%s2 + $0xf8] sm:$0xff]
    %v2873 = vunpack.c.l.b16 %v2809
    %v2874 = vunpack.c.h.b16 %v2809
    %v2875 = vunpack.c.l.b16 %v2810
    %v2876 = vunpack.c.h.b16 %v2810
    %v2877 = vunpack.c.l.b16 %v2811
    %v2878 = vunpack.c.h.b16 %v2811
    %v2879 = vunpack.c.l.b16 %v2812
    %v2880 = vunpack.c.h.b16 %v2812
    %v2881 = vunpack.c.l.b16 %v2813
    %v2882 = vunpack.c.h.b16 %v2813
    %v2883 = vunpack.c.l.b16 %v2814
    %v2884 = vunpack.c.h.b16 %v2814
    %v2885 = vunpack.c.l.b16 %v2815
    %v2886 = vunpack.c.h.b16 %v2815
    %v2887 = vunpack.c.l.b16 %v2816
    %v2888 = vunpack.c.h.b16 %v2816
    %v2889 = vunpack.c.l.b16 %v2817
    %v2890 = vunpack.c.h.b16 %v2817
    %v2891 = vunpack.c.l.b16 %v2818
    %v2892 = vunpack.c.h.b16 %v2818
    %v2893 = vunpack.c.l.b16 %v2819
    %v2894 = vunpack.c.h.b16 %v2819
    %v2895 = vunpack.c.l.b16 %v2820
    %v2896 = vunpack.c.h.b16 %v2820
    %v2897 = vunpack.c.l.b16 %v2821
    %v2898 = vunpack.c.h.b16 %v2821
    %v2899 = vunpack.c.l.b16 %v2822
    %v2900 = vunpack.c.h.b16 %v2822
    %v2901 = vunpack.c.l.b16 %v2823
    %v2902 = vunpack.c.h.b16 %v2823
    %v2903 = vunpack.c.l.b16 %v2824
    %v2904 = vunpack.c.h.b16 %v2824
    %v2905 = vunpack.c.l.b16 %v2825
    %v2906 = vunpack.c.h.b16 %v2825
    %v2907 = vunpack.c.l.b16 %v2826
    %v2908 = vunpack.c.h.b16 %v2826
    %v2909 = vunpack.c.l.b16 %v2827
    %v2910 = vunpack.c.h.b16 %v2827
    %v2911 = vunpack.c.l.b16 %v2828
    %v2912 = vunpack.c.h.b16 %v2828
    %v2913 = vunpack.c.l.b16 %v2829
    %v2914 = vunpack.c.h.b16 %v2829
    %v2915 = vunpack.c.l.b16 %v2830
    %v2916 = vunpack.c.h.b16 %v2830
    %v2917 = vunpack.c.l.b16 %v2831
    %v2918 = vunpack.c.h.b16 %v2831
    %v2919 = vunpack.c.l.b16 %v2832
    %v2920 = vunpack.c.h.b16 %v2832
    %v2921 = vunpack.c.l.b16 %v2833
    %v2922 = vunpack.c.h.b16 %v2833
    %v2923 = vunpack.c.l.b16 %v2834
    %v2924 = vunpack.c.h.b16 %v2834
    %v2925 = vunpack.c.l.b16 %v2835
    %v2926 = vunpack.c.h.b16 %v2835
    %v2927 = vunpack.c.l.b16 %v2836
    %v2928 = vunpack.c.h.b16 %v2836
    %v2929 = vunpack.c.l.b16 %v2837
    %v2930 = vunpack.c.h.b16 %v2837
    %v2931 = vunpack.c.l.b16 %v2838
    %v2932 = vunpack.c.h.b16 %v2838
    %v2933 = vunpack.c.l.b16 %v2839
    %v2934 = vunpack.c.h.b16 %v2839
    %v2935 = vunpack.c.l.b16 %v2840
    %v2936 = vunpack.c.h.b16 %v2840
    %v2937 = vpack.c.b16 %v2877, %v2873
    %v2938 = vpack.c.b16 %v2878, %v2874
    %v2939 = vpack.c.b16 %v2879, %v2875
    %v2940 = vpack.c.b16 %v2880, %v2876
    %v2941 = vpack.c.b16 %v2885, %v2881
    %v2942 = vpack.c.b16 %v2886, %v2882
    %v2943 = vpack.c.b16 %v2887, %v2883
    %v2944 = vpack.c.b16 %v2888, %v2884
    %v2945 = vpack.c.b16 %v2893, %v2889
    %v2946 = vpack.c.b16 %v2894, %v2890
    %v2947 = vpack.c.b16 %v2895, %v2891
    %v2948 = vpack.c.b16 %v2896, %v2892
    %v2949 = vpack.c.b16 %v2901, %v2897
    %v2950 = vpack.c.b16 %v2902, %v2898
    %v2951 = vpack.c.b16 %v2903, %v2899
    %v2952 = vpack.c.b16 %v2904, %v2900
    %v2953 = vpack.c.b16 %v2909, %v2905
    %v2954 = vpack.c.b16 %v2910, %v2906
    %v2955 = vpack.c.b16 %v2911, %v2907
    %v2956 = vpack.c.b16 %v2912, %v2908
    %v2957 = vpack.c.b16 %v2917, %v2913
    %v2958 = vpack.c.b16 %v2918, %v2914
    %v2959 = vpack.c.b16 %v2919, %v2915
    %v2960 = vpack.c.b16 %v2920, %v2916
    %v2961 = vpack.c.b16 %v2925, %v2921
    %v2962 = vpack.c.b16 %v2926, %v2922
    %v2963 = vpack.c.b16 %v2927, %v2923
    %v2964 = vpack.c.b16 %v2928, %v2924
    %v2965 = vpack.c.b16 %v2933, %v2929
    %v2966 = vpack.c.b16 %v2934, %v2930
    %v2967 = vpack.c.b16 %v2935, %v2931
    %v2968 = vpack.c.b16 %v2936, %v2932
    %3001 = vmatprep.subr.bf16.mxu0 %v2966
    %3002 = vmatpush1.bf16.msra.mxu0 %v2965
    %3003 = vmatprep.subr.bf16.mxu0 %v2962
    %3004 = vmatpush1.bf16.msra.mxu0 %v2961
    %3005 = vmatprep.subr.bf16.mxu0 %v2958
    %3006 = vmatpush1.bf16.msra.mxu0 %v2957
    %3007 = vmatprep.subr.bf16.mxu0 %v2954
    %3008 = vmatpush1.bf16.msra.mxu0 %v2953
    %3009 = vmatprep.subr.bf16.mxu0 %v2950
    %3010 = vmatpush1.bf16.msra.mxu0 %v2949
    %3011 = vmatprep.subr.bf16.mxu0 %v2946
    %3012 = vmatpush1.bf16.msra.mxu0 %v2945
    %3013 = vmatprep.subr.bf16.mxu0 %v2942
    %3014 = vmatpush1.bf16.msra.mxu0 %v2941
    %3015 = vmatprep.subr.bf16.mxu0 %v2938
    %3016 = vmatpush1.bf16.msra.mxu0 %v2937
    %3017 = vmatprep.subr.bf16.mxu0 0
    %3018 = vmatpush2.bf16.msra.mxu0 0
    %3019 = vmatprep.subr.bf16.mxu0 0
    %3020 = vmatpush2.bf16.msra.mxu0 0
    %3021 = vmatprep.subr.bf16.mxu0 0
    %3022 = vmatpush2.bf16.msra.mxu0 0
    %3023 = vmatprep.subr.bf16.mxu0 0
    %3024 = vmatpush2.bf16.msra.mxu0 0
    %3025 = vmatprep.subr.bf16.mxu0 0
    %3026 = vmatpush2.bf16.msra.mxu0 0
    %3027 = vmatprep.subr.bf16.mxu0 0
    %3028 = vmatpush2.bf16.msra.mxu0 0
    %3029 = vmatprep.subr.bf16.mxu0 0
    %3030 = vmatpush2.bf16.msra.mxu0 0
    %3031 = vmatprep.subr.bf16.mxu0 0
    %3032 = vmatpush2.bf16.msra.mxu0 0
    %3033 = vmatprep.mubr.bf16.mxu0 0
    %3034 = vmatmul.mubr.bf16.gmra.mxu0 %v2808
    %v3035 = vpop.f32.mrf.mxu0
    %v3036 = vadd.f32 0.0, %v3035
    %v3037 = vpop.f32.mrf.mxu0
    %v3038 = vadd.f32 0.0, %v3037
    %v3039 = vpop.f32.mrf.mxu0
    %v3040 = vadd.f32 0.0, %v3039
    %v3041 = vpop.f32.mrf.mxu0
    %v3042 = vadd.f32 0.0, %v3041
    %3043 = vdwg.mxu0
    %3044 = vmatprep.subr.bf16.mxu0 %v2968
    %3045 = vmatpush1.bf16.msra.mxu0 %v2967
    %3046 = vmatprep.subr.bf16.mxu0 %v2964
    %3047 = vmatpush1.bf16.msra.mxu0 %v2963
    %3048 = vmatprep.subr.bf16.mxu0 %v2960
    %3049 = vmatpush1.bf16.msra.mxu0 %v2959
    %3050 = vmatprep.subr.bf16.mxu0 %v2956
    %3051 = vmatpush1.bf16.msra.mxu0 %v2955
    %3052 = vmatprep.subr.bf16.mxu0 %v2952
    %3053 = vmatpush1.bf16.msra.mxu0 %v2951
    %3054 = vmatprep.subr.bf16.mxu0 %v2948
    %3055 = vmatpush1.bf16.msra.mxu0 %v2947
    %3056 = vmatprep.subr.bf16.mxu0 %v2944
    %3057 = vmatpush1.bf16.msra.mxu0 %v2943
    %3058 = vmatprep.subr.bf16.mxu0 %v2940
    %3059 = vmatpush1.bf16.msra.mxu0 %v2939
    %3060 = vmatprep.subr.bf16.mxu0 0
    %3061 = vmatpush2.bf16.msra.mxu0 0
    %3062 = vmatprep.subr.bf16.mxu0 0
    %3063 = vmatpush2.bf16.msra.mxu0 0
    %3064 = vmatprep.subr.bf16.mxu0 0
    %3065 = vmatpush2.bf16.msra.mxu0 0
    %3066 = vmatprep.subr.bf16.mxu0 0
    %3067 = vmatpush2.bf16.msra.mxu0 0
    %3068 = vmatprep.subr.bf16.mxu0 0
    %3069 = vmatpush2.bf16.msra.mxu0 0
    %3070 = vmatprep.subr.bf16.mxu0 0
    %3071 = vmatpush2.bf16.msra.mxu0 0
    %3072 = vmatprep.subr.bf16.mxu0 0
    %3073 = vmatpush2.bf16.msra.mxu0 0
    %3074 = vmatprep.subr.bf16.mxu0 0
    %3075 = vmatpush2.bf16.msra.mxu0 0
    %3076 = vmatprep.mubr.bf16.mxu0 0
    %3077 = vmatmul.mubr.bf16.gmra.mxu0 %v2808
    %v3078 = vpop.f32.mrf.mxu0
    %v3079 = vadd.f32 0.0, %v3078
    %v3080 = vpop.f32.mrf.mxu0
    %v3081 = vadd.f32 0.0, %v3080
    %v3082 = vpop.f32.mrf.mxu0
    %v3083 = vadd.f32 0.0, %v3082
    %v3084 = vpop.f32.mrf.mxu0
    %v3085 = vadd.f32 0.0, %v3084
    %3086 = vdwg.mxu0
    %v3087 = vadd.f32 %v2800, %v3036
    %v3088 = vadd.f32 %v2801, %v3038
    %v3089 = vadd.f32 %v2802, %v3079
    %v3090 = vadd.f32 %v2803, %v3081
    %v3091 = vadd.f32 %v2804, %v3040
    %v3092 = vadd.f32 %v2805, %v3042
    %v3093 = vadd.f32 %v2806, %v3083
    %v3094 = vadd.f32 %v2807, %v3085
    %v3095 = vxor.u32 %v3087, 2147483648
    %v3096 = vxor.u32 %v3091, 2147483648
    %v3097 = vmul.f32 %v3095, 1.442695
    %v3098 = vpow.pop %v3097
    %v3099 = vmul.f32 %v3096, 1.442695
    %v3100 = vpow.pop %v3099
    %v3101 = vadd.f32 %v3098, 1.0
    %v3102 = vadd.f32 %v3100, 1.0
    %v3103 = vrcp.pop %v3101
    %v3104 = vmul.f32 1.0, %v3103
    %v3105 = vrcp.pop %v3102
    %v3106 = vmul.f32 1.0, %v3105
    %v3107 = vxor.u32 %v3088, 2147483648
    %v3108 = vxor.u32 %v3092, 2147483648
    %v3109 = vmul.f32 %v3107, 1.442695
    %v3110 = vpow.pop %v3109
    %v3111 = vmul.f32 %v3108, 1.442695
    %v3112 = vpow.pop %v3111
    %v3113 = vadd.f32 %v3110, 1.0
    %v3114 = vadd.f32 %v3112, 1.0
    %v3115 = vrcp.pop %v3113
    %v3116 = vmul.f32 1.0, %v3115
    %v3117 = vrcp.pop %v3114
    %v3118 = vmul.f32 1.0, %v3117
    %v3119 = vtanh.pop %v3089
    %v3120 = vtanh.pop %v3093
    %v3121 = vxor.u32 %v3090, 2147483648
    %v3122 = vxor.u32 %v3094, 2147483648
    %v3123 = vmul.f32 %v3121, 1.442695
    %v3124 = vpow.pop %v3123
    %v3125 = vmul.f32 %v3122, 1.442695
    %v3126 = vpow.pop %v3125
    %v3127 = vadd.f32 %v3124, 1.0
    %v3128 = vadd.f32 %v3126, 1.0
    %v3129 = vrcp.pop %v3127
    %v3130 = vmul.f32 1.0, %v3129
    %v3131 = vrcp.pop %v3128
    %v3132 = vmul.f32 1.0, %v3131
    %v3133 = vld [vmem:[#allocation5] sm:$0xff]
    %v3134 = vld [vmem:[#allocation5 + $0x8] sm:$0xff]
    %v3135 = vmul.f32 %v3116, %v3133
    %v3136 = vmul.f32 %v3118, %v3134
    %v3137 = vmul.f32 %v3104, %v3119
    %v3138 = vmul.f32 %v3106, %v3120
    %v3139 = vadd.f32 %v3135, %v3137
    %v3140 = vadd.f32 %v3136, %v3138
    %v3141 = vtanh.pop %v3139
    %v3142 = vtanh.pop %v3140
    %v3143 = vmul.f32 %v3130, %v3141
    %v3144 = vmul.f32 %v3132, %v3142
    %3145 = vst [vmem:[#allocation5] sm:$0xff] %v3139
    %3146 = vst [vmem:[#allocation5 + $0x8] sm:$0xff] %v3140
    %3147 = vst [vmem:[#allocation4] sm:$0xff] %v3143
    %3148 = vst [vmem:[#allocation4 + $0x8] sm:$0xff] %v3144
    %v3149 = vpack.c.bf16 %v3144, %v3143
    %v3151 = vunpack.c.l.b16 %v3149
    %v3152 = vunpack.c.h.b16 %v3149
    %v3153 = vpack.c.b16 %v3151, %v3151
    %v3154 = vpack.c.b16 %v3152, %v3152
    %s3157 = scalar_lea.vmem [#allocation3], 48
    %3158 = vst [vmem:[%s3157] sm:$0xf] %v3153
    %3159 = vst [vmem:[%s3157 + $0x4] sm:$0xf] %v3154
    %v3160 = vld [vmem:[#allocation4] sm:$0xff]
    %v3161 = vld [vmem:[#allocation4 + $0x8] sm:$0xff]
    %s3162 = smul.u32 14, 4
    %s3163 = smul.addr %s3162, 8
    %s3164 = scalar_lea.vmem [#allocation2], %s3163
    %v3165 = vld [vmem:[%s3164] sm:$0xff]
    %v3166 = vld [vmem:[%s3164 + $0x8] sm:$0xff]
    %v3167 = vld [vmem:[%s3164 + $0x10] sm:$0xff]
    %v3168 = vld [vmem:[%s3164 + $0x18] sm:$0xff]
    %v3169 = vld [vmem:[%s3164 + $0x20] sm:$0xff]
    %v3170 = vld [vmem:[%s3164 + $0x28] sm:$0xff]
    %v3171 = vld [vmem:[%s3164 + $0x30] sm:$0xff]
    %v3172 = vld [vmem:[%s3164 + $0x38] sm:$0xff]
    %v3173 = vpack.c.bf16 %v3161, %v3160
    %v3174 = vld [vmem:[%s2] sm:$0xff]
    %v3175 = vld [vmem:[%s2 + $0x8] sm:$0xff]
    %v3176 = vld [vmem:[%s2 + $0x10] sm:$0xff]
    %v3177 = vld [vmem:[%s2 + $0x18] sm:$0xff]
    %v3178 = vld [vmem:[%s2 + $0x20] sm:$0xff]
    %v3179 = vld [vmem:[%s2 + $0x28] sm:$0xff]
    %v3180 = vld [vmem:[%s2 + $0x30] sm:$0xff]
    %v3181 = vld [vmem:[%s2 + $0x38] sm:$0xff]
    %v3182 = vld [vmem:[%s2 + $0x40] sm:$0xff]
    %v3183 = vld [vmem:[%s2 + $0x48] sm:$0xff]
    %v3184 = vld [vmem:[%s2 + $0x50] sm:$0xff]
    %v3185 = vld [vmem:[%s2 + $0x58] sm:$0xff]
    %v3186 = vld [vmem:[%s2 + $0x60] sm:$0xff]
    %v3187 = vld [vmem:[%s2 + $0x68] sm:$0xff]
    %v3188 = vld [vmem:[%s2 + $0x70] sm:$0xff]
    %v3189 = vld [vmem:[%s2 + $0x78] sm:$0xff]
    %v3190 = vld [vmem:[%s2 + $0x80] sm:$0xff]
    %v3191 = vld [vmem:[%s2 + $0x88] sm:$0xff]
    %v3192 = vld [vmem:[%s2 + $0x90] sm:$0xff]
    %v3193 = vld [vmem:[%s2 + $0x98] sm:$0xff]
    %v3194 = vld [vmem:[%s2 + $0xa0] sm:$0xff]
    %v3195 = vld [vmem:[%s2 + $0xa8] sm:$0xff]
    %v3196 = vld [vmem:[%s2 + $0xb0] sm:$0xff]
    %v3197 = vld [vmem:[%s2 + $0xb8] sm:$0xff]
    %v3198 = vld [vmem:[%s2 + $0xc0] sm:$0xff]
    %v3199 = vld [vmem:[%s2 + $0xc8] sm:$0xff]
    %v3200 = vld [vmem:[%s2 + $0xd0] sm:$0xff]
    %v3201 = vld [vmem:[%s2 + $0xd8] sm:$0xff]
    %v3202 = vld [vmem:[%s2 + $0xe0] sm:$0xff]
    %v3203 = vld [vmem:[%s2 + $0xe8] sm:$0xff]
    %v3204 = vld [vmem:[%s2 + $0xf0] sm:$0xff]
    %v3205 = vld [vmem:[%s2 + $0xf8] sm:$0xff]
    %v3238 = vunpack.c.l.b16 %v3174
    %v3239 = vunpack.c.h.b16 %v3174
    %v3240 = vunpack.c.l.b16 %v3175
    %v3241 = vunpack.c.h.b16 %v3175
    %v3242 = vunpack.c.l.b16 %v3176
    %v3243 = vunpack.c.h.b16 %v3176
    %v3244 = vunpack.c.l.b16 %v3177
    %v3245 = vunpack.c.h.b16 %v3177
    %v3246 = vunpack.c.l.b16 %v3178
    %v3247 = vunpack.c.h.b16 %v3178
    %v3248 = vunpack.c.l.b16 %v3179
    %v3249 = vunpack.c.h.b16 %v3179
    %v3250 = vunpack.c.l.b16 %v3180
    %v3251 = vunpack.c.h.b16 %v3180
    %v3252 = vunpack.c.l.b16 %v3181
    %v3253 = vunpack.c.h.b16 %v3181
    %v3254 = vunpack.c.l.b16 %v3182
    %v3255 = vunpack.c.h.b16 %v3182
    %v3256 = vunpack.c.l.b16 %v3183
    %v3257 = vunpack.c.h.b16 %v3183
    %v3258 = vunpack.c.l.b16 %v3184
    %v3259 = vunpack.c.h.b16 %v3184
    %v3260 = vunpack.c.l.b16 %v3185
    %v3261 = vunpack.c.h.b16 %v3185
    %v3262 = vunpack.c.l.b16 %v3186
    %v3263 = vunpack.c.h.b16 %v3186
    %v3264 = vunpack.c.l.b16 %v3187
    %v3265 = vunpack.c.h.b16 %v3187
    %v3266 = vunpack.c.l.b16 %v3188
    %v3267 = vunpack.c.h.b16 %v3188
    %v3268 = vunpack.c.l.b16 %v3189
    %v3269 = vunpack.c.h.b16 %v3189
    %v3270 = vunpack.c.l.b16 %v3190
    %v3271 = vunpack.c.h.b16 %v3190
    %v3272 = vunpack.c.l.b16 %v3191
    %v3273 = vunpack.c.h.b16 %v3191
    %v3274 = vunpack.c.l.b16 %v3192
    %v3275 = vunpack.c.h.b16 %v3192
    %v3276 = vunpack.c.l.b16 %v3193
    %v3277 = vunpack.c.h.b16 %v3193
    %v3278 = vunpack.c.l.b16 %v3194
    %v3279 = vunpack.c.h.b16 %v3194
    %v3280 = vunpack.c.l.b16 %v3195
    %v3281 = vunpack.c.h.b16 %v3195
    %v3282 = vunpack.c.l.b16 %v3196
    %v3283 = vunpack.c.h.b16 %v3196
    %v3284 = vunpack.c.l.b16 %v3197
    %v3285 = vunpack.c.h.b16 %v3197
    %v3286 = vunpack.c.l.b16 %v3198
    %v3287 = vunpack.c.h.b16 %v3198
    %v3288 = vunpack.c.l.b16 %v3199
    %v3289 = vunpack.c.h.b16 %v3199
    %v3290 = vunpack.c.l.b16 %v3200
    %v3291 = vunpack.c.h.b16 %v3200
    %v3292 = vunpack.c.l.b16 %v3201
    %v3293 = vunpack.c.h.b16 %v3201
    %v3294 = vunpack.c.l.b16 %v3202
    %v3295 = vunpack.c.h.b16 %v3202
    %v3296 = vunpack.c.l.b16 %v3203
    %v3297 = vunpack.c.h.b16 %v3203
    %v3298 = vunpack.c.l.b16 %v3204
    %v3299 = vunpack.c.h.b16 %v3204
    %v3300 = vunpack.c.l.b16 %v3205
    %v3301 = vunpack.c.h.b16 %v3205
    %v3302 = vpack.c.b16 %v3242, %v3238
    %v3303 = vpack.c.b16 %v3243, %v3239
    %v3304 = vpack.c.b16 %v3244, %v3240
    %v3305 = vpack.c.b16 %v3245, %v3241
    %v3306 = vpack.c.b16 %v3250, %v3246
    %v3307 = vpack.c.b16 %v3251, %v3247
    %v3308 = vpack.c.b16 %v3252, %v3248
    %v3309 = vpack.c.b16 %v3253, %v3249
    %v3310 = vpack.c.b16 %v3258, %v3254
    %v3311 = vpack.c.b16 %v3259, %v3255
    %v3312 = vpack.c.b16 %v3260, %v3256
    %v3313 = vpack.c.b16 %v3261, %v3257
    %v3314 = vpack.c.b16 %v3266, %v3262
    %v3315 = vpack.c.b16 %v3267, %v3263
    %v3316 = vpack.c.b16 %v3268, %v3264
    %v3317 = vpack.c.b16 %v3269, %v3265
    %v3318 = vpack.c.b16 %v3274, %v3270
    %v3319 = vpack.c.b16 %v3275, %v3271
    %v3320 = vpack.c.b16 %v3276, %v3272
    %v3321 = vpack.c.b16 %v3277, %v3273
    %v3322 = vpack.c.b16 %v3282, %v3278
    %v3323 = vpack.c.b16 %v3283, %v3279
    %v3324 = vpack.c.b16 %v3284, %v3280
    %v3325 = vpack.c.b16 %v3285, %v3281
    %v3326 = vpack.c.b16 %v3290, %v3286
    %v3327 = vpack.c.b16 %v3291, %v3287
    %v3328 = vpack.c.b16 %v3292, %v3288
    %v3329 = vpack.c.b16 %v3293, %v3289
    %v3330 = vpack.c.b16 %v3298, %v3294
    %v3331 = vpack.c.b16 %v3299, %v3295
    %v3332 = vpack.c.b16 %v3300, %v3296
    %v3333 = vpack.c.b16 %v3301, %v3297
    %3366 = vmatprep.subr.bf16.mxu0 %v3331
    %3367 = vmatpush1.bf16.msra.mxu0 %v3330
    %3368 = vmatprep.subr.bf16.mxu0 %v3327
    %3369 = vmatpush1.bf16.msra.mxu0 %v3326
    %3370 = vmatprep.subr.bf16.mxu0 %v3323
    %3371 = vmatpush1.bf16.msra.mxu0 %v3322
    %3372 = vmatprep.subr.bf16.mxu0 %v3319
    %3373 = vmatpush1.bf16.msra.mxu0 %v3318
    %3374 = vmatprep.subr.bf16.mxu0 %v3315
    %3375 = vmatpush1.bf16.msra.mxu0 %v3314
    %3376 = vmatprep.subr.bf16.mxu0 %v3311
    %3377 = vmatpush1.bf16.msra.mxu0 %v3310
    %3378 = vmatprep.subr.bf16.mxu0 %v3307
    %3379 = vmatpush1.bf16.msra.mxu0 %v3306
    %3380 = vmatprep.subr.bf16.mxu0 %v3303
    %3381 = vmatpush1.bf16.msra.mxu0 %v3302
    %3382 = vmatprep.subr.bf16.mxu0 0
    %3383 = vmatpush2.bf16.msra.mxu0 0
    %3384 = vmatprep.subr.bf16.mxu0 0
    %3385 = vmatpush2.bf16.msra.mxu0 0
    %3386 = vmatprep.subr.bf16.mxu0 0
    %3387 = vmatpush2.bf16.msra.mxu0 0
    %3388 = vmatprep.subr.bf16.mxu0 0
    %3389 = vmatpush2.bf16.msra.mxu0 0
    %3390 = vmatprep.subr.bf16.mxu0 0
    %3391 = vmatpush2.bf16.msra.mxu0 0
    %3392 = vmatprep.subr.bf16.mxu0 0
    %3393 = vmatpush2.bf16.msra.mxu0 0
    %3394 = vmatprep.subr.bf16.mxu0 0
    %3395 = vmatpush2.bf16.msra.mxu0 0
    %3396 = vmatprep.subr.bf16.mxu0 0
    %3397 = vmatpush2.bf16.msra.mxu0 0
    %3398 = vmatprep.mubr.bf16.mxu0 0
    %3399 = vmatmul.mubr.bf16.gmra.mxu0 %v3173
    %v3400 = vpop.f32.mrf.mxu0
    %v3401 = vadd.f32 0.0, %v3400
    %v3402 = vpop.f32.mrf.mxu0
    %v3403 = vadd.f32 0.0, %v3402
    %v3404 = vpop.f32.mrf.mxu0
    %v3405 = vadd.f32 0.0, %v3404
    %v3406 = vpop.f32.mrf.mxu0
    %v3407 = vadd.f32 0.0, %v3406
    %3408 = vdwg.mxu0
    %3409 = vmatprep.subr.bf16.mxu0 %v3333
    %3410 = vmatpush1.bf16.msra.mxu0 %v3332
    %3411 = vmatprep.subr.bf16.mxu0 %v3329
    %3412 = vmatpush1.bf16.msra.mxu0 %v3328
    %3413 = vmatprep.subr.bf16.mxu0 %v3325
    %3414 = vmatpush1.bf16.msra.mxu0 %v3324
    %3415 = vmatprep.subr.bf16.mxu0 %v3321
    %3416 = vmatpush1.bf16.msra.mxu0 %v3320
    %3417 = vmatprep.subr.bf16.mxu0 %v3317
    %3418 = vmatpush1.bf16.msra.mxu0 %v3316
    %3419 = vmatprep.subr.bf16.mxu0 %v3313
    %3420 = vmatpush1.bf16.msra.mxu0 %v3312
    %3421 = vmatprep.subr.bf16.mxu0 %v3309
    %3422 = vmatpush1.bf16.msra.mxu0 %v3308
    %3423 = vmatprep.subr.bf16.mxu0 %v3305
    %3424 = vmatpush1.bf16.msra.mxu0 %v3304
    %3425 = vmatprep.subr.bf16.mxu0 0
    %3426 = vmatpush2.bf16.msra.mxu0 0
    %3427 = vmatprep.subr.bf16.mxu0 0
    %3428 = vmatpush2.bf16.msra.mxu0 0
    %3429 = vmatprep.subr.bf16.mxu0 0
    %3430 = vmatpush2.bf16.msra.mxu0 0
    %3431 = vmatprep.subr.bf16.mxu0 0
    %3432 = vmatpush2.bf16.msra.mxu0 0
    %3433 = vmatprep.subr.bf16.mxu0 0
    %3434 = vmatpush2.bf16.msra.mxu0 0
    %3435 = vmatprep.subr.bf16.mxu0 0
    %3436 = vmatpush2.bf16.msra.mxu0 0
    %3437 = vmatprep.subr.bf16.mxu0 0
    %3438 = vmatpush2.bf16.msra.mxu0 0
    %3439 = vmatprep.subr.bf16.mxu0 0
    %3440 = vmatpush2.bf16.msra.mxu0 0
    %3441 = vmatprep.mubr.bf16.mxu0 0
    %3442 = vmatmul.mubr.bf16.gmra.mxu0 %v3173
    %v3443 = vpop.f32.mrf.mxu0
    %v3444 = vadd.f32 0.0, %v3443
    %v3445 = vpop.f32.mrf.mxu0
    %v3446 = vadd.f32 0.0, %v3445
    %v3447 = vpop.f32.mrf.mxu0
    %v3448 = vadd.f32 0.0, %v3447
    %v3449 = vpop.f32.mrf.mxu0
    %v3450 = vadd.f32 0.0, %v3449
    %3451 = vdwg.mxu0
    %v3452 = vadd.f32 %v3165, %v3401
    %v3453 = vadd.f32 %v3166, %v3403
    %v3454 = vadd.f32 %v3167, %v3444
    %v3455 = vadd.f32 %v3168, %v3446
    %v3456 = vadd.f32 %v3169, %v3405
    %v3457 = vadd.f32 %v3170, %v3407
    %v3458 = vadd.f32 %v3171, %v3448
    %v3459 = vadd.f32 %v3172, %v3450
    %v3460 = vxor.u32 %v3452, 2147483648
    %v3461 = vxor.u32 %v3456, 2147483648
    %v3462 = vmul.f32 %v3460, 1.442695
    %v3463 = vpow.pop %v3462
    %v3464 = vmul.f32 %v3461, 1.442695
    %v3465 = vpow.pop %v3464
    %v3466 = vadd.f32 %v3463, 1.0
    %v3467 = vadd.f32 %v3465, 1.0
    %v3468 = vrcp.pop %v3466
    %v3469 = vmul.f32 1.0, %v3468
    %v3470 = vrcp.pop %v3467
    %v3471 = vmul.f32 1.0, %v3470
    %v3472 = vxor.u32 %v3453, 2147483648
    %v3473 = vxor.u32 %v3457, 2147483648
    %v3474 = vmul.f32 %v3472, 1.442695
    %v3475 = vpow.pop %v3474
    %v3476 = vmul.f32 %v3473, 1.442695
    %v3477 = vpow.pop %v3476
    %v3478 = vadd.f32 %v3475, 1.0
    %v3479 = vadd.f32 %v3477, 1.0
    %v3480 = vrcp.pop %v3478
    %v3481 = vmul.f32 1.0, %v3480
    %v3482 = vrcp.pop %v3479
    %v3483 = vmul.f32 1.0, %v3482
    %v3484 = vtanh.pop %v3454
    %v3485 = vtanh.pop %v3458
    %v3486 = vxor.u32 %v3455, 2147483648
    %v3487 = vxor.u32 %v3459, 2147483648
    %v3488 = vmul.f32 %v3486, 1.442695
    %v3489 = vpow.pop %v3488
    %v3490 = vmul.f32 %v3487, 1.442695
    %v3491 = vpow.pop %v3490
    %v3492 = vadd.f32 %v3489, 1.0
    %v3493 = vadd.f32 %v3491, 1.0
    %v3494 = vrcp.pop %v3492
    %v3495 = vmul.f32 1.0, %v3494
    %v3496 = vrcp.pop %v3493
    %v3497 = vmul.f32 1.0, %v3496
    %v3498 = vld [vmem:[#allocation5] sm:$0xff]
    %v3499 = vld [vmem:[#allocation5 + $0x8] sm:$0xff]
    %v3500 = vmul.f32 %v3481, %v3498
    %v3501 = vmul.f32 %v3483, %v3499
    %v3502 = vmul.f32 %v3469, %v3484
    %v3503 = vmul.f32 %v3471, %v3485
    %v3504 = vadd.f32 %v3500, %v3502
    %v3505 = vadd.f32 %v3501, %v3503
    %v3506 = vtanh.pop %v3504
    %v3507 = vtanh.pop %v3505
    %v3508 = vmul.f32 %v3495, %v3506
    %v3509 = vmul.f32 %v3497, %v3507
    %3510 = vst [vmem:[#allocation5] sm:$0xff] %v3504
    %3511 = vst [vmem:[#allocation5 + $0x8] sm:$0xff] %v3505
    %3512 = vst [vmem:[#allocation4] sm:$0xff] %v3508
    %3513 = vst [vmem:[#allocation4 + $0x8] sm:$0xff] %v3509
    %v3514 = vpack.c.bf16 %v3509, %v3508
    %v3516 = vunpack.c.l.b16 %v3514
    %v3517 = vunpack.c.h.b16 %v3514
    %v3518 = vpack.c.b16 %v3516, %v3516
    %v3519 = vpack.c.b16 %v3517, %v3517
    %s3522 = scalar_lea.vmem [#allocation3], 56
    %3523 = vst [vmem:[%s3522] sm:$0xf] %v3518
    %3524 = vst [vmem:[%s3522 + $0x4] sm:$0xf] %v3519
    %v3525 = vld [vmem:[#allocation3] sm:$0xf]
    %v3526 = vld [vmem:[#allocation3 + $0x4] sm:$0xf]
    %v3527 = vld [vmem:[#allocation3 + $0x8] sm:$0xf]
    %v3528 = vld [vmem:[#allocation3 + $0xc] sm:$0xf]
    %v3529 = vld [vmem:[#allocation3 + $0x10] sm:$0xf]
    %v3530 = vld [vmem:[#allocation3 + $0x14] sm:$0xf]
    %v3531 = vld [vmem:[#allocation3 + $0x18] sm:$0xf]
    %v3532 = vld [vmem:[#allocation3 + $0x1c] sm:$0xf]
    %v3533 = vld [vmem:[#allocation3 + $0x20] sm:$0xf]
    %v3534 = vld [vmem:[#allocation3 + $0x24] sm:$0xf]
    %v3535 = vld [vmem:[#allocation3 + $0x28] sm:$0xf]
    %v3536 = vld [vmem:[#allocation3 + $0x2c] sm:$0xf]
    %v3537 = vld [vmem:[#allocation3 + $0x30] sm:$0xf]
    %v3538 = vld [vmem:[#allocation3 + $0x34] sm:$0xf]
    %v3539 = vld [vmem:[#allocation3 + $0x38] sm:$0xf]
    %v3540 = vld [vmem:[#allocation3 + $0x3c] sm:$0xf]
    %v3541 = vld [vmem:[%s4] sm:$0xff]
    %v3542 = vld [vmem:[%s4 + $0x8] sm:$0xff]
    %v3543 = vld [vmem:[%s4 + $0x10] sm:$0xff]
    %v3544 = vld [vmem:[%s4 + $0x18] sm:$0xff]
    %v3545 = vld [vmem:[%s4 + $0x20] sm:$0xff]
    %v3546 = vld [vmem:[%s4 + $0x28] sm:$0xff]
    %v3547 = vld [vmem:[%s4 + $0x30] sm:$0xff]
    %v3548 = vld [vmem:[%s4 + $0x38] sm:$0xff]
    %v3549 = vld [vmem:[%s4 + $0x40] sm:$0xff]
    %v3550 = vld [vmem:[%s4 + $0x48] sm:$0xff]
    %v3551 = vld [vmem:[%s4 + $0x50] sm:$0xff]
    %v3552 = vld [vmem:[%s4 + $0x58] sm:$0xff]
    %v3553 = vld [vmem:[%s4 + $0x60] sm:$0xff]
    %v3554 = vld [vmem:[%s4 + $0x68] sm:$0xff]
    %v3555 = vld [vmem:[%s4 + $0x70] sm:$0xff]
    %v3556 = vld [vmem:[%s4 + $0x78] sm:$0xff]
    %v3557 = vld [vmem:[%s4 + $0x80] sm:$0xff]
    %v3558 = vld [vmem:[%s4 + $0x88] sm:$0xff]
    %v3559 = vld [vmem:[%s4 + $0x90] sm:$0xff]
    %v3560 = vld [vmem:[%s4 + $0x98] sm:$0xff]
    %v3561 = vld [vmem:[%s4 + $0xa0] sm:$0xff]
    %v3562 = vld [vmem:[%s4 + $0xa8] sm:$0xff]
    %v3563 = vld [vmem:[%s4 + $0xb0] sm:$0xff]
    %v3564 = vld [vmem:[%s4 + $0xb8] sm:$0xff]
    %v3565 = vld [vmem:[%s4 + $0xc0] sm:$0xff]
    %v3566 = vld [vmem:[%s4 + $0xc8] sm:$0xff]
    %v3567 = vld [vmem:[%s4 + $0xd0] sm:$0xff]
    %v3568 = vld [vmem:[%s4 + $0xd8] sm:$0xff]
    %v3569 = vld [vmem:[%s4 + $0xe0] sm:$0xff]
    %v3570 = vld [vmem:[%s4 + $0xe8] sm:$0xff]
    %v3571 = vld [vmem:[%s4 + $0xf0] sm:$0xff]
    %v3572 = vld [vmem:[%s4 + $0xf8] sm:$0xff]
    %v3573 = vld [vmem:[%s6] sm:$0xf]
    %v3575 = vlaneseq
    %v3576 = vshrl.u32 %v3575, 7
    %v3577 = vsub.s32 0, %v3576
    %v3578 = vrot.slane %v3573, %v3577
    %v3579 = vlaneseq
    %v3580 = vshrl.u32 %v3579, 7
    %v3581 = vsub.s32 1, %v3580
    %v3582 = vrot.slane %v3573, %v3581
    %v3583 = vlaneseq
    %v3584 = vshrl.u32 %v3583, 7
    %v3585 = vsub.s32 2, %v3584
    %v3586 = vrot.slane %v3573, %v3585
    %v3587 = vlaneseq
    %v3588 = vshrl.u32 %v3587, 7
    %v3589 = vsub.s32 3, %v3588
    %v3590 = vrot.slane %v3573, %v3589
    %v3611 = vunpack.c.l.b16 %v3525
    %v3612 = vunpack.c.l.b16 %v3526
    %v3613 = vunpack.c.l.b16 %v3527
    %v3614 = vunpack.c.l.b16 %v3528
    %v3615 = vunpack.c.l.b16 %v3529
    %v3616 = vunpack.c.l.b16 %v3530
    %v3617 = vunpack.c.l.b16 %v3531
    %v3618 = vunpack.c.l.b16 %v3532
    %v3619 = vunpack.c.l.b16 %v3533
    %v3620 = vunpack.c.l.b16 %v3534
    %v3621 = vunpack.c.l.b16 %v3535
    %v3622 = vunpack.c.l.b16 %v3536
    %v3623 = vunpack.c.l.b16 %v3537
    %v3624 = vunpack.c.l.b16 %v3538
    %v3625 = vunpack.c.l.b16 %v3539
    %v3626 = vunpack.c.l.b16 %v3540
    %v3627 = vpack.c.b16 %v3612, %v3611
    %v3628 = vpack.c.b16 %v3614, %v3613
    %v3629 = vpack.c.b16 %v3616, %v3615
    %v3630 = vpack.c.b16 %v3618, %v3617
    %v3631 = vpack.c.b16 %v3620, %v3619
    %v3632 = vpack.c.b16 %v3622, %v3621
    %v3633 = vpack.c.b16 %v3624, %v3623
    %v3634 = vpack.c.b16 %v3626, %v3625
    %v3675 = vunpack.c.l.b16 %v3541
    %v3676 = vunpack.c.h.b16 %v3541
    %v3677 = vunpack.c.l.b16 %v3542
    %v3678 = vunpack.c.h.b16 %v3542
    %v3679 = vunpack.c.l.b16 %v3543
    %v3680 = vunpack.c.h.b16 %v3543
    %v3681 = vunpack.c.l.b16 %v3544
    %v3682 = vunpack.c.h.b16 %v3544
    %v3683 = vunpack.c.l.b16 %v3545
    %v3684 = vunpack.c.h.b16 %v3545
    %v3685 = vunpack.c.l.b16 %v3546
    %v3686 = vunpack.c.h.b16 %v3546
    %v3687 = vunpack.c.l.b16 %v3547
    %v3688 = vunpack.c.h.b16 %v3547
    %v3689 = vunpack.c.l.b16 %v3548
    %v3690 = vunpack.c.h.b16 %v3548
    %v3691 = vunpack.c.l.b16 %v3549
    %v3692 = vunpack.c.h.b16 %v3549
    %v3693 = vunpack.c.l.b16 %v3550
    %v3694 = vunpack.c.h.b16 %v3550
    %v3695 = vunpack.c.l.b16 %v3551
    %v3696 = vunpack.c.h.b16 %v3551
    %v3697 = vunpack.c.l.b16 %v3552
    %v3698 = vunpack.c.h.b16 %v3552
    %v3699 = vunpack.c.l.b16 %v3553
    %v3700 = vunpack.c.h.b16 %v3553
    %v3701 = vunpack.c.l.b16 %v3554
    %v3702 = vunpack.c.h.b16 %v3554
    %v3703 = vunpack.c.l.b16 %v3555
    %v3704 = vunpack.c.h.b16 %v3555
    %v3705 = vunpack.c.l.b16 %v3556
    %v3706 = vunpack.c.h.b16 %v3556
    %v3707 = vunpack.c.l.b16 %v3557
    %v3708 = vunpack.c.h.b16 %v3557
    %v3709 = vunpack.c.l.b16 %v3558
    %v3710 = vunpack.c.h.b16 %v3558
    %v3711 = vunpack.c.l.b16 %v3559
    %v3712 = vunpack.c.h.b16 %v3559
    %v3713 = vunpack.c.l.b16 %v3560
    %v3714 = vunpack.c.h.b16 %v3560
    %v3715 = vunpack.c.l.b16 %v3561
    %v3716 = vunpack.c.h.b16 %v3561
    %v3717 = vunpack.c.l.b16 %v3562
    %v3718 = vunpack.c.h.b16 %v3562
    %v3719 = vunpack.c.l.b16 %v3563
    %v3720 = vunpack.c.h.b16 %v3563
    %v3721 = vunpack.c.l.b16 %v3564
    %v3722 = vunpack.c.h.b16 %v3564
    %v3723 = vunpack.c.l.b16 %v3565
    %v3724 = vunpack.c.h.b16 %v3565
    %v3725 = vunpack.c.l.b16 %v3566
    %v3726 = vunpack.c.h.b16 %v3566
    %v3727 = vunpack.c.l.b16 %v3567
    %v3728 = vunpack.c.h.b16 %v3567
    %v3729 = vunpack.c.l.b16 %v3568
    %v3730 = vunpack.c.h.b16 %v3568
    %v3731 = vunpack.c.l.b16 %v3569
    %v3732 = vunpack.c.h.b16 %v3569
    %v3733 = vunpack.c.l.b16 %v3570
    %v3734 = vunpack.c.h.b16 %v3570
    %v3735 = vunpack.c.l.b16 %v3571
    %v3736 = vunpack.c.h.b16 %v3571
    %v3737 = vunpack.c.l.b16 %v3572
    %v3738 = vunpack.c.h.b16 %v3572
    %v3739 = vpack.c.b16 %v3679, %v3675
    %v3740 = vpack.c.b16 %v3680, %v3676
    %v3741 = vpack.c.b16 %v3681, %v3677
    %v3742 = vpack.c.b16 %v3682, %v3678
    %v3743 = vpack.c.b16 %v3687, %v3683
    %v3744 = vpack.c.b16 %v3688, %v3684
    %v3745 = vpack.c.b16 %v3689, %v3685
    %v3746 = vpack.c.b16 %v3690, %v3686
    %v3747 = vpack.c.b16 %v3695, %v3691
    %v3748 = vpack.c.b16 %v3696, %v3692
    %v3749 = vpack.c.b16 %v3697, %v3693
    %v3750 = vpack.c.b16 %v3698, %v3694
    %v3751 = vpack.c.b16 %v3703, %v3699
    %v3752 = vpack.c.b16 %v3704, %v3700
    %v3753 = vpack.c.b16 %v3705, %v3701
    %v3754 = vpack.c.b16 %v3706, %v3702
    %v3755 = vpack.c.b16 %v3711, %v3707
    %v3756 = vpack.c.b16 %v3712, %v3708
    %v3757 = vpack.c.b16 %v3713, %v3709
    %v3758 = vpack.c.b16 %v3714, %v3710
    %v3759 = vpack.c.b16 %v3719, %v3715
    %v3760 = vpack.c.b16 %v3720, %v3716
    %v3761 = vpack.c.b16 %v3721, %v3717
    %v3762 = vpack.c.b16 %v3722, %v3718
    %v3763 = vpack.c.b16 %v3727, %v3723
    %v3764 = vpack.c.b16 %v3728, %v3724
    %v3765 = vpack.c.b16 %v3729, %v3725
    %v3766 = vpack.c.b16 %v3730, %v3726
    %v3767 = vpack.c.b16 %v3735, %v3731
    %v3768 = vpack.c.b16 %v3736, %v3732
    %v3769 = vpack.c.b16 %v3737, %v3733
    %v3770 = vpack.c.b16 %v3738, %v3734
    %3803 = vmatprep.subr.bf16.mxu0 %v3768
    %3804 = vmatpush1.bf16.msra.mxu0 %v3767
    %3805 = vmatprep.subr.bf16.mxu0 %v3764
    %3806 = vmatpush1.bf16.msra.mxu0 %v3763
    %3807 = vmatprep.subr.bf16.mxu0 %v3760
    %3808 = vmatpush1.bf16.msra.mxu0 %v3759
    %3809 = vmatprep.subr.bf16.mxu0 %v3756
    %3810 = vmatpush1.bf16.msra.mxu0 %v3755
    %3811 = vmatprep.subr.bf16.mxu0 %v3752
    %3812 = vmatpush1.bf16.msra.mxu0 %v3751
    %3813 = vmatprep.subr.bf16.mxu0 %v3748
    %3814 = vmatpush1.bf16.msra.mxu0 %v3747
    %3815 = vmatprep.subr.bf16.mxu0 %v3744
    %3816 = vmatpush1.bf16.msra.mxu0 %v3743
    %3817 = vmatprep.subr.bf16.mxu0 %v3740
    %3818 = vmatpush1.bf16.msra.mxu0 %v3739
    %3819 = vmatprep.subr.bf16.mxu0 0
    %3820 = vmatpush2.bf16.msra.mxu0 0
    %3821 = vmatprep.subr.bf16.mxu0 0
    %3822 = vmatpush2.bf16.msra.mxu0 0
    %3823 = vmatprep.subr.bf16.mxu0 0
    %3824 = vmatpush2.bf16.msra.mxu0 0
    %3825 = vmatprep.subr.bf16.mxu0 0
    %3826 = vmatpush2.bf16.msra.mxu0 0
    %3827 = vmatprep.subr.bf16.mxu0 0
    %3828 = vmatpush2.bf16.msra.mxu0 0
    %3829 = vmatprep.subr.bf16.mxu0 0
    %3830 = vmatpush2.bf16.msra.mxu0 0
    %3831 = vmatprep.subr.bf16.mxu0 0
    %3832 = vmatpush2.bf16.msra.mxu0 0
    %3833 = vmatprep.subr.bf16.mxu0 0
    %3834 = vmatpush2.bf16.msra.mxu0 0
    %3835 = vmatprep.mubr.bf16.mxu0 0
    %3836 = vmatmul.mubr.bf16.gmra.mxu0 %v3627
    %v3837 = vpop.f32.mrf.mxu0
    %v3838 = vadd.f32 %v3578, %v3837
    %v3839 = vpop.f32.mrf.mxu0
    %v3840 = vadd.f32 %v3582, %v3839
    %v3841 = vpop.f32.mrf.mxu0
    %v3842 = vadd.f32 %v3578, %v3841
    %v3843 = vpop.f32.mrf.mxu0
    %v3844 = vadd.f32 %v3582, %v3843
    %3845 = vmatprep.mubr.bf16.mxu0 0
    %3846 = vmatmul.mubr.bf16.gmra.mxu0 %v3628
    %v3847 = vpop.f32.mrf.mxu0
    %v3848 = vadd.f32 %v3578, %v3847
    %v3849 = vpop.f32.mrf.mxu0
    %v3850 = vadd.f32 %v3582, %v3849
    %v3851 = vpop.f32.mrf.mxu0
    %v3852 = vadd.f32 %v3578, %v3851
    %v3853 = vpop.f32.mrf.mxu0
    %v3854 = vadd.f32 %v3582, %v3853
    %3855 = vmatprep.mubr.bf16.mxu0 0
    %3856 = vmatmul.mubr.bf16.gmra.mxu0 %v3629
    %v3857 = vpop.f32.mrf.mxu0
    %v3858 = vadd.f32 %v3578, %v3857
    %v3859 = vpop.f32.mrf.mxu0
    %v3860 = vadd.f32 %v3582, %v3859
    %v3861 = vpop.f32.mrf.mxu0
    %v3862 = vadd.f32 %v3578, %v3861
    %v3863 = vpop.f32.mrf.mxu0
    %v3864 = vadd.f32 %v3582, %v3863
    %3865 = vmatprep.mubr.bf16.mxu0 0
    %3866 = vmatmul.mubr.bf16.gmra.mxu0 %v3630
    %v3867 = vpop.f32.mrf.mxu0
    %v3868 = vadd.f32 %v3578, %v3867
    %v3869 = vpop.f32.mrf.mxu0
    %v3870 = vadd.f32 %v3582, %v3869
    %v3871 = vpop.f32.mrf.mxu0
    %v3872 = vadd.f32 %v3578, %v3871
    %v3873 = vpop.f32.mrf.mxu0
    %v3874 = vadd.f32 %v3582, %v3873
    %3875 = vmatprep.mubr.bf16.mxu0 0
    %3876 = vmatmul.mubr.bf16.gmra.mxu0 %v3631
    %v3877 = vpop.f32.mrf.mxu0
    %v3878 = vadd.f32 %v3578, %v3877
    %v3879 = vpop.f32.mrf.mxu0
    %v3880 = vadd.f32 %v3582, %v3879
    %v3881 = vpop.f32.mrf.mxu0
    %v3882 = vadd.f32 %v3578, %v3881
    %v3883 = vpop.f32.mrf.mxu0
    %v3884 = vadd.f32 %v3582, %v3883
    %3885 = vmatprep.mubr.bf16.mxu0 0
    %3886 = vmatmul.mubr.bf16.gmra.mxu0 %v3632
    %v3887 = vpop.f32.mrf.mxu0
    %v3888 = vadd.f32 %v3578, %v3887
    %v3889 = vpop.f32.mrf.mxu0
    %v3890 = vadd.f32 %v3582, %v3889
    %v3891 = vpop.f32.mrf.mxu0
    %v3892 = vadd.f32 %v3578, %v3891
    %v3893 = vpop.f32.mrf.mxu0
    %v3894 = vadd.f32 %v3582, %v3893
    %3895 = vmatprep.mubr.bf16.mxu0 0
    %3896 = vmatmul.mubr.bf16.gmra.mxu0 %v3633
    %v3897 = vpop.f32.mrf.mxu0
    %v3898 = vadd.f32 %v3578, %v3897
    %v3899 = vpop.f32.mrf.mxu0
    %v3900 = vadd.f32 %v3582, %v3899
    %v3901 = vpop.f32.mrf.mxu0
    %v3902 = vadd.f32 %v3578, %v3901
    %v3903 = vpop.f32.mrf.mxu0
    %v3904 = vadd.f32 %v3582, %v3903
    %3905 = vmatprep.mubr.bf16.mxu0 0
    %3906 = vmatmul.mubr.bf16.gmra.mxu0 %v3634
    %v3907 = vpop.f32.mrf.mxu0
    %v3908 = vadd.f32 %v3578, %v3907
    %v3909 = vpop.f32.mrf.mxu0
    %v3910 = vadd.f32 %v3582, %v3909
    %v3911 = vpop.f32.mrf.mxu0
    %v3912 = vadd.f32 %v3578, %v3911
    %v3913 = vpop.f32.mrf.mxu0
    %v3914 = vadd.f32 %v3582, %v3913
    %3915 = vdwg.mxu0
    %3916 = vmatprep.subr.bf16.mxu0 %v3770
    %3917 = vmatpush1.bf16.msra.mxu0 %v3769
    %3918 = vmatprep.subr.bf16.mxu0 %v3766
    %3919 = vmatpush1.bf16.msra.mxu0 %v3765
    %3920 = vmatprep.subr.bf16.mxu0 %v3762
    %3921 = vmatpush1.bf16.msra.mxu0 %v3761
    %3922 = vmatprep.subr.bf16.mxu0 %v3758
    %3923 = vmatpush1.bf16.msra.mxu0 %v3757
    %3924 = vmatprep.subr.bf16.mxu0 %v3754
    %3925 = vmatpush1.bf16.msra.mxu0 %v3753
    %3926 = vmatprep.subr.bf16.mxu0 %v3750
    %3927 = vmatpush1.bf16.msra.mxu0 %v3749
    %3928 = vmatprep.subr.bf16.mxu0 %v3746
    %3929 = vmatpush1.bf16.msra.mxu0 %v3745
    %3930 = vmatprep.subr.bf16.mxu0 %v3742
    %3931 = vmatpush1.bf16.msra.mxu0 %v3741
    %3932 = vmatprep.subr.bf16.mxu0 0
    %3933 = vmatpush2.bf16.msra.mxu0 0
    %3934 = vmatprep.subr.bf16.mxu0 0
    %3935 = vmatpush2.bf16.msra.mxu0 0
    %3936 = vmatprep.subr.bf16.mxu0 0
    %3937 = vmatpush2.bf16.msra.mxu0 0
    %3938 = vmatprep.subr.bf16.mxu0 0
    %3939 = vmatpush2.bf16.msra.mxu0 0
    %3940 = vmatprep.subr.bf16.mxu0 0
    %3941 = vmatpush2.bf16.msra.mxu0 0
    %3942 = vmatprep.subr.bf16.mxu0 0
    %3943 = vmatpush2.bf16.msra.mxu0 0
    %3944 = vmatprep.subr.bf16.mxu0 0
    %3945 = vmatpush2.bf16.msra.mxu0 0
    %3946 = vmatprep.subr.bf16.mxu0 0
    %3947 = vmatpush2.bf16.msra.mxu0 0
    %3948 = vmatprep.mubr.bf16.mxu0 0
    %3949 = vmatmul.mubr.bf16.gmra.mxu0 %v3627
    %v3950 = vpop.f32.mrf.mxu0
    %v3951 = vadd.f32 %v3586, %v3950
    %v3952 = vpop.f32.mrf.mxu0
    %v3953 = vadd.f32 %v3590, %v3952
    %v3954 = vpop.f32.mrf.mxu0
    %v3955 = vadd.f32 %v3586, %v3954
    %v3956 = vpop.f32.mrf.mxu0
    %v3957 = vadd.f32 %v3590, %v3956
    %3958 = vmatprep.mubr.bf16.mxu0 0
    %3959 = vmatmul.mubr.bf16.gmra.mxu0 %v3628
    %v3960 = vpop.f32.mrf.mxu0
    %v3961 = vadd.f32 %v3586, %v3960
    %v3962 = vpop.f32.mrf.mxu0
    %v3963 = vadd.f32 %v3590, %v3962
    %v3964 = vpop.f32.mrf.mxu0
    %v3965 = vadd.f32 %v3586, %v3964
    %v3966 = vpop.f32.mrf.mxu0
    %v3967 = vadd.f32 %v3590, %v3966
    %3968 = vmatprep.mubr.bf16.mxu0 0
    %3969 = vmatmul.mubr.bf16.gmra.mxu0 %v3629
    %v3970 = vpop.f32.mrf.mxu0
    %v3971 = vadd.f32 %v3586, %v3970
    %v3972 = vpop.f32.mrf.mxu0
    %v3973 = vadd.f32 %v3590, %v3972
    %v3974 = vpop.f32.mrf.mxu0
    %v3975 = vadd.f32 %v3586, %v3974
    %v3976 = vpop.f32.mrf.mxu0
    %v3977 = vadd.f32 %v3590, %v3976
    %3978 = vmatprep.mubr.bf16.mxu0 0
    %3979 = vmatmul.mubr.bf16.gmra.mxu0 %v3630
    %v3980 = vpop.f32.mrf.mxu0
    %v3981 = vadd.f32 %v3586, %v3980
    %v3982 = vpop.f32.mrf.mxu0
    %v3983 = vadd.f32 %v3590, %v3982
    %v3984 = vpop.f32.mrf.mxu0
    %v3985 = vadd.f32 %v3586, %v3984
    %v3986 = vpop.f32.mrf.mxu0
    %v3987 = vadd.f32 %v3590, %v3986
    %3988 = vmatprep.mubr.bf16.mxu0 0
    %3989 = vmatmul.mubr.bf16.gmra.mxu0 %v3631
    %v3990 = vpop.f32.mrf.mxu0
    %v3991 = vadd.f32 %v3586, %v3990
    %v3992 = vpop.f32.mrf.mxu0
    %v3993 = vadd.f32 %v3590, %v3992
    %v3994 = vpop.f32.mrf.mxu0
    %v3995 = vadd.f32 %v3586, %v3994
    %v3996 = vpop.f32.mrf.mxu0
    %v3997 = vadd.f32 %v3590, %v3996
    %3998 = vmatprep.mubr.bf16.mxu0 0
    %3999 = vmatmul.mubr.bf16.gmra.mxu0 %v3632
    %v4000 = vpop.f32.mrf.mxu0
    %v4001 = vadd.f32 %v3586, %v4000
    %v4002 = vpop.f32.mrf.mxu0
    %v4003 = vadd.f32 %v3590, %v4002
    %v4004 = vpop.f32.mrf.mxu0
    %v4005 = vadd.f32 %v3586, %v4004
    %v4006 = vpop.f32.mrf.mxu0
    %v4007 = vadd.f32 %v3590, %v4006
    %4008 = vmatprep.mubr.bf16.mxu0 0
    %4009 = vmatmul.mubr.bf16.gmra.mxu0 %v3633
    %v4010 = vpop.f32.mrf.mxu0
    %v4011 = vadd.f32 %v3586, %v4010
    %v4012 = vpop.f32.mrf.mxu0
    %v4013 = vadd.f32 %v3590, %v4012
    %v4014 = vpop.f32.mrf.mxu0
    %v4015 = vadd.f32 %v3586, %v4014
    %v4016 = vpop.f32.mrf.mxu0
    %v4017 = vadd.f32 %v3590, %v4016
    %4018 = vmatprep.mubr.bf16.mxu0 0
    %4019 = vmatmul.mubr.bf16.gmra.mxu0 %v3634
    %v4020 = vpop.f32.mrf.mxu0
    %v4021 = vadd.f32 %v3586, %v4020
    %v4022 = vpop.f32.mrf.mxu0
    %v4023 = vadd.f32 %v3590, %v4022
    %v4024 = vpop.f32.mrf.mxu0
    %v4025 = vadd.f32 %v3586, %v4024
    %v4026 = vpop.f32.mrf.mxu0
    %v4027 = vadd.f32 %v3590, %v4026
    %4028 = vdwg.mxu0
    %4029 = vst [vmem:[#allocation2] sm:$0xff] %v3838
    %4030 = vst [vmem:[#allocation2 + $0x8] sm:$0xff] %v3840
    %4031 = vst [vmem:[#allocation2 + $0x10] sm:$0xff] %v3951
    %4032 = vst [vmem:[#allocation2 + $0x18] sm:$0xff] %v3953
    %4033 = vst [vmem:[#allocation2 + $0x20] sm:$0xff] %v3842
    %4034 = vst [vmem:[#allocation2 + $0x28] sm:$0xff] %v3844
    %4035 = vst [vmem:[#allocation2 + $0x30] sm:$0xff] %v3955
    %4036 = vst [vmem:[#allocation2 + $0x38] sm:$0xff] %v3957
    %4037 = vst [vmem:[#allocation2 + $0x40] sm:$0xff] %v3848
    %4038 = vst [vmem:[#allocation2 + $0x48] sm:$0xff] %v3850
    %4039 = vst [vmem:[#allocation2 + $0x50] sm:$0xff] %v3961
    %4040 = vst [vmem:[#allocation2 + $0x58] sm:$0xff] %v3963
    %4041 = vst [vmem:[#allocation2 + $0x60] sm:$0xff] %v3852
    %4042 = vst [vmem:[#allocation2 + $0x68] sm:$0xff] %v3854
    %4043 = vst [vmem:[#allocation2 + $0x70] sm:$0xff] %v3965
    %4044 = vst [vmem:[#allocation2 + $0x78] sm:$0xff] %v3967
    %4045 = vst [vmem:[#allocation2 + $0x80] sm:$0xff] %v3858
    %4046 = vst [vmem:[#allocation2 + $0x88] sm:$0xff] %v3860
    %4047 = vst [vmem:[#allocation2 + $0x90] sm:$0xff] %v3971
    %4048 = vst [vmem:[#allocation2 + $0x98] sm:$0xff] %v3973
    %4049 = vst [vmem:[#allocation2 + $0xa0] sm:$0xff] %v3862
    %4050 = vst [vmem:[#allocation2 + $0xa8] sm:$0xff] %v3864
    %4051 = vst [vmem:[#allocation2 + $0xb0] sm:$0xff] %v3975
    %4052 = vst [vmem:[#allocation2 + $0xb8] sm:$0xff] %v3977
    %4053 = vst [vmem:[#allocation2 + $0xc0] sm:$0xff] %v3868
    %4054 = vst [vmem:[#allocation2 + $0xc8] sm:$0xff] %v3870
    %4055 = vst [vmem:[#allocation2 + $0xd0] sm:$0xff] %v3981
    %4056 = vst [vmem:[#allocation2 + $0xd8] sm:$0xff] %v3983
    %4057 = vst [vmem:[#allocation2 + $0xe0] sm:$0xff] %v3872
    %4058 = vst [vmem:[#allocation2 + $0xe8] sm:$0xff] %v3874
    %4059 = vst [vmem:[#allocation2 + $0xf0] sm:$0xff] %v3985
    %4060 = vst [vmem:[#allocation2 + $0xf8] sm:$0xff] %v3987
    %4061 = vst [vmem:[#allocation2 + $0x100] sm:$0xff] %v3878
    %4062 = vst [vmem:[#allocation2 + $0x108] sm:$0xff] %v3880
    %4063 = vst [vmem:[#allocation2 + $0x110] sm:$0xff] %v3991
    %4064 = vst [vmem:[#allocation2 + $0x118] sm:$0xff] %v3993
    %4065 = vst [vmem:[#allocation2 + $0x120] sm:$0xff] %v3882
    %4066 = vst [vmem:[#allocation2 + $0x128] sm:$0xff] %v3884
    %4067 = vst [vmem:[#allocation2 + $0x130] sm:$0xff] %v3995
    %4068 = vst [vmem:[#allocation2 + $0x138] sm:$0xff] %v3997
    %4069 = vst [vmem:[#allocation2 + $0x140] sm:$0xff] %v3888
    %4070 = vst [vmem:[#allocation2 + $0x148] sm:$0xff] %v3890
    %4071 = vst [vmem:[#allocation2 + $0x150] sm:$0xff] %v4001
    %4072 = vst [vmem:[#allocation2 + $0x158] sm:$0xff] %v4003
    %4073 = vst [vmem:[#allocation2 + $0x160] sm:$0xff] %v3892
    %4074 = vst [vmem:[#allocation2 + $0x168] sm:$0xff] %v3894
    %4075 = vst [vmem:[#allocation2 + $0x170] sm:$0xff] %v4005
    %4076 = vst [vmem:[#allocation2 + $0x178] sm:$0xff] %v4007
    %4077 = vst [vmem:[#allocation2 + $0x180] sm:$0xff] %v3898
    %4078 = vst [vmem:[#allocation2 + $0x188] sm:$0xff] %v3900
    %4079 = vst [vmem:[#allocation2 + $0x190] sm:$0xff] %v4011
    %4080 = vst [vmem:[#allocation2 + $0x198] sm:$0xff] %v4013
    %4081 = vst [vmem:[#allocation2 + $0x1a0] sm:$0xff] %v3902
    %4082 = vst [vmem:[#allocation2 + $0x1a8] sm:$0xff] %v3904
    %4083 = vst [vmem:[#allocation2 + $0x1b0] sm:$0xff] %v4015
    %4084 = vst [vmem:[#allocation2 + $0x1b8] sm:$0xff] %v4017
    %4085 = vst [vmem:[#allocation2 + $0x1c0] sm:$0xff] %v3908
    %4086 = vst [vmem:[#allocation2 + $0x1c8] sm:$0xff] %v3910
    %4087 = vst [vmem:[#allocation2 + $0x1d0] sm:$0xff] %v4021
    %4088 = vst [vmem:[#allocation2 + $0x1d8] sm:$0xff] %v4023
    %4089 = vst [vmem:[#allocation2 + $0x1e0] sm:$0xff] %v3912
    %4090 = vst [vmem:[#allocation2 + $0x1e8] sm:$0xff] %v3914
    %4091 = vst [vmem:[#allocation2 + $0x1f0] sm:$0xff] %v4025
    %4092 = vst [vmem:[#allocation2 + $0x1f8] sm:$0xff] %v4027
    %4093 = vst [vmem:[#allocation4] sm:$0xff] 0.0
    %4094 = vst [vmem:[#allocation4 + $0x8] sm:$0xff] 0.0
    %4095 = vst [vmem:[#allocation5] sm:$0xff] 0.0
    %4096 = vst [vmem:[#allocation5 + $0x8] sm:$0xff] 0.0
    %v4097 = vld [vmem:[#allocation4] sm:$0xff]
    %v4098 = vld [vmem:[#allocation4 + $0x8] sm:$0xff]
    %v4099 = vld [vmem:[%s610] sm:$0xff]
    %v4100 = vld [vmem:[%s610 + $0x8] sm:$0xff]
    %v4101 = vld [vmem:[%s610 + $0x10] sm:$0xff]
    %v4102 = vld [vmem:[%s610 + $0x18] sm:$0xff]
    %v4103 = vld [vmem:[%s610 + $0x20] sm:$0xff]
    %v4104 = vld [vmem:[%s610 + $0x28] sm:$0xff]
    %v4105 = vld [vmem:[%s610 + $0x30] sm:$0xff]
    %v4106 = vld [vmem:[%s610 + $0x38] sm:$0xff]
    %v4107 = vpack.c.bf16 %v4098, %v4097
    %v4108 = vld [vmem:[%s5] sm:$0xff]
    %v4109 = vld [vmem:[%s5 + $0x8] sm:$0xff]
    %v4110 = vld [vmem:[%s5 + $0x10] sm:$0xff]
    %v4111 = vld [vmem:[%s5 + $0x18] sm:$0xff]
    %v4112 = vld [vmem:[%s5 + $0x20] sm:$0xff]
    %v4113 = vld [vmem:[%s5 + $0x28] sm:$0xff]
    %v4114 = vld [vmem:[%s5 + $0x30] sm:$0xff]
    %v4115 = vld [vmem:[%s5 + $0x38] sm:$0xff]
    %v4116 = vld [vmem:[%s5 + $0x40] sm:$0xff]
    %v4117 = vld [vmem:[%s5 + $0x48] sm:$0xff]
    %v4118 = vld [vmem:[%s5 + $0x50] sm:$0xff]
    %v4119 = vld [vmem:[%s5 + $0x58] sm:$0xff]
    %v4120 = vld [vmem:[%s5 + $0x60] sm:$0xff]
    %v4121 = vld [vmem:[%s5 + $0x68] sm:$0xff]
    %v4122 = vld [vmem:[%s5 + $0x70] sm:$0xff]
    %v4123 = vld [vmem:[%s5 + $0x78] sm:$0xff]
    %v4124 = vld [vmem:[%s5 + $0x80] sm:$0xff]
    %v4125 = vld [vmem:[%s5 + $0x88] sm:$0xff]
    %v4126 = vld [vmem:[%s5 + $0x90] sm:$0xff]
    %v4127 = vld [vmem:[%s5 + $0x98] sm:$0xff]
    %v4128 = vld [vmem:[%s5 + $0xa0] sm:$0xff]
    %v4129 = vld [vmem:[%s5 + $0xa8] sm:$0xff]
    %v4130 = vld [vmem:[%s5 + $0xb0] sm:$0xff]
    %v4131 = vld [vmem:[%s5 + $0xb8] sm:$0xff]
    %v4132 = vld [vmem:[%s5 + $0xc0] sm:$0xff]
    %v4133 = vld [vmem:[%s5 + $0xc8] sm:$0xff]
    %v4134 = vld [vmem:[%s5 + $0xd0] sm:$0xff]
    %v4135 = vld [vmem:[%s5 + $0xd8] sm:$0xff]
    %v4136 = vld [vmem:[%s5 + $0xe0] sm:$0xff]
    %v4137 = vld [vmem:[%s5 + $0xe8] sm:$0xff]
    %v4138 = vld [vmem:[%s5 + $0xf0] sm:$0xff]
    %v4139 = vld [vmem:[%s5 + $0xf8] sm:$0xff]
    %v4172 = vunpack.c.l.b16 %v4108
    %v4173 = vunpack.c.h.b16 %v4108
    %v4174 = vunpack.c.l.b16 %v4109
    %v4175 = vunpack.c.h.b16 %v4109
    %v4176 = vunpack.c.l.b16 %v4110
    %v4177 = vunpack.c.h.b16 %v4110
    %v4178 = vunpack.c.l.b16 %v4111
    %v4179 = vunpack.c.h.b16 %v4111
    %v4180 = vunpack.c.l.b16 %v4112
    %v4181 = vunpack.c.h.b16 %v4112
    %v4182 = vunpack.c.l.b16 %v4113
    %v4183 = vunpack.c.h.b16 %v4113
    %v4184 = vunpack.c.l.b16 %v4114
    %v4185 = vunpack.c.h.b16 %v4114
    %v4186 = vunpack.c.l.b16 %v4115
    %v4187 = vunpack.c.h.b16 %v4115
    %v4188 = vunpack.c.l.b16 %v4116
    %v4189 = vunpack.c.h.b16 %v4116
    %v4190 = vunpack.c.l.b16 %v4117
    %v4191 = vunpack.c.h.b16 %v4117
    %v4192 = vunpack.c.l.b16 %v4118
    %v4193 = vunpack.c.h.b16 %v4118
    %v4194 = vunpack.c.l.b16 %v4119
    %v4195 = vunpack.c.h.b16 %v4119
    %v4196 = vunpack.c.l.b16 %v4120
    %v4197 = vunpack.c.h.b16 %v4120
    %v4198 = vunpack.c.l.b16 %v4121
    %v4199 = vunpack.c.h.b16 %v4121
    %v4200 = vunpack.c.l.b16 %v4122
    %v4201 = vunpack.c.h.b16 %v4122
    %v4202 = vunpack.c.l.b16 %v4123
    %v4203 = vunpack.c.h.b16 %v4123
    %v4204 = vunpack.c.l.b16 %v4124
    %v4205 = vunpack.c.h.b16 %v4124
    %v4206 = vunpack.c.l.b16 %v4125
    %v4207 = vunpack.c.h.b16 %v4125
    %v4208 = vunpack.c.l.b16 %v4126
    %v4209 = vunpack.c.h.b16 %v4126
    %v4210 = vunpack.c.l.b16 %v4127
    %v4211 = vunpack.c.h.b16 %v4127
    %v4212 = vunpack.c.l.b16 %v4128
    %v4213 = vunpack.c.h.b16 %v4128
    %v4214 = vunpack.c.l.b16 %v4129
    %v4215 = vunpack.c.h.b16 %v4129
    %v4216 = vunpack.c.l.b16 %v4130
    %v4217 = vunpack.c.h.b16 %v4130
    %v4218 = vunpack.c.l.b16 %v4131
    %v4219 = vunpack.c.h.b16 %v4131
    %v4220 = vunpack.c.l.b16 %v4132
    %v4221 = vunpack.c.h.b16 %v4132
    %v4222 = vunpack.c.l.b16 %v4133
    %v4223 = vunpack.c.h.b16 %v4133
    %v4224 = vunpack.c.l.b16 %v4134
    %v4225 = vunpack.c.h.b16 %v4134
    %v4226 = vunpack.c.l.b16 %v4135
    %v4227 = vunpack.c.h.b16 %v4135
    %v4228 = vunpack.c.l.b16 %v4136
    %v4229 = vunpack.c.h.b16 %v4136
    %v4230 = vunpack.c.l.b16 %v4137
    %v4231 = vunpack.c.h.b16 %v4137
    %v4232 = vunpack.c.l.b16 %v4138
    %v4233 = vunpack.c.h.b16 %v4138
    %v4234 = vunpack.c.l.b16 %v4139
    %v4235 = vunpack.c.h.b16 %v4139
    %v4236 = vpack.c.b16 %v4176, %v4172
    %v4237 = vpack.c.b16 %v4177, %v4173
    %v4238 = vpack.c.b16 %v4178, %v4174
    %v4239 = vpack.c.b16 %v4179, %v4175
    %v4240 = vpack.c.b16 %v4184, %v4180
    %v4241 = vpack.c.b16 %v4185, %v4181
    %v4242 = vpack.c.b16 %v4186, %v4182
    %v4243 = vpack.c.b16 %v4187, %v4183
    %v4244 = vpack.c.b16 %v4192, %v4188
    %v4245 = vpack.c.b16 %v4193, %v4189
    %v4246 = vpack.c.b16 %v4194, %v4190
    %v4247 = vpack.c.b16 %v4195, %v4191
    %v4248 = vpack.c.b16 %v4200, %v4196
    %v4249 = vpack.c.b16 %v4201, %v4197
    %v4250 = vpack.c.b16 %v4202, %v4198
    %v4251 = vpack.c.b16 %v4203, %v4199
    %v4252 = vpack.c.b16 %v4208, %v4204
    %v4253 = vpack.c.b16 %v4209, %v4205
    %v4254 = vpack.c.b16 %v4210, %v4206
    %v4255 = vpack.c.b16 %v4211, %v4207
    %v4256 = vpack.c.b16 %v4216, %v4212
    %v4257 = vpack.c.b16 %v4217, %v4213
    %v4258 = vpack.c.b16 %v4218, %v4214
    %v4259 = vpack.c.b16 %v4219, %v4215
    %v4260 = vpack.c.b16 %v4224, %v4220
    %v4261 = vpack.c.b16 %v4225, %v4221
    %v4262 = vpack.c.b16 %v4226, %v4222
    %v4263 = vpack.c.b16 %v4227, %v4223
    %v4264 = vpack.c.b16 %v4232, %v4228
    %v4265 = vpack.c.b16 %v4233, %v4229
    %v4266 = vpack.c.b16 %v4234, %v4230
    %v4267 = vpack.c.b16 %v4235, %v4231
    %4300 = vmatprep.subr.bf16.mxu0 %v4265
    %4301 = vmatpush1.bf16.msra.mxu0 %v4264
    %4302 = vmatprep.subr.bf16.mxu0 %v4261
    %4303 = vmatpush1.bf16.msra.mxu0 %v4260
    %4304 = vmatprep.subr.bf16.mxu0 %v4257
    %4305 = vmatpush1.bf16.msra.mxu0 %v4256
    %4306 = vmatprep.subr.bf16.mxu0 %v4253
    %4307 = vmatpush1.bf16.msra.mxu0 %v4252
    %4308 = vmatprep.subr.bf16.mxu0 %v4249
    %4309 = vmatpush1.bf16.msra.mxu0 %v4248
    %4310 = vmatprep.subr.bf16.mxu0 %v4245
    %4311 = vmatpush1.bf16.msra.mxu0 %v4244
    %4312 = vmatprep.subr.bf16.mxu0 %v4241
    %4313 = vmatpush1.bf16.msra.mxu0 %v4240
    %4314 = vmatprep.subr.bf16.mxu0 %v4237
    %4315 = vmatpush1.bf16.msra.mxu0 %v4236
    %4316 = vmatprep.subr.bf16.mxu0 0
    %4317 = vmatpush2.bf16.msra.mxu0 0
    %4318 = vmatprep.subr.bf16.mxu0 0
    %4319 = vmatpush2.bf16.msra.mxu0 0
    %4320 = vmatprep.subr.bf16.mxu0 0
    %4321 = vmatpush2.bf16.msra.mxu0 0
    %4322 = vmatprep.subr.bf16.mxu0 0
    %4323 = vmatpush2.bf16.msra.mxu0 0
    %4324 = vmatprep.subr.bf16.mxu0 0
    %4325 = vmatpush2.bf16.msra.mxu0 0
    %4326 = vmatprep.subr.bf16.mxu0 0
    %4327 = vmatpush2.bf16.msra.mxu0 0
    %4328 = vmatprep.subr.bf16.mxu0 0
    %4329 = vmatpush2.bf16.msra.mxu0 0
    %4330 = vmatprep.subr.bf16.mxu0 0
    %4331 = vmatpush2.bf16.msra.mxu0 0
    %4332 = vmatprep.mubr.bf16.mxu0 0
    %4333 = vmatmul.mubr.bf16.gmra.mxu0 %v4107
    %v4334 = vpop.f32.mrf.mxu0
    %v4335 = vadd.f32 0.0, %v4334
    %v4336 = vpop.f32.mrf.mxu0
    %v4337 = vadd.f32 0.0, %v4336
    %v4338 = vpop.f32.mrf.mxu0
    %v4339 = vadd.f32 0.0, %v4338
    %v4340 = vpop.f32.mrf.mxu0
    %v4341 = vadd.f32 0.0, %v4340
    %4342 = vdwg.mxu0
    %4343 = vmatprep.subr.bf16.mxu0 %v4267
    %4344 = vmatpush1.bf16.msra.mxu0 %v4266
    %4345 = vmatprep.subr.bf16.mxu0 %v4263
    %4346 = vmatpush1.bf16.msra.mxu0 %v4262
    %4347 = vmatprep.subr.bf16.mxu0 %v4259
    %4348 = vmatpush1.bf16.msra.mxu0 %v4258
    %4349 = vmatprep.subr.bf16.mxu0 %v4255
    %4350 = vmatpush1.bf16.msra.mxu0 %v4254
    %4351 = vmatprep.subr.bf16.mxu0 %v4251
    %4352 = vmatpush1.bf16.msra.mxu0 %v4250
    %4353 = vmatprep.subr.bf16.mxu0 %v4247
    %4354 = vmatpush1.bf16.msra.mxu0 %v4246
    %4355 = vmatprep.subr.bf16.mxu0 %v4243
    %4356 = vmatpush1.bf16.msra.mxu0 %v4242
    %4357 = vmatprep.subr.bf16.mxu0 %v4239
    %4358 = vmatpush1.bf16.msra.mxu0 %v4238
    %4359 = vmatprep.subr.bf16.mxu0 0
    %4360 = vmatpush2.bf16.msra.mxu0 0
    %4361 = vmatprep.subr.bf16.mxu0 0
    %4362 = vmatpush2.bf16.msra.mxu0 0
    %4363 = vmatprep.subr.bf16.mxu0 0
    %4364 = vmatpush2.bf16.msra.mxu0 0
    %4365 = vmatprep.subr.bf16.mxu0 0
    %4366 = vmatpush2.bf16.msra.mxu0 0
    %4367 = vmatprep.subr.bf16.mxu0 0
    %4368 = vmatpush2.bf16.msra.mxu0 0
    %4369 = vmatprep.subr.bf16.mxu0 0
    %4370 = vmatpush2.bf16.msra.mxu0 0
    %4371 = vmatprep.subr.bf16.mxu0 0
    %4372 = vmatpush2.bf16.msra.mxu0 0
    %4373 = vmatprep.subr.bf16.mxu0 0
    %4374 = vmatpush2.bf16.msra.mxu0 0
    %4375 = vmatprep.mubr.bf16.mxu0 0
    %4376 = vmatmul.mubr.bf16.gmra.mxu0 %v4107
    %v4377 = vpop.f32.mrf.mxu0
    %v4378 = vadd.f32 0.0, %v4377
    %v4379 = vpop.f32.mrf.mxu0
    %v4380 = vadd.f32 0.0, %v4379
    %v4381 = vpop.f32.mrf.mxu0
    %v4382 = vadd.f32 0.0, %v4381
    %v4383 = vpop.f32.mrf.mxu0
    %v4384 = vadd.f32 0.0, %v4383
    %4385 = vdwg.mxu0
    %v4386 = vadd.f32 %v4099, %v4335
    %v4387 = vadd.f32 %v4100, %v4337
    %v4388 = vadd.f32 %v4101, %v4378
    %v4389 = vadd.f32 %v4102, %v4380
    %v4390 = vadd.f32 %v4103, %v4339
    %v4391 = vadd.f32 %v4104, %v4341
    %v4392 = vadd.f32 %v4105, %v4382
    %v4393 = vadd.f32 %v4106, %v4384
    %v4394 = vxor.u32 %v4386, 2147483648
    %v4395 = vxor.u32 %v4390, 2147483648
    %v4396 = vmul.f32 %v4394, 1.442695
    %v4397 = vpow.pop %v4396
    %v4398 = vmul.f32 %v4395, 1.442695
    %v4399 = vpow.pop %v4398
    %v4400 = vadd.f32 %v4397, 1.0
    %v4401 = vadd.f32 %v4399, 1.0
    %v4402 = vrcp.pop %v4400
    %v4403 = vmul.f32 1.0, %v4402
    %v4404 = vrcp.pop %v4401
    %v4405 = vmul.f32 1.0, %v4404
    %v4406 = vxor.u32 %v4387, 2147483648
    %v4407 = vxor.u32 %v4391, 2147483648
    %v4408 = vmul.f32 %v4406, 1.442695
    %v4409 = vpow.pop %v4408
    %v4410 = vmul.f32 %v4407, 1.442695
    %v4411 = vpow.pop %v4410
    %v4412 = vadd.f32 %v4409, 1.0
    %v4413 = vadd.f32 %v4411, 1.0
    %v4414 = vrcp.pop %v4412
    %v4415 = vmul.f32 1.0, %v4414
    %v4416 = vrcp.pop %v4413
    %v4417 = vmul.f32 1.0, %v4416
    %v4418 = vtanh.pop %v4388
    %v4419 = vtanh.pop %v4392
    %v4420 = vxor.u32 %v4389, 2147483648
    %v4421 = vxor.u32 %v4393, 2147483648
    %v4422 = vmul.f32 %v4420, 1.442695
    %v4423 = vpow.pop %v4422
    %v4424 = vmul.f32 %v4421, 1.442695
    %v4425 = vpow.pop %v4424
    %v4426 = vadd.f32 %v4423, 1.0
    %v4427 = vadd.f32 %v4425, 1.0
    %v4428 = vrcp.pop %v4426
    %v4429 = vmul.f32 1.0, %v4428
    %v4430 = vrcp.pop %v4427
    %v4431 = vmul.f32 1.0, %v4430
    %v4432 = vld [vmem:[#allocation5] sm:$0xff]
    %v4433 = vld [vmem:[#allocation5 + $0x8] sm:$0xff]
    %v4434 = vmul.f32 %v4415, %v4432
    %v4435 = vmul.f32 %v4417, %v4433
    %v4436 = vmul.f32 %v4403, %v4418
    %v4437 = vmul.f32 %v4405, %v4419
    %v4438 = vadd.f32 %v4434, %v4436
    %v4439 = vadd.f32 %v4435, %v4437
    %v4440 = vtanh.pop %v4438
    %v4441 = vtanh.pop %v4439
    %v4442 = vmul.f32 %v4429, %v4440
    %v4443 = vmul.f32 %v4431, %v4441
    %4444 = vst [vmem:[#allocation5] sm:$0xff] %v4438
    %4445 = vst [vmem:[#allocation5 + $0x8] sm:$0xff] %v4439
    %4446 = vst [vmem:[#allocation4] sm:$0xff] %v4442
    %4447 = vst [vmem:[#allocation4 + $0x8] sm:$0xff] %v4443
    %v4448 = vld [vmem:[#allocation4] sm:$0xff]
    %v4449 = vld [vmem:[#allocation4 + $0x8] sm:$0xff]
    %v4450 = vld [vmem:[%s974] sm:$0xff]
    %v4451 = vld [vmem:[%s974 + $0x8] sm:$0xff]
    %v4452 = vld [vmem:[%s974 + $0x10] sm:$0xff]
    %v4453 = vld [vmem:[%s974 + $0x18] sm:$0xff]
    %v4454 = vld [vmem:[%s974 + $0x20] sm:$0xff]
    %v4455 = vld [vmem:[%s974 + $0x28] sm:$0xff]
    %v4456 = vld [vmem:[%s974 + $0x30] sm:$0xff]
    %v4457 = vld [vmem:[%s974 + $0x38] sm:$0xff]
    %v4458 = vpack.c.bf16 %v4449, %v4448
    %v4459 = vld [vmem:[%s5] sm:$0xff]
    %v4460 = vld [vmem:[%s5 + $0x8] sm:$0xff]
    %v4461 = vld [vmem:[%s5 + $0x10] sm:$0xff]
    %v4462 = vld [vmem:[%s5 + $0x18] sm:$0xff]
    %v4463 = vld [vmem:[%s5 + $0x20] sm:$0xff]
    %v4464 = vld [vmem:[%s5 + $0x28] sm:$0xff]
    %v4465 = vld [vmem:[%s5 + $0x30] sm:$0xff]
    %v4466 = vld [vmem:[%s5 + $0x38] sm:$0xff]
    %v4467 = vld [vmem:[%s5 + $0x40] sm:$0xff]
    %v4468 = vld [vmem:[%s5 + $0x48] sm:$0xff]
    %v4469 = vld [vmem:[%s5 + $0x50] sm:$0xff]
    %v4470 = vld [vmem:[%s5 + $0x58] sm:$0xff]
    %v4471 = vld [vmem:[%s5 + $0x60] sm:$0xff]
    %v4472 = vld [vmem:[%s5 + $0x68] sm:$0xff]
    %v4473 = vld [vmem:[%s5 + $0x70] sm:$0xff]
    %v4474 = vld [vmem:[%s5 + $0x78] sm:$0xff]
    %v4475 = vld [vmem:[%s5 + $0x80] sm:$0xff]
    %v4476 = vld [vmem:[%s5 + $0x88] sm:$0xff]
    %v4477 = vld [vmem:[%s5 + $0x90] sm:$0xff]
    %v4478 = vld [vmem:[%s5 + $0x98] sm:$0xff]
    %v4479 = vld [vmem:[%s5 + $0xa0] sm:$0xff]
    %v4480 = vld [vmem:[%s5 + $0xa8] sm:$0xff]
    %v4481 = vld [vmem:[%s5 + $0xb0] sm:$0xff]
    %v4482 = vld [vmem:[%s5 + $0xb8] sm:$0xff]
    %v4483 = vld [vmem:[%s5 + $0xc0] sm:$0xff]
    %v4484 = vld [vmem:[%s5 + $0xc8] sm:$0xff]
    %v4485 = vld [vmem:[%s5 + $0xd0] sm:$0xff]
    %v4486 = vld [vmem:[%s5 + $0xd8] sm:$0xff]
    %v4487 = vld [vmem:[%s5 + $0xe0] sm:$0xff]
    %v4488 = vld [vmem:[%s5 + $0xe8] sm:$0xff]
    %v4489 = vld [vmem:[%s5 + $0xf0] sm:$0xff]
    %v4490 = vld [vmem:[%s5 + $0xf8] sm:$0xff]
    %v4523 = vunpack.c.l.b16 %v4459
    %v4524 = vunpack.c.h.b16 %v4459
    %v4525 = vunpack.c.l.b16 %v4460
    %v4526 = vunpack.c.h.b16 %v4460
    %v4527 = vunpack.c.l.b16 %v4461
    %v4528 = vunpack.c.h.b16 %v4461
    %v4529 = vunpack.c.l.b16 %v4462
    %v4530 = vunpack.c.h.b16 %v4462
    %v4531 = vunpack.c.l.b16 %v4463
    %v4532 = vunpack.c.h.b16 %v4463
    %v4533 = vunpack.c.l.b16 %v4464
    %v4534 = vunpack.c.h.b16 %v4464
    %v4535 = vunpack.c.l.b16 %v4465
    %v4536 = vunpack.c.h.b16 %v4465
    %v4537 = vunpack.c.l.b16 %v4466
    %v4538 = vunpack.c.h.b16 %v4466
    %v4539 = vunpack.c.l.b16 %v4467
    %v4540 = vunpack.c.h.b16 %v4467
    %v4541 = vunpack.c.l.b16 %v4468
    %v4542 = vunpack.c.h.b16 %v4468
    %v4543 = vunpack.c.l.b16 %v4469
    %v4544 = vunpack.c.h.b16 %v4469
    %v4545 = vunpack.c.l.b16 %v4470
    %v4546 = vunpack.c.h.b16 %v4470
    %v4547 = vunpack.c.l.b16 %v4471
    %v4548 = vunpack.c.h.b16 %v4471
    %v4549 = vunpack.c.l.b16 %v4472
    %v4550 = vunpack.c.h.b16 %v4472
    %v4551 = vunpack.c.l.b16 %v4473
    %v4552 = vunpack.c.h.b16 %v4473
    %v4553 = vunpack.c.l.b16 %v4474
    %v4554 = vunpack.c.h.b16 %v4474
    %v4555 = vunpack.c.l.b16 %v4475
    %v4556 = vunpack.c.h.b16 %v4475
    %v4557 = vunpack.c.l.b16 %v4476
    %v4558 = vunpack.c.h.b16 %v4476
    %v4559 = vunpack.c.l.b16 %v4477
    %v4560 = vunpack.c.h.b16 %v4477
    %v4561 = vunpack.c.l.b16 %v4478
    %v4562 = vunpack.c.h.b16 %v4478
    %v4563 = vunpack.c.l.b16 %v4479
    %v4564 = vunpack.c.h.b16 %v4479
    %v4565 = vunpack.c.l.b16 %v4480
    %v4566 = vunpack.c.h.b16 %v4480
    %v4567 = vunpack.c.l.b16 %v4481
    %v4568 = vunpack.c.h.b16 %v4481
    %v4569 = vunpack.c.l.b16 %v4482
    %v4570 = vunpack.c.h.b16 %v4482
    %v4571 = vunpack.c.l.b16 %v4483
    %v4572 = vunpack.c.h.b16 %v4483
    %v4573 = vunpack.c.l.b16 %v4484
    %v4574 = vunpack.c.h.b16 %v4484
    %v4575 = vunpack.c.l.b16 %v4485
    %v4576 = vunpack.c.h.b16 %v4485
    %v4577 = vunpack.c.l.b16 %v4486
    %v4578 = vunpack.c.h.b16 %v4486
    %v4579 = vunpack.c.l.b16 %v4487
    %v4580 = vunpack.c.h.b16 %v4487
    %v4581 = vunpack.c.l.b16 %v4488
    %v4582 = vunpack.c.h.b16 %v4488
    %v4583 = vunpack.c.l.b16 %v4489
    %v4584 = vunpack.c.h.b16 %v4489
    %v4585 = vunpack.c.l.b16 %v4490
    %v4586 = vunpack.c.h.b16 %v4490
    %v4587 = vpack.c.b16 %v4527, %v4523
    %v4588 = vpack.c.b16 %v4528, %v4524
    %v4589 = vpack.c.b16 %v4529, %v4525
    %v4590 = vpack.c.b16 %v4530, %v4526
    %v4591 = vpack.c.b16 %v4535, %v4531
    %v4592 = vpack.c.b16 %v4536, %v4532
    %v4593 = vpack.c.b16 %v4537, %v4533
    %v4594 = vpack.c.b16 %v4538, %v4534
    %v4595 = vpack.c.b16 %v4543, %v4539
    %v4596 = vpack.c.b16 %v4544, %v4540
    %v4597 = vpack.c.b16 %v4545, %v4541
    %v4598 = vpack.c.b16 %v4546, %v4542
    %v4599 = vpack.c.b16 %v4551, %v4547
    %v4600 = vpack.c.b16 %v4552, %v4548
    %v4601 = vpack.c.b16 %v4553, %v4549
    %v4602 = vpack.c.b16 %v4554, %v4550
    %v4603 = vpack.c.b16 %v4559, %v4555
    %v4604 = vpack.c.b16 %v4560, %v4556
    %v4605 = vpack.c.b16 %v4561, %v4557
    %v4606 = vpack.c.b16 %v4562, %v4558
    %v4607 = vpack.c.b16 %v4567, %v4563
    %v4608 = vpack.c.b16 %v4568, %v4564
    %v4609 = vpack.c.b16 %v4569, %v4565
    %v4610 = vpack.c.b16 %v4570, %v4566
    %v4611 = vpack.c.b16 %v4575, %v4571
    %v4612 = vpack.c.b16 %v4576, %v4572
    %v4613 = vpack.c.b16 %v4577, %v4573
    %v4614 = vpack.c.b16 %v4578, %v4574
    %v4615 = vpack.c.b16 %v4583, %v4579
    %v4616 = vpack.c.b16 %v4584, %v4580
    %v4617 = vpack.c.b16 %v4585, %v4581
    %v4618 = vpack.c.b16 %v4586, %v4582
    %4651 = vmatprep.subr.bf16.mxu0 %v4616
    %4652 = vmatpush1.bf16.msra.mxu0 %v4615
    %4653 = vmatprep.subr.bf16.mxu0 %v4612
    %4654 = vmatpush1.bf16.msra.mxu0 %v4611
    %4655 = vmatprep.subr.bf16.mxu0 %v4608
    %4656 = vmatpush1.bf16.msra.mxu0 %v4607
    %4657 = vmatprep.subr.bf16.mxu0 %v4604
    %4658 = vmatpush1.bf16.msra.mxu0 %v4603
    %4659 = vmatprep.subr.bf16.mxu0 %v4600
    %4660 = vmatpush1.bf16.msra.mxu0 %v4599
    %4661 = vmatprep.subr.bf16.mxu0 %v4596
    %4662 = vmatpush1.bf16.msra.mxu0 %v4595
    %4663 = vmatprep.subr.bf16.mxu0 %v4592
    %4664 = vmatpush1.bf16.msra.mxu0 %v4591
    %4665 = vmatprep.subr.bf16.mxu0 %v4588
    %4666 = vmatpush1.bf16.msra.mxu0 %v4587
    %4667 = vmatprep.subr.bf16.mxu0 0
    %4668 = vmatpush2.bf16.msra.mxu0 0
    %4669 = vmatprep.subr.bf16.mxu0 0
    %4670 = vmatpush2.bf16.msra.mxu0 0
    %4671 = vmatprep.subr.bf16.mxu0 0
    %4672 = vmatpush2.bf16.msra.mxu0 0
    %4673 = vmatprep.subr.bf16.mxu0 0
    %4674 = vmatpush2.bf16.msra.mxu0 0
    %4675 = vmatprep.subr.bf16.mxu0 0
    %4676 = vmatpush2.bf16.msra.mxu0 0
    %4677 = vmatprep.subr.bf16.mxu0 0
    %4678 = vmatpush2.bf16.msra.mxu0 0
    %4679 = vmatprep.subr.bf16.mxu0 0
    %4680 = vmatpush2.bf16.msra.mxu0 0
    %4681 = vmatprep.subr.bf16.mxu0 0
    %4682 = vmatpush2.bf16.msra.mxu0 0
    %4683 = vmatprep.mubr.bf16.mxu0 0
    %4684 = vmatmul.mubr.bf16.gmra.mxu0 %v4458
    %v4685 = vpop.f32.mrf.mxu0
    %v4686 = vadd.f32 0.0, %v4685
    %v4687 = vpop.f32.mrf.mxu0
    %v4688 = vadd.f32 0.0, %v4687
    %v4689 = vpop.f32.mrf.mxu0
    %v4690 = vadd.f32 0.0, %v4689
    %v4691 = vpop.f32.mrf.mxu0
    %v4692 = vadd.f32 0.0, %v4691
    %4693 = vdwg.mxu0
    %4694 = vmatprep.subr.bf16.mxu0 %v4618
    %4695 = vmatpush1.bf16.msra.mxu0 %v4617
    %4696 = vmatprep.subr.bf16.mxu0 %v4614
    %4697 = vmatpush1.bf16.msra.mxu0 %v4613
    %4698 = vmatprep.subr.bf16.mxu0 %v4610
    %4699 = vmatpush1.bf16.msra.mxu0 %v4609
    %4700 = vmatprep.subr.bf16.mxu0 %v4606
    %4701 = vmatpush1.bf16.msra.mxu0 %v4605
    %4702 = vmatprep.subr.bf16.mxu0 %v4602
    %4703 = vmatpush1.bf16.msra.mxu0 %v4601
    %4704 = vmatprep.subr.bf16.mxu0 %v4598
    %4705 = vmatpush1.bf16.msra.mxu0 %v4597
    %4706 = vmatprep.subr.bf16.mxu0 %v4594
    %4707 = vmatpush1.bf16.msra.mxu0 %v4593
    %4708 = vmatprep.subr.bf16.mxu0 %v4590
    %4709 = vmatpush1.bf16.msra.mxu0 %v4589
    %4710 = vmatprep.subr.bf16.mxu0 0
    %4711 = vmatpush2.bf16.msra.mxu0 0
    %4712 = vmatprep.subr.bf16.mxu0 0
    %4713 = vmatpush2.bf16.msra.mxu0 0
    %4714 = vmatprep.subr.bf16.mxu0 0
    %4715 = vmatpush2.bf16.msra.mxu0 0
    %4716 = vmatprep.subr.bf16.mxu0 0
    %4717 = vmatpush2.bf16.msra.mxu0 0
    %4718 = vmatprep.subr.bf16.mxu0 0
    %4719 = vmatpush2.bf16.msra.mxu0 0
    %4720 = vmatprep.subr.bf16.mxu0 0
    %4721 = vmatpush2.bf16.msra.mxu0 0
    %4722 = vmatprep.subr.bf16.mxu0 0
    %4723 = vmatpush2.bf16.msra.mxu0 0
    %4724 = vmatprep.subr.bf16.mxu0 0
    %4725 = vmatpush2.bf16.msra.mxu0 0
    %4726 = vmatprep.mubr.bf16.mxu0 0
    %4727 = vmatmul.mubr.bf16.gmra.mxu0 %v4458
    %v4728 = vpop.f32.mrf.mxu0
    %v4729 = vadd.f32 0.0, %v4728
    %v4730 = vpop.f32.mrf.mxu0
    %v4731 = vadd.f32 0.0, %v4730
    %v4732 = vpop.f32.mrf.mxu0
    %v4733 = vadd.f32 0.0, %v4732
    %v4734 = vpop.f32.mrf.mxu0
    %v4735 = vadd.f32 0.0, %v4734
    %4736 = vdwg.mxu0
    %v4737 = vadd.f32 %v4450, %v4686
    %v4738 = vadd.f32 %v4451, %v4688
    %v4739 = vadd.f32 %v4452, %v4729
    %v4740 = vadd.f32 %v4453, %v4731
    %v4741 = vadd.f32 %v4454, %v4690
    %v4742 = vadd.f32 %v4455, %v4692
    %v4743 = vadd.f32 %v4456, %v4733
    %v4744 = vadd.f32 %v4457, %v4735
    %v4745 = vxor.u32 %v4737, 2147483648
    %v4746 = vxor.u32 %v4741, 2147483648
    %v4747 = vmul.f32 %v4745, 1.442695
    %v4748 = vpow.pop %v4747
    %v4749 = vmul.f32 %v4746, 1.442695
    %v4750 = vpow.pop %v4749
    %v4751 = vadd.f32 %v4748, 1.0
    %v4752 = vadd.f32 %v4750, 1.0
    %v4753 = vrcp.pop %v4751
    %v4754 = vmul.f32 1.0, %v4753
    %v4755 = vrcp.pop %v4752
    %v4756 = vmul.f32 1.0, %v4755
    %v4757 = vxor.u32 %v4738, 2147483648
    %v4758 = vxor.u32 %v4742, 2147483648
    %v4759 = vmul.f32 %v4757, 1.442695
    %v4760 = vpow.pop %v4759
    %v4761 = vmul.f32 %v4758, 1.442695
    %v4762 = vpow.pop %v4761
    %v4763 = vadd.f32 %v4760, 1.0
    %v4764 = vadd.f32 %v4762, 1.0
    %v4765 = vrcp.pop %v4763
    %v4766 = vmul.f32 1.0, %v4765
    %v4767 = vrcp.pop %v4764
    %v4768 = vmul.f32 1.0, %v4767
    %v4769 = vtanh.pop %v4739
    %v4770 = vtanh.pop %v4743
    %v4771 = vxor.u32 %v4740, 2147483648
    %v4772 = vxor.u32 %v4744, 2147483648
    %v4773 = vmul.f32 %v4771, 1.442695
    %v4774 = vpow.pop %v4773
    %v4775 = vmul.f32 %v4772, 1.442695
    %v4776 = vpow.pop %v4775
    %v4777 = vadd.f32 %v4774, 1.0
    %v4778 = vadd.f32 %v4776, 1.0
    %v4779 = vrcp.pop %v4777
    %v4780 = vmul.f32 1.0, %v4779
    %v4781 = vrcp.pop %v4778
    %v4782 = vmul.f32 1.0, %v4781
    %v4783 = vld [vmem:[#allocation5] sm:$0xff]
    %v4784 = vld [vmem:[#allocation5 + $0x8] sm:$0xff]
    %v4785 = vmul.f32 %v4766, %v4783
    %v4786 = vmul.f32 %v4768, %v4784
    %v4787 = vmul.f32 %v4754, %v4769
    %v4788 = vmul.f32 %v4756, %v4770
    %v4789 = vadd.f32 %v4785, %v4787
    %v4790 = vadd.f32 %v4786, %v4788
    %v4791 = vtanh.pop %v4789
    %v4792 = vtanh.pop %v4790
    %v4793 = vmul.f32 %v4780, %v4791
    %v4794 = vmul.f32 %v4782, %v4792
    %4795 = vst [vmem:[#allocation5] sm:$0xff] %v4789
    %4796 = vst [vmem:[#allocation5 + $0x8] sm:$0xff] %v4790
    %4797 = vst [vmem:[#allocation4] sm:$0xff] %v4793
    %4798 = vst [vmem:[#allocation4 + $0x8] sm:$0xff] %v4794
    %v4799 = vld [vmem:[#allocation4] sm:$0xff]
    %v4800 = vld [vmem:[#allocation4 + $0x8] sm:$0xff]
    %v4801 = vld [vmem:[%s1339] sm:$0xff]
    %v4802 = vld [vmem:[%s1339 + $0x8] sm:$0xff]
    %v4803 = vld [vmem:[%s1339 + $0x10] sm:$0xff]
    %v4804 = vld [vmem:[%s1339 + $0x18] sm:$0xff]
    %v4805 = vld [vmem:[%s1339 + $0x20] sm:$0xff]
    %v4806 = vld [vmem:[%s1339 + $0x28] sm:$0xff]
    %v4807 = vld [vmem:[%s1339 + $0x30] sm:$0xff]
    %v4808 = vld [vmem:[%s1339 + $0x38] sm:$0xff]
    %v4809 = vpack.c.bf16 %v4800, %v4799
    %v4810 = vld [vmem:[%s5] sm:$0xff]
    %v4811 = vld [vmem:[%s5 + $0x8] sm:$0xff]
    %v4812 = vld [vmem:[%s5 + $0x10] sm:$0xff]
    %v4813 = vld [vmem:[%s5 + $0x18] sm:$0xff]
    %v4814 = vld [vmem:[%s5 + $0x20] sm:$0xff]
    %v4815 = vld [vmem:[%s5 + $0x28] sm:$0xff]
    %v4816 = vld [vmem:[%s5 + $0x30] sm:$0xff]
    %v4817 = vld [vmem:[%s5 + $0x38] sm:$0xff]
    %v4818 = vld [vmem:[%s5 + $0x40] sm:$0xff]
    %v4819 = vld [vmem:[%s5 + $0x48] sm:$0xff]
    %v4820 = vld [vmem:[%s5 + $0x50] sm:$0xff]
    %v4821 = vld [vmem:[%s5 + $0x58] sm:$0xff]
    %v4822 = vld [vmem:[%s5 + $0x60] sm:$0xff]
    %v4823 = vld [vmem:[%s5 + $0x68] sm:$0xff]
    %v4824 = vld [vmem:[%s5 + $0x70] sm:$0xff]
    %v4825 = vld [vmem:[%s5 + $0x78] sm:$0xff]
    %v4826 = vld [vmem:[%s5 + $0x80] sm:$0xff]
    %v4827 = vld [vmem:[%s5 + $0x88] sm:$0xff]
    %v4828 = vld [vmem:[%s5 + $0x90] sm:$0xff]
    %v4829 = vld [vmem:[%s5 + $0x98] sm:$0xff]
    %v4830 = vld [vmem:[%s5 + $0xa0] sm:$0xff]
    %v4831 = vld [vmem:[%s5 + $0xa8] sm:$0xff]
    %v4832 = vld [vmem:[%s5 + $0xb0] sm:$0xff]
    %v4833 = vld [vmem:[%s5 + $0xb8] sm:$0xff]
    %v4834 = vld [vmem:[%s5 + $0xc0] sm:$0xff]
    %v4835 = vld [vmem:[%s5 + $0xc8] sm:$0xff]
    %v4836 = vld [vmem:[%s5 + $0xd0] sm:$0xff]
    %v4837 = vld [vmem:[%s5 + $0xd8] sm:$0xff]
    %v4838 = vld [vmem:[%s5 + $0xe0] sm:$0xff]
    %v4839 = vld [vmem:[%s5 + $0xe8] sm:$0xff]
    %v4840 = vld [vmem:[%s5 + $0xf0] sm:$0xff]
    %v4841 = vld [vmem:[%s5 + $0xf8] sm:$0xff]
    %v4874 = vunpack.c.l.b16 %v4810
    %v4875 = vunpack.c.h.b16 %v4810
    %v4876 = vunpack.c.l.b16 %v4811
    %v4877 = vunpack.c.h.b16 %v4811
    %v4878 = vunpack.c.l.b16 %v4812
    %v4879 = vunpack.c.h.b16 %v4812
    %v4880 = vunpack.c.l.b16 %v4813
    %v4881 = vunpack.c.h.b16 %v4813
    %v4882 = vunpack.c.l.b16 %v4814
    %v4883 = vunpack.c.h.b16 %v4814
    %v4884 = vunpack.c.l.b16 %v4815
    %v4885 = vunpack.c.h.b16 %v4815
    %v4886 = vunpack.c.l.b16 %v4816
    %v4887 = vunpack.c.h.b16 %v4816
    %v4888 = vunpack.c.l.b16 %v4817
    %v4889 = vunpack.c.h.b16 %v4817
    %v4890 = vunpack.c.l.b16 %v4818
    %v4891 = vunpack.c.h.b16 %v4818
    %v4892 = vunpack.c.l.b16 %v4819
    %v4893 = vunpack.c.h.b16 %v4819
    %v4894 = vunpack.c.l.b16 %v4820
    %v4895 = vunpack.c.h.b16 %v4820
    %v4896 = vunpack.c.l.b16 %v4821
    %v4897 = vunpack.c.h.b16 %v4821
    %v4898 = vunpack.c.l.b16 %v4822
    %v4899 = vunpack.c.h.b16 %v4822
    %v4900 = vunpack.c.l.b16 %v4823
    %v4901 = vunpack.c.h.b16 %v4823
    %v4902 = vunpack.c.l.b16 %v4824
    %v4903 = vunpack.c.h.b16 %v4824
    %v4904 = vunpack.c.l.b16 %v4825
    %v4905 = vunpack.c.h.b16 %v4825
    %v4906 = vunpack.c.l.b16 %v4826
    %v4907 = vunpack.c.h.b16 %v4826
    %v4908 = vunpack.c.l.b16 %v4827
    %v4909 = vunpack.c.h.b16 %v4827
    %v4910 = vunpack.c.l.b16 %v4828
    %v4911 = vunpack.c.h.b16 %v4828
    %v4912 = vunpack.c.l.b16 %v4829
    %v4913 = vunpack.c.h.b16 %v4829
    %v4914 = vunpack.c.l.b16 %v4830
    %v4915 = vunpack.c.h.b16 %v4830
    %v4916 = vunpack.c.l.b16 %v4831
    %v4917 = vunpack.c.h.b16 %v4831
    %v4918 = vunpack.c.l.b16 %v4832
    %v4919 = vunpack.c.h.b16 %v4832
    %v4920 = vunpack.c.l.b16 %v4833
    %v4921 = vunpack.c.h.b16 %v4833
    %v4922 = vunpack.c.l.b16 %v4834
    %v4923 = vunpack.c.h.b16 %v4834
    %v4924 = vunpack.c.l.b16 %v4835
    %v4925 = vunpack.c.h.b16 %v4835
    %v4926 = vunpack.c.l.b16 %v4836
    %v4927 = vunpack.c.h.b16 %v4836
    %v4928 = vunpack.c.l.b16 %v4837
    %v4929 = vunpack.c.h.b16 %v4837
    %v4930 = vunpack.c.l.b16 %v4838
    %v4931 = vunpack.c.h.b16 %v4838
    %v4932 = vunpack.c.l.b16 %v4839
    %v4933 = vunpack.c.h.b16 %v4839
    %v4934 = vunpack.c.l.b16 %v4840
    %v4935 = vunpack.c.h.b16 %v4840
    %v4936 = vunpack.c.l.b16 %v4841
    %v4937 = vunpack.c.h.b16 %v4841
    %v4938 = vpack.c.b16 %v4878, %v4874
    %v4939 = vpack.c.b16 %v4879, %v4875
    %v4940 = vpack.c.b16 %v4880, %v4876
    %v4941 = vpack.c.b16 %v4881, %v4877
    %v4942 = vpack.c.b16 %v4886, %v4882
    %v4943 = vpack.c.b16 %v4887, %v4883
    %v4944 = vpack.c.b16 %v4888, %v4884
    %v4945 = vpack.c.b16 %v4889, %v4885
    %v4946 = vpack.c.b16 %v4894, %v4890
    %v4947 = vpack.c.b16 %v4895, %v4891
    %v4948 = vpack.c.b16 %v4896, %v4892
    %v4949 = vpack.c.b16 %v4897, %v4893
    %v4950 = vpack.c.b16 %v4902, %v4898
    %v4951 = vpack.c.b16 %v4903, %v4899
    %v4952 = vpack.c.b16 %v4904, %v4900
    %v4953 = vpack.c.b16 %v4905, %v4901
    %v4954 = vpack.c.b16 %v4910, %v4906
    %v4955 = vpack.c.b16 %v4911, %v4907
    %v4956 = vpack.c.b16 %v4912, %v4908
    %v4957 = vpack.c.b16 %v4913, %v4909
    %v4958 = vpack.c.b16 %v4918, %v4914
    %v4959 = vpack.c.b16 %v4919, %v4915
    %v4960 = vpack.c.b16 %v4920, %v4916
    %v4961 = vpack.c.b16 %v4921, %v4917
    %v4962 = vpack.c.b16 %v4926, %v4922
    %v4963 = vpack.c.b16 %v4927, %v4923
    %v4964 = vpack.c.b16 %v4928, %v4924
    %v4965 = vpack.c.b16 %v4929, %v4925
    %v4966 = vpack.c.b16 %v4934, %v4930
    %v4967 = vpack.c.b16 %v4935, %v4931
    %v4968 = vpack.c.b16 %v4936, %v4932
    %v4969 = vpack.c.b16 %v4937, %v4933
    %5002 = vmatprep.subr.bf16.mxu0 %v4967
    %5003 = vmatpush1.bf16.msra.mxu0 %v4966
    %5004 = vmatprep.subr.bf16.mxu0 %v4963
    %5005 = vmatpush1.bf16.msra.mxu0 %v4962
    %5006 = vmatprep.subr.bf16.mxu0 %v4959
    %5007 = vmatpush1.bf16.msra.mxu0 %v4958
    %5008 = vmatprep.subr.bf16.mxu0 %v4955
    %5009 = vmatpush1.bf16.msra.mxu0 %v4954
    %5010 = vmatprep.subr.bf16.mxu0 %v4951
    %5011 = vmatpush1.bf16.msra.mxu0 %v4950
    %5012 = vmatprep.subr.bf16.mxu0 %v4947
    %5013 = vmatpush1.bf16.msra.mxu0 %v4946
    %5014 = vmatprep.subr.bf16.mxu0 %v4943
    %5015 = vmatpush1.bf16.msra.mxu0 %v4942
    %5016 = vmatprep.subr.bf16.mxu0 %v4939
    %5017 = vmatpush1.bf16.msra.mxu0 %v4938
    %5018 = vmatprep.subr.bf16.mxu0 0
    %5019 = vmatpush2.bf16.msra.mxu0 0
    %5020 = vmatprep.subr.bf16.mxu0 0
    %5021 = vmatpush2.bf16.msra.mxu0 0
    %5022 = vmatprep.subr.bf16.mxu0 0
    %5023 = vmatpush2.bf16.msra.mxu0 0
    %5024 = vmatprep.subr.bf16.mxu0 0
    %5025 = vmatpush2.bf16.msra.mxu0 0
    %5026 = vmatprep.subr.bf16.mxu0 0
    %5027 = vmatpush2.bf16.msra.mxu0 0
    %5028 = vmatprep.subr.bf16.mxu0 0
    %5029 = vmatpush2.bf16.msra.mxu0 0
    %5030 = vmatprep.subr.bf16.mxu0 0
    %5031 = vmatpush2.bf16.msra.mxu0 0
    %5032 = vmatprep.subr.bf16.mxu0 0
    %5033 = vmatpush2.bf16.msra.mxu0 0
    %5034 = vmatprep.mubr.bf16.mxu0 0
    %5035 = vmatmul.mubr.bf16.gmra.mxu0 %v4809
    %v5036 = vpop.f32.mrf.mxu0
    %v5037 = vadd.f32 0.0, %v5036
    %v5038 = vpop.f32.mrf.mxu0
    %v5039 = vadd.f32 0.0, %v5038
    %v5040 = vpop.f32.mrf.mxu0
    %v5041 = vadd.f32 0.0, %v5040
    %v5042 = vpop.f32.mrf.mxu0
    %v5043 = vadd.f32 0.0, %v5042
    %5044 = vdwg.mxu0
    %5045 = vmatprep.subr.bf16.mxu0 %v4969
    %5046 = vmatpush1.bf16.msra.mxu0 %v4968
    %5047 = vmatprep.subr.bf16.mxu0 %v4965
    %5048 = vmatpush1.bf16.msra.mxu0 %v4964
    %5049 = vmatprep.subr.bf16.mxu0 %v4961
    %5050 = vmatpush1.bf16.msra.mxu0 %v4960
    %5051 = vmatprep.subr.bf16.mxu0 %v4957
    %5052 = vmatpush1.bf16.msra.mxu0 %v4956
    %5053 = vmatprep.subr.bf16.mxu0 %v4953
    %5054 = vmatpush1.bf16.msra.mxu0 %v4952
    %5055 = vmatprep.subr.bf16.mxu0 %v4949
    %5056 = vmatpush1.bf16.msra.mxu0 %v4948
    %5057 = vmatprep.subr.bf16.mxu0 %v4945
    %5058 = vmatpush1.bf16.msra.mxu0 %v4944
    %5059 = vmatprep.subr.bf16.mxu0 %v4941
    %5060 = vmatpush1.bf16.msra.mxu0 %v4940
    %5061 = vmatprep.subr.bf16.mxu0 0
    %5062 = vmatpush2.bf16.msra.mxu0 0
    %5063 = vmatprep.subr.bf16.mxu0 0
    %5064 = vmatpush2.bf16.msra.mxu0 0
    %5065 = vmatprep.subr.bf16.mxu0 0
    %5066 = vmatpush2.bf16.msra.mxu0 0
    %5067 = vmatprep.subr.bf16.mxu0 0
    %5068 = vmatpush2.bf16.msra.mxu0 0
    %5069 = vmatprep.subr.bf16.mxu0 0
    %5070 = vmatpush2.bf16.msra.mxu0 0
    %5071 = vmatprep.subr.bf16.mxu0 0
    %5072 = vmatpush2.bf16.msra.mxu0 0
    %5073 = vmatprep.subr.bf16.mxu0 0
    %5074 = vmatpush2.bf16.msra.mxu0 0
    %5075 = vmatprep.subr.bf16.mxu0 0
    %5076 = vmatpush2.bf16.msra.mxu0 0
    %5077 = vmatprep.mubr.bf16.mxu0 0
    %5078 = vmatmul.mubr.bf16.gmra.mxu0 %v4809
    %v5079 = vpop.f32.mrf.mxu0
    %v5080 = vadd.f32 0.0, %v5079
    %v5081 = vpop.f32.mrf.mxu0
    %v5082 = vadd.f32 0.0, %v5081
    %v5083 = vpop.f32.mrf.mxu0
    %v5084 = vadd.f32 0.0, %v5083
    %v5085 = vpop.f32.mrf.mxu0
    %v5086 = vadd.f32 0.0, %v5085
    %5087 = vdwg.mxu0
    %v5088 = vadd.f32 %v4801, %v5037
    %v5089 = vadd.f32 %v4802, %v5039
    %v5090 = vadd.f32 %v4803, %v5080
    %v5091 = vadd.f32 %v4804, %v5082
    %v5092 = vadd.f32 %v4805, %v5041
    %v5093 = vadd.f32 %v4806, %v5043
    %v5094 = vadd.f32 %v4807, %v5084
    %v5095 = vadd.f32 %v4808, %v5086
    %v5096 = vxor.u32 %v5088, 2147483648
    %v5097 = vxor.u32 %v5092, 2147483648
    %v5098 = vmul.f32 %v5096, 1.442695
    %v5099 = vpow.pop %v5098
    %v5100 = vmul.f32 %v5097, 1.442695
    %v5101 = vpow.pop %v5100
    %v5102 = vadd.f32 %v5099, 1.0
    %v5103 = vadd.f32 %v5101, 1.0
    %v5104 = vrcp.pop %v5102
    %v5105 = vmul.f32 1.0, %v5104
    %v5106 = vrcp.pop %v5103
    %v5107 = vmul.f32 1.0, %v5106
    %v5108 = vxor.u32 %v5089, 2147483648
    %v5109 = vxor.u32 %v5093, 2147483648
    %v5110 = vmul.f32 %v5108, 1.442695
    %v5111 = vpow.pop %v5110
    %v5112 = vmul.f32 %v5109, 1.442695
    %v5113 = vpow.pop %v5112
    %v5114 = vadd.f32 %v5111, 1.0
    %v5115 = vadd.f32 %v5113, 1.0
    %v5116 = vrcp.pop %v5114
    %v5117 = vmul.f32 1.0, %v5116
    %v5118 = vrcp.pop %v5115
    %v5119 = vmul.f32 1.0, %v5118
    %v5120 = vtanh.pop %v5090
    %v5121 = vtanh.pop %v5094
    %v5122 = vxor.u32 %v5091, 2147483648
    %v5123 = vxor.u32 %v5095, 2147483648
    %v5124 = vmul.f32 %v5122, 1.442695
    %v5125 = vpow.pop %v5124
    %v5126 = vmul.f32 %v5123, 1.442695
    %v5127 = vpow.pop %v5126
    %v5128 = vadd.f32 %v5125, 1.0
    %v5129 = vadd.f32 %v5127, 1.0
    %v5130 = vrcp.pop %v5128
    %v5131 = vmul.f32 1.0, %v5130
    %v5132 = vrcp.pop %v5129
    %v5133 = vmul.f32 1.0, %v5132
    %v5134 = vld [vmem:[#allocation5] sm:$0xff]
    %v5135 = vld [vmem:[#allocation5 + $0x8] sm:$0xff]
    %v5136 = vmul.f32 %v5117, %v5134
    %v5137 = vmul.f32 %v5119, %v5135
    %v5138 = vmul.f32 %v5105, %v5120
    %v5139 = vmul.f32 %v5107, %v5121
    %v5140 = vadd.f32 %v5136, %v5138
    %v5141 = vadd.f32 %v5137, %v5139
    %v5142 = vtanh.pop %v5140
    %v5143 = vtanh.pop %v5141
    %v5144 = vmul.f32 %v5131, %v5142
    %v5145 = vmul.f32 %v5133, %v5143
    %5146 = vst [vmem:[#allocation5] sm:$0xff] %v5140
    %5147 = vst [vmem:[#allocation5 + $0x8] sm:$0xff] %v5141
    %5148 = vst [vmem:[#allocation4] sm:$0xff] %v5144
    %5149 = vst [vmem:[#allocation4 + $0x8] sm:$0xff] %v5145
    %v5150 = vld [vmem:[#allocation4] sm:$0xff]
    %v5151 = vld [vmem:[#allocation4 + $0x8] sm:$0xff]
    %v5152 = vld [vmem:[%s1704] sm:$0xff]
    %v5153 = vld [vmem:[%s1704 + $0x8] sm:$0xff]
    %v5154 = vld [vmem:[%s1704 + $0x10] sm:$0xff]
    %v5155 = vld [vmem:[%s1704 + $0x18] sm:$0xff]
    %v5156 = vld [vmem:[%s1704 + $0x20] sm:$0xff]
    %v5157 = vld [vmem:[%s1704 + $0x28] sm:$0xff]
    %v5158 = vld [vmem:[%s1704 + $0x30] sm:$0xff]
    %v5159 = vld [vmem:[%s1704 + $0x38] sm:$0xff]
    %v5160 = vpack.c.bf16 %v5151, %v5150
    %v5161 = vld [vmem:[%s5] sm:$0xff]
    %v5162 = vld [vmem:[%s5 + $0x8] sm:$0xff]
    %v5163 = vld [vmem:[%s5 + $0x10] sm:$0xff]
    %v5164 = vld [vmem:[%s5 + $0x18] sm:$0xff]
    %v5165 = vld [vmem:[%s5 + $0x20] sm:$0xff]
    %v5166 = vld [vmem:[%s5 + $0x28] sm:$0xff]
    %v5167 = vld [vmem:[%s5 + $0x30] sm:$0xff]
    %v5168 = vld [vmem:[%s5 + $0x38] sm:$0xff]
    %v5169 = vld [vmem:[%s5 + $0x40] sm:$0xff]
    %v5170 = vld [vmem:[%s5 + $0x48] sm:$0xff]
    %v5171 = vld [vmem:[%s5 + $0x50] sm:$0xff]
    %v5172 = vld [vmem:[%s5 + $0x58] sm:$0xff]
    %v5173 = vld [vmem:[%s5 + $0x60] sm:$0xff]
    %v5174 = vld [vmem:[%s5 + $0x68] sm:$0xff]
    %v5175 = vld [vmem:[%s5 + $0x70] sm:$0xff]
    %v5176 = vld [vmem:[%s5 + $0x78] sm:$0xff]
    %v5177 = vld [vmem:[%s5 + $0x80] sm:$0xff]
    %v5178 = vld [vmem:[%s5 + $0x88] sm:$0xff]
    %v5179 = vld [vmem:[%s5 + $0x90] sm:$0xff]
    %v5180 = vld [vmem:[%s5 + $0x98] sm:$0xff]
    %v5181 = vld [vmem:[%s5 + $0xa0] sm:$0xff]
    %v5182 = vld [vmem:[%s5 + $0xa8] sm:$0xff]
    %v5183 = vld [vmem:[%s5 + $0xb0] sm:$0xff]
    %v5184 = vld [vmem:[%s5 + $0xb8] sm:$0xff]
    %v5185 = vld [vmem:[%s5 + $0xc0] sm:$0xff]
    %v5186 = vld [vmem:[%s5 + $0xc8] sm:$0xff]
    %v5187 = vld [vmem:[%s5 + $0xd0] sm:$0xff]
    %v5188 = vld [vmem:[%s5 + $0xd8] sm:$0xff]
    %v5189 = vld [vmem:[%s5 + $0xe0] sm:$0xff]
    %v5190 = vld [vmem:[%s5 + $0xe8] sm:$0xff]
    %v5191 = vld [vmem:[%s5 + $0xf0] sm:$0xff]
    %v5192 = vld [vmem:[%s5 + $0xf8] sm:$0xff]
    %v5225 = vunpack.c.l.b16 %v5161
    %v5226 = vunpack.c.h.b16 %v5161
    %v5227 = vunpack.c.l.b16 %v5162
    %v5228 = vunpack.c.h.b16 %v5162
    %v5229 = vunpack.c.l.b16 %v5163
    %v5230 = vunpack.c.h.b16 %v5163
    %v5231 = vunpack.c.l.b16 %v5164
    %v5232 = vunpack.c.h.b16 %v5164
    %v5233 = vunpack.c.l.b16 %v5165
    %v5234 = vunpack.c.h.b16 %v5165
    %v5235 = vunpack.c.l.b16 %v5166
    %v5236 = vunpack.c.h.b16 %v5166
    %v5237 = vunpack.c.l.b16 %v5167
    %v5238 = vunpack.c.h.b16 %v5167
    %v5239 = vunpack.c.l.b16 %v5168
    %v5240 = vunpack.c.h.b16 %v5168
    %v5241 = vunpack.c.l.b16 %v5169
    %v5242 = vunpack.c.h.b16 %v5169
    %v5243 = vunpack.c.l.b16 %v5170
    %v5244 = vunpack.c.h.b16 %v5170
    %v5245 = vunpack.c.l.b16 %v5171
    %v5246 = vunpack.c.h.b16 %v5171
    %v5247 = vunpack.c.l.b16 %v5172
    %v5248 = vunpack.c.h.b16 %v5172
    %v5249 = vunpack.c.l.b16 %v5173
    %v5250 = vunpack.c.h.b16 %v5173
    %v5251 = vunpack.c.l.b16 %v5174
    %v5252 = vunpack.c.h.b16 %v5174
    %v5253 = vunpack.c.l.b16 %v5175
    %v5254 = vunpack.c.h.b16 %v5175
    %v5255 = vunpack.c.l.b16 %v5176
    %v5256 = vunpack.c.h.b16 %v5176
    %v5257 = vunpack.c.l.b16 %v5177
    %v5258 = vunpack.c.h.b16 %v5177
    %v5259 = vunpack.c.l.b16 %v5178
    %v5260 = vunpack.c.h.b16 %v5178
    %v5261 = vunpack.c.l.b16 %v5179
    %v5262 = vunpack.c.h.b16 %v5179
    %v5263 = vunpack.c.l.b16 %v5180
    %v5264 = vunpack.c.h.b16 %v5180
    %v5265 = vunpack.c.l.b16 %v5181
    %v5266 = vunpack.c.h.b16 %v5181
    %v5267 = vunpack.c.l.b16 %v5182
    %v5268 = vunpack.c.h.b16 %v5182
    %v5269 = vunpack.c.l.b16 %v5183
    %v5270 = vunpack.c.h.b16 %v5183
    %v5271 = vunpack.c.l.b16 %v5184
    %v5272 = vunpack.c.h.b16 %v5184
    %v5273 = vunpack.c.l.b16 %v5185
    %v5274 = vunpack.c.h.b16 %v5185
    %v5275 = vunpack.c.l.b16 %v5186
    %v5276 = vunpack.c.h.b16 %v5186
    %v5277 = vunpack.c.l.b16 %v5187
    %v5278 = vunpack.c.h.b16 %v5187
    %v5279 = vunpack.c.l.b16 %v5188
    %v5280 = vunpack.c.h.b16 %v5188
    %v5281 = vunpack.c.l.b16 %v5189
    %v5282 = vunpack.c.h.b16 %v5189
    %v5283 = vunpack.c.l.b16 %v5190
    %v5284 = vunpack.c.h.b16 %v5190
    %v5285 = vunpack.c.l.b16 %v5191
    %v5286 = vunpack.c.h.b16 %v5191
    %v5287 = vunpack.c.l.b16 %v5192
    %v5288 = vunpack.c.h.b16 %v5192
    %v5289 = vpack.c.b16 %v5229, %v5225
    %v5290 = vpack.c.b16 %v5230, %v5226
    %v5291 = vpack.c.b16 %v5231, %v5227
    %v5292 = vpack.c.b16 %v5232, %v5228
    %v5293 = vpack.c.b16 %v5237, %v5233
    %v5294 = vpack.c.b16 %v5238, %v5234
    %v5295 = vpack.c.b16 %v5239, %v5235
    %v5296 = vpack.c.b16 %v5240, %v5236
    %v5297 = vpack.c.b16 %v5245, %v5241
    %v5298 = vpack.c.b16 %v5246, %v5242
    %v5299 = vpack.c.b16 %v5247, %v5243
    %v5300 = vpack.c.b16 %v5248, %v5244
    %v5301 = vpack.c.b16 %v5253, %v5249
    %v5302 = vpack.c.b16 %v5254, %v5250
    %v5303 = vpack.c.b16 %v5255, %v5251
    %v5304 = vpack.c.b16 %v5256, %v5252
    %v5305 = vpack.c.b16 %v5261, %v5257
    %v5306 = vpack.c.b16 %v5262, %v5258
    %v5307 = vpack.c.b16 %v5263, %v5259
    %v5308 = vpack.c.b16 %v5264, %v5260
    %v5309 = vpack.c.b16 %v5269, %v5265
    %v5310 = vpack.c.b16 %v5270, %v5266
    %v5311 = vpack.c.b16 %v5271, %v5267
    %v5312 = vpack.c.b16 %v5272, %v5268
    %v5313 = vpack.c.b16 %v5277, %v5273
    %v5314 = vpack.c.b16 %v5278, %v5274
    %v5315 = vpack.c.b16 %v5279, %v5275
    %v5316 = vpack.c.b16 %v5280, %v5276
    %v5317 = vpack.c.b16 %v5285, %v5281
    %v5318 = vpack.c.b16 %v5286, %v5282
    %v5319 = vpack.c.b16 %v5287, %v5283
    %v5320 = vpack.c.b16 %v5288, %v5284
    %5353 = vmatprep.subr.bf16.mxu0 %v5318
    %5354 = vmatpush1.bf16.msra.mxu0 %v5317
    %5355 = vmatprep.subr.bf16.mxu0 %v5314
    %5356 = vmatpush1.bf16.msra.mxu0 %v5313
    %5357 = vmatprep.subr.bf16.mxu0 %v5310
    %5358 = vmatpush1.bf16.msra.mxu0 %v5309
    %5359 = vmatprep.subr.bf16.mxu0 %v5306
    %5360 = vmatpush1.bf16.msra.mxu0 %v5305
    %5361 = vmatprep.subr.bf16.mxu0 %v5302
    %5362 = vmatpush1.bf16.msra.mxu0 %v5301
    %5363 = vmatprep.subr.bf16.mxu0 %v5298
    %5364 = vmatpush1.bf16.msra.mxu0 %v5297
    %5365 = vmatprep.subr.bf16.mxu0 %v5294
    %5366 = vmatpush1.bf16.msra.mxu0 %v5293
    %5367 = vmatprep.subr.bf16.mxu0 %v5290
    %5368 = vmatpush1.bf16.msra.mxu0 %v5289
    %5369 = vmatprep.subr.bf16.mxu0 0
    %5370 = vmatpush2.bf16.msra.mxu0 0
    %5371 = vmatprep.subr.bf16.mxu0 0
    %5372 = vmatpush2.bf16.msra.mxu0 0
    %5373 = vmatprep.subr.bf16.mxu0 0
    %5374 = vmatpush2.bf16.msra.mxu0 0
    %5375 = vmatprep.subr.bf16.mxu0 0
    %5376 = vmatpush2.bf16.msra.mxu0 0
    %5377 = vmatprep.subr.bf16.mxu0 0
    %5378 = vmatpush2.bf16.msra.mxu0 0
    %5379 = vmatprep.subr.bf16.mxu0 0
    %5380 = vmatpush2.bf16.msra.mxu0 0
    %5381 = vmatprep.subr.bf16.mxu0 0
    %5382 = vmatpush2.bf16.msra.mxu0 0
    %5383 = vmatprep.subr.bf16.mxu0 0
    %5384 = vmatpush2.bf16.msra.mxu0 0
    %5385 = vmatprep.mubr.bf16.mxu0 0
    %5386 = vmatmul.mubr.bf16.gmra.mxu0 %v5160
    %v5387 = vpop.f32.mrf.mxu0
    %v5388 = vadd.f32 0.0, %v5387
    %v5389 = vpop.f32.mrf.mxu0
    %v5390 = vadd.f32 0.0, %v5389
    %v5391 = vpop.f32.mrf.mxu0
    %v5392 = vadd.f32 0.0, %v5391
    %v5393 = vpop.f32.mrf.mxu0
    %v5394 = vadd.f32 0.0, %v5393
    %5395 = vdwg.mxu0
    %5396 = vmatprep.subr.bf16.mxu0 %v5320
    %5397 = vmatpush1.bf16.msra.mxu0 %v5319
    %5398 = vmatprep.subr.bf16.mxu0 %v5316
    %5399 = vmatpush1.bf16.msra.mxu0 %v5315
    %5400 = vmatprep.subr.bf16.mxu0 %v5312
    %5401 = vmatpush1.bf16.msra.mxu0 %v5311
    %5402 = vmatprep.subr.bf16.mxu0 %v5308
    %5403 = vmatpush1.bf16.msra.mxu0 %v5307
    %5404 = vmatprep.subr.bf16.mxu0 %v5304
    %5405 = vmatpush1.bf16.msra.mxu0 %v5303
    %5406 = vmatprep.subr.bf16.mxu0 %v5300
    %5407 = vmatpush1.bf16.msra.mxu0 %v5299
    %5408 = vmatprep.subr.bf16.mxu0 %v5296
    %5409 = vmatpush1.bf16.msra.mxu0 %v5295
    %5410 = vmatprep.subr.bf16.mxu0 %v5292
    %5411 = vmatpush1.bf16.msra.mxu0 %v5291
    %5412 = vmatprep.subr.bf16.mxu0 0
    %5413 = vmatpush2.bf16.msra.mxu0 0
    %5414 = vmatprep.subr.bf16.mxu0 0
    %5415 = vmatpush2.bf16.msra.mxu0 0
    %5416 = vmatprep.subr.bf16.mxu0 0
    %5417 = vmatpush2.bf16.msra.mxu0 0
    %5418 = vmatprep.subr.bf16.mxu0 0
    %5419 = vmatpush2.bf16.msra.mxu0 0
    %5420 = vmatprep.subr.bf16.mxu0 0
    %5421 = vmatpush2.bf16.msra.mxu0 0
    %5422 = vmatprep.subr.bf16.mxu0 0
    %5423 = vmatpush2.bf16.msra.mxu0 0
    %5424 = vmatprep.subr.bf16.mxu0 0
    %5425 = vmatpush2.bf16.msra.mxu0 0
    %5426 = vmatprep.subr.bf16.mxu0 0
    %5427 = vmatpush2.bf16.msra.mxu0 0
    %5428 = vmatprep.mubr.bf16.mxu0 0
    %5429 = vmatmul.mubr.bf16.gmra.mxu0 %v5160
    %v5430 = vpop.f32.mrf.mxu0
    %v5431 = vadd.f32 0.0, %v5430
    %v5432 = vpop.f32.mrf.mxu0
    %v5433 = vadd.f32 0.0, %v5432
    %v5434 = vpop.f32.mrf.mxu0
    %v5435 = vadd.f32 0.0, %v5434
    %v5436 = vpop.f32.mrf.mxu0
    %v5437 = vadd.f32 0.0, %v5436
    %5438 = vdwg.mxu0
    %v5439 = vadd.f32 %v5152, %v5388
    %v5440 = vadd.f32 %v5153, %v5390
    %v5441 = vadd.f32 %v5154, %v5431
    %v5442 = vadd.f32 %v5155, %v5433
    %v5443 = vadd.f32 %v5156, %v5392
    %v5444 = vadd.f32 %v5157, %v5394
    %v5445 = vadd.f32 %v5158, %v5435
    %v5446 = vadd.f32 %v5159, %v5437
    %v5447 = vxor.u32 %v5439, 2147483648
    %v5448 = vxor.u32 %v5443, 2147483648
    %v5449 = vmul.f32 %v5447, 1.442695
    %v5450 = vpow.pop %v5449
    %v5451 = vmul.f32 %v5448, 1.442695
    %v5452 = vpow.pop %v5451
    %v5453 = vadd.f32 %v5450, 1.0
    %v5454 = vadd.f32 %v5452, 1.0
    %v5455 = vrcp.pop %v5453
    %v5456 = vmul.f32 1.0, %v5455
    %v5457 = vrcp.pop %v5454
    %v5458 = vmul.f32 1.0, %v5457
    %v5459 = vxor.u32 %v5440, 2147483648
    %v5460 = vxor.u32 %v5444, 2147483648
    %v5461 = vmul.f32 %v5459, 1.442695
    %v5462 = vpow.pop %v5461
    %v5463 = vmul.f32 %v5460, 1.442695
    %v5464 = vpow.pop %v5463
    %v5465 = vadd.f32 %v5462, 1.0
    %v5466 = vadd.f32 %v5464, 1.0
    %v5467 = vrcp.pop %v5465
    %v5468 = vmul.f32 1.0, %v5467
    %v5469 = vrcp.pop %v5466
    %v5470 = vmul.f32 1.0, %v5469
    %v5471 = vtanh.pop %v5441
    %v5472 = vtanh.pop %v5445
    %v5473 = vxor.u32 %v5442, 2147483648
    %v5474 = vxor.u32 %v5446, 2147483648
    %v5475 = vmul.f32 %v5473, 1.442695
    %v5476 = vpow.pop %v5475
    %v5477 = vmul.f32 %v5474, 1.442695
    %v5478 = vpow.pop %v5477
    %v5479 = vadd.f32 %v5476, 1.0
    %v5480 = vadd.f32 %v5478, 1.0
    %v5481 = vrcp.pop %v5479
    %v5482 = vmul.f32 1.0, %v5481
    %v5483 = vrcp.pop %v5480
    %v5484 = vmul.f32 1.0, %v5483
    %v5485 = vld [vmem:[#allocation5] sm:$0xff]
    %v5486 = vld [vmem:[#allocation5 + $0x8] sm:$0xff]
    %v5487 = vmul.f32 %v5468, %v5485
    %v5488 = vmul.f32 %v5470, %v5486
    %v5489 = vmul.f32 %v5456, %v5471
    %v5490 = vmul.f32 %v5458, %v5472
    %v5491 = vadd.f32 %v5487, %v5489
    %v5492 = vadd.f32 %v5488, %v5490
    %v5493 = vtanh.pop %v5491
    %v5494 = vtanh.pop %v5492
    %v5495 = vmul.f32 %v5482, %v5493
    %v5496 = vmul.f32 %v5484, %v5494
    %5497 = vst [vmem:[#allocation5] sm:$0xff] %v5491
    %5498 = vst [vmem:[#allocation5 + $0x8] sm:$0xff] %v5492
    %5499 = vst [vmem:[#allocation4] sm:$0xff] %v5495
    %5500 = vst [vmem:[#allocation4 + $0x8] sm:$0xff] %v5496
    %v5501 = vld [vmem:[#allocation4] sm:$0xff]
    %v5502 = vld [vmem:[#allocation4 + $0x8] sm:$0xff]
    %v5503 = vld [vmem:[%s2069] sm:$0xff]
    %v5504 = vld [vmem:[%s2069 + $0x8] sm:$0xff]
    %v5505 = vld [vmem:[%s2069 + $0x10] sm:$0xff]
    %v5506 = vld [vmem:[%s2069 + $0x18] sm:$0xff]
    %v5507 = vld [vmem:[%s2069 + $0x20] sm:$0xff]
    %v5508 = vld [vmem:[%s2069 + $0x28] sm:$0xff]
    %v5509 = vld [vmem:[%s2069 + $0x30] sm:$0xff]
    %v5510 = vld [vmem:[%s2069 + $0x38] sm:$0xff]
    %v5511 = vpack.c.bf16 %v5502, %v5501
    %v5512 = vld [vmem:[%s5] sm:$0xff]
    %v5513 = vld [vmem:[%s5 + $0x8] sm:$0xff]
    %v5514 = vld [vmem:[%s5 + $0x10] sm:$0xff]
    %v5515 = vld [vmem:[%s5 + $0x18] sm:$0xff]
    %v5516 = vld [vmem:[%s5 + $0x20] sm:$0xff]
    %v5517 = vld [vmem:[%s5 + $0x28] sm:$0xff]
    %v5518 = vld [vmem:[%s5 + $0x30] sm:$0xff]
    %v5519 = vld [vmem:[%s5 + $0x38] sm:$0xff]
    %v5520 = vld [vmem:[%s5 + $0x40] sm:$0xff]
    %v5521 = vld [vmem:[%s5 + $0x48] sm:$0xff]
    %v5522 = vld [vmem:[%s5 + $0x50] sm:$0xff]
    %v5523 = vld [vmem:[%s5 + $0x58] sm:$0xff]
    %v5524 = vld [vmem:[%s5 + $0x60] sm:$0xff]
    %v5525 = vld [vmem:[%s5 + $0x68] sm:$0xff]
    %v5526 = vld [vmem:[%s5 + $0x70] sm:$0xff]
    %v5527 = vld [vmem:[%s5 + $0x78] sm:$0xff]
    %v5528 = vld [vmem:[%s5 + $0x80] sm:$0xff]
    %v5529 = vld [vmem:[%s5 + $0x88] sm:$0xff]
    %v5530 = vld [vmem:[%s5 + $0x90] sm:$0xff]
    %v5531 = vld [vmem:[%s5 + $0x98] sm:$0xff]
    %v5532 = vld [vmem:[%s5 + $0xa0] sm:$0xff]
    %v5533 = vld [vmem:[%s5 + $0xa8] sm:$0xff]
    %v5534 = vld [vmem:[%s5 + $0xb0] sm:$0xff]
    %v5535 = vld [vmem:[%s5 + $0xb8] sm:$0xff]
    %v5536 = vld [vmem:[%s5 + $0xc0] sm:$0xff]
    %v5537 = vld [vmem:[%s5 + $0xc8] sm:$0xff]
    %v5538 = vld [vmem:[%s5 + $0xd0] sm:$0xff]
    %v5539 = vld [vmem:[%s5 + $0xd8] sm:$0xff]
    %v5540 = vld [vmem:[%s5 + $0xe0] sm:$0xff]
    %v5541 = vld [vmem:[%s5 + $0xe8] sm:$0xff]
    %v5542 = vld [vmem:[%s5 + $0xf0] sm:$0xff]
    %v5543 = vld [vmem:[%s5 + $0xf8] sm:$0xff]
    %v5576 = vunpack.c.l.b16 %v5512
    %v5577 = vunpack.c.h.b16 %v5512
    %v5578 = vunpack.c.l.b16 %v5513
    %v5579 = vunpack.c.h.b16 %v5513
    %v5580 = vunpack.c.l.b16 %v5514
    %v5581 = vunpack.c.h.b16 %v5514
    %v5582 = vunpack.c.l.b16 %v5515
    %v5583 = vunpack.c.h.b16 %v5515
    %v5584 = vunpack.c.l.b16 %v5516
    %v5585 = vunpack.c.h.b16 %v5516
    %v5586 = vunpack.c.l.b16 %v5517
    %v5587 = vunpack.c.h.b16 %v5517
    %v5588 = vunpack.c.l.b16 %v5518
    %v5589 = vunpack.c.h.b16 %v5518
    %v5590 = vunpack.c.l.b16 %v5519
    %v5591 = vunpack.c.h.b16 %v5519
    %v5592 = vunpack.c.l.b16 %v5520
    %v5593 = vunpack.c.h.b16 %v5520
    %v5594 = vunpack.c.l.b16 %v5521
    %v5595 = vunpack.c.h.b16 %v5521
    %v5596 = vunpack.c.l.b16 %v5522
    %v5597 = vunpack.c.h.b16 %v5522
    %v5598 = vunpack.c.l.b16 %v5523
    %v5599 = vunpack.c.h.b16 %v5523
    %v5600 = vunpack.c.l.b16 %v5524
    %v5601 = vunpack.c.h.b16 %v5524
    %v5602 = vunpack.c.l.b16 %v5525
    %v5603 = vunpack.c.h.b16 %v5525
    %v5604 = vunpack.c.l.b16 %v5526
    %v5605 = vunpack.c.h.b16 %v5526
    %v5606 = vunpack.c.l.b16 %v5527
    %v5607 = vunpack.c.h.b16 %v5527
    %v5608 = vunpack.c.l.b16 %v5528
    %v5609 = vunpack.c.h.b16 %v5528
    %v5610 = vunpack.c.l.b16 %v5529
    %v5611 = vunpack.c.h.b16 %v5529
    %v5612 = vunpack.c.l.b16 %v5530
    %v5613 = vunpack.c.h.b16 %v5530
    %v5614 = vunpack.c.l.b16 %v5531
    %v5615 = vunpack.c.h.b16 %v5531
    %v5616 = vunpack.c.l.b16 %v5532
    %v5617 = vunpack.c.h.b16 %v5532
    %v5618 = vunpack.c.l.b16 %v5533
    %v5619 = vunpack.c.h.b16 %v5533
    %v5620 = vunpack.c.l.b16 %v5534
    %v5621 = vunpack.c.h.b16 %v5534
    %v5622 = vunpack.c.l.b16 %v5535
    %v5623 = vunpack.c.h.b16 %v5535
    %v5624 = vunpack.c.l.b16 %v5536
    %v5625 = vunpack.c.h.b16 %v5536
    %v5626 = vunpack.c.l.b16 %v5537
    %v5627 = vunpack.c.h.b16 %v5537
    %v5628 = vunpack.c.l.b16 %v5538
    %v5629 = vunpack.c.h.b16 %v5538
    %v5630 = vunpack.c.l.b16 %v5539
    %v5631 = vunpack.c.h.b16 %v5539
    %v5632 = vunpack.c.l.b16 %v5540
    %v5633 = vunpack.c.h.b16 %v5540
    %v5634 = vunpack.c.l.b16 %v5541
    %v5635 = vunpack.c.h.b16 %v5541
    %v5636 = vunpack.c.l.b16 %v5542
    %v5637 = vunpack.c.h.b16 %v5542
    %v5638 = vunpack.c.l.b16 %v5543
    %v5639 = vunpack.c.h.b16 %v5543
    %v5640 = vpack.c.b16 %v5580, %v5576
    %v5641 = vpack.c.b16 %v5581, %v5577
    %v5642 = vpack.c.b16 %v5582, %v5578
    %v5643 = vpack.c.b16 %v5583, %v5579
    %v5644 = vpack.c.b16 %v5588, %v5584
    %v5645 = vpack.c.b16 %v5589, %v5585
    %v5646 = vpack.c.b16 %v5590, %v5586
    %v5647 = vpack.c.b16 %v5591, %v5587
    %v5648 = vpack.c.b16 %v5596, %v5592
    %v5649 = vpack.c.b16 %v5597, %v5593
    %v5650 = vpack.c.b16 %v5598, %v5594
    %v5651 = vpack.c.b16 %v5599, %v5595
    %v5652 = vpack.c.b16 %v5604, %v5600
    %v5653 = vpack.c.b16 %v5605, %v5601
    %v5654 = vpack.c.b16 %v5606, %v5602
    %v5655 = vpack.c.b16 %v5607, %v5603
    %v5656 = vpack.c.b16 %v5612, %v5608
    %v5657 = vpack.c.b16 %v5613, %v5609
    %v5658 = vpack.c.b16 %v5614, %v5610
    %v5659 = vpack.c.b16 %v5615, %v5611
    %v5660 = vpack.c.b16 %v5620, %v5616
    %v5661 = vpack.c.b16 %v5621, %v5617
    %v5662 = vpack.c.b16 %v5622, %v5618
    %v5663 = vpack.c.b16 %v5623, %v5619
    %v5664 = vpack.c.b16 %v5628, %v5624
    %v5665 = vpack.c.b16 %v5629, %v5625
    %v5666 = vpack.c.b16 %v5630, %v5626
    %v5667 = vpack.c.b16 %v5631, %v5627
    %v5668 = vpack.c.b16 %v5636, %v5632
    %v5669 = vpack.c.b16 %v5637, %v5633
    %v5670 = vpack.c.b16 %v5638, %v5634
    %v5671 = vpack.c.b16 %v5639, %v5635
    %5704 = vmatprep.subr.bf16.mxu0 %v5669
    %5705 = vmatpush1.bf16.msra.mxu0 %v5668
    %5706 = vmatprep.subr.bf16.mxu0 %v5665
    %5707 = vmatpush1.bf16.msra.mxu0 %v5664
    %5708 = vmatprep.subr.bf16.mxu0 %v5661
    %5709 = vmatpush1.bf16.msra.mxu0 %v5660
    %5710 = vmatprep.subr.bf16.mxu0 %v5657
    %5711 = vmatpush1.bf16.msra.mxu0 %v5656
    %5712 = vmatprep.subr.bf16.mxu0 %v5653
    %5713 = vmatpush1.bf16.msra.mxu0 %v5652
    %5714 = vmatprep.subr.bf16.mxu0 %v5649
    %5715 = vmatpush1.bf16.msra.mxu0 %v5648
    %5716 = vmatprep.subr.bf16.mxu0 %v5645
    %5717 = vmatpush1.bf16.msra.mxu0 %v5644
    %5718 = vmatprep.subr.bf16.mxu0 %v5641
    %5719 = vmatpush1.bf16.msra.mxu0 %v5640
    %5720 = vmatprep.subr.bf16.mxu0 0
    %5721 = vmatpush2.bf16.msra.mxu0 0
    %5722 = vmatprep.subr.bf16.mxu0 0
    %5723 = vmatpush2.bf16.msra.mxu0 0
    %5724 = vmatprep.subr.bf16.mxu0 0
    %5725 = vmatpush2.bf16.msra.mxu0 0
    %5726 = vmatprep.subr.bf16.mxu0 0
    %5727 = vmatpush2.bf16.msra.mxu0 0
    %5728 = vmatprep.subr.bf16.mxu0 0
    %5729 = vmatpush2.bf16.msra.mxu0 0
    %5730 = vmatprep.subr.bf16.mxu0 0
    %5731 = vmatpush2.bf16.msra.mxu0 0
    %5732 = vmatprep.subr.bf16.mxu0 0
    %5733 = vmatpush2.bf16.msra.mxu0 0
    %5734 = vmatprep.subr.bf16.mxu0 0
    %5735 = vmatpush2.bf16.msra.mxu0 0
    %5736 = vmatprep.mubr.bf16.mxu0 0
    %5737 = vmatmul.mubr.bf16.gmra.mxu0 %v5511
    %v5738 = vpop.f32.mrf.mxu0
    %v5739 = vadd.f32 0.0, %v5738
    %v5740 = vpop.f32.mrf.mxu0
    %v5741 = vadd.f32 0.0, %v5740
    %v5742 = vpop.f32.mrf.mxu0
    %v5743 = vadd.f32 0.0, %v5742
    %v5744 = vpop.f32.mrf.mxu0
    %v5745 = vadd.f32 0.0, %v5744
    %5746 = vdwg.mxu0
    %5747 = vmatprep.subr.bf16.mxu0 %v5671
    %5748 = vmatpush1.bf16.msra.mxu0 %v5670
    %5749 = vmatprep.subr.bf16.mxu0 %v5667
    %5750 = vmatpush1.bf16.msra.mxu0 %v5666
    %5751 = vmatprep.subr.bf16.mxu0 %v5663
    %5752 = vmatpush1.bf16.msra.mxu0 %v5662
    %5753 = vmatprep.subr.bf16.mxu0 %v5659
    %5754 = vmatpush1.bf16.msra.mxu0 %v5658
    %5755 = vmatprep.subr.bf16.mxu0 %v5655
    %5756 = vmatpush1.bf16.msra.mxu0 %v5654
    %5757 = vmatprep.subr.bf16.mxu0 %v5651
    %5758 = vmatpush1.bf16.msra.mxu0 %v5650
    %5759 = vmatprep.subr.bf16.mxu0 %v5647
    %5760 = vmatpush1.bf16.msra.mxu0 %v5646
    %5761 = vmatprep.subr.bf16.mxu0 %v5643
    %5762 = vmatpush1.bf16.msra.mxu0 %v5642
    %5763 = vmatprep.subr.bf16.mxu0 0
    %5764 = vmatpush2.bf16.msra.mxu0 0
    %5765 = vmatprep.subr.bf16.mxu0 0
    %5766 = vmatpush2.bf16.msra.mxu0 0
    %5767 = vmatprep.subr.bf16.mxu0 0
    %5768 = vmatpush2.bf16.msra.mxu0 0
    %5769 = vmatprep.subr.bf16.mxu0 0
    %5770 = vmatpush2.bf16.msra.mxu0 0
    %5771 = vmatprep.subr.bf16.mxu0 0
    %5772 = vmatpush2.bf16.msra.mxu0 0
    %5773 = vmatprep.subr.bf16.mxu0 0
    %5774 = vmatpush2.bf16.msra.mxu0 0
    %5775 = vmatprep.subr.bf16.mxu0 0
    %5776 = vmatpush2.bf16.msra.mxu0 0
    %5777 = vmatprep.subr.bf16.mxu0 0
    %5778 = vmatpush2.bf16.msra.mxu0 0
    %5779 = vmatprep.mubr.bf16.mxu0 0
    %5780 = vmatmul.mubr.bf16.gmra.mxu0 %v5511
    %v5781 = vpop.f32.mrf.mxu0
    %v5782 = vadd.f32 0.0, %v5781
    %v5783 = vpop.f32.mrf.mxu0
    %v5784 = vadd.f32 0.0, %v5783
    %v5785 = vpop.f32.mrf.mxu0
    %v5786 = vadd.f32 0.0, %v5785
    %v5787 = vpop.f32.mrf.mxu0
    %v5788 = vadd.f32 0.0, %v5787
    %5789 = vdwg.mxu0
    %v5790 = vadd.f32 %v5503, %v5739
    %v5791 = vadd.f32 %v5504, %v5741
    %v5792 = vadd.f32 %v5505, %v5782
    %v5793 = vadd.f32 %v5506, %v5784
    %v5794 = vadd.f32 %v5507, %v5743
    %v5795 = vadd.f32 %v5508, %v5745
    %v5796 = vadd.f32 %v5509, %v5786
    %v5797 = vadd.f32 %v5510, %v5788
    %v5798 = vxor.u32 %v5790, 2147483648
    %v5799 = vxor.u32 %v5794, 2147483648
    %v5800 = vmul.f32 %v5798, 1.442695
    %v5801 = vpow.pop %v5800
    %v5802 = vmul.f32 %v5799, 1.442695
    %v5803 = vpow.pop %v5802
    %v5804 = vadd.f32 %v5801, 1.0
    %v5805 = vadd.f32 %v5803, 1.0
    %v5806 = vrcp.pop %v5804
    %v5807 = vmul.f32 1.0, %v5806
    %v5808 = vrcp.pop %v5805
    %v5809 = vmul.f32 1.0, %v5808
    %v5810 = vxor.u32 %v5791, 2147483648
    %v5811 = vxor.u32 %v5795, 2147483648
    %v5812 = vmul.f32 %v5810, 1.442695
    %v5813 = vpow.pop %v5812
    %v5814 = vmul.f32 %v5811, 1.442695
    %v5815 = vpow.pop %v5814
    %v5816 = vadd.f32 %v5813, 1.0
    %v5817 = vadd.f32 %v5815, 1.0
    %v5818 = vrcp.pop %v5816
    %v5819 = vmul.f32 1.0, %v5818
    %v5820 = vrcp.pop %v5817
    %v5821 = vmul.f32 1.0, %v5820
    %v5822 = vtanh.pop %v5792
    %v5823 = vtanh.pop %v5796
    %v5824 = vxor.u32 %v5793, 2147483648
    %v5825 = vxor.u32 %v5797, 2147483648
    %v5826 = vmul.f32 %v5824, 1.442695
    %v5827 = vpow.pop %v5826
    %v5828 = vmul.f32 %v5825, 1.442695
    %v5829 = vpow.pop %v5828
    %v5830 = vadd.f32 %v5827, 1.0
    %v5831 = vadd.f32 %v5829, 1.0
    %v5832 = vrcp.pop %v5830
    %v5833 = vmul.f32 1.0, %v5832
    %v5834 = vrcp.pop %v5831
    %v5835 = vmul.f32 1.0, %v5834
    %v5836 = vld [vmem:[#allocation5] sm:$0xff]
    %v5837 = vld [vmem:[#allocation5 + $0x8] sm:$0xff]
    %v5838 = vmul.f32 %v5819, %v5836
    %v5839 = vmul.f32 %v5821, %v5837
    %v5840 = vmul.f32 %v5807, %v5822
    %v5841 = vmul.f32 %v5809, %v5823
    %v5842 = vadd.f32 %v5838, %v5840
    %v5843 = vadd.f32 %v5839, %v5841
    %v5844 = vtanh.pop %v5842
    %v5845 = vtanh.pop %v5843
    %v5846 = vmul.f32 %v5833, %v5844
    %v5847 = vmul.f32 %v5835, %v5845
    %5848 = vst [vmem:[#allocation5] sm:$0xff] %v5842
    %5849 = vst [vmem:[#allocation5 + $0x8] sm:$0xff] %v5843
    %5850 = vst [vmem:[#allocation4] sm:$0xff] %v5846
    %5851 = vst [vmem:[#allocation4 + $0x8] sm:$0xff] %v5847
    %v5852 = vld [vmem:[#allocation4] sm:$0xff]
    %v5853 = vld [vmem:[#allocation4 + $0x8] sm:$0xff]
    %v5854 = vld [vmem:[%s2434] sm:$0xff]
    %v5855 = vld [vmem:[%s2434 + $0x8] sm:$0xff]
    %v5856 = vld [vmem:[%s2434 + $0x10] sm:$0xff]
    %v5857 = vld [vmem:[%s2434 + $0x18] sm:$0xff]
    %v5858 = vld [vmem:[%s2434 + $0x20] sm:$0xff]
    %v5859 = vld [vmem:[%s2434 + $0x28] sm:$0xff]
    %v5860 = vld [vmem:[%s2434 + $0x30] sm:$0xff]
    %v5861 = vld [vmem:[%s2434 + $0x38] sm:$0xff]
    %v5862 = vpack.c.bf16 %v5853, %v5852
    %v5863 = vld [vmem:[%s5] sm:$0xff]
    %v5864 = vld [vmem:[%s5 + $0x8] sm:$0xff]
    %v5865 = vld [vmem:[%s5 + $0x10] sm:$0xff]
    %v5866 = vld [vmem:[%s5 + $0x18] sm:$0xff]
    %v5867 = vld [vmem:[%s5 + $0x20] sm:$0xff]
    %v5868 = vld [vmem:[%s5 + $0x28] sm:$0xff]
    %v5869 = vld [vmem:[%s5 + $0x30] sm:$0xff]
    %v5870 = vld [vmem:[%s5 + $0x38] sm:$0xff]
    %v5871 = vld [vmem:[%s5 + $0x40] sm:$0xff]
    %v5872 = vld [vmem:[%s5 + $0x48] sm:$0xff]
    %v5873 = vld [vmem:[%s5 + $0x50] sm:$0xff]
    %v5874 = vld [vmem:[%s5 + $0x58] sm:$0xff]
    %v5875 = vld [vmem:[%s5 + $0x60] sm:$0xff]
    %v5876 = vld [vmem:[%s5 + $0x68] sm:$0xff]
    %v5877 = vld [vmem:[%s5 + $0x70] sm:$0xff]
    %v5878 = vld [vmem:[%s5 + $0x78] sm:$0xff]
    %v5879 = vld [vmem:[%s5 + $0x80] sm:$0xff]
    %v5880 = vld [vmem:[%s5 + $0x88] sm:$0xff]
    %v5881 = vld [vmem:[%s5 + $0x90] sm:$0xff]
    %v5882 = vld [vmem:[%s5 + $0x98] sm:$0xff]
    %v5883 = vld [vmem:[%s5 + $0xa0] sm:$0xff]
    %v5884 = vld [vmem:[%s5 + $0xa8] sm:$0xff]
    %v5885 = vld [vmem:[%s5 + $0xb0] sm:$0xff]
    %v5886 = vld [vmem:[%s5 + $0xb8] sm:$0xff]
    %v5887 = vld [vmem:[%s5 + $0xc0] sm:$0xff]
    %v5888 = vld [vmem:[%s5 + $0xc8] sm:$0xff]
    %v5889 = vld [vmem:[%s5 + $0xd0] sm:$0xff]
    %v5890 = vld [vmem:[%s5 + $0xd8] sm:$0xff]
    %v5891 = vld [vmem:[%s5 + $0xe0] sm:$0xff]
    %v5892 = vld [vmem:[%s5 + $0xe8] sm:$0xff]
    %v5893 = vld [vmem:[%s5 + $0xf0] sm:$0xff]
    %v5894 = vld [vmem:[%s5 + $0xf8] sm:$0xff]
    %v5927 = vunpack.c.l.b16 %v5863
    %v5928 = vunpack.c.h.b16 %v5863
    %v5929 = vunpack.c.l.b16 %v5864
    %v5930 = vunpack.c.h.b16 %v5864
    %v5931 = vunpack.c.l.b16 %v5865
    %v5932 = vunpack.c.h.b16 %v5865
    %v5933 = vunpack.c.l.b16 %v5866
    %v5934 = vunpack.c.h.b16 %v5866
    %v5935 = vunpack.c.l.b16 %v5867
    %v5936 = vunpack.c.h.b16 %v5867
    %v5937 = vunpack.c.l.b16 %v5868
    %v5938 = vunpack.c.h.b16 %v5868
    %v5939 = vunpack.c.l.b16 %v5869
    %v5940 = vunpack.c.h.b16 %v5869
    %v5941 = vunpack.c.l.b16 %v5870
    %v5942 = vunpack.c.h.b16 %v5870
    %v5943 = vunpack.c.l.b16 %v5871
    %v5944 = vunpack.c.h.b16 %v5871
    %v5945 = vunpack.c.l.b16 %v5872
    %v5946 = vunpack.c.h.b16 %v5872
    %v5947 = vunpack.c.l.b16 %v5873
    %v5948 = vunpack.c.h.b16 %v5873
    %v5949 = vunpack.c.l.b16 %v5874
    %v5950 = vunpack.c.h.b16 %v5874
    %v5951 = vunpack.c.l.b16 %v5875
    %v5952 = vunpack.c.h.b16 %v5875
    %v5953 = vunpack.c.l.b16 %v5876
    %v5954 = vunpack.c.h.b16 %v5876
    %v5955 = vunpack.c.l.b16 %v5877
    %v5956 = vunpack.c.h.b16 %v5877
    %v5957 = vunpack.c.l.b16 %v5878
    %v5958 = vunpack.c.h.b16 %v5878
    %v5959 = vunpack.c.l.b16 %v5879
    %v5960 = vunpack.c.h.b16 %v5879
    %v5961 = vunpack.c.l.b16 %v5880
    %v5962 = vunpack.c.h.b16 %v5880
    %v5963 = vunpack.c.l.b16 %v5881
    %v5964 = vunpack.c.h.b16 %v5881
    %v5965 = vunpack.c.l.b16 %v5882
    %v5966 = vunpack.c.h.b16 %v5882
    %v5967 = vunpack.c.l.b16 %v5883
    %v5968 = vunpack.c.h.b16 %v5883
    %v5969 = vunpack.c.l.b16 %v5884
    %v5970 = vunpack.c.h.b16 %v5884
    %v5971 = vunpack.c.l.b16 %v5885
    %v5972 = vunpack.c.h.b16 %v5885
    %v5973 = vunpack.c.l.b16 %v5886
    %v5974 = vunpack.c.h.b16 %v5886
    %v5975 = vunpack.c.l.b16 %v5887
    %v5976 = vunpack.c.h.b16 %v5887
    %v5977 = vunpack.c.l.b16 %v5888
    %v5978 = vunpack.c.h.b16 %v5888
    %v5979 = vunpack.c.l.b16 %v5889
    %v5980 = vunpack.c.h.b16 %v5889
    %v5981 = vunpack.c.l.b16 %v5890
    %v5982 = vunpack.c.h.b16 %v5890
    %v5983 = vunpack.c.l.b16 %v5891
    %v5984 = vunpack.c.h.b16 %v5891
    %v5985 = vunpack.c.l.b16 %v5892
    %v5986 = vunpack.c.h.b16 %v5892
    %v5987 = vunpack.c.l.b16 %v5893
    %v5988 = vunpack.c.h.b16 %v5893
    %v5989 = vunpack.c.l.b16 %v5894
    %v5990 = vunpack.c.h.b16 %v5894
    %v5991 = vpack.c.b16 %v5931, %v5927
    %v5992 = vpack.c.b16 %v5932, %v5928
    %v5993 = vpack.c.b16 %v5933, %v5929
    %v5994 = vpack.c.b16 %v5934, %v5930
    %v5995 = vpack.c.b16 %v5939, %v5935
    %v5996 = vpack.c.b16 %v5940, %v5936
    %v5997 = vpack.c.b16 %v5941, %v5937
    %v5998 = vpack.c.b16 %v5942, %v5938
    %v5999 = vpack.c.b16 %v5947, %v5943
    %v6000 = vpack.c.b16 %v5948, %v5944
    %v6001 = vpack.c.b16 %v5949, %v5945
    %v6002 = vpack.c.b16 %v5950, %v5946
    %v6003 = vpack.c.b16 %v5955, %v5951
    %v6004 = vpack.c.b16 %v5956, %v5952
    %v6005 = vpack.c.b16 %v5957, %v5953
    %v6006 = vpack.c.b16 %v5958, %v5954
    %v6007 = vpack.c.b16 %v5963, %v5959
    %v6008 = vpack.c.b16 %v5964, %v5960
    %v6009 = vpack.c.b16 %v5965, %v5961
    %v6010 = vpack.c.b16 %v5966, %v5962
    %v6011 = vpack.c.b16 %v5971, %v5967
    %v6012 = vpack.c.b16 %v5972, %v5968
    %v6013 = vpack.c.b16 %v5973, %v5969
    %v6014 = vpack.c.b16 %v5974, %v5970
    %v6015 = vpack.c.b16 %v5979, %v5975
    %v6016 = vpack.c.b16 %v5980, %v5976
    %v6017 = vpack.c.b16 %v5981, %v5977
    %v6018 = vpack.c.b16 %v5982, %v5978
    %v6019 = vpack.c.b16 %v5987, %v5983
    %v6020 = vpack.c.b16 %v5988, %v5984
    %v6021 = vpack.c.b16 %v5989, %v5985
    %v6022 = vpack.c.b16 %v5990, %v5986
    %6055 = vmatprep.subr.bf16.mxu0 %v6020
    %6056 = vmatpush1.bf16.msra.mxu0 %v6019
    %6057 = vmatprep.subr.bf16.mxu0 %v6016
    %6058 = vmatpush1.bf16.msra.mxu0 %v6015
    %6059 = vmatprep.subr.bf16.mxu0 %v6012
    %6060 = vmatpush1.bf16.msra.mxu0 %v6011
    %6061 = vmatprep.subr.bf16.mxu0 %v6008
    %6062 = vmatpush1.bf16.msra.mxu0 %v6007
    %6063 = vmatprep.subr.bf16.mxu0 %v6004
    %6064 = vmatpush1.bf16.msra.mxu0 %v6003
    %6065 = vmatprep.subr.bf16.mxu0 %v6000
    %6066 = vmatpush1.bf16.msra.mxu0 %v5999
    %6067 = vmatprep.subr.bf16.mxu0 %v5996
    %6068 = vmatpush1.bf16.msra.mxu0 %v5995
    %6069 = vmatprep.subr.bf16.mxu0 %v5992
    %6070 = vmatpush1.bf16.msra.mxu0 %v5991
    %6071 = vmatprep.subr.bf16.mxu0 0
    %6072 = vmatpush2.bf16.msra.mxu0 0
    %6073 = vmatprep.subr.bf16.mxu0 0
    %6074 = vmatpush2.bf16.msra.mxu0 0
    %6075 = vmatprep.subr.bf16.mxu0 0
    %6076 = vmatpush2.bf16.msra.mxu0 0
    %6077 = vmatprep.subr.bf16.mxu0 0
    %6078 = vmatpush2.bf16.msra.mxu0 0
    %6079 = vmatprep.subr.bf16.mxu0 0
    %6080 = vmatpush2.bf16.msra.mxu0 0
    %6081 = vmatprep.subr.bf16.mxu0 0
    %6082 = vmatpush2.bf16.msra.mxu0 0
    %6083 = vmatprep.subr.bf16.mxu0 0
    %6084 = vmatpush2.bf16.msra.mxu0 0
    %6085 = vmatprep.subr.bf16.mxu0 0
    %6086 = vmatpush2.bf16.msra.mxu0 0
    %6087 = vmatprep.mubr.bf16.mxu0 0
    %6088 = vmatmul.mubr.bf16.gmra.mxu0 %v5862
    %v6089 = vpop.f32.mrf.mxu0
    %v6090 = vadd.f32 0.0, %v6089
    %v6091 = vpop.f32.mrf.mxu0
    %v6092 = vadd.f32 0.0, %v6091
    %v6093 = vpop.f32.mrf.mxu0
    %v6094 = vadd.f32 0.0, %v6093
    %v6095 = vpop.f32.mrf.mxu0
    %v6096 = vadd.f32 0.0, %v6095
    %6097 = vdwg.mxu0
    %6098 = vmatprep.subr.bf16.mxu0 %v6022
    %6099 = vmatpush1.bf16.msra.mxu0 %v6021
    %6100 = vmatprep.subr.bf16.mxu0 %v6018
    %6101 = vmatpush1.bf16.msra.mxu0 %v6017
    %6102 = vmatprep.subr.bf16.mxu0 %v6014
    %6103 = vmatpush1.bf16.msra.mxu0 %v6013
    %6104 = vmatprep.subr.bf16.mxu0 %v6010
    %6105 = vmatpush1.bf16.msra.mxu0 %v6009
    %6106 = vmatprep.subr.bf16.mxu0 %v6006
    %6107 = vmatpush1.bf16.msra.mxu0 %v6005
    %6108 = vmatprep.subr.bf16.mxu0 %v6002
    %6109 = vmatpush1.bf16.msra.mxu0 %v6001
    %6110 = vmatprep.subr.bf16.mxu0 %v5998
    %6111 = vmatpush1.bf16.msra.mxu0 %v5997
    %6112 = vmatprep.subr.bf16.mxu0 %v5994
    %6113 = vmatpush1.bf16.msra.mxu0 %v5993
    %6114 = vmatprep.subr.bf16.mxu0 0
    %6115 = vmatpush2.bf16.msra.mxu0 0
    %6116 = vmatprep.subr.bf16.mxu0 0
    %6117 = vmatpush2.bf16.msra.mxu0 0
    %6118 = vmatprep.subr.bf16.mxu0 0
    %6119 = vmatpush2.bf16.msra.mxu0 0
    %6120 = vmatprep.subr.bf16.mxu0 0
    %6121 = vmatpush2.bf16.msra.mxu0 0
    %6122 = vmatprep.subr.bf16.mxu0 0
    %6123 = vmatpush2.bf16.msra.mxu0 0
    %6124 = vmatprep.subr.bf16.mxu0 0
    %6125 = vmatpush2.bf16.msra.mxu0 0
    %6126 = vmatprep.subr.bf16.mxu0 0
    %6127 = vmatpush2.bf16.msra.mxu0 0
    %6128 = vmatprep.subr.bf16.mxu0 0
    %6129 = vmatpush2.bf16.msra.mxu0 0
    %6130 = vmatprep.mubr.bf16.mxu0 0
    %6131 = vmatmul.mubr.bf16.gmra.mxu0 %v5862
    %v6132 = vpop.f32.mrf.mxu0
    %v6133 = vadd.f32 0.0, %v6132
    %v6134 = vpop.f32.mrf.mxu0
    %v6135 = vadd.f32 0.0, %v6134
    %v6136 = vpop.f32.mrf.mxu0
    %v6137 = vadd.f32 0.0, %v6136
    %v6138 = vpop.f32.mrf.mxu0
    %v6139 = vadd.f32 0.0, %v6138
    %6140 = vdwg.mxu0
    %v6141 = vadd.f32 %v5854, %v6090
    %v6142 = vadd.f32 %v5855, %v6092
    %v6143 = vadd.f32 %v5856, %v6133
    %v6144 = vadd.f32 %v5857, %v6135
    %v6145 = vadd.f32 %v5858, %v6094
    %v6146 = vadd.f32 %v5859, %v6096
    %v6147 = vadd.f32 %v5860, %v6137
    %v6148 = vadd.f32 %v5861, %v6139
    %v6149 = vxor.u32 %v6141, 2147483648
    %v6150 = vxor.u32 %v6145, 2147483648
    %v6151 = vmul.f32 %v6149, 1.442695
    %v6152 = vpow.pop %v6151
    %v6153 = vmul.f32 %v6150, 1.442695
    %v6154 = vpow.pop %v6153
    %v6155 = vadd.f32 %v6152, 1.0
    %v6156 = vadd.f32 %v6154, 1.0
    %v6157 = vrcp.pop %v6155
    %v6158 = vmul.f32 1.0, %v6157
    %v6159 = vrcp.pop %v6156
    %v6160 = vmul.f32 1.0, %v6159
    %v6161 = vxor.u32 %v6142, 2147483648
    %v6162 = vxor.u32 %v6146, 2147483648
    %v6163 = vmul.f32 %v6161, 1.442695
    %v6164 = vpow.pop %v6163
    %v6165 = vmul.f32 %v6162, 1.442695
    %v6166 = vpow.pop %v6165
    %v6167 = vadd.f32 %v6164, 1.0
    %v6168 = vadd.f32 %v6166, 1.0
    %v6169 = vrcp.pop %v6167
    %v6170 = vmul.f32 1.0, %v6169
    %v6171 = vrcp.pop %v6168
    %v6172 = vmul.f32 1.0, %v6171
    %v6173 = vtanh.pop %v6143
    %v6174 = vtanh.pop %v6147
    %v6175 = vxor.u32 %v6144, 2147483648
    %v6176 = vxor.u32 %v6148, 2147483648
    %v6177 = vmul.f32 %v6175, 1.442695
    %v6178 = vpow.pop %v6177
    %v6179 = vmul.f32 %v6176, 1.442695
    %v6180 = vpow.pop %v6179
    %v6181 = vadd.f32 %v6178, 1.0
    %v6182 = vadd.f32 %v6180, 1.0
    %v6183 = vrcp.pop %v6181
    %v6184 = vmul.f32 1.0, %v6183
    %v6185 = vrcp.pop %v6182
    %v6186 = vmul.f32 1.0, %v6185
    %v6187 = vld [vmem:[#allocation5] sm:$0xff]
    %v6188 = vld [vmem:[#allocation5 + $0x8] sm:$0xff]
    %v6189 = vmul.f32 %v6170, %v6187
    %v6190 = vmul.f32 %v6172, %v6188
    %v6191 = vmul.f32 %v6158, %v6173
    %v6192 = vmul.f32 %v6160, %v6174
    %v6193 = vadd.f32 %v6189, %v6191
    %v6194 = vadd.f32 %v6190, %v6192
    %v6195 = vtanh.pop %v6193
    %v6196 = vtanh.pop %v6194
    %v6197 = vmul.f32 %v6184, %v6195
    %v6198 = vmul.f32 %v6186, %v6196
    %6199 = vst [vmem:[#allocation5] sm:$0xff] %v6193
    %6200 = vst [vmem:[#allocation5 + $0x8] sm:$0xff] %v6194
    %6201 = vst [vmem:[#allocation4] sm:$0xff] %v6197
    %6202 = vst [vmem:[#allocation4 + $0x8] sm:$0xff] %v6198
    %v6203 = vld [vmem:[#allocation4] sm:$0xff]
    %v6204 = vld [vmem:[#allocation4 + $0x8] sm:$0xff]
    %v6205 = vld [vmem:[%s2799] sm:$0xff]
    %v6206 = vld [vmem:[%s2799 + $0x8] sm:$0xff]
    %v6207 = vld [vmem:[%s2799 + $0x10] sm:$0xff]
    %v6208 = vld [vmem:[%s2799 + $0x18] sm:$0xff]
    %v6209 = vld [vmem:[%s2799 + $0x20] sm:$0xff]
    %v6210 = vld [vmem:[%s2799 + $0x28] sm:$0xff]
    %v6211 = vld [vmem:[%s2799 + $0x30] sm:$0xff]
    %v6212 = vld [vmem:[%s2799 + $0x38] sm:$0xff]
    %v6213 = vpack.c.bf16 %v6204, %v6203
    %v6214 = vld [vmem:[%s5] sm:$0xff]
    %v6215 = vld [vmem:[%s5 + $0x8] sm:$0xff]
    %v6216 = vld [vmem:[%s5 + $0x10] sm:$0xff]
    %v6217 = vld [vmem:[%s5 + $0x18] sm:$0xff]
    %v6218 = vld [vmem:[%s5 + $0x20] sm:$0xff]
    %v6219 = vld [vmem:[%s5 + $0x28] sm:$0xff]
    %v6220 = vld [vmem:[%s5 + $0x30] sm:$0xff]
    %v6221 = vld [vmem:[%s5 + $0x38] sm:$0xff]
    %v6222 = vld [vmem:[%s5 + $0x40] sm:$0xff]
    %v6223 = vld [vmem:[%s5 + $0x48] sm:$0xff]
    %v6224 = vld [vmem:[%s5 + $0x50] sm:$0xff]
    %v6225 = vld [vmem:[%s5 + $0x58] sm:$0xff]
    %v6226 = vld [vmem:[%s5 + $0x60] sm:$0xff]
    %v6227 = vld [vmem:[%s5 + $0x68] sm:$0xff]
    %v6228 = vld [vmem:[%s5 + $0x70] sm:$0xff]
    %v6229 = vld [vmem:[%s5 + $0x78] sm:$0xff]
    %v6230 = vld [vmem:[%s5 + $0x80] sm:$0xff]
    %v6231 = vld [vmem:[%s5 + $0x88] sm:$0xff]
    %v6232 = vld [vmem:[%s5 + $0x90] sm:$0xff]
    %v6233 = vld [vmem:[%s5 + $0x98] sm:$0xff]
    %v6234 = vld [vmem:[%s5 + $0xa0] sm:$0xff]
    %v6235 = vld [vmem:[%s5 + $0xa8] sm:$0xff]
    %v6236 = vld [vmem:[%s5 + $0xb0] sm:$0xff]
    %v6237 = vld [vmem:[%s5 + $0xb8] sm:$0xff]
    %v6238 = vld [vmem:[%s5 + $0xc0] sm:$0xff]
    %v6239 = vld [vmem:[%s5 + $0xc8] sm:$0xff]
    %v6240 = vld [vmem:[%s5 + $0xd0] sm:$0xff]
    %v6241 = vld [vmem:[%s5 + $0xd8] sm:$0xff]
    %v6242 = vld [vmem:[%s5 + $0xe0] sm:$0xff]
    %v6243 = vld [vmem:[%s5 + $0xe8] sm:$0xff]
    %v6244 = vld [vmem:[%s5 + $0xf0] sm:$0xff]
    %v6245 = vld [vmem:[%s5 + $0xf8] sm:$0xff]
    %v6278 = vunpack.c.l.b16 %v6214
    %v6279 = vunpack.c.h.b16 %v6214
    %v6280 = vunpack.c.l.b16 %v6215
    %v6281 = vunpack.c.h.b16 %v6215
    %v6282 = vunpack.c.l.b16 %v6216
    %v6283 = vunpack.c.h.b16 %v6216
    %v6284 = vunpack.c.l.b16 %v6217
    %v6285 = vunpack.c.h.b16 %v6217
    %v6286 = vunpack.c.l.b16 %v6218
    %v6287 = vunpack.c.h.b16 %v6218
    %v6288 = vunpack.c.l.b16 %v6219
    %v6289 = vunpack.c.h.b16 %v6219
    %v6290 = vunpack.c.l.b16 %v6220
    %v6291 = vunpack.c.h.b16 %v6220
    %v6292 = vunpack.c.l.b16 %v6221
    %v6293 = vunpack.c.h.b16 %v6221
    %v6294 = vunpack.c.l.b16 %v6222
    %v6295 = vunpack.c.h.b16 %v6222
    %v6296 = vunpack.c.l.b16 %v6223
    %v6297 = vunpack.c.h.b16 %v6223
    %v6298 = vunpack.c.l.b16 %v6224
    %v6299 = vunpack.c.h.b16 %v6224
    %v6300 = vunpack.c.l.b16 %v6225
    %v6301 = vunpack.c.h.b16 %v6225
    %v6302 = vunpack.c.l.b16 %v6226
    %v6303 = vunpack.c.h.b16 %v6226
    %v6304 = vunpack.c.l.b16 %v6227
    %v6305 = vunpack.c.h.b16 %v6227
    %v6306 = vunpack.c.l.b16 %v6228
    %v6307 = vunpack.c.h.b16 %v6228
    %v6308 = vunpack.c.l.b16 %v6229
    %v6309 = vunpack.c.h.b16 %v6229
    %v6310 = vunpack.c.l.b16 %v6230
    %v6311 = vunpack.c.h.b16 %v6230
    %v6312 = vunpack.c.l.b16 %v6231
    %v6313 = vunpack.c.h.b16 %v6231
    %v6314 = vunpack.c.l.b16 %v6232
    %v6315 = vunpack.c.h.b16 %v6232
    %v6316 = vunpack.c.l.b16 %v6233
    %v6317 = vunpack.c.h.b16 %v6233
    %v6318 = vunpack.c.l.b16 %v6234
    %v6319 = vunpack.c.h.b16 %v6234
    %v6320 = vunpack.c.l.b16 %v6235
    %v6321 = vunpack.c.h.b16 %v6235
    %v6322 = vunpack.c.l.b16 %v6236
    %v6323 = vunpack.c.h.b16 %v6236
    %v6324 = vunpack.c.l.b16 %v6237
    %v6325 = vunpack.c.h.b16 %v6237
    %v6326 = vunpack.c.l.b16 %v6238
    %v6327 = vunpack.c.h.b16 %v6238
    %v6328 = vunpack.c.l.b16 %v6239
    %v6329 = vunpack.c.h.b16 %v6239
    %v6330 = vunpack.c.l.b16 %v6240
    %v6331 = vunpack.c.h.b16 %v6240
    %v6332 = vunpack.c.l.b16 %v6241
    %v6333 = vunpack.c.h.b16 %v6241
    %v6334 = vunpack.c.l.b16 %v6242
    %v6335 = vunpack.c.h.b16 %v6242
    %v6336 = vunpack.c.l.b16 %v6243
    %v6337 = vunpack.c.h.b16 %v6243
    %v6338 = vunpack.c.l.b16 %v6244
    %v6339 = vunpack.c.h.b16 %v6244
    %v6340 = vunpack.c.l.b16 %v6245
    %v6341 = vunpack.c.h.b16 %v6245
    %v6342 = vpack.c.b16 %v6282, %v6278
    %v6343 = vpack.c.b16 %v6283, %v6279
    %v6344 = vpack.c.b16 %v6284, %v6280
    %v6345 = vpack.c.b16 %v6285, %v6281
    %v6346 = vpack.c.b16 %v6290, %v6286
    %v6347 = vpack.c.b16 %v6291, %v6287
    %v6348 = vpack.c.b16 %v6292, %v6288
    %v6349 = vpack.c.b16 %v6293, %v6289
    %v6350 = vpack.c.b16 %v6298, %v6294
    %v6351 = vpack.c.b16 %v6299, %v6295
    %v6352 = vpack.c.b16 %v6300, %v6296
    %v6353 = vpack.c.b16 %v6301, %v6297
    %v6354 = vpack.c.b16 %v6306, %v6302
    %v6355 = vpack.c.b16 %v6307, %v6303
    %v6356 = vpack.c.b16 %v6308, %v6304
    %v6357 = vpack.c.b16 %v6309, %v6305
    %v6358 = vpack.c.b16 %v6314, %v6310
    %v6359 = vpack.c.b16 %v6315, %v6311
    %v6360 = vpack.c.b16 %v6316, %v6312
    %v6361 = vpack.c.b16 %v6317, %v6313
    %v6362 = vpack.c.b16 %v6322, %v6318
    %v6363 = vpack.c.b16 %v6323, %v6319
    %v6364 = vpack.c.b16 %v6324, %v6320
    %v6365 = vpack.c.b16 %v6325, %v6321
    %v6366 = vpack.c.b16 %v6330, %v6326
    %v6367 = vpack.c.b16 %v6331, %v6327
    %v6368 = vpack.c.b16 %v6332, %v6328
    %v6369 = vpack.c.b16 %v6333, %v6329
    %v6370 = vpack.c.b16 %v6338, %v6334
    %v6371 = vpack.c.b16 %v6339, %v6335
    %v6372 = vpack.c.b16 %v6340, %v6336
    %v6373 = vpack.c.b16 %v6341, %v6337
    %6406 = vmatprep.subr.bf16.mxu0 %v6371
    %6407 = vmatpush1.bf16.msra.mxu0 %v6370
    %6408 = vmatprep.subr.bf16.mxu0 %v6367
    %6409 = vmatpush1.bf16.msra.mxu0 %v6366
    %6410 = vmatprep.subr.bf16.mxu0 %v6363
    %6411 = vmatpush1.bf16.msra.mxu0 %v6362
    %6412 = vmatprep.subr.bf16.mxu0 %v6359
    %6413 = vmatpush1.bf16.msra.mxu0 %v6358
    %6414 = vmatprep.subr.bf16.mxu0 %v6355
    %6415 = vmatpush1.bf16.msra.mxu0 %v6354
    %6416 = vmatprep.subr.bf16.mxu0 %v6351
    %6417 = vmatpush1.bf16.msra.mxu0 %v6350
    %6418 = vmatprep.subr.bf16.mxu0 %v6347
    %6419 = vmatpush1.bf16.msra.mxu0 %v6346
    %6420 = vmatprep.subr.bf16.mxu0 %v6343
    %6421 = vmatpush1.bf16.msra.mxu0 %v6342
    %6422 = vmatprep.subr.bf16.mxu0 0
    %6423 = vmatpush2.bf16.msra.mxu0 0
    %6424 = vmatprep.subr.bf16.mxu0 0
    %6425 = vmatpush2.bf16.msra.mxu0 0
    %6426 = vmatprep.subr.bf16.mxu0 0
    %6427 = vmatpush2.bf16.msra.mxu0 0
    %6428 = vmatprep.subr.bf16.mxu0 0
    %6429 = vmatpush2.bf16.msra.mxu0 0
    %6430 = vmatprep.subr.bf16.mxu0 0
    %6431 = vmatpush2.bf16.msra.mxu0 0
    %6432 = vmatprep.subr.bf16.mxu0 0
    %6433 = vmatpush2.bf16.msra.mxu0 0
    %6434 = vmatprep.subr.bf16.mxu0 0
    %6435 = vmatpush2.bf16.msra.mxu0 0
    %6436 = vmatprep.subr.bf16.mxu0 0
    %6437 = vmatpush2.bf16.msra.mxu0 0
    %6438 = vmatprep.mubr.bf16.mxu0 0
    %6439 = vmatmul.mubr.bf16.gmra.mxu0 %v6213
    %v6440 = vpop.f32.mrf.mxu0
    %v6441 = vadd.f32 0.0, %v6440
    %v6442 = vpop.f32.mrf.mxu0
    %v6443 = vadd.f32 0.0, %v6442
    %v6444 = vpop.f32.mrf.mxu0
    %v6445 = vadd.f32 0.0, %v6444
    %v6446 = vpop.f32.mrf.mxu0
    %v6447 = vadd.f32 0.0, %v6446
    %6448 = vdwg.mxu0
    %6449 = vmatprep.subr.bf16.mxu0 %v6373
    %6450 = vmatpush1.bf16.msra.mxu0 %v6372
    %6451 = vmatprep.subr.bf16.mxu0 %v6369
    %6452 = vmatpush1.bf16.msra.mxu0 %v6368
    %6453 = vmatprep.subr.bf16.mxu0 %v6365
    %6454 = vmatpush1.bf16.msra.mxu0 %v6364
    %6455 = vmatprep.subr.bf16.mxu0 %v6361
    %6456 = vmatpush1.bf16.msra.mxu0 %v6360
    %6457 = vmatprep.subr.bf16.mxu0 %v6357
    %6458 = vmatpush1.bf16.msra.mxu0 %v6356
    %6459 = vmatprep.subr.bf16.mxu0 %v6353
    %6460 = vmatpush1.bf16.msra.mxu0 %v6352
    %6461 = vmatprep.subr.bf16.mxu0 %v6349
    %6462 = vmatpush1.bf16.msra.mxu0 %v6348
    %6463 = vmatprep.subr.bf16.mxu0 %v6345
    %6464 = vmatpush1.bf16.msra.mxu0 %v6344
    %6465 = vmatprep.subr.bf16.mxu0 0
    %6466 = vmatpush2.bf16.msra.mxu0 0
    %6467 = vmatprep.subr.bf16.mxu0 0
    %6468 = vmatpush2.bf16.msra.mxu0 0
    %6469 = vmatprep.subr.bf16.mxu0 0
    %6470 = vmatpush2.bf16.msra.mxu0 0
    %6471 = vmatprep.subr.bf16.mxu0 0
    %6472 = vmatpush2.bf16.msra.mxu0 0
    %6473 = vmatprep.subr.bf16.mxu0 0
    %6474 = vmatpush2.bf16.msra.mxu0 0
    %6475 = vmatprep.subr.bf16.mxu0 0
    %6476 = vmatpush2.bf16.msra.mxu0 0
    %6477 = vmatprep.subr.bf16.mxu0 0
    %6478 = vmatpush2.bf16.msra.mxu0 0
    %6479 = vmatprep.subr.bf16.mxu0 0
    %6480 = vmatpush2.bf16.msra.mxu0 0
    %6481 = vmatprep.mubr.bf16.mxu0 0
    %6482 = vmatmul.mubr.bf16.gmra.mxu0 %v6213
    %v6483 = vpop.f32.mrf.mxu0
    %v6484 = vadd.f32 0.0, %v6483
    %v6485 = vpop.f32.mrf.mxu0
    %v6486 = vadd.f32 0.0, %v6485
    %v6487 = vpop.f32.mrf.mxu0
    %v6488 = vadd.f32 0.0, %v6487
    %v6489 = vpop.f32.mrf.mxu0
    %v6490 = vadd.f32 0.0, %v6489
    %6491 = vdwg.mxu0
    %v6492 = vadd.f32 %v6205, %v6441
    %v6493 = vadd.f32 %v6206, %v6443
    %v6494 = vadd.f32 %v6207, %v6484
    %v6495 = vadd.f32 %v6208, %v6486
    %v6496 = vadd.f32 %v6209, %v6445
    %v6497 = vadd.f32 %v6210, %v6447
    %v6498 = vadd.f32 %v6211, %v6488
    %v6499 = vadd.f32 %v6212, %v6490
    %v6500 = vxor.u32 %v6492, 2147483648
    %v6501 = vxor.u32 %v6496, 2147483648
    %v6502 = vmul.f32 %v6500, 1.442695
    %v6503 = vpow.pop %v6502
    %v6504 = vmul.f32 %v6501, 1.442695
    %v6505 = vpow.pop %v6504
    %v6506 = vadd.f32 %v6503, 1.0
    %v6507 = vadd.f32 %v6505, 1.0
    %v6508 = vrcp.pop %v6506
    %v6509 = vmul.f32 1.0, %v6508
    %v6510 = vrcp.pop %v6507
    %v6511 = vmul.f32 1.0, %v6510
    %v6512 = vxor.u32 %v6493, 2147483648
    %v6513 = vxor.u32 %v6497, 2147483648
    %v6514 = vmul.f32 %v6512, 1.442695
    %v6515 = vpow.pop %v6514
    %v6516 = vmul.f32 %v6513, 1.442695
    %v6517 = vpow.pop %v6516
    %v6518 = vadd.f32 %v6515, 1.0
    %v6519 = vadd.f32 %v6517, 1.0
    %v6520 = vrcp.pop %v6518
    %v6521 = vmul.f32 1.0, %v6520
    %v6522 = vrcp.pop %v6519
    %v6523 = vmul.f32 1.0, %v6522
    %v6524 = vtanh.pop %v6494
    %v6525 = vtanh.pop %v6498
    %v6526 = vxor.u32 %v6495, 2147483648
    %v6527 = vxor.u32 %v6499, 2147483648
    %v6528 = vmul.f32 %v6526, 1.442695
    %v6529 = vpow.pop %v6528
    %v6530 = vmul.f32 %v6527, 1.442695
    %v6531 = vpow.pop %v6530
    %v6532 = vadd.f32 %v6529, 1.0
    %v6533 = vadd.f32 %v6531, 1.0
    %v6534 = vrcp.pop %v6532
    %v6535 = vmul.f32 1.0, %v6534
    %v6536 = vrcp.pop %v6533
    %v6537 = vmul.f32 1.0, %v6536
    %v6538 = vld [vmem:[#allocation5] sm:$0xff]
    %v6539 = vld [vmem:[#allocation5 + $0x8] sm:$0xff]
    %v6540 = vmul.f32 %v6521, %v6538
    %v6541 = vmul.f32 %v6523, %v6539
    %v6542 = vmul.f32 %v6509, %v6524
    %v6543 = vmul.f32 %v6511, %v6525
    %v6544 = vadd.f32 %v6540, %v6542
    %v6545 = vadd.f32 %v6541, %v6543
    %v6546 = vtanh.pop %v6544
    %v6547 = vtanh.pop %v6545
    %v6548 = vmul.f32 %v6535, %v6546
    %v6549 = vmul.f32 %v6537, %v6547
    %6550 = vst [vmem:[#allocation5] sm:$0xff] %v6544
    %6551 = vst [vmem:[#allocation5 + $0x8] sm:$0xff] %v6545
    %6552 = vst [vmem:[#allocation4] sm:$0xff] %v6548
    %6553 = vst [vmem:[#allocation4 + $0x8] sm:$0xff] %v6549
    %v6554 = vld [vmem:[#allocation4] sm:$0xff]
    %v6555 = vld [vmem:[#allocation4 + $0x8] sm:$0xff]
    %v6556 = vld [vmem:[%s3164] sm:$0xff]
    %v6557 = vld [vmem:[%s3164 + $0x8] sm:$0xff]
    %v6558 = vld [vmem:[%s3164 + $0x10] sm:$0xff]
    %v6559 = vld [vmem:[%s3164 + $0x18] sm:$0xff]
    %v6560 = vld [vmem:[%s3164 + $0x20] sm:$0xff]
    %v6561 = vld [vmem:[%s3164 + $0x28] sm:$0xff]
    %v6562 = vld [vmem:[%s3164 + $0x30] sm:$0xff]
    %v6563 = vld [vmem:[%s3164 + $0x38] sm:$0xff]
    %v6564 = vpack.c.bf16 %v6555, %v6554
    %v6565 = vld [vmem:[%s5] sm:$0xff]
    %v6566 = vld [vmem:[%s5 + $0x8] sm:$0xff]
    %v6567 = vld [vmem:[%s5 + $0x10] sm:$0xff]
    %v6568 = vld [vmem:[%s5 + $0x18] sm:$0xff]
    %v6569 = vld [vmem:[%s5 + $0x20] sm:$0xff]
    %v6570 = vld [vmem:[%s5 + $0x28] sm:$0xff]
    %v6571 = vld [vmem:[%s5 + $0x30] sm:$0xff]
    %v6572 = vld [vmem:[%s5 + $0x38] sm:$0xff]
    %v6573 = vld [vmem:[%s5 + $0x40] sm:$0xff]
    %v6574 = vld [vmem:[%s5 + $0x48] sm:$0xff]
    %v6575 = vld [vmem:[%s5 + $0x50] sm:$0xff]
    %v6576 = vld [vmem:[%s5 + $0x58] sm:$0xff]
    %v6577 = vld [vmem:[%s5 + $0x60] sm:$0xff]
    %v6578 = vld [vmem:[%s5 + $0x68] sm:$0xff]
    %v6579 = vld [vmem:[%s5 + $0x70] sm:$0xff]
    %v6580 = vld [vmem:[%s5 + $0x78] sm:$0xff]
    %v6581 = vld [vmem:[%s5 + $0x80] sm:$0xff]
    %v6582 = vld [vmem:[%s5 + $0x88] sm:$0xff]
    %v6583 = vld [vmem:[%s5 + $0x90] sm:$0xff]
    %v6584 = vld [vmem:[%s5 + $0x98] sm:$0xff]
    %v6585 = vld [vmem:[%s5 + $0xa0] sm:$0xff]
    %v6586 = vld [vmem:[%s5 + $0xa8] sm:$0xff]
    %v6587 = vld [vmem:[%s5 + $0xb0] sm:$0xff]
    %v6588 = vld [vmem:[%s5 + $0xb8] sm:$0xff]
    %v6589 = vld [vmem:[%s5 + $0xc0] sm:$0xff]
    %v6590 = vld [vmem:[%s5 + $0xc8] sm:$0xff]
    %v6591 = vld [vmem:[%s5 + $0xd0] sm:$0xff]
    %v6592 = vld [vmem:[%s5 + $0xd8] sm:$0xff]
    %v6593 = vld [vmem:[%s5 + $0xe0] sm:$0xff]
    %v6594 = vld [vmem:[%s5 + $0xe8] sm:$0xff]
    %v6595 = vld [vmem:[%s5 + $0xf0] sm:$0xff]
    %v6596 = vld [vmem:[%s5 + $0xf8] sm:$0xff]
    %v6629 = vunpack.c.l.b16 %v6565
    %v6630 = vunpack.c.h.b16 %v6565
    %v6631 = vunpack.c.l.b16 %v6566
    %v6632 = vunpack.c.h.b16 %v6566
    %v6633 = vunpack.c.l.b16 %v6567
    %v6634 = vunpack.c.h.b16 %v6567
    %v6635 = vunpack.c.l.b16 %v6568
    %v6636 = vunpack.c.h.b16 %v6568
    %v6637 = vunpack.c.l.b16 %v6569
    %v6638 = vunpack.c.h.b16 %v6569
    %v6639 = vunpack.c.l.b16 %v6570
    %v6640 = vunpack.c.h.b16 %v6570
    %v6641 = vunpack.c.l.b16 %v6571
    %v6642 = vunpack.c.h.b16 %v6571
    %v6643 = vunpack.c.l.b16 %v6572
    %v6644 = vunpack.c.h.b16 %v6572
    %v6645 = vunpack.c.l.b16 %v6573
    %v6646 = vunpack.c.h.b16 %v6573
    %v6647 = vunpack.c.l.b16 %v6574
    %v6648 = vunpack.c.h.b16 %v6574
    %v6649 = vunpack.c.l.b16 %v6575
    %v6650 = vunpack.c.h.b16 %v6575
    %v6651 = vunpack.c.l.b16 %v6576
    %v6652 = vunpack.c.h.b16 %v6576
    %v6653 = vunpack.c.l.b16 %v6577
    %v6654 = vunpack.c.h.b16 %v6577
    %v6655 = vunpack.c.l.b16 %v6578
    %v6656 = vunpack.c.h.b16 %v6578
    %v6657 = vunpack.c.l.b16 %v6579
    %v6658 = vunpack.c.h.b16 %v6579
    %v6659 = vunpack.c.l.b16 %v6580
    %v6660 = vunpack.c.h.b16 %v6580
    %v6661 = vunpack.c.l.b16 %v6581
    %v6662 = vunpack.c.h.b16 %v6581
    %v6663 = vunpack.c.l.b16 %v6582
    %v6664 = vunpack.c.h.b16 %v6582
    %v6665 = vunpack.c.l.b16 %v6583
    %v6666 = vunpack.c.h.b16 %v6583
    %v6667 = vunpack.c.l.b16 %v6584
    %v6668 = vunpack.c.h.b16 %v6584
    %v6669 = vunpack.c.l.b16 %v6585
    %v6670 = vunpack.c.h.b16 %v6585
    %v6671 = vunpack.c.l.b16 %v6586
    %v6672 = vunpack.c.h.b16 %v6586
    %v6673 = vunpack.c.l.b16 %v6587
    %v6674 = vunpack.c.h.b16 %v6587
    %v6675 = vunpack.c.l.b16 %v6588
    %v6676 = vunpack.c.h.b16 %v6588
    %v6677 = vunpack.c.l.b16 %v6589
    %v6678 = vunpack.c.h.b16 %v6589
    %v6679 = vunpack.c.l.b16 %v6590
    %v6680 = vunpack.c.h.b16 %v6590
    %v6681 = vunpack.c.l.b16 %v6591
    %v6682 = vunpack.c.h.b16 %v6591
    %v6683 = vunpack.c.l.b16 %v6592
    %v6684 = vunpack.c.h.b16 %v6592
    %v6685 = vunpack.c.l.b16 %v6593
    %v6686 = vunpack.c.h.b16 %v6593
    %v6687 = vunpack.c.l.b16 %v6594
    %v6688 = vunpack.c.h.b16 %v6594
    %v6689 = vunpack.c.l.b16 %v6595
    %v6690 = vunpack.c.h.b16 %v6595
    %v6691 = vunpack.c.l.b16 %v6596
    %v6692 = vunpack.c.h.b16 %v6596
    %v6693 = vpack.c.b16 %v6633, %v6629
    %v6694 = vpack.c.b16 %v6634, %v6630
    %v6695 = vpack.c.b16 %v6635, %v6631
    %v6696 = vpack.c.b16 %v6636, %v6632
    %v6697 = vpack.c.b16 %v6641, %v6637
    %v6698 = vpack.c.b16 %v6642, %v6638
    %v6699 = vpack.c.b16 %v6643, %v6639
    %v6700 = vpack.c.b16 %v6644, %v6640
    %v6701 = vpack.c.b16 %v6649, %v6645
    %v6702 = vpack.c.b16 %v6650, %v6646
    %v6703 = vpack.c.b16 %v6651, %v6647
    %v6704 = vpack.c.b16 %v6652, %v6648
    %v6705 = vpack.c.b16 %v6657, %v6653
    %v6706 = vpack.c.b16 %v6658, %v6654
    %v6707 = vpack.c.b16 %v6659, %v6655
    %v6708 = vpack.c.b16 %v6660, %v6656
    %v6709 = vpack.c.b16 %v6665, %v6661
    %v6710 = vpack.c.b16 %v6666, %v6662
    %v6711 = vpack.c.b16 %v6667, %v6663
    %v6712 = vpack.c.b16 %v6668, %v6664
    %v6713 = vpack.c.b16 %v6673, %v6669
    %v6714 = vpack.c.b16 %v6674, %v6670
    %v6715 = vpack.c.b16 %v6675, %v6671
    %v6716 = vpack.c.b16 %v6676, %v6672
    %v6717 = vpack.c.b16 %v6681, %v6677
    %v6718 = vpack.c.b16 %v6682, %v6678
    %v6719 = vpack.c.b16 %v6683, %v6679
    %v6720 = vpack.c.b16 %v6684, %v6680
    %v6721 = vpack.c.b16 %v6689, %v6685
    %v6722 = vpack.c.b16 %v6690, %v6686
    %v6723 = vpack.c.b16 %v6691, %v6687
    %v6724 = vpack.c.b16 %v6692, %v6688
    %6757 = vmatprep.subr.bf16.mxu0 %v6722
    %6758 = vmatpush1.bf16.msra.mxu0 %v6721
    %6759 = vmatprep.subr.bf16.mxu0 %v6718
    %6760 = vmatpush1.bf16.msra.mxu0 %v6717
    %6761 = vmatprep.subr.bf16.mxu0 %v6714
    %6762 = vmatpush1.bf16.msra.mxu0 %v6713
    %6763 = vmatprep.subr.bf16.mxu0 %v6710
    %6764 = vmatpush1.bf16.msra.mxu0 %v6709
    %6765 = vmatprep.subr.bf16.mxu0 %v6706
    %6766 = vmatpush1.bf16.msra.mxu0 %v6705
    %6767 = vmatprep.subr.bf16.mxu0 %v6702
    %6768 = vmatpush1.bf16.msra.mxu0 %v6701
    %6769 = vmatprep.subr.bf16.mxu0 %v6698
    %6770 = vmatpush1.bf16.msra.mxu0 %v6697
    %6771 = vmatprep.subr.bf16.mxu0 %v6694
    %6772 = vmatpush1.bf16.msra.mxu0 %v6693
    %6773 = vmatprep.subr.bf16.mxu0 0
    %6774 = vmatpush2.bf16.msra.mxu0 0
    %6775 = vmatprep.subr.bf16.mxu0 0
    %6776 = vmatpush2.bf16.msra.mxu0 0
    %6777 = vmatprep.subr.bf16.mxu0 0
    %6778 = vmatpush2.bf16.msra.mxu0 0
    %6779 = vmatprep.subr.bf16.mxu0 0
    %6780 = vmatpush2.bf16.msra.mxu0 0
    %6781 = vmatprep.subr.bf16.mxu0 0
    %6782 = vmatpush2.bf16.msra.mxu0 0
    %6783 = vmatprep.subr.bf16.mxu0 0
    %6784 = vmatpush2.bf16.msra.mxu0 0
    %6785 = vmatprep.subr.bf16.mxu0 0
    %6786 = vmatpush2.bf16.msra.mxu0 0
    %6787 = vmatprep.subr.bf16.mxu0 0
    %6788 = vmatpush2.bf16.msra.mxu0 0
    %6789 = vmatprep.mubr.bf16.mxu0 0
    %6790 = vmatmul.mubr.bf16.gmra.mxu0 %v6564
    %v6791 = vpop.f32.mrf.mxu0
    %v6792 = vadd.f32 0.0, %v6791
    %v6793 = vpop.f32.mrf.mxu0
    %v6794 = vadd.f32 0.0, %v6793
    %v6795 = vpop.f32.mrf.mxu0
    %v6796 = vadd.f32 0.0, %v6795
    %v6797 = vpop.f32.mrf.mxu0
    %v6798 = vadd.f32 0.0, %v6797
    %6799 = vdwg.mxu0
    %6800 = vmatprep.subr.bf16.mxu0 %v6724
    %6801 = vmatpush1.bf16.msra.mxu0 %v6723
    %6802 = vmatprep.subr.bf16.mxu0 %v6720
    %6803 = vmatpush1.bf16.msra.mxu0 %v6719
    %6804 = vmatprep.subr.bf16.mxu0 %v6716
    %6805 = vmatpush1.bf16.msra.mxu0 %v6715
    %6806 = vmatprep.subr.bf16.mxu0 %v6712
    %6807 = vmatpush1.bf16.msra.mxu0 %v6711
    %6808 = vmatprep.subr.bf16.mxu0 %v6708
    %6809 = vmatpush1.bf16.msra.mxu0 %v6707
    %6810 = vmatprep.subr.bf16.mxu0 %v6704
    %6811 = vmatpush1.bf16.msra.mxu0 %v6703
    %6812 = vmatprep.subr.bf16.mxu0 %v6700
    %6813 = vmatpush1.bf16.msra.mxu0 %v6699
    %6814 = vmatprep.subr.bf16.mxu0 %v6696
    %6815 = vmatpush1.bf16.msra.mxu0 %v6695
    %6816 = vmatprep.subr.bf16.mxu0 0
    %6817 = vmatpush2.bf16.msra.mxu0 0
    %6818 = vmatprep.subr.bf16.mxu0 0
    %6819 = vmatpush2.bf16.msra.mxu0 0
    %6820 = vmatprep.subr.bf16.mxu0 0
    %6821 = vmatpush2.bf16.msra.mxu0 0
    %6822 = vmatprep.subr.bf16.mxu0 0
    %6823 = vmatpush2.bf16.msra.mxu0 0
    %6824 = vmatprep.subr.bf16.mxu0 0
    %6825 = vmatpush2.bf16.msra.mxu0 0
    %6826 = vmatprep.subr.bf16.mxu0 0
    %6827 = vmatpush2.bf16.msra.mxu0 0
    %6828 = vmatprep.subr.bf16.mxu0 0
    %6829 = vmatpush2.bf16.msra.mxu0 0
    %6830 = vmatprep.subr.bf16.mxu0 0
    %6831 = vmatpush2.bf16.msra.mxu0 0
    %6832 = vmatprep.mubr.bf16.mxu0 0
    %6833 = vmatmul.mubr.bf16.gmra.mxu0 %v6564
    %v6834 = vpop.f32.mrf.mxu0
    %v6835 = vadd.f32 0.0, %v6834
    %v6836 = vpop.f32.mrf.mxu0
    %v6837 = vadd.f32 0.0, %v6836
    %v6838 = vpop.f32.mrf.mxu0
    %v6839 = vadd.f32 0.0, %v6838
    %v6840 = vpop.f32.mrf.mxu0
    %v6841 = vadd.f32 0.0, %v6840
    %6842 = vdwg.mxu0
    %v6843 = vadd.f32 %v6556, %v6792
    %v6844 = vadd.f32 %v6557, %v6794
    %v6845 = vadd.f32 %v6558, %v6835
    %v6846 = vadd.f32 %v6559, %v6837
    %v6847 = vadd.f32 %v6560, %v6796
    %v6848 = vadd.f32 %v6561, %v6798
    %v6849 = vadd.f32 %v6562, %v6839
    %v6850 = vadd.f32 %v6563, %v6841
    %v6851 = vxor.u32 %v6843, 2147483648
    %v6852 = vxor.u32 %v6847, 2147483648
    %v6853 = vmul.f32 %v6851, 1.442695
    %v6854 = vpow.pop %v6853
    %v6855 = vmul.f32 %v6852, 1.442695
    %v6856 = vpow.pop %v6855
    %v6857 = vadd.f32 %v6854, 1.0
    %v6858 = vadd.f32 %v6856, 1.0
    %v6859 = vrcp.pop %v6857
    %v6860 = vmul.f32 1.0, %v6859
    %v6861 = vrcp.pop %v6858
    %v6862 = vmul.f32 1.0, %v6861
    %v6863 = vxor.u32 %v6844, 2147483648
    %v6864 = vxor.u32 %v6848, 2147483648
    %v6865 = vmul.f32 %v6863, 1.442695
    %v6866 = vpow.pop %v6865
    %v6867 = vmul.f32 %v6864, 1.442695
    %v6868 = vpow.pop %v6867
    %v6869 = vadd.f32 %v6866, 1.0
    %v6870 = vadd.f32 %v6868, 1.0
    %v6871 = vrcp.pop %v6869
    %v6872 = vmul.f32 1.0, %v6871
    %v6873 = vrcp.pop %v6870
    %v6874 = vmul.f32 1.0, %v6873
    %v6875 = vtanh.pop %v6845
    %v6876 = vtanh.pop %v6849
    %v6877 = vxor.u32 %v6846, 2147483648
    %v6878 = vxor.u32 %v6850, 2147483648
    %v6879 = vmul.f32 %v6877, 1.442695
    %v6880 = vpow.pop %v6879
    %v6881 = vmul.f32 %v6878, 1.442695
    %v6882 = vpow.pop %v6881
    %v6883 = vadd.f32 %v6880, 1.0
    %v6884 = vadd.f32 %v6882, 1.0
    %v6885 = vrcp.pop %v6883
    %v6886 = vmul.f32 1.0, %v6885
    %v6887 = vrcp.pop %v6884
    %v6888 = vmul.f32 1.0, %v6887
    %v6889 = vld [vmem:[#allocation5] sm:$0xff]
    %v6890 = vld [vmem:[#allocation5 + $0x8] sm:$0xff]
    %v6891 = vmul.f32 %v6872, %v6889
    %v6892 = vmul.f32 %v6874, %v6890
    %v6893 = vmul.f32 %v6860, %v6875
    %v6894 = vmul.f32 %v6862, %v6876
    %v6895 = vadd.f32 %v6891, %v6893
    %v6896 = vadd.f32 %v6892, %v6894
    %v6897 = vtanh.pop %v6895
    %v6898 = vtanh.pop %v6896
    %v6899 = vmul.f32 %v6886, %v6897
    %v6900 = vmul.f32 %v6888, %v6898
    %6901 = vst [vmem:[#allocation5] sm:$0xff] %v6895
    %6902 = vst [vmem:[#allocation5 + $0x8] sm:$0xff] %v6896
    %6903 = vst [vmem:[#allocation4] sm:$0xff] %v6899
    %6904 = vst [vmem:[#allocation4 + $0x8] sm:$0xff] %v6900
    %v6905 = vld [vmem:[#allocation4] sm:$0xff]
    %v6906 = vld [vmem:[#allocation4 + $0x8] sm:$0xff]
    %v6907 = vpack.c.bf16 %v6906, %v6905
    %v6908 = vld [vmem:[%s7] sm:$0xff]
    %v6909 = vld [vmem:[%s7 + $0x8] sm:$0xff]
    %v6910 = vld [vmem:[%s7 + $0x10] sm:$0xff]
    %v6911 = vld [vmem:[%s7 + $0x18] sm:$0xff]
    %v6912 = vld [vmem:[%s7 + $0x20] sm:$0xff]
    %v6913 = vld [vmem:[%s7 + $0x28] sm:$0xff]
    %v6914 = vld [vmem:[%s7 + $0x30] sm:$0xff]
    %v6915 = vld [vmem:[%s7 + $0x38] sm:$0xff]
    %v6916 = vld [vmem:[%s7 + $0x40] sm:$0xff]
    %v6917 = vld [vmem:[%s7 + $0x48] sm:$0xff]
    %v6918 = vld [vmem:[%s7 + $0x50] sm:$0xff]
    %v6919 = vld [vmem:[%s7 + $0x58] sm:$0xff]
    %v6920 = vld [vmem:[%s7 + $0x60] sm:$0xff]
    %v6921 = vld [vmem:[%s7 + $0x68] sm:$0xff]
    %v6922 = vld [vmem:[%s7 + $0x70] sm:$0xff]
    %v6923 = vld [vmem:[%s7 + $0x78] sm:$0xff]
    %v6924 = vld [vmem:[%s8] sm:$0x3]
    %v6926 = vlaneseq
    %v6927 = vshrl.u32 %v6926, 7
    %v6928 = vsub.s32 0, %v6927
    %v6929 = vrot.slane %v6924, %v6928
    %v6930 = vlaneseq
    %v6931 = vshrl.u32 %v6930, 7
    %v6932 = vsub.s32 1, %v6931
    %v6933 = vrot.slane %v6924, %v6932
    %v6952 = vunpack.c.l.b16 %v6908
    %v6953 = vunpack.c.h.b16 %v6908
    %v6954 = vunpack.c.l.b16 %v6909
    %v6955 = vunpack.c.h.b16 %v6909
    %v6956 = vunpack.c.l.b16 %v6910
    %v6957 = vunpack.c.h.b16 %v6910
    %v6958 = vunpack.c.l.b16 %v6911
    %v6959 = vunpack.c.h.b16 %v6911
    %v6960 = vunpack.c.l.b16 %v6912
    %v6961 = vunpack.c.h.b16 %v6912
    %v6962 = vunpack.c.l.b16 %v6913
    %v6963 = vunpack.c.h.b16 %v6913
    %v6964 = vunpack.c.l.b16 %v6914
    %v6965 = vunpack.c.h.b16 %v6914
    %v6966 = vunpack.c.l.b16 %v6915
    %v6967 = vunpack.c.h.b16 %v6915
    %v6968 = vunpack.c.l.b16 %v6916
    %v6969 = vunpack.c.h.b16 %v6916
    %v6970 = vunpack.c.l.b16 %v6917
    %v6971 = vunpack.c.h.b16 %v6917
    %v6972 = vunpack.c.l.b16 %v6918
    %v6973 = vunpack.c.h.b16 %v6918
    %v6974 = vunpack.c.l.b16 %v6919
    %v6975 = vunpack.c.h.b16 %v6919
    %v6976 = vunpack.c.l.b16 %v6920
    %v6977 = vunpack.c.h.b16 %v6920
    %v6978 = vunpack.c.l.b16 %v6921
    %v6979 = vunpack.c.h.b16 %v6921
    %v6980 = vunpack.c.l.b16 %v6922
    %v6981 = vunpack.c.h.b16 %v6922
    %v6982 = vunpack.c.l.b16 %v6923
    %v6983 = vunpack.c.h.b16 %v6923
    %v6984 = vpack.c.b16 %v6954, %v6952
    %v6985 = vpack.c.b16 %v6955, %v6953
    %v6986 = vpack.c.b16 %v6958, %v6956
    %v6987 = vpack.c.b16 %v6959, %v6957
    %v6988 = vpack.c.b16 %v6962, %v6960
    %v6989 = vpack.c.b16 %v6963, %v6961
    %v6990 = vpack.c.b16 %v6966, %v6964
    %v6991 = vpack.c.b16 %v6967, %v6965
    %v6992 = vpack.c.b16 %v6970, %v6968
    %v6993 = vpack.c.b16 %v6971, %v6969
    %v6994 = vpack.c.b16 %v6974, %v6972
    %v6995 = vpack.c.b16 %v6975, %v6973
    %v6996 = vpack.c.b16 %v6978, %v6976
    %v6997 = vpack.c.b16 %v6979, %v6977
    %v6998 = vpack.c.b16 %v6982, %v6980
    %v6999 = vpack.c.b16 %v6983, %v6981
    %7016 = vmatprep.subr.bf16.mxu0 %v6999
    %7017 = vmatpush1.bf16.msra.mxu0 %v6998
    %7018 = vmatprep.subr.bf16.mxu0 %v6997
    %7019 = vmatpush1.bf16.msra.mxu0 %v6996
    %7020 = vmatprep.subr.bf16.mxu0 %v6995
    %7021 = vmatpush1.bf16.msra.mxu0 %v6994
    %7022 = vmatprep.subr.bf16.mxu0 %v6993
    %7023 = vmatpush1.bf16.msra.mxu0 %v6992
    %7024 = vmatprep.subr.bf16.mxu0 %v6991
    %7025 = vmatpush1.bf16.msra.mxu0 %v6990
    %7026 = vmatprep.subr.bf16.mxu0 %v6989
    %7027 = vmatpush1.bf16.msra.mxu0 %v6988
    %7028 = vmatprep.subr.bf16.mxu0 %v6987
    %7029 = vmatpush1.bf16.msra.mxu0 %v6986
    %7030 = vmatprep.subr.bf16.mxu0 %v6985
    %7031 = vmatpush1.bf16.msra.mxu0 %v6984
    %7032 = vmatprep.subr.bf16.mxu0 0
    %7033 = vmatpush2.bf16.msra.mxu0 0
    %7034 = vmatprep.subr.bf16.mxu0 0
    %7035 = vmatpush2.bf16.msra.mxu0 0
    %7036 = vmatprep.subr.bf16.mxu0 0
    %7037 = vmatpush2.bf16.msra.mxu0 0
    %7038 = vmatprep.subr.bf16.mxu0 0
    %7039 = vmatpush2.bf16.msra.mxu0 0
    %7040 = vmatprep.subr.bf16.mxu0 0
    %7041 = vmatpush2.bf16.msra.mxu0 0
    %7042 = vmatprep.subr.bf16.mxu0 0
    %7043 = vmatpush2.bf16.msra.mxu0 0
    %7044 = vmatprep.subr.bf16.mxu0 0
    %7045 = vmatpush2.bf16.msra.mxu0 0
    %7046 = vmatprep.subr.bf16.mxu0 0
    %7047 = vmatpush2.bf16.msra.mxu0 0
    %7048 = vmatprep.mubr.bf16.mxu0 0
    %7049 = vmatmul.mubr.bf16.gmra.mxu0 %v6907
    %v7050 = vpop.f32.mrf.mxu0
    %v7051 = vadd.f32 %v6929, %v7050
    %v7052 = vpop.f32.mrf.mxu0
    %v7053 = vadd.f32 %v6933, %v7052
    %v7054 = vpop.f32.mrf.mxu0
    %v7055 = vadd.f32 %v6929, %v7054
    %v7056 = vpop.f32.mrf.mxu0
    %v7057 = vadd.f32 %v6933, %v7056
    %7058 = vdwg.mxu0
    %7059 = vst [vmem:[#allocation6] sm:$0xff] %v7051
    %7060 = vst [vmem:[#allocation6 + $0x8] sm:$0xff] %v7053
    %7061 = vst [vmem:[#allocation6 + $0x10] sm:$0xff] %v7055
    %7062 = vst [vmem:[#allocation6 + $0x18] sm:$0xff] %v7057
    // Predicated region
    $region38: #{lstm_word_net_forward.1} parent=1 // pred_check
      _
    $region39: #{lstm_word_net_forward.1} parent=1 // pred_check_branch
      %7064 = sbr.rel (0) target = $region41
    $region40: #{lstm_word_net_forward.1} parent=1 // pred_region
      %s7066 = ssub.s32 512, 512
      %7067 = vsyncadd [#allocation7], %s7066
      %s7068 = sshll.u32 [#allocation6], 4
      %s7069 = int_to_ptr.vmem [resolvable:$true] %s7068
      %7074 = dma.vmem_to_hbm [thread:$0]  %s7069, 512, %s9, [#allocation7], 256, 256, 16
    $region41: #{lstm_word_net_forward.1} parent=1 // pred_fallthru
      _
    // Predicated region
    $region42: #{lstm_word_net_forward.1} parent=1 // pred_check
      _
    $region43: #{lstm_word_net_forward.1} parent=1 // pred_check_branch
      %7076 = sbr.rel (0) target = $region45
    $region44: #{lstm_word_net_forward.1} parent=1 // pred_region
      %7077 = dma.done [#allocation7], 512
    $region45: #{lstm_word_net_forward.1} parent=1 // pred_fallthru
      _
    %7078 = vsyncpa [#allocation7], 1

</llo_original>
